<compile_context>
chip_gen: v7x
topology: tpu7x:2x2x1
jax: 0.10.0
libtpu: 0.0.40
codegen_flags: <defaults>
</compile_context>

<pallas_src>
import math
from functools import partial

import jax
import jax.numpy as jnp
from jax.experimental import pallas as pl
from jax.experimental.pallas import tpu as pltpu

D_IN = 57     # input feature dim
D_PAD = 64    # padded input feature dim (sublane/lane friendly)
D1 = 256      # liner_1 out
D2 = 512      # liner_2 out / embed_dim
D_OUT = 1     # liner_3 out


def mlp_kernel(x_ref, w1_ref, b1_ref, w2_ref, b2_ref,
               wq_ref, bq_ref, wk_ref, bk_ref, wv_ref, bv_ref,
               wo_ref, bo_ref, w3_ref, b3_ref, o_ref, *, tb, seq_len):
    m = tb * seq_len
    bf16 = jnp.bfloat16

    # (TB, L, D_PAD) -> (TB*L, D_PAD): flatten so every matmul has M = TB*L rows.
    x = x_ref[...].reshape(m, D_PAD).astype(bf16)

    # liner_1 + ReLU
    h1 = jnp.dot(x, w1_ref[...], preferred_element_type=jnp.float32) + b1_ref[...]
    h1 = jnp.maximum(h1, 0.0).astype(bf16)                          # (M, 256)

    # liner_2 + ReLU  (kept in f32 for the residual add)
    h2 = jnp.dot(h1, w2_ref[...], preferred_element_type=jnp.float32) + b2_ref[...]
    h2 = jnp.maximum(h2, 0.0)                                       # (M, 512) f32
    h2b = h2.astype(bf16)

    # Single-head self-attention. wq/bq already carry the 1/sqrt(512) scale.
    q = jnp.dot(h2b, wq_ref[...], preferred_element_type=jnp.float32) + bq_ref[...]
    k = jnp.dot(h2b, wk_ref[...], preferred_element_type=jnp.float32) + bk_ref[...]
    v = jnp.dot(h2b, wv_ref[...], preferred_element_type=jnp.float32) + bv_ref[...]

    qb = q.astype(bf16).reshape(tb, seq_len, D2)
    kb = k.astype(bf16).reshape(tb, seq_len, D2)
    vb = v.astype(bf16).reshape(tb, seq_len, D2)

    scores = jnp.einsum('bld,bmd->blm', qb, kb,
                        preferred_element_type=jnp.float32)          # (TB, L, L)
    scores = scores - jnp.max(scores, axis=-1, keepdims=True)
    e = jnp.exp(scores)
    attn = (e / jnp.sum(e, axis=-1, keepdims=True)).astype(bf16)     # (TB, L, L)

    ctx = jnp.einsum('blm,bmd->bld', attn, vb,
                     preferred_element_type=jnp.float32)             # (TB, L, 512)
    ctx = ctx.reshape(m, D2).astype(bf16)
    attn_out = jnp.dot(ctx, wo_ref[...], preferred_element_type=jnp.float32) + bo_ref[...]

    # residual + liner_3 as VPU multiply + lane reduction (avoids an N=1 MXU pass).
    y = (h2 + attn_out).reshape(tb, seq_len, D2)                     # (TB, L, 512) f32
    out = jnp.sum(y * w3_ref[...], axis=-1) + b3_ref[...]            # (TB, L)
    o_ref[...] = out


def mlp_forward(x, prep_params, *, target_rows=256, single_buffer_weights=True):
    """x: (B, L, 57) float32 -> (B, L, 1) float32."""
    B, L, d_in = x.shape
    assert d_in == D_IN

    # Batch enough sequences per grid step so TB*L ~ target_rows (>=256 rows on v6e/v7x).
    TB = max(1, min(B, (target_rows + L - 1) // L))
    Bp = ((B + TB - 1) // TB) * TB
    grid = (Bp // TB,)

    # Pad batch to a multiple of TB and features 57 -> 64 with zeros.
    xp = jnp.pad(x, ((0, Bp - B), (0, 0), (0, D_PAD - D_IN)))

    # Weights never change across grid steps -> single buffer (no double-buffering).
    weight_pipeline = pl.Buffered(1) if single_buffer_weights else None

    def w_spec(arr):
        nd = arr.ndim
        return pl.BlockSpec(arr.shape, lambda b, _nd=nd: (0,) * _nd,
                            pipeline_mode=weight_pipeline)

    in_specs = [pl.BlockSpec((TB, L, D_PAD), lambda b: (b, 0, 0))]
    in_specs += [w_spec(w) for w in prep_params]

    grid_spec = pltpu.PrefetchScalarGridSpec(
        num_scalar_prefetch=0,
        grid=grid,
        in_specs=in_specs,
        out_specs=pl.BlockSpec((TB, L), lambda b: (b, 0)),
    )

    out = pl.pallas_call(
        partial(mlp_kernel, tb=TB, seq_len=L),
        out_shape=jax.ShapeDtypeStruct((Bp, L), jnp.float32),
        grid_spec=grid_spec,
        compiler_params=pltpu.CompilerParams(
            dimension_semantics=("parallel",),
            vmem_limit_bytes=48 << 20,   # leave headroom on v7x (64 MiB physical VMEM)
        ),
    )(xp, *prep_params)

    return out[:B].reshape(B, L, D_OUT)


def prepare_params(params):
    """Pad/split/scale/cast the f32 module parameters into kernel-ready form."""
    (w1, b1, w2, b2, wqkv, bqkv, wo, bo, w3, b3) = params
    bf16 = jnp.bfloat16

    w1p = jnp.pad(w1, ((0, D_PAD - D_IN), (0, 0)))        # (64, 256), zero rows for padding

    # Split fused QKV and fold the 1/sqrt(512) attention scale into wq / bq.
    scale = 1.0 / math.sqrt(D2)
    wq, wk, wv = wqkv[:, :D2], wqkv[:, D2:2 * D2], wqkv[:, 2 * D2:]
    bq, bk, bv = bqkv[:D2], bqkv[D2:2 * D2], bqkv[2 * D2:]
    wq = wq * scale
    bq = bq * scale

    return (
        w1p.astype(bf16), b1.reshape(1, D1).astype(jnp.float32),
        w2.astype(bf16), b2.reshape(1, D2).astype(jnp.float32),
        wq.astype(bf16), bq.reshape(1, D2).astype(jnp.float32),
        wk.astype(bf16), bk.reshape(1, D2).astype(jnp.float32),
        wv.astype(bf16), bv.reshape(1, D2).astype(jnp.float32),
        wo.astype(bf16), bo.reshape(1, D2).astype(jnp.float32),
        w3.reshape(1, D2).astype(jnp.float32),             # used on the VPU, keep f32
        b3.reshape(1, 1).astype(jnp.float32),
    )


def reference_forward(x, params):
    """Pure-JAX f32 reference matching the PyTorch module semantics."""
    (w1, b1, w2, b2, wqkv, bqkv, wo, bo, w3, b3) = params
    h1 = jax.nn.relu(x @ w1 + b1)
    h2 = jax.nn.relu(h1 @ w2 + b2)
    qkv = h2 @ wqkv + bqkv
    q, k, v = qkv[..., :D2], qkv[..., D2:2 * D2], qkv[..., 2 * D2:]
    scores = jnp.einsum('bld,bmd->blm', q, k) / math.sqrt(D2)
    attn = jax.nn.softmax(scores, axis=-1)
    attn_out = jnp.einsum('blm,bmd->bld', attn, v) @ wo + bo
    y = h2 + attn_out
    return y @ w3 + b3


def init_params(key):
    ks = jax.random.split(key, 10)

    def lin(kw, kb, fan_in, fan_out):
        bound = 1.0 / math.sqrt(fan_in)
        w = jax.random.uniform(kw, (fan_in, fan_out), jnp.float32, -bound, bound)
        b = jax.random.uniform(kb, (fan_out,), jnp.float32, -bound, bound)
        return w, b

    w1, b1 = lin(ks[0], ks[1], D_IN, D1)
    w2, b2 = lin(ks[2], ks[3], D1, D2)
    # MultiheadAttention: in_proj (512 -> 3*512), out_proj (512 -> 512)
    wqkv, bqkv = lin(ks[4], ks[5], D2, 3 * D2)
    wo, bo = lin(ks[6], ks[7], D2, D2)
    w3, b3 = lin(ks[8], ks[9], D2, D_OUT)
    return (w1, b1, w2, b2, wqkv, bqkv, wo, bo, w3, b3)


if __name__ == "__main__":
    key = jax.random.PRNGKey(0)
    kx, kp = jax.random.split(key)

    B, L = 2, 8  # small batch / sequence
    x = jax.random.normal(kx, (B, L, D_IN), jnp.float32)
    params = init_params(kp)
    prep = prepare_params(params)

    try:
        out = jax.block_until_ready(mlp_forward(x, prep))
    except Exception:
        # Fallback if this JAX build rejects single-buffered (pl.Buffered(1)) weight specs.
        out = jax.block_until_ready(mlp_forward(x, prep, single_buffer_weights=False))

    ref = reference_forward(x, params)
    assert out.shape == (B, L, D_OUT)
    # Tolerance relaxed for bf16 weights/activations with f32 accumulation.
    assert jnp.allclose(out, ref, atol=5e-2, rtol=5e-2), "mismatch vs pure-JAX reference"

    print("KERNEL_OK")
</pallas_src>

<mosaic_0001>
module attributes {stable_mosaic.version = 11 : i64} {
  func.func @mlp_kernel(%arg0: i32, %arg1: memref<2x8x64xf32, #tpu.memory_space<vmem>>, %arg2: memref<64x256xbf16, #tpu.memory_space<vmem>>, %arg3: memref<1x256xf32, #tpu.memory_space<vmem>>, %arg4: memref<256x512xbf16, #tpu.memory_space<vmem>>, %arg5: memref<1x512xf32, #tpu.memory_space<vmem>>, %arg6: memref<512x512xbf16, #tpu.memory_space<vmem>>, %arg7: memref<1x512xf32, #tpu.memory_space<vmem>>, %arg8: memref<512x512xbf16, #tpu.memory_space<vmem>>, %arg9: memref<1x512xf32, #tpu.memory_space<vmem>>, %arg10: memref<512x512xbf16, #tpu.memory_space<vmem>>, %arg11: memref<1x512xf32, #tpu.memory_space<vmem>>, %arg12: memref<512x512xbf16, #tpu.memory_space<vmem>>, %arg13: memref<1x512xf32, #tpu.memory_space<vmem>>, %arg14: memref<1x512xf32, #tpu.memory_space<vmem>>, %arg15: memref<1x1xf32, #tpu.memory_space<vmem>>, %arg16: memref<2x8xf32, #tpu.memory_space<vmem>>) attributes {dimension_semantics = [#tpu.dimension_semantics<parallel>], iteration_bounds = array<i64: 1>, scalar_prefetch = 0 : i64, scratch_operands = 0 : i64, tpu.core_type = #tpu.core_type<tc>, window_params = [{transform_indices = @transform_0, window_bounds = array<i64: 2, 8, 64>}, {pipeline_mode = #tpu.pipeline_mode<synchronous>, transform_indices = @transform_1, window_bounds = array<i64: 64, 256>}, {pipeline_mode = #tpu.pipeline_mode<synchronous>, transform_indices = @transform_2, window_bounds = array<i64: 1, 256>}, {pipeline_mode = #tpu.pipeline_mode<synchronous>, transform_indices = @transform_3, window_bounds = array<i64: 256, 512>}, {pipeline_mode = #tpu.pipeline_mode<synchronous>, transform_indices = @transform_4, window_bounds = array<i64: 1, 512>}, {pipeline_mode = #tpu.pipeline_mode<synchronous>, transform_indices = @transform_5, window_bounds = array<i64: 512, 512>}, {pipeline_mode = #tpu.pipeline_mode<synchronous>, transform_indices = @transform_6, window_bounds = array<i64: 1, 512>}, {pipeline_mode = #tpu.pipeline_mode<synchronous>, transform_indices = @transform_7, window_bounds = array<i64: 512, 512>}, {pipeline_mode = #tpu.pipeline_mode<synchronous>, transform_indices = @transform_8, window_bounds = array<i64: 1, 512>}, {pipeline_mode = #tpu.pipeline_mode<synchronous>, transform_indices = @transform_9, window_bounds = array<i64: 512, 512>}, {pipeline_mode = #tpu.pipeline_mode<synchronous>, transform_indices = @transform_10, window_bounds = array<i64: 1, 512>}, {pipeline_mode = #tpu.pipeline_mode<synchronous>, transform_indices = @transform_11, window_bounds = array<i64: 512, 512>}, {pipeline_mode = #tpu.pipeline_mode<synchronous>, transform_indices = @transform_12, window_bounds = array<i64: 1, 512>}, {pipeline_mode = #tpu.pipeline_mode<synchronous>, transform_indices = @transform_13, window_bounds = array<i64: 1, 512>}, {pipeline_mode = #tpu.pipeline_mode<synchronous>, transform_indices = @transform_14, window_bounds = array<i64: 1, 1>}, {transform_indices = @transform_15, window_bounds = array<i64: 2, 8>}]} {
    %c0 = arith.constant 0 : index
    %c0_0 = arith.constant 0 : index
    %c0_1 = arith.constant 0 : index
    %0 = vector.load %arg1[%c0, %c0_0, %c0_1] : memref<2x8x64xf32, #tpu.memory_space<vmem>>, vector<2x8x64xf32>
    %1 = vector.shape_cast %0 : vector<2x8x64xf32> to vector<16x64xf32>
    %2 = arith.truncf %1 : vector<16x64xf32> to vector<16x64xbf16>
    %c0_2 = arith.constant 0 : index
    %c0_3 = arith.constant 0 : index
    %3 = vector.load %arg2[%c0_2, %c0_3] : memref<64x256xbf16, #tpu.memory_space<vmem>>, vector<64x256xbf16>
    %cst = arith.constant dense<0.000000e+00> : vector<16x256xf32>
    %4 = tpu.matmul %2, %3, %cst {dimension_numbers = #tpu.dot_dimension_numbers<[1], [0], [0], [1], [0, 0, 1, 1], [], []>} : vector<16x64xbf16>, vector<64x256xbf16>, vector<16x256xf32> -> vector<16x256xf32>
    %c0_4 = arith.constant 0 : index
    %c0_5 = arith.constant 0 : index
    %5 = vector.load %arg3[%c0_4, %c0_5] : memref<1x256xf32, #tpu.memory_space<vmem>>, vector<1x256xf32>
    %6 = vector.broadcast %5 : vector<1x256xf32> to vector<16x256xf32>
    %7 = arith.addf %4, %6 : vector<16x256xf32>
    %cst_6 = arith.constant 0.000000e+00 : f32
    %8 = vector.broadcast %cst_6 : f32 to vector<16x256xf32>
    %9 = arith.maximumf %7, %8 : vector<16x256xf32>
    %10 = arith.truncf %9 : vector<16x256xf32> to vector<16x256xbf16>
    %c0_7 = arith.constant 0 : index
    %c0_8 = arith.constant 0 : index
    %11 = vector.load %arg4[%c0_7, %c0_8] : memref<256x512xbf16, #tpu.memory_space<vmem>>, vector<256x512xbf16>
    %cst_9 = arith.constant dense<0.000000e+00> : vector<16x512xf32>
    %12 = tpu.matmul %10, %11, %cst_9 {dimension_numbers = #tpu.dot_dimension_numbers<[1], [0], [0], [1], [0, 0, 1, 1], [], []>} : vector<16x256xbf16>, vector<256x512xbf16>, vector<16x512xf32> -> vector<16x512xf32>
    %c0_10 = arith.constant 0 : index
    %c0_11 = arith.constant 0 : index
    %13 = vector.load %arg5[%c0_10, %c0_11] : memref<1x512xf32, #tpu.memory_space<vmem>>, vector<1x512xf32>
    %14 = vector.broadcast %13 : vector<1x512xf32> to vector<16x512xf32>
    %15 = arith.addf %12, %14 : vector<16x512xf32>
    %cst_12 = arith.constant 0.000000e+00 : f32
    %16 = vector.broadcast %cst_12 : f32 to vector<16x512xf32>
    %17 = arith.maximumf %15, %16 : vector<16x512xf32>
    %18 = arith.truncf %17 : vector<16x512xf32> to vector<16x512xbf16>
    %c0_13 = arith.constant 0 : index
    %c0_14 = arith.constant 0 : index
    %19 = vector.load %arg6[%c0_13, %c0_14] : memref<512x512xbf16, #tpu.memory_space<vmem>>, vector<512x512xbf16>
    %cst_15 = arith.constant dense<0.000000e+00> : vector<16x512xf32>
    %20 = tpu.matmul %18, %19, %cst_15 {dimension_numbers = #tpu.dot_dimension_numbers<[1], [0], [0], [1], [0, 0, 1, 1], [], []>} : vector<16x512xbf16>, vector<512x512xbf16>, vector<16x512xf32> -> vector<16x512xf32>
    %c0_16 = arith.constant 0 : index
    %c0_17 = arith.constant 0 : index
    %21 = vector.load %arg7[%c0_16, %c0_17] : memref<1x512xf32, #tpu.memory_space<vmem>>, vector<1x512xf32>
    %22 = vector.broadcast %21 : vector<1x512xf32> to vector<16x512xf32>
    %23 = arith.addf %20, %22 : vector<16x512xf32>
    %c0_18 = arith.constant 0 : index
    %c0_19 = arith.constant 0 : index
    %24 = vector.load %arg8[%c0_18, %c0_19] : memref<512x512xbf16, #tpu.memory_space<vmem>>, vector<512x512xbf16>
    %cst_20 = arith.constant dense<0.000000e+00> : vector<16x512xf32>
    %25 = tpu.matmul %18, %24, %cst_20 {dimension_numbers = #tpu.dot_dimension_numbers<[1], [0], [0], [1], [0, 0, 1, 1], [], []>} : vector<16x512xbf16>, vector<512x512xbf16>, vector<16x512xf32> -> vector<16x512xf32>
    %c0_21 = arith.constant 0 : index
    %c0_22 = arith.constant 0 : index
    %26 = vector.load %arg9[%c0_21, %c0_22] : memref<1x512xf32, #tpu.memory_space<vmem>>, vector<1x512xf32>
    %27 = vector.broadcast %26 : vector<1x512xf32> to vector<16x512xf32>
    %28 = arith.addf %25, %27 : vector<16x512xf32>
    %c0_23 = arith.constant 0 : index
    %c0_24 = arith.constant 0 : index
    %29 = vector.load %arg10[%c0_23, %c0_24] : memref<512x512xbf16, #tpu.memory_space<vmem>>, vector<512x512xbf16>
    %cst_25 = arith.constant dense<0.000000e+00> : vector<16x512xf32>
    %30 = tpu.matmul %18, %29, %cst_25 {dimension_numbers = #tpu.dot_dimension_numbers<[1], [0], [0], [1], [0, 0, 1, 1], [], []>} : vector<16x512xbf16>, vector<512x512xbf16>, vector<16x512xf32> -> vector<16x512xf32>
    %c0_26 = arith.constant 0 : index
    %c0_27 = arith.constant 0 : index
    %31 = vector.load %arg11[%c0_26, %c0_27] : memref<1x512xf32, #tpu.memory_space<vmem>>, vector<1x512xf32>
    %32 = vector.broadcast %31 : vector<1x512xf32> to vector<16x512xf32>
    %33 = arith.addf %30, %32 : vector<16x512xf32>
    %34 = arith.truncf %23 : vector<16x512xf32> to vector<16x512xbf16>
    %35 = vector.shape_cast %34 : vector<16x512xbf16> to vector<2x8x512xbf16>
    %36 = arith.truncf %28 : vector<16x512xf32> to vector<16x512xbf16>
    %37 = vector.shape_cast %36 : vector<16x512xbf16> to vector<2x8x512xbf16>
    %38 = arith.truncf %33 : vector<16x512xf32> to vector<16x512xbf16>
    %39 = vector.shape_cast %38 : vector<16x512xbf16> to vector<2x8x512xbf16>
    "tpu.trace_start"() <{level = 10 : i32, message = "bld,bmd->blm"}> : () -> ()
    %cst_28 = arith.constant dense<0.000000e+00> : vector<2x8x8xf32>
    %40 = tpu.matmul %35, %37, %cst_28 {dimension_numbers = #tpu.dot_dimension_numbers<[2], [2], [1], [1], [0, 0, 0, 1, 1, 1], [0], [0]>} : vector<2x8x512xbf16>, vector<2x8x512xbf16>, vector<2x8x8xf32> -> vector<2x8x8xf32>
    "tpu.trace_stop"() : () -> ()
    %cst_29 = arith.constant dense<0xFF800000> : vector<2x8xf32>
    %41 = vector.multi_reduction <maximumf>, %40, %cst_29 [2] : vector<2x8x8xf32> to vector<2x8xf32>
    %42 = vector.shape_cast %41 : vector<2x8xf32> to vector<2x8x1xf32>
    %43 = vector.broadcast %42 : vector<2x8x1xf32> to vector<2x8x8xf32>
    %44 = arith.subf %40, %43 : vector<2x8x8xf32>
    %45 = math.exp %44 : vector<2x8x8xf32>
    %cst_30 = arith.constant dense<0.000000e+00> : vector<2x8xf32>
    %46 = vector.multi_reduction <add>, %45, %cst_30 [2] : vector<2x8x8xf32> to vector<2x8xf32>
    %47 = vector.shape_cast %46 : vector<2x8xf32> to vector<2x8x1xf32>
    %48 = vector.broadcast %47 : vector<2x8x1xf32> to vector<2x8x8xf32>
    %49 = arith.divf %45, %48 : vector<2x8x8xf32>
    %50 = arith.truncf %49 : vector<2x8x8xf32> to vector<2x8x8xbf16>
    "tpu.trace_start"() <{level = 10 : i32, message = "blm,bmd->bld"}> : () -> ()
    %cst_31 = arith.constant dense<0.000000e+00> : vector<2x8x512xf32>
    %51 = tpu.matmul %50, %39, %cst_31 {dimension_numbers = #tpu.dot_dimension_numbers<[2], [1], [1], [2], [0, 0, 0, 1, 1, 2], [0], [0]>} : vector<2x8x8xbf16>, vector<2x8x512xbf16>, vector<2x8x512xf32> -> vector<2x8x512xf32>
    "tpu.trace_stop"() : () -> ()
    %52 = vector.shape_cast %51 : vector<2x8x512xf32> to vector<16x512xf32>
    %53 = arith.truncf %52 : vector<16x512xf32> to vector<16x512xbf16>
    %c0_32 = arith.constant 0 : index
    %c0_33 = arith.constant 0 : index
    %54 = vector.load %arg12[%c0_32, %c0_33] : memref<512x512xbf16, #tpu.memory_space<vmem>>, vector<512x512xbf16>
    %cst_34 = arith.constant dense<0.000000e+00> : vector<16x512xf32>
    %55 = tpu.matmul %53, %54, %cst_34 {dimension_numbers = #tpu.dot_dimension_numbers<[1], [0], [0], [1], [0, 0, 1, 1], [], []>} : vector<16x512xbf16>, vector<512x512xbf16>, vector<16x512xf32> -> vector<16x512xf32>
    %c0_35 = arith.constant 0 : index
    %c0_36 = arith.constant 0 : index
    %56 = vector.load %arg13[%c0_35, %c0_36] : memref<1x512xf32, #tpu.memory_space<vmem>>, vector<1x512xf32>
    %57 = vector.broadcast %56 : vector<1x512xf32> to vector<16x512xf32>
    %58 = arith.addf %55, %57 : vector<16x512xf32>
    %59 = arith.addf %17, %58 : vector<16x512xf32>
    %60 = vector.shape_cast %59 : vector<16x512xf32> to vector<2x8x512xf32>
    %c0_37 = arith.constant 0 : index
    %c0_38 = arith.constant 0 : index
    %61 = vector.load %arg14[%c0_37, %c0_38] : memref<1x512xf32, #tpu.memory_space<vmem>>, vector<1x512xf32>
    %62 = vector.shape_cast %61 : vector<1x512xf32> to vector<1x1x512xf32>
    %63 = vector.broadcast %62 : vector<1x1x512xf32> to vector<2x8x512xf32>
    %64 = arith.mulf %60, %63 : vector<2x8x512xf32>
    %cst_39 = arith.constant dense<0.000000e+00> : vector<2x8xf32>
    %65 = vector.multi_reduction <add>, %64, %cst_39 [2] : vector<2x8x512xf32> to vector<2x8xf32>
    %c0_40 = arith.constant 0 : index
    %c0_41 = arith.constant 0 : index
    %66 = vector.load %arg15[%c0_40, %c0_41] : memref<1x1xf32, #tpu.memory_space<vmem>>, vector<1x1xf32>
    %67 = vector.broadcast %66 : vector<1x1xf32> to vector<2x8xf32>
    %68 = arith.addf %65, %67 : vector<2x8xf32>
    %c0_42 = arith.constant 0 : index
    %c0_43 = arith.constant 0 : index
    %69 = vector.load %arg16[%c0_42, %c0_43] : memref<2x8xf32, #tpu.memory_space<vmem>>, vector<2x8xf32>
    tpu.vector_store %arg16[%c0_42, %c0_43], %68 {strides = array<i32>} : memref<2x8xf32, #tpu.memory_space<vmem>>, vector<2x8xf32>,
    return
  }
  func.func @transform_0(%arg0: i32) -> (i32, i32, i32) {
    %c0_i32 = arith.constant 0 : i32
    %c0_i32_0 = arith.constant 0 : i32
    %c0_i32_1 = arith.constant 0 : i32
    return %arg0, %c0_i32, %c0_i32_0 : i32, i32, i32
  }
  func.func @transform_1(%arg0: i32) -> (i32, i32) {
    %c0_i32 = arith.constant 0 : i32
    %c0_i32_0 = arith.constant 0 : i32
    %c0_i32_1 = arith.constant 0 : i32
    return %c0_i32, %c0_i32_0 : i32, i32
  }
  func.func @transform_2(%arg0: i32) -> (i32, i32) {
    %c0_i32 = arith.constant 0 : i32
    %c0_i32_0 = arith.constant 0 : i32
    %c0_i32_1 = arith.constant 0 : i32
    return %c0_i32, %c0_i32_0 : i32, i32
  }
  func.func @transform_3(%arg0: i32) -> (i32, i32) {
    %c0_i32 = arith.constant 0 : i32
    %c0_i32_0 = arith.constant 0 : i32
    %c0_i32_1 = arith.constant 0 : i32
    return %c0_i32, %c0_i32_0 : i32, i32
  }
  func.func @transform_4(%arg0: i32) -> (i32, i32) {
    %c0_i32 = arith.constant 0 : i32
    %c0_i32_0 = arith.constant 0 : i32
    %c0_i32_1 = arith.constant 0 : i32
    return %c0_i32, %c0_i32_0 : i32, i32
  }
  func.func @transform_5(%arg0: i32) -> (i32, i32) {
    %c0_i32 = arith.constant 0 : i32
    %c0_i32_0 = arith.constant 0 : i32
    %c0_i32_1 = arith.constant 0 : i32
    return %c0_i32, %c0_i32_0 : i32, i32
  }
  func.func @transform_6(%arg0: i32) -> (i32, i32) {
    %c0_i32 = arith.constant 0 : i32
    %c0_i32_0 = arith.constant 0 : i32
    %c0_i32_1 = arith.constant 0 : i32
    return %c0_i32, %c0_i32_0 : i32, i32
  }
  func.func @transform_7(%arg0: i32) -> (i32, i32) {
    %c0_i32 = arith.constant 0 : i32
    %c0_i32_0 = arith.constant 0 : i32
    %c0_i32_1 = arith.constant 0 : i32
    return %c0_i32, %c0_i32_0 : i32, i32
  }
  func.func @transform_8(%arg0: i32) -> (i32, i32) {
    %c0_i32 = arith.constant 0 : i32
    %c0_i32_0 = arith.constant 0 : i32
    %c0_i32_1 = arith.constant 0 : i32
    return %c0_i32, %c0_i32_0 : i32, i32
  }
  func.func @transform_9(%arg0: i32) -> (i32, i32) {
    %c0_i32 = arith.constant 0 : i32
    %c0_i32_0 = arith.constant 0 : i32
    %c0_i32_1 = arith.constant 0 : i32
    return %c0_i32, %c0_i32_0 : i32, i32
  }
  func.func @transform_10(%arg0: i32) -> (i32, i32) {
    %c0_i32 = arith.constant 0 : i32
    %c0_i32_0 = arith.constant 0 : i32
    %c0_i32_1 = arith.constant 0 : i32
    return %c0_i32, %c0_i32_0 : i32, i32
  }
  func.func @transform_11(%arg0: i32) -> (i32, i32) {
    %c0_i32 = arith.constant 0 : i32
    %c0_i32_0 = arith.constant 0 : i32
    %c0_i32_1 = arith.constant 0 : i32
    return %c0_i32, %c0_i32_0 : i32, i32
  }
  func.func @transform_12(%arg0: i32) -> (i32, i32) {
    %c0_i32 = arith.constant 0 : i32
    %c0_i32_0 = arith.constant 0 : i32
    %c0_i32_1 = arith.constant 0 : i32
    return %c0_i32, %c0_i32_0 : i32, i32
  }
  func.func @transform_13(%arg0: i32) -> (i32, i32) {
    %c0_i32 = arith.constant 0 : i32
    %c0_i32_0 = arith.constant 0 : i32
    %c0_i32_1 = arith.constant 0 : i32
    return %c0_i32, %c0_i32_0 : i32, i32
  }
  func.func @transform_14(%arg0: i32) -> (i32, i32) {
    %c0_i32 = arith.constant 0 : i32
    %c0_i32_0 = arith.constant 0 : i32
    %c0_i32_1 = arith.constant 0 : i32
    return %c0_i32, %c0_i32_0 : i32, i32
  }
  func.func @transform_15(%arg0: i32) -> (i32, i32) {
    %c0_i32 = arith.constant 0 : i32
    %c0_i32_0 = arith.constant 0 : i32
    return %arg0, %c0_i32 : i32, i32
  }
}

module attributes {stable_mosaic.version = 11 : i64} {
  func.func @mlp_kernel(%arg0: i32, %arg1: memref<2x8x64xf32, #tpu.memory_space<vmem>>, %arg2: memref<64x256xbf16, #tpu.memory_space<vmem>>, %arg3: memref<1x256xf32, #tpu.memory_space<vmem>>, %arg4: memref<256x512xbf16, #tpu.memory_space<vmem>>, %arg5: memref<1x512xf32, #tpu.memory_space<vmem>>, %arg6: memref<512x512xbf16, #tpu.memory_space<vmem>>, %arg7: memref<1x512xf32, #tpu.memory_space<vmem>>, %arg8: memref<512x512xbf16, #tpu.memory_space<vmem>>, %arg9: memref<1x512xf32, #tpu.memory_space<vmem>>, %arg10: memref<512x512xbf16, #tpu.memory_space<vmem>>, %arg11: memref<1x512xf32, #tpu.memory_space<vmem>>, %arg12: memref<512x512xbf16, #tpu.memory_space<vmem>>, %arg13: memref<1x512xf32, #tpu.memory_space<vmem>>, %arg14: memref<1x512xf32, #tpu.memory_space<vmem>>, %arg15: memref<1x1xf32, #tpu.memory_space<vmem>>, %arg16: memref<2x8xf32, #tpu.memory_space<vmem>>) attributes {dimension_semantics = [#tpu.dimension_semantics<parallel>], iteration_bounds = array<i64: 1>, scalar_prefetch = 0 : i64, scratch_operands = 0 : i64, tpu.core_type = #tpu.core_type<tc>, window_params = [{transform_indices = @transform_0, window_bounds = array<i64: 2, 8, 64>}, {pipeline_mode = #tpu.pipeline_mode<synchronous>, transform_indices = @transform_1, window_bounds = array<i64: 64, 256>}, {pipeline_mode = #tpu.pipeline_mode<synchronous>, transform_indices = @transform_2, window_bounds = array<i64: 1, 256>}, {pipeline_mode = #tpu.pipeline_mode<synchronous>, transform_indices = @transform_3, window_bounds = array<i64: 256, 512>}, {pipeline_mode = #tpu.pipeline_mode<synchronous>, transform_indices = @transform_4, window_bounds = array<i64: 1, 512>}, {pipeline_mode = #tpu.pipeline_mode<synchronous>, transform_indices = @transform_5, window_bounds = array<i64: 512, 512>}, {pipeline_mode = #tpu.pipeline_mode<synchronous>, transform_indices = @transform_6, window_bounds = array<i64: 1, 512>}, {pipeline_mode = #tpu.pipeline_mode<synchronous>, transform_indices = @transform_7, window_bounds = array<i64: 512, 512>}, {pipeline_mode = #tpu.pipeline_mode<synchronous>, transform_indices = @transform_8, window_bounds = array<i64: 1, 512>}, {pipeline_mode = #tpu.pipeline_mode<synchronous>, transform_indices = @transform_9, window_bounds = array<i64: 512, 512>}, {pipeline_mode = #tpu.pipeline_mode<synchronous>, transform_indices = @transform_10, window_bounds = array<i64: 1, 512>}, {pipeline_mode = #tpu.pipeline_mode<synchronous>, transform_indices = @transform_11, window_bounds = array<i64: 512, 512>}, {pipeline_mode = #tpu.pipeline_mode<synchronous>, transform_indices = @transform_12, window_bounds = array<i64: 1, 512>}, {pipeline_mode = #tpu.pipeline_mode<synchronous>, transform_indices = @transform_13, window_bounds = array<i64: 1, 512>}, {pipeline_mode = #tpu.pipeline_mode<synchronous>, transform_indices = @transform_14, window_bounds = array<i64: 1, 1>}, {transform_indices = @transform_15, window_bounds = array<i64: 2, 8>}]} {
    %c0 = arith.constant 0 : index
    %c0_0 = arith.constant 0 : index
    %c0_1 = arith.constant 0 : index
    %0 = vector.load %arg1[%c0, %c0_0, %c0_1] : memref<2x8x64xf32, #tpu.memory_space<vmem>>, vector<2x8x64xf32>
    %1 = vector.shape_cast %0 : vector<2x8x64xf32> to vector<16x64xf32>
    %2 = arith.truncf %1 : vector<16x64xf32> to vector<16x64xbf16>
    %c0_2 = arith.constant 0 : index
    %c0_3 = arith.constant 0 : index
    %3 = vector.load %arg2[%c0_2, %c0_3] : memref<64x256xbf16, #tpu.memory_space<vmem>>, vector<64x256xbf16>
    %cst = arith.constant dense<0.000000e+00> : vector<16x256xf32>
    %4 = tpu.matmul %2, %3, %cst {dimension_numbers = #tpu.dot_dimension_numbers<[1], [0], [0], [1], [0, 0, 1, 1], [], []>} : vector<16x64xbf16>, vector<64x256xbf16>, vector<16x256xf32> -> vector<16x256xf32>
    %c0_4 = arith.constant 0 : index
    %c0_5 = arith.constant 0 : index
    %5 = vector.load %arg3[%c0_4, %c0_5] : memref<1x256xf32, #tpu.memory_space<vmem>>, vector<1x256xf32>
    %6 = vector.broadcast %5 : vector<1x256xf32> to vector<16x256xf32>
    %7 = arith.addf %4, %6 : vector<16x256xf32>
    %cst_6 = arith.constant 0.000000e+00 : f32
    %8 = vector.broadcast %cst_6 : f32 to vector<16x256xf32>
    %9 = arith.maximumf %7, %8 : vector<16x256xf32>
    %10 = arith.truncf %9 : vector<16x256xf32> to vector<16x256xbf16>
    %c0_7 = arith.constant 0 : index
    %c0_8 = arith.constant 0 : index
    %11 = vector.load %arg4[%c0_7, %c0_8] : memref<256x512xbf16, #tpu.memory_space<vmem>>, vector<256x512xbf16>
    %cst_9 = arith.constant dense<0.000000e+00> : vector<16x512xf32>
    %12 = tpu.matmul %10, %11, %cst_9 {dimension_numbers = #tpu.dot_dimension_numbers<[1], [0], [0], [1], [0, 0, 1, 1], [], []>} : vector<16x256xbf16>, vector<256x512xbf16>, vector<16x512xf32> -> vector<16x512xf32>
    %c0_10 = arith.constant 0 : index
    %c0_11 = arith.constant 0 : index
    %13 = vector.load %arg5[%c0_10, %c0_11] : memref<1x512xf32, #tpu.memory_space<vmem>>, vector<1x512xf32>
    %14 = vector.broadcast %13 : vector<1x512xf32> to vector<16x512xf32>
    %15 = arith.addf %12, %14 : vector<16x512xf32>
    %cst_12 = arith.constant 0.000000e+00 : f32
    %16 = vector.broadcast %cst_12 : f32 to vector<16x512xf32>
    %17 = arith.maximumf %15, %16 : vector<16x512xf32>
    %18 = arith.truncf %17 : vector<16x512xf32> to vector<16x512xbf16>
    %c0_13 = arith.constant 0 : index
    %c0_14 = arith.constant 0 : index
    %19 = vector.load %arg6[%c0_13, %c0_14] : memref<512x512xbf16, #tpu.memory_space<vmem>>, vector<512x512xbf16>
    %cst_15 = arith.constant dense<0.000000e+00> : vector<16x512xf32>
    %20 = tpu.matmul %18, %19, %cst_15 {dimension_numbers = #tpu.dot_dimension_numbers<[1], [0], [0], [1], [0, 0, 1, 1], [], []>} : vector<16x512xbf16>, vector<512x512xbf16>, vector<16x512xf32> -> vector<16x512xf32>
    %c0_16 = arith.constant 0 : index
    %c0_17 = arith.constant 0 : index
    %21 = vector.load %arg7[%c0_16, %c0_17] : memref<1x512xf32, #tpu.memory_space<vmem>>, vector<1x512xf32>
    %22 = vector.broadcast %21 : vector<1x512xf32> to vector<16x512xf32>
    %23 = arith.addf %20, %22 : vector<16x512xf32>
    %c0_18 = arith.constant 0 : index
    %c0_19 = arith.constant 0 : index
    %24 = vector.load %arg8[%c0_18, %c0_19] : memref<512x512xbf16, #tpu.memory_space<vmem>>, vector<512x512xbf16>
    %cst_20 = arith.constant dense<0.000000e+00> : vector<16x512xf32>
    %25 = tpu.matmul %18, %24, %cst_20 {dimension_numbers = #tpu.dot_dimension_numbers<[1], [0], [0], [1], [0, 0, 1, 1], [], []>} : vector<16x512xbf16>, vector<512x512xbf16>, vector<16x512xf32> -> vector<16x512xf32>
    %c0_21 = arith.constant 0 : index
    %c0_22 = arith.constant 0 : index
    %26 = vector.load %arg9[%c0_21, %c0_22] : memref<1x512xf32, #tpu.memory_space<vmem>>, vector<1x512xf32>
    %27 = vector.broadcast %26 : vector<1x512xf32> to vector<16x512xf32>
    %28 = arith.addf %25, %27 : vector<16x512xf32>
    %c0_23 = arith.constant 0 : index
    %c0_24 = arith.constant 0 : index
    %29 = vector.load %arg10[%c0_23, %c0_24] : memref<512x512xbf16, #tpu.memory_space<vmem>>, vector<512x512xbf16>
    %cst_25 = arith.constant dense<0.000000e+00> : vector<16x512xf32>
    %30 = tpu.matmul %18, %29, %cst_25 {dimension_numbers = #tpu.dot_dimension_numbers<[1], [0], [0], [1], [0, 0, 1, 1], [], []>} : vector<16x512xbf16>, vector<512x512xbf16>, vector<16x512xf32> -> vector<16x512xf32>
    %c0_26 = arith.constant 0 : index
    %c0_27 = arith.constant 0 : index
    %31 = vector.load %arg11[%c0_26, %c0_27] : memref<1x512xf32, #tpu.memory_space<vmem>>, vector<1x512xf32>
    %32 = vector.broadcast %31 : vector<1x512xf32> to vector<16x512xf32>
    %33 = arith.addf %30, %32 : vector<16x512xf32>
    %34 = arith.truncf %23 : vector<16x512xf32> to vector<16x512xbf16>
    %35 = vector.shape_cast %34 : vector<16x512xbf16> to vector<2x8x512xbf16>
    %36 = arith.truncf %28 : vector<16x512xf32> to vector<16x512xbf16>
    %37 = vector.shape_cast %36 : vector<16x512xbf16> to vector<2x8x512xbf16>
    %38 = arith.truncf %33 : vector<16x512xf32> to vector<16x512xbf16>
    %39 = vector.shape_cast %38 : vector<16x512xbf16> to vector<2x8x512xbf16>
    "tpu.trace_start"() <{level = 10 : i32, message = "bld,bmd->blm"}> : () -> ()
    %cst_28 = arith.constant dense<0.000000e+00> : vector<2x8x8xf32>
    %40 = tpu.matmul %35, %37, %cst_28 {dimension_numbers = #tpu.dot_dimension_numbers<[2], [2], [1], [1], [0, 0, 0, 1, 1, 1], [0], [0]>} : vector<2x8x512xbf16>, vector<2x8x512xbf16>, vector<2x8x8xf32> -> vector<2x8x8xf32>
    "tpu.trace_stop"() : () -> ()
    %cst_29 = arith.constant dense<0xFF800000> : vector<2x8xf32>
    %41 = vector.multi_reduction <maximumf>, %40, %cst_29 [2] : vector<2x8x8xf32> to vector<2x8xf32>
    %42 = vector.shape_cast %41 : vector<2x8xf32> to vector<2x8x1xf32>
    %43 = vector.broadcast %42 : vector<2x8x1xf32> to vector<2x8x8xf32>
    %44 = arith.subf %40, %43 : vector<2x8x8xf32>
    %45 = math.exp %44 : vector<2x8x8xf32>
    %cst_30 = arith.constant dense<0.000000e+00> : vector<2x8xf32>
    %46 = vector.multi_reduction <add>, %45, %cst_30 [2] : vector<2x8x8xf32> to vector<2x8xf32>
    %47 = vector.shape_cast %46 : vector<2x8xf32> to vector<2x8x1xf32>
    %48 = vector.broadcast %47 : vector<2x8x1xf32> to vector<2x8x8xf32>
    %49 = arith.divf %45, %48 : vector<2x8x8xf32>
    %50 = arith.truncf %49 : vector<2x8x8xf32> to vector<2x8x8xbf16>
    "tpu.trace_start"() <{level = 10 : i32, message = "blm,bmd->bld"}> : () -> ()
    %cst_31 = arith.constant dense<0.000000e+00> : vector<2x8x512xf32>
    %51 = tpu.matmul %50, %39, %cst_31 {dimension_numbers = #tpu.dot_dimension_numbers<[2], [1], [1], [2], [0, 0, 0, 1, 1, 2], [0], [0]>} : vector<2x8x8xbf16>, vector<2x8x512xbf16>, vector<2x8x512xf32> -> vector<2x8x512xf32>
    "tpu.trace_stop"() : () -> ()
    %52 = vector.shape_cast %51 : vector<2x8x512xf32> to vector<16x512xf32>
    %53 = arith.truncf %52 : vector<16x512xf32> to vector<16x512xbf16>
    %c0_32 = arith.constant 0 : index
    %c0_33 = arith.constant 0 : index
    %54 = vector.load %arg12[%c0_32, %c0_33] : memref<512x512xbf16, #tpu.memory_space<vmem>>, vector<512x512xbf16>
    %cst_34 = arith.constant dense<0.000000e+00> : vector<16x512xf32>
    %55 = tpu.matmul %53, %54, %cst_34 {dimension_numbers = #tpu.dot_dimension_numbers<[1], [0], [0], [1], [0, 0, 1, 1], [], []>} : vector<16x512xbf16>, vector<512x512xbf16>, vector<16x512xf32> -> vector<16x512xf32>
    %c0_35 = arith.constant 0 : index
    %c0_36 = arith.constant 0 : index
    %56 = vector.load %arg13[%c0_35, %c0_36] : memref<1x512xf32, #tpu.memory_space<vmem>>, vector<1x512xf32>
    %57 = vector.broadcast %56 : vector<1x512xf32> to vector<16x512xf32>
    %58 = arith.addf %55, %57 : vector<16x512xf32>
    %59 = arith.addf %17, %58 : vector<16x512xf32>
    %60 = vector.shape_cast %59 : vector<16x512xf32> to vector<2x8x512xf32>
    %c0_37 = arith.constant 0 : index
    %c0_38 = arith.constant 0 : index
    %61 = vector.load %arg14[%c0_37, %c0_38] : memref<1x512xf32, #tpu.memory_space<vmem>>, vector<1x512xf32>
    %62 = vector.shape_cast %61 : vector<1x512xf32> to vector<1x1x512xf32>
    %63 = vector.broadcast %62 : vector<1x1x512xf32> to vector<2x8x512xf32>
    %64 = arith.mulf %60, %63 : vector<2x8x512xf32>
    %cst_39 = arith.constant dense<0.000000e+00> : vector<2x8xf32>
    %65 = vector.multi_reduction <add>, %64, %cst_39 [2] : vector<2x8x512xf32> to vector<2x8xf32>
    %c0_40 = arith.constant 0 : index
    %c0_41 = arith.constant 0 : index
    %66 = vector.load %arg15[%c0_40, %c0_41] : memref<1x1xf32, #tpu.memory_space<vmem>>, vector<1x1xf32>
    %67 = vector.broadcast %66 : vector<1x1xf32> to vector<2x8xf32>
    %68 = arith.addf %65, %67 : vector<2x8xf32>
    %c0_42 = arith.constant 0 : index
    %c0_43 = arith.constant 0 : index
    %69 = vector.load %arg16[%c0_42, %c0_43] : memref<2x8xf32, #tpu.memory_space<vmem>>, vector<2x8xf32>
    tpu.vector_store %arg16[%c0_42, %c0_43], %68 {strides = array<i32>} : memref<2x8xf32, #tpu.memory_space<vmem>>, vector<2x8xf32>,
    return
  }
  func.func @transform_0(%arg0: i32) -> (i32, i32, i32) {
    %c0_i32 = arith.constant 0 : i32
    %c0_i32_0 = arith.constant 0 : i32
    %c0_i32_1 = arith.constant 0 : i32
    return %arg0, %c0_i32, %c0_i32_0 : i32, i32, i32
  }
  func.func @transform_1(%arg0: i32) -> (i32, i32) {
    %c0_i32 = arith.constant 0 : i32
    %c0_i32_0 = arith.constant 0 : i32
    %c0_i32_1 = arith.constant 0 : i32
    return %c0_i32, %c0_i32_0 : i32, i32
  }
  func.func @transform_2(%arg0: i32) -> (i32, i32) {
    %c0_i32 = arith.constant 0 : i32
    %c0_i32_0 = arith.constant 0 : i32
    %c0_i32_1 = arith.constant 0 : i32
    return %c0_i32, %c0_i32_0 : i32, i32
  }
  func.func @transform_3(%arg0: i32) -> (i32, i32) {
    %c0_i32 = arith.constant 0 : i32
    %c0_i32_0 = arith.constant 0 : i32
    %c0_i32_1 = arith.constant 0 : i32
    return %c0_i32, %c0_i32_0 : i32, i32
  }
  func.func @transform_4(%arg0: i32) -> (i32, i32) {
    %c0_i32 = arith.constant 0 : i32
    %c0_i32_0 = arith.constant 0 : i32
    %c0_i32_1 = arith.constant 0 : i32
    return %c0_i32, %c0_i32_0 : i32, i32
  }
  func.func @transform_5(%arg0: i32) -> (i32, i32) {
    %c0_i32 = arith.constant 0 : i32
    %c0_i32_0 = arith.constant 0 : i32
    %c0_i32_1 = arith.constant 0 : i32
    return %c0_i32, %c0_i32_0 : i32, i32
  }
  func.func @transform_6(%arg0: i32) -> (i32, i32) {
    %c0_i32 = arith.constant 0 : i32
    %c0_i32_0 = arith.constant 0 : i32
    %c0_i32_1 = arith.constant 0 : i32
    return %c0_i32, %c0_i32_0 : i32, i32
  }
  func.func @transform_7(%arg0: i32) -> (i32, i32) {
    %c0_i32 = arith.constant 0 : i32
    %c0_i32_0 = arith.constant 0 : i32
    %c0_i32_1 = arith.constant 0 : i32
    return %c0_i32, %c0_i32_0 : i32, i32
  }
  func.func @transform_8(%arg0: i32) -> (i32, i32) {
    %c0_i32 = arith.constant 0 : i32
    %c0_i32_0 = arith.constant 0 : i32
    %c0_i32_1 = arith.constant 0 : i32
    return %c0_i32, %c0_i32_0 : i32, i32
  }
  func.func @transform_9(%arg0: i32) -> (i32, i32) {
    %c0_i32 = arith.constant 0 : i32
    %c0_i32_0 = arith.constant 0 : i32
    %c0_i32_1 = arith.constant 0 : i32
    return %c0_i32, %c0_i32_0 : i32, i32
  }
  func.func @transform_10(%arg0: i32) -> (i32, i32) {
    %c0_i32 = arith.constant 0 : i32
    %c0_i32_0 = arith.constant 0 : i32
    %c0_i32_1 = arith.constant 0 : i32
    return %c0_i32, %c0_i32_0 : i32, i32
  }
  func.func @transform_11(%arg0: i32) -> (i32, i32) {
    %c0_i32 = arith.constant 0 : i32
    %c0_i32_0 = arith.constant 0 : i32
    %c0_i32_1 = arith.constant 0 : i32
    return %c0_i32, %c0_i32_0 : i32, i32
  }
  func.func @transform_12(%arg0: i32) -> (i32, i32) {
    %c0_i32 = arith.constant 0 : i32
    %c0_i32_0 = arith.constant 0 : i32
    %c0_i32_1 = arith.constant 0 : i32
    return %c0_i32, %c0_i32_0 : i32, i32
  }
  func.func @transform_13(%arg0: i32) -> (i32, i32) {
    %c0_i32 = arith.constant 0 : i32
    %c0_i32_0 = arith.constant 0 : i32
    %c0_i32_1 = arith.constant 0 : i32
    return %c0_i32, %c0_i32_0 : i32, i32
  }
  func.func @transform_14(%arg0: i32) -> (i32, i32) {
    %c0_i32 = arith.constant 0 : i32
    %c0_i32_0 = arith.constant 0 : i32
    %c0_i32_1 = arith.constant 0 : i32
    return %c0_i32, %c0_i32_0 : i32, i32
  }
  func.func @transform_15(%arg0: i32) -> (i32, i32) {
    %c0_i32 = arith.constant 0 : i32
    %c0_i32_0 = arith.constant 0 : i32
    return %arg0, %c0_i32 : i32, i32
  }
}

</mosaic_0001>

<llo_original>
// kernel: tpu_custom_call.1
$region0: #{tpu_custom_call.1}
  #allocation0 [shape = 'u32[]', space=smem, size = 0x4, offset = 0x4, fixed_abs, tag = 'smem constant byte address 0x4 - core index']
  #allocation1 [shape = 'u32[144,128]{1,0:T(1,128)}', space=vmem, size = 0x12000, scoped, tag = 'internal scratch']
  #allocation2 [shape = 'f32[1,1]{1,0:T(1,128)S(1)}', space=vmem, size = 0x200, scoped, tag = 'scoped memory for tpu_custom_call.1']
  %s0 = inlined_call_operand.hbm [shape: f32[2,8,64], index: 0, kind: input, shape index: {}]
  %s1 = inlined_call_operand.hbm [shape: bf16[64,256], index: 1, kind: input, shape index: {}]
  %s2 = inlined_call_operand.vmem [shape: f32[1,256], index: 2, kind: input, shape index: {}]
  %s3 = inlined_call_operand.hbm [shape: bf16[256,512], index: 3, kind: input, shape index: {}]
  %s4 = inlined_call_operand.vmem [shape: f32[1,512], index: 4, kind: input, shape index: {}]
  %s5 = inlined_call_operand.hbm [shape: bf16[512,512], index: 5, kind: input, shape index: {}]
  %s6 = inlined_call_operand.vmem [shape: f32[1,512], index: 6, kind: input, shape index: {}]
  %s7 = inlined_call_operand.hbm [shape: bf16[512,512], index: 7, kind: input, shape index: {}]
  %s8 = inlined_call_operand.vmem [shape: f32[1,512], index: 8, kind: input, shape index: {}]
  %s9 = inlined_call_operand.hbm [shape: bf16[512,512], index: 9, kind: input, shape index: {}]
  %s10 = inlined_call_operand.vmem [shape: f32[1,512], index: 10, kind: input, shape index: {}]
  %s11 = inlined_call_operand.hbm [shape: bf16[512,512], index: 11, kind: input, shape index: {}]
  %s12 = inlined_call_operand.vmem [shape: f32[1,512], index: 12, kind: input, shape index: {}]
  %s13 = inlined_call_operand.vmem [shape: f32[1,512], index: 13, kind: input, shape index: {}]
  %s14 = inlined_call_operand.<no memory space> [shape: f32[1,1], index: 14, kind: input, shape index: {}]
  %s15 = inlined_call_operand.hbm [shape: f32[2,8], index: 15, kind: output, shape index: {}]
  %s16 = sld [smem:[#allocation0]]
  $region98: #{tpu_custom_call.1} parent=0
    _
  %s18 = ssub.s32 1, %s16
  %s19 = scalar_select 0, %s18, %s16
  %v20 = vstv %s14
  %21 = vst [vmem:[#allocation2] sm:$0x1] %v20
  $region1: #{tpu_custom_call.1} parent=0
    #allocation3 [shape = 'u8[8192]{0}', space=vmem, size = 0x2000, scoped, tag = 'input window, operand 0, single buffered']
    #allocation4 [shape = 's32[1]{0}', space=sflag, size = 0x4, scoped, tag = 'scoped memory for tpu_custom_call.1']
    #allocation5 [shape = 's32[1]{0}', space=sflag, size = 0x4, scoped, tag = 'scoped memory for tpu_custom_call.1']
    #allocation6 [shape = 'u8[32768]{0}', space=vmem, size = 0x8000, scoped, tag = 'input window, operand 1, single buffered']
    #allocation7 [shape = 's32[1]{0}', space=sflag, size = 0x4, scoped, tag = 'scoped memory for tpu_custom_call.1']
    #allocation8 [shape = 'u8[262144]{0}', space=vmem, size = 0x40000, scoped, tag = 'input window, operand 3, single buffered']
    #allocation9 [shape = 'u8[524288]{0}', space=vmem, size = 0x80000, scoped, tag = 'input window, operand 5, single buffered']
    #allocation10 [shape = 's32[1]{0}', space=sflag, size = 0x4, scoped, tag = 'scoped memory for tpu_custom_call.1']
    #allocation11 [shape = 'u8[524288]{0}', space=vmem, size = 0x80000, scoped, tag = 'input window, operand 7, single buffered']
    #allocation12 [shape = 'u8[524288]{0}', space=vmem, size = 0x80000, scoped, tag = 'input window, operand 9, single buffered']
    #allocation13 [shape = 's32[1]{0}', space=sflag, size = 0x4, scoped, tag = 'scoped memory for tpu_custom_call.1']
    #allocation14 [shape = 'u8[524288]{0}', space=vmem, size = 0x80000, scoped, tag = 'input window, operand 11, single buffered']
    #allocation15 [shape = 'u8[1024]{0}', space=vmem, size = 0x400, scoped, tag = 'output window, operand 0, single buffered']
    %22 = vsyncpa [#allocation4], 0
    %23 = vsyncpa [#allocation7], 0
    %24 = vsyncpa [#allocation10], 0
    %25 = vsyncpa [#allocation13], 0
    %26 = vsyncpa [#allocation5], 0
    // Predicated region
    $region2: #{tpu_custom_call.1} parent=1 // pred_check
      _
    $region3: #{tpu_custom_call.1} parent=1 // pred_check_branch
      %28 = sbr.rel (0) target = $region5
    $region4: #{tpu_custom_call.1} parent=1 // pred_region
      %s30 = ssub.s32 256, 256
      %31 = vsyncadd [#allocation4], %s30
      %s32 = sshll.u32 [#allocation3], 4
      %s33 = int_to_ptr.vmem [resolvable:$true] %s32
      %38 = dma.hbm_to_vmem [thread:$0]  %s0, 256, %s33, [#allocation4], 128, 128, 8
    $region5: #{tpu_custom_call.1} parent=1 // pred_fallthru
      _
    // Predicated region
    $region6: #{tpu_custom_call.1} parent=1 // pred_check
      _
    $region7: #{tpu_custom_call.1} parent=1 // pred_check_branch
      %40 = sbr.rel (0) target = $region9
    $region8: #{tpu_custom_call.1} parent=1 // pred_region
      %s42 = ssub.s32 1024, 1024
      %43 = vsyncadd [#allocation7], %s42
      %s44 = sshll.u32 [#allocation6], 4
      %s45 = int_to_ptr.vmem [resolvable:$true] %s44
      %50 = dma.hbm_to_vmem [thread:$0]  %s1, 1024, %s45, [#allocation7], 128, 128, 8
    $region9: #{tpu_custom_call.1} parent=1 // pred_fallthru
      _
    // Predicated region
    $region10: #{tpu_custom_call.1} parent=1 // pred_check
      _
    $region11: #{tpu_custom_call.1} parent=1 // pred_check_branch
      %52 = sbr.rel (0) target = $region13
    $region12: #{tpu_custom_call.1} parent=1 // pred_region
      _
    $region13: #{tpu_custom_call.1} parent=1 // pred_fallthru
      _
    // Predicated region
    $region14: #{tpu_custom_call.1} parent=1 // pred_check
      _
    $region15: #{tpu_custom_call.1} parent=1 // pred_check_branch
      %54 = sbr.rel (0) target = $region17
    $region16: #{tpu_custom_call.1} parent=1 // pred_region
      %s56 = ssub.s32 8192, 8192
      %57 = vsyncadd [#allocation7], %s56
      %s58 = sshll.u32 [#allocation8], 4
      %s59 = int_to_ptr.vmem [resolvable:$true] %s58
      %64 = dma.hbm_to_vmem [thread:$0]  %s3, 8192, %s59, [#allocation7], 256, 256, 16
    $region17: #{tpu_custom_call.1} parent=1 // pred_fallthru
      _
    // Predicated region
    $region18: #{tpu_custom_call.1} parent=1 // pred_check
      _
    $region19: #{tpu_custom_call.1} parent=1 // pred_check_branch
      %66 = sbr.rel (0) target = $region21
    $region20: #{tpu_custom_call.1} parent=1 // pred_region
      _
    $region21: #{tpu_custom_call.1} parent=1 // pred_fallthru
      _
    // Predicated region
    $region22: #{tpu_custom_call.1} parent=1 // pred_check
      _
    $region23: #{tpu_custom_call.1} parent=1 // pred_check_branch
      %68 = sbr.rel (0) target = $region25
    $region24: #{tpu_custom_call.1} parent=1 // pred_region
      %s70 = ssub.s32 16384, 16384
      %71 = vsyncadd [#allocation10], %s70
      %s72 = sshll.u32 [#allocation9], 4
      %s73 = int_to_ptr.vmem [resolvable:$true] %s72
      %78 = dma.hbm_to_vmem [thread:$0]  %s5, 16384, %s73, [#allocation10], 256, 256, 16
    $region25: #{tpu_custom_call.1} parent=1 // pred_fallthru
      _
    // Predicated region
    $region26: #{tpu_custom_call.1} parent=1 // pred_check
      _
    $region27: #{tpu_custom_call.1} parent=1 // pred_check_branch
      %80 = sbr.rel (0) target = $region29
    $region28: #{tpu_custom_call.1} parent=1 // pred_region
      _
    $region29: #{tpu_custom_call.1} parent=1 // pred_fallthru
      _
    // Predicated region
    $region30: #{tpu_custom_call.1} parent=1 // pred_check
      _
    $region31: #{tpu_custom_call.1} parent=1 // pred_check_branch
      %82 = sbr.rel (0) target = $region33
    $region32: #{tpu_custom_call.1} parent=1 // pred_region
      %s84 = ssub.s32 16384, 16384
      %85 = vsyncadd [#allocation10], %s84
      %s86 = sshll.u32 [#allocation11], 4
      %s87 = int_to_ptr.vmem [resolvable:$true] %s86
      %92 = dma.hbm_to_vmem [thread:$0]  %s7, 16384, %s87, [#allocation10], 256, 256, 16
    $region33: #{tpu_custom_call.1} parent=1 // pred_fallthru
      _
    // Predicated region
    $region34: #{tpu_custom_call.1} parent=1 // pred_check
      _
    $region35: #{tpu_custom_call.1} parent=1 // pred_check_branch
      %94 = sbr.rel (0) target = $region37
    $region36: #{tpu_custom_call.1} parent=1 // pred_region
      _
    $region37: #{tpu_custom_call.1} parent=1 // pred_fallthru
      _
    // Predicated region
    $region38: #{tpu_custom_call.1} parent=1 // pred_check
      _
    $region39: #{tpu_custom_call.1} parent=1 // pred_check_branch
      %96 = sbr.rel (0) target = $region41
    $region40: #{tpu_custom_call.1} parent=1 // pred_region
      %s98 = ssub.s32 16384, 16384
      %99 = vsyncadd [#allocation13], %s98
      %s100 = sshll.u32 [#allocation12], 4
      %s101 = int_to_ptr.vmem [resolvable:$true] %s100
      %106 = dma.hbm_to_vmem [thread:$0]  %s9, 16384, %s101, [#allocation13], 256, 256, 16
    $region41: #{tpu_custom_call.1} parent=1 // pred_fallthru
      _
    // Predicated region
    $region42: #{tpu_custom_call.1} parent=1 // pred_check
      _
    $region43: #{tpu_custom_call.1} parent=1 // pred_check_branch
      %108 = sbr.rel (0) target = $region45
    $region44: #{tpu_custom_call.1} parent=1 // pred_region
      _
    $region45: #{tpu_custom_call.1} parent=1 // pred_fallthru
      _
    // Predicated region
    $region46: #{tpu_custom_call.1} parent=1 // pred_check
      _
    $region47: #{tpu_custom_call.1} parent=1 // pred_check_branch
      %110 = sbr.rel (0) target = $region49
    $region48: #{tpu_custom_call.1} parent=1 // pred_region
      %s112 = ssub.s32 16384, 16384
      %113 = vsyncadd [#allocation13], %s112
      %s114 = sshll.u32 [#allocation14], 4
      %s115 = int_to_ptr.vmem [resolvable:$true] %s114
      %120 = dma.hbm_to_vmem [thread:$0]  %s11, 16384, %s115, [#allocation13], 256, 256, 16
    $region49: #{tpu_custom_call.1} parent=1 // pred_fallthru
      _
    // Predicated region
    $region50: #{tpu_custom_call.1} parent=1 // pred_check
      _
    $region51: #{tpu_custom_call.1} parent=1 // pred_check_branch
      %122 = sbr.rel (0) target = $region53
    $region52: #{tpu_custom_call.1} parent=1 // pred_region
      _
    $region53: #{tpu_custom_call.1} parent=1 // pred_fallthru
      _
    // Predicated region
    $region54: #{tpu_custom_call.1} parent=1 // pred_check
      _
    $region55: #{tpu_custom_call.1} parent=1 // pred_check_branch
      %124 = sbr.rel (0) target = $region57
    $region56: #{tpu_custom_call.1} parent=1 // pred_region
      _
    $region57: #{tpu_custom_call.1} parent=1 // pred_fallthru
      _
    // Predicated region
    $region58: #{tpu_custom_call.1} parent=1 // pred_check
      _
    $region59: #{tpu_custom_call.1} parent=1 // pred_check_branch
      %126 = sbr.rel (0) target = $region61
    $region60: #{tpu_custom_call.1} parent=1 // pred_region
      _
    $region61: #{tpu_custom_call.1} parent=1 // pred_fallthru
      _
    // Predicated region
    $region62: #{tpu_custom_call.1} parent=1 // pred_check
      _
    $region63: #{tpu_custom_call.1} parent=1 // pred_check_branch
      %128 = sbr.rel (0) target = $region65
    $region64: #{tpu_custom_call.1} parent=1 // pred_region
      %129 = dma.done [#allocation4], 256
    $region65: #{tpu_custom_call.1} parent=1 // pred_fallthru
      _
    // Predicated region
    $region66: #{tpu_custom_call.1} parent=1 // pred_check
      _
    $region67: #{tpu_custom_call.1} parent=1 // pred_check_branch
      %131 = sbr.rel (0) target = $region69
    $region68: #{tpu_custom_call.1} parent=1 // pred_region
      %132 = dma.done [#allocation7], 1024
    $region69: #{tpu_custom_call.1} parent=1 // pred_fallthru
      _
    // Predicated region
    $region70: #{tpu_custom_call.1} parent=1 // pred_check
      _
    $region71: #{tpu_custom_call.1} parent=1 // pred_check_branch
      %134 = sbr.rel (0) target = $region73
    $region72: #{tpu_custom_call.1} parent=1 // pred_region
      %135 = dma.done [#allocation7], 8192
    $region73: #{tpu_custom_call.1} parent=1 // pred_fallthru
      _
    // Predicated region
    $region74: #{tpu_custom_call.1} parent=1 // pred_check
      _
    $region75: #{tpu_custom_call.1} parent=1 // pred_check_branch
      %137 = sbr.rel (0) target = $region77
    $region76: #{tpu_custom_call.1} parent=1 // pred_region
      %138 = dma.done [#allocation10], 16384
    $region77: #{tpu_custom_call.1} parent=1 // pred_fallthru
      _
    // Predicated region
    $region78: #{tpu_custom_call.1} parent=1 // pred_check
      _
    $region79: #{tpu_custom_call.1} parent=1 // pred_check_branch
      %140 = sbr.rel (0) target = $region81
    $region80: #{tpu_custom_call.1} parent=1 // pred_region
      %141 = dma.done [#allocation10], 16384
    $region81: #{tpu_custom_call.1} parent=1 // pred_fallthru
      _
    // Predicated region
    $region82: #{tpu_custom_call.1} parent=1 // pred_check
      _
    $region83: #{tpu_custom_call.1} parent=1 // pred_check_branch
      %143 = sbr.rel (0) target = $region85
    $region84: #{tpu_custom_call.1} parent=1 // pred_region
      %144 = dma.done [#allocation13], 16384
    $region85: #{tpu_custom_call.1} parent=1 // pred_fallthru
      _
    // Predicated region
    $region86: #{tpu_custom_call.1} parent=1 // pred_check
      _
    $region87: #{tpu_custom_call.1} parent=1 // pred_check_branch
      %146 = sbr.rel (0) target = $region89
    $region88: #{tpu_custom_call.1} parent=1 // pred_region
      %147 = dma.done [#allocation13], 16384
    $region89: #{tpu_custom_call.1} parent=1 // pred_fallthru
      _
    %v149 = vld [vmem:[#allocation3] sm:$0xff]
    %v150 = vld [vmem:[#allocation3 + $0x8] sm:$0xff]
    %v151 = vpack.c.bf16 %v150, %v149
    %v152 = vld [vmem:[#allocation6] sm:$0xff]
    %v153 = vld [vmem:[#allocation6 + $0x8] sm:$0xff]
    %v154 = vld [vmem:[#allocation6 + $0x10] sm:$0xff]
    %v155 = vld [vmem:[#allocation6 + $0x18] sm:$0xff]
    %v156 = vld [vmem:[#allocation6 + $0x20] sm:$0xff]
    %v157 = vld [vmem:[#allocation6 + $0x28] sm:$0xff]
    %v158 = vld [vmem:[#allocation6 + $0x30] sm:$0xff]
    %v159 = vld [vmem:[#allocation6 + $0x38] sm:$0xff]
    %v160 = vld [vmem:[%s2] sm:$0x3]
    %v162 = vlaneseq
    %v163 = vshrl.u32 %v162, 7
    %v164 = vsub.s32 0, %v163
    %v165 = vrot.slane %v160, %v164
    %v166 = vlaneseq
    %v167 = vshrl.u32 %v166, 7
    %v168 = vsub.s32 1, %v167
    %v169 = vrot.slane %v160, %v168
    %v180 = vunpack.c.l.b16 %v152
    %v181 = vunpack.c.h.b16 %v152
    %v182 = vunpack.c.l.b16 %v153
    %v183 = vunpack.c.h.b16 %v153
    %v184 = vunpack.c.l.b16 %v154
    %v185 = vunpack.c.h.b16 %v154
    %v186 = vunpack.c.l.b16 %v155
    %v187 = vunpack.c.h.b16 %v155
    %v188 = vunpack.c.l.b16 %v156
    %v189 = vunpack.c.h.b16 %v156
    %v190 = vunpack.c.l.b16 %v157
    %v191 = vunpack.c.h.b16 %v157
    %v192 = vunpack.c.l.b16 %v158
    %v193 = vunpack.c.h.b16 %v158
    %v194 = vunpack.c.l.b16 %v159
    %v195 = vunpack.c.h.b16 %v159
    %v196 = vpack.c.b16 %v182, %v180
    %v197 = vpack.c.b16 %v183, %v181
    %v198 = vpack.c.b16 %v186, %v184
    %v199 = vpack.c.b16 %v187, %v185
    %v200 = vpack.c.b16 %v190, %v188
    %v201 = vpack.c.b16 %v191, %v189
    %v202 = vpack.c.b16 %v194, %v192
    %v203 = vpack.c.b16 %v195, %v193
    %vm212 = vcmask 523264
    %v214 = vsel %vm212, %v151, 0
    %216 = vmatprep.subr.bf16.mxu0 %v197
    %217 = vmatpush1.bf16.msra.mxu0 %v196
    %218 = vmatprep.subr.bf16.mxu0 %v199
    %219 = vmatpush1.bf16.msra.mxu0 %v198
    %220 = vmatprep.subr.bf16.mxu0 %v201
    %221 = vmatpush1.bf16.msra.mxu0 %v200
    %222 = vmatprep.subr.bf16.mxu0 %v203
    %223 = vmatpush1.bf16.msra.mxu0 %v202
    %224 = vmatprep.subr.bf16.mxu0 0
    %225 = vmatpush1.bf16.msra.mxu0 0
    %226 = vmatprep.subr.bf16.mxu0 0
    %227 = vmatpush1.bf16.msra.mxu0 0
    %228 = vmatprep.subr.bf16.mxu0 0
    %229 = vmatpush1.bf16.msra.mxu0 0
    %230 = vmatprep.subr.bf16.mxu0 0
    %231 = vmatpush1.bf16.msra.mxu0 0
    %232 = vmatprep.subr.bf16.mxu0 0
    %233 = vmatpush1.bf16.msra.mxu0 0
    %234 = vmatprep.subr.bf16.mxu0 0
    %235 = vmatpush1.bf16.msra.mxu0 0
    %236 = vmatprep.subr.bf16.mxu0 0
    %237 = vmatpush1.bf16.msra.mxu0 0
    %238 = vmatprep.subr.bf16.mxu0 0
    %239 = vmatpush1.bf16.msra.mxu0 0
    %240 = vmatprep.subr.bf16.mxu0 0
    %241 = vmatpush1.bf16.msra.mxu0 0
    %242 = vmatprep.subr.bf16.mxu0 0
    %243 = vmatpush1.bf16.msra.mxu0 0
    %244 = vmatprep.subr.bf16.mxu0 0
    %245 = vmatpush1.bf16.msra.mxu0 0
    %246 = vmatprep.subr.bf16.mxu0 0
    %247 = vmatpush1.bf16.msra.mxu0 0
    %248 = vmatprep.mubr.bf16.mxu0 0
    %249 = vmatmul.mubr.bf16.gmra.mrb[0].mxu0 %v214
    %v250 = vpop.f32.mrb[0].mxu0
    %v251 = vadd.f32 %v165, %v250
    %v252 = vpop.f32.mrb[0].mxu0
    %v253 = vadd.f32 %v169, %v252
    %v254 = vpop.f32.mrb[0].mxu0
    %v255 = vadd.f32 %v165, %v254
    %v256 = vpop.f32.mrb[0].mxu0
    %v257 = vadd.f32 %v169, %v256
    %258 = vdwg.mxu0
    %v259 = vmax.f32 %v251, 0.0
    %v260 = vmax.f32 %v253, 0.0
    %v261 = vmax.f32 %v255, 0.0
    %v262 = vmax.f32 %v257, 0.0
    %v263 = vpack.c.bf16 %v261, %v259
    %v264 = vpack.c.bf16 %v262, %v260
    %v265 = vld [vmem:[#allocation8] sm:$0xff]
    %v266 = vld [vmem:[#allocation8 + $0x8] sm:$0xff]
    %v267 = vld [vmem:[#allocation8 + $0x10] sm:$0xff]
    %v268 = vld [vmem:[#allocation8 + $0x18] sm:$0xff]
    %v269 = vld [vmem:[#allocation8 + $0x20] sm:$0xff]
    %v270 = vld [vmem:[#allocation8 + $0x28] sm:$0xff]
    %v271 = vld [vmem:[#allocation8 + $0x30] sm:$0xff]
    %v272 = vld [vmem:[#allocation8 + $0x38] sm:$0xff]
    %v273 = vld [vmem:[#allocation8 + $0x40] sm:$0xff]
    %v274 = vld [vmem:[#allocation8 + $0x48] sm:$0xff]
    %v275 = vld [vmem:[#allocation8 + $0x50] sm:$0xff]
    %v276 = vld [vmem:[#allocation8 + $0x58] sm:$0xff]
    %v277 = vld [vmem:[#allocation8 + $0x60] sm:$0xff]
    %v278 = vld [vmem:[#allocation8 + $0x68] sm:$0xff]
    %v279 = vld [vmem:[#allocation8 + $0x70] sm:$0xff]
    %v280 = vld [vmem:[#allocation8 + $0x78] sm:$0xff]
    %v281 = vld [vmem:[#allocation8 + $0x80] sm:$0xff]
    %v282 = vld [vmem:[#allocation8 + $0x88] sm:$0xff]
    %v283 = vld [vmem:[#allocation8 + $0x90] sm:$0xff]
    %v284 = vld [vmem:[#allocation8 + $0x98] sm:$0xff]
    %v285 = vld [vmem:[#allocation8 + $0xa0] sm:$0xff]
    %v286 = vld [vmem:[#allocation8 + $0xa8] sm:$0xff]
    %v287 = vld [vmem:[#allocation8 + $0xb0] sm:$0xff]
    %v288 = vld [vmem:[#allocation8 + $0xb8] sm:$0xff]
    %v289 = vld [vmem:[#allocation8 + $0xc0] sm:$0xff]
    %v290 = vld [vmem:[#allocation8 + $0xc8] sm:$0xff]
    %v291 = vld [vmem:[#allocation8 + $0xd0] sm:$0xff]
    %v292 = vld [vmem:[#allocation8 + $0xd8] sm:$0xff]
    %v293 = vld [vmem:[#allocation8 + $0xe0] sm:$0xff]
    %v294 = vld [vmem:[#allocation8 + $0xe8] sm:$0xff]
    %v295 = vld [vmem:[#allocation8 + $0xf0] sm:$0xff]
    %v296 = vld [vmem:[#allocation8 + $0xf8] sm:$0xff]
    %v297 = vld [vmem:[#allocation8 + $0x100] sm:$0xff]
    %v298 = vld [vmem:[#allocation8 + $0x108] sm:$0xff]
    %v299 = vld [vmem:[#allocation8 + $0x110] sm:$0xff]
    %v300 = vld [vmem:[#allocation8 + $0x118] sm:$0xff]
    %v301 = vld [vmem:[#allocation8 + $0x120] sm:$0xff]
    %v302 = vld [vmem:[#allocation8 + $0x128] sm:$0xff]
    %v303 = vld [vmem:[#allocation8 + $0x130] sm:$0xff]
    %v304 = vld [vmem:[#allocation8 + $0x138] sm:$0xff]
    %v305 = vld [vmem:[#allocation8 + $0x140] sm:$0xff]
    %v306 = vld [vmem:[#allocation8 + $0x148] sm:$0xff]
    %v307 = vld [vmem:[#allocation8 + $0x150] sm:$0xff]
    %v308 = vld [vmem:[#allocation8 + $0x158] sm:$0xff]
    %v309 = vld [vmem:[#allocation8 + $0x160] sm:$0xff]
    %v310 = vld [vmem:[#allocation8 + $0x168] sm:$0xff]
    %v311 = vld [vmem:[#allocation8 + $0x170] sm:$0xff]
    %v312 = vld [vmem:[#allocation8 + $0x178] sm:$0xff]
    %v313 = vld [vmem:[#allocation8 + $0x180] sm:$0xff]
    %v314 = vld [vmem:[#allocation8 + $0x188] sm:$0xff]
    %v315 = vld [vmem:[#allocation8 + $0x190] sm:$0xff]
    %v316 = vld [vmem:[#allocation8 + $0x198] sm:$0xff]
    %v317 = vld [vmem:[#allocation8 + $0x1a0] sm:$0xff]
    %v318 = vld [vmem:[#allocation8 + $0x1a8] sm:$0xff]
    %v319 = vld [vmem:[#allocation8 + $0x1b0] sm:$0xff]
    %v320 = vld [vmem:[#allocation8 + $0x1b8] sm:$0xff]
    %v321 = vld [vmem:[#allocation8 + $0x1c0] sm:$0xff]
    %v322 = vld [vmem:[#allocation8 + $0x1c8] sm:$0xff]
    %v323 = vld [vmem:[#allocation8 + $0x1d0] sm:$0xff]
    %v324 = vld [vmem:[#allocation8 + $0x1d8] sm:$0xff]
    %v325 = vld [vmem:[#allocation8 + $0x1e0] sm:$0xff]
    %v326 = vld [vmem:[#allocation8 + $0x1e8] sm:$0xff]
    %v327 = vld [vmem:[#allocation8 + $0x1f0] sm:$0xff]
    %v328 = vld [vmem:[#allocation8 + $0x1f8] sm:$0xff]
    %v329 = vld [vmem:[%s4] sm:$0xf]
    %v331 = vlaneseq
    %v332 = vshrl.u32 %v331, 7
    %v333 = vsub.s32 0, %v332
    %v334 = vrot.slane %v329, %v333
    %v335 = vlaneseq
    %v336 = vshrl.u32 %v335, 7
    %v337 = vsub.s32 1, %v336
    %v338 = vrot.slane %v329, %v337
    %v339 = vlaneseq
    %v340 = vshrl.u32 %v339, 7
    %v341 = vsub.s32 2, %v340
    %v342 = vrot.slane %v329, %v341
    %v343 = vlaneseq
    %v344 = vshrl.u32 %v343, 7
    %v345 = vsub.s32 3, %v344
    %v346 = vrot.slane %v329, %v345
    %v415 = vunpack.c.l.b16 %v265
    %v416 = vunpack.c.h.b16 %v265
    %v417 = vunpack.c.l.b16 %v266
    %v418 = vunpack.c.h.b16 %v266
    %v419 = vunpack.c.l.b16 %v267
    %v420 = vunpack.c.h.b16 %v267
    %v421 = vunpack.c.l.b16 %v268
    %v422 = vunpack.c.h.b16 %v268
    %v423 = vunpack.c.l.b16 %v269
    %v424 = vunpack.c.h.b16 %v269
    %v425 = vunpack.c.l.b16 %v270
    %v426 = vunpack.c.h.b16 %v270
    %v427 = vunpack.c.l.b16 %v271
    %v428 = vunpack.c.h.b16 %v271
    %v429 = vunpack.c.l.b16 %v272
    %v430 = vunpack.c.h.b16 %v272
    %v431 = vunpack.c.l.b16 %v273
    %v432 = vunpack.c.h.b16 %v273
    %v433 = vunpack.c.l.b16 %v274
    %v434 = vunpack.c.h.b16 %v274
    %v435 = vunpack.c.l.b16 %v275
    %v436 = vunpack.c.h.b16 %v275
    %v437 = vunpack.c.l.b16 %v276
    %v438 = vunpack.c.h.b16 %v276
    %v439 = vunpack.c.l.b16 %v277
    %v440 = vunpack.c.h.b16 %v277
    %v441 = vunpack.c.l.b16 %v278
    %v442 = vunpack.c.h.b16 %v278
    %v443 = vunpack.c.l.b16 %v279
    %v444 = vunpack.c.h.b16 %v279
    %v445 = vunpack.c.l.b16 %v280
    %v446 = vunpack.c.h.b16 %v280
    %v447 = vunpack.c.l.b16 %v281
    %v448 = vunpack.c.h.b16 %v281
    %v449 = vunpack.c.l.b16 %v282
    %v450 = vunpack.c.h.b16 %v282
    %v451 = vunpack.c.l.b16 %v283
    %v452 = vunpack.c.h.b16 %v283
    %v453 = vunpack.c.l.b16 %v284
    %v454 = vunpack.c.h.b16 %v284
    %v455 = vunpack.c.l.b16 %v285
    %v456 = vunpack.c.h.b16 %v285
    %v457 = vunpack.c.l.b16 %v286
    %v458 = vunpack.c.h.b16 %v286
    %v459 = vunpack.c.l.b16 %v287
    %v460 = vunpack.c.h.b16 %v287
    %v461 = vunpack.c.l.b16 %v288
    %v462 = vunpack.c.h.b16 %v288
    %v463 = vunpack.c.l.b16 %v289
    %v464 = vunpack.c.h.b16 %v289
    %v465 = vunpack.c.l.b16 %v290
    %v466 = vunpack.c.h.b16 %v290
    %v467 = vunpack.c.l.b16 %v291
    %v468 = vunpack.c.h.b16 %v291
    %v469 = vunpack.c.l.b16 %v292
    %v470 = vunpack.c.h.b16 %v292
    %v471 = vunpack.c.l.b16 %v293
    %v472 = vunpack.c.h.b16 %v293
    %v473 = vunpack.c.l.b16 %v294
    %v474 = vunpack.c.h.b16 %v294
    %v475 = vunpack.c.l.b16 %v295
    %v476 = vunpack.c.h.b16 %v295
    %v477 = vunpack.c.l.b16 %v296
    %v478 = vunpack.c.h.b16 %v296
    %v479 = vunpack.c.l.b16 %v297
    %v480 = vunpack.c.h.b16 %v297
    %v481 = vunpack.c.l.b16 %v298
    %v482 = vunpack.c.h.b16 %v298
    %v483 = vunpack.c.l.b16 %v299
    %v484 = vunpack.c.h.b16 %v299
    %v485 = vunpack.c.l.b16 %v300
    %v486 = vunpack.c.h.b16 %v300
    %v487 = vunpack.c.l.b16 %v301
    %v488 = vunpack.c.h.b16 %v301
    %v489 = vunpack.c.l.b16 %v302
    %v490 = vunpack.c.h.b16 %v302
    %v491 = vunpack.c.l.b16 %v303
    %v492 = vunpack.c.h.b16 %v303
    %v493 = vunpack.c.l.b16 %v304
    %v494 = vunpack.c.h.b16 %v304
    %v495 = vunpack.c.l.b16 %v305
    %v496 = vunpack.c.h.b16 %v305
    %v497 = vunpack.c.l.b16 %v306
    %v498 = vunpack.c.h.b16 %v306
    %v499 = vunpack.c.l.b16 %v307
    %v500 = vunpack.c.h.b16 %v307
    %v501 = vunpack.c.l.b16 %v308
    %v502 = vunpack.c.h.b16 %v308
    %v503 = vunpack.c.l.b16 %v309
    %v504 = vunpack.c.h.b16 %v309
    %v505 = vunpack.c.l.b16 %v310
    %v506 = vunpack.c.h.b16 %v310
    %v507 = vunpack.c.l.b16 %v311
    %v508 = vunpack.c.h.b16 %v311
    %v509 = vunpack.c.l.b16 %v312
    %v510 = vunpack.c.h.b16 %v312
    %v511 = vunpack.c.l.b16 %v313
    %v512 = vunpack.c.h.b16 %v313
    %v513 = vunpack.c.l.b16 %v314
    %v514 = vunpack.c.h.b16 %v314
    %v515 = vunpack.c.l.b16 %v315
    %v516 = vunpack.c.h.b16 %v315
    %v517 = vunpack.c.l.b16 %v316
    %v518 = vunpack.c.h.b16 %v316
    %v519 = vunpack.c.l.b16 %v317
    %v520 = vunpack.c.h.b16 %v317
    %v521 = vunpack.c.l.b16 %v318
    %v522 = vunpack.c.h.b16 %v318
    %v523 = vunpack.c.l.b16 %v319
    %v524 = vunpack.c.h.b16 %v319
    %v525 = vunpack.c.l.b16 %v320
    %v526 = vunpack.c.h.b16 %v320
    %v527 = vunpack.c.l.b16 %v321
    %v528 = vunpack.c.h.b16 %v321
    %v529 = vunpack.c.l.b16 %v322
    %v530 = vunpack.c.h.b16 %v322
    %v531 = vunpack.c.l.b16 %v323
    %v532 = vunpack.c.h.b16 %v323
    %v533 = vunpack.c.l.b16 %v324
    %v534 = vunpack.c.h.b16 %v324
    %v535 = vunpack.c.l.b16 %v325
    %v536 = vunpack.c.h.b16 %v325
    %v537 = vunpack.c.l.b16 %v326
    %v538 = vunpack.c.h.b16 %v326
    %v539 = vunpack.c.l.b16 %v327
    %v540 = vunpack.c.h.b16 %v327
    %v541 = vunpack.c.l.b16 %v328
    %v542 = vunpack.c.h.b16 %v328
    %v543 = vpack.c.b16 %v419, %v415
    %v544 = vpack.c.b16 %v420, %v416
    %v545 = vpack.c.b16 %v421, %v417
    %v546 = vpack.c.b16 %v422, %v418
    %v547 = vpack.c.b16 %v427, %v423
    %v548 = vpack.c.b16 %v428, %v424
    %v549 = vpack.c.b16 %v429, %v425
    %v550 = vpack.c.b16 %v430, %v426
    %v551 = vpack.c.b16 %v435, %v431
    %v552 = vpack.c.b16 %v436, %v432
    %v553 = vpack.c.b16 %v437, %v433
    %v554 = vpack.c.b16 %v438, %v434
    %v555 = vpack.c.b16 %v443, %v439
    %v556 = vpack.c.b16 %v444, %v440
    %v557 = vpack.c.b16 %v445, %v441
    %v558 = vpack.c.b16 %v446, %v442
    %v559 = vpack.c.b16 %v451, %v447
    %v560 = vpack.c.b16 %v452, %v448
    %v561 = vpack.c.b16 %v453, %v449
    %v562 = vpack.c.b16 %v454, %v450
    %v563 = vpack.c.b16 %v459, %v455
    %v564 = vpack.c.b16 %v460, %v456
    %v565 = vpack.c.b16 %v461, %v457
    %v566 = vpack.c.b16 %v462, %v458
    %v567 = vpack.c.b16 %v467, %v463
    %v568 = vpack.c.b16 %v468, %v464
    %v569 = vpack.c.b16 %v469, %v465
    %v570 = vpack.c.b16 %v470, %v466
    %v571 = vpack.c.b16 %v475, %v471
    %v572 = vpack.c.b16 %v476, %v472
    %v573 = vpack.c.b16 %v477, %v473
    %v574 = vpack.c.b16 %v478, %v474
    %v575 = vpack.c.b16 %v483, %v479
    %v576 = vpack.c.b16 %v484, %v480
    %v577 = vpack.c.b16 %v485, %v481
    %v578 = vpack.c.b16 %v486, %v482
    %v579 = vpack.c.b16 %v491, %v487
    %v580 = vpack.c.b16 %v492, %v488
    %v581 = vpack.c.b16 %v493, %v489
    %v582 = vpack.c.b16 %v494, %v490
    %v583 = vpack.c.b16 %v499, %v495
    %v584 = vpack.c.b16 %v500, %v496
    %v585 = vpack.c.b16 %v501, %v497
    %v586 = vpack.c.b16 %v502, %v498
    %v587 = vpack.c.b16 %v507, %v503
    %v588 = vpack.c.b16 %v508, %v504
    %v589 = vpack.c.b16 %v509, %v505
    %v590 = vpack.c.b16 %v510, %v506
    %v591 = vpack.c.b16 %v515, %v511
    %v592 = vpack.c.b16 %v516, %v512
    %v593 = vpack.c.b16 %v517, %v513
    %v594 = vpack.c.b16 %v518, %v514
    %v595 = vpack.c.b16 %v523, %v519
    %v596 = vpack.c.b16 %v524, %v520
    %v597 = vpack.c.b16 %v525, %v521
    %v598 = vpack.c.b16 %v526, %v522
    %v599 = vpack.c.b16 %v531, %v527
    %v600 = vpack.c.b16 %v532, %v528
    %v601 = vpack.c.b16 %v533, %v529
    %v602 = vpack.c.b16 %v534, %v530
    %v603 = vpack.c.b16 %v539, %v535
    %v604 = vpack.c.b16 %v540, %v536
    %v605 = vpack.c.b16 %v541, %v537
    %v606 = vpack.c.b16 %v542, %v538
    %671 = vmatprep.subr.bf16.mxu0 %v544
    %672 = vmatpush1.bf16.msra.mxu0 %v543
    %673 = vmatprep.subr.bf16.mxu0 %v548
    %674 = vmatpush1.bf16.msra.mxu0 %v547
    %675 = vmatprep.subr.bf16.mxu0 %v552
    %676 = vmatpush1.bf16.msra.mxu0 %v551
    %677 = vmatprep.subr.bf16.mxu0 %v556
    %678 = vmatpush1.bf16.msra.mxu0 %v555
    %679 = vmatprep.subr.bf16.mxu0 %v560
    %680 = vmatpush1.bf16.msra.mxu0 %v559
    %681 = vmatprep.subr.bf16.mxu0 %v564
    %682 = vmatpush1.bf16.msra.mxu0 %v563
    %683 = vmatprep.subr.bf16.mxu0 %v568
    %684 = vmatpush1.bf16.msra.mxu0 %v567
    %685 = vmatprep.subr.bf16.mxu0 %v572
    %686 = vmatpush1.bf16.msra.mxu0 %v571
    %687 = vmatprep.subr.bf16.mxu0 %v576
    %688 = vmatpush1.bf16.msra.mxu0 %v575
    %689 = vmatprep.subr.bf16.mxu0 %v580
    %690 = vmatpush1.bf16.msra.mxu0 %v579
    %691 = vmatprep.subr.bf16.mxu0 %v584
    %692 = vmatpush1.bf16.msra.mxu0 %v583
    %693 = vmatprep.subr.bf16.mxu0 %v588
    %694 = vmatpush1.bf16.msra.mxu0 %v587
    %695 = vmatprep.subr.bf16.mxu0 %v592
    %696 = vmatpush1.bf16.msra.mxu0 %v591
    %697 = vmatprep.subr.bf16.mxu0 %v596
    %698 = vmatpush1.bf16.msra.mxu0 %v595
    %699 = vmatprep.subr.bf16.mxu0 %v600
    %700 = vmatpush1.bf16.msra.mxu0 %v599
    %701 = vmatprep.subr.bf16.mxu0 %v604
    %702 = vmatpush1.bf16.msra.mxu0 %v603
    %703 = vmatprep.mubr.bf16.mxu0 %v264
    %704 = vmatmul.mubr.bf16.gmra.mrb[0].mxu0 %v263
    %v705 = vpop.f32.mrb[0].mxu0
    %v706 = vadd.f32 %v334, %v705
    %v707 = vpop.f32.mrb[0].mxu0
    %v708 = vadd.f32 %v338, %v707
    %v709 = vpop.f32.mrb[0].mxu0
    %v710 = vadd.f32 %v334, %v709
    %v711 = vpop.f32.mrb[0].mxu0
    %v712 = vadd.f32 %v338, %v711
    %713 = vdwg.mxu0
    %714 = vmatprep.subr.bf16.mxu0 %v546
    %715 = vmatpush1.bf16.msra.mxu0 %v545
    %716 = vmatprep.subr.bf16.mxu0 %v550
    %717 = vmatpush1.bf16.msra.mxu0 %v549
    %718 = vmatprep.subr.bf16.mxu0 %v554
    %719 = vmatpush1.bf16.msra.mxu0 %v553
    %720 = vmatprep.subr.bf16.mxu0 %v558
    %721 = vmatpush1.bf16.msra.mxu0 %v557
    %722 = vmatprep.subr.bf16.mxu0 %v562
    %723 = vmatpush1.bf16.msra.mxu0 %v561
    %724 = vmatprep.subr.bf16.mxu0 %v566
    %725 = vmatpush1.bf16.msra.mxu0 %v565
    %726 = vmatprep.subr.bf16.mxu0 %v570
    %727 = vmatpush1.bf16.msra.mxu0 %v569
    %728 = vmatprep.subr.bf16.mxu0 %v574
    %729 = vmatpush1.bf16.msra.mxu0 %v573
    %730 = vmatprep.subr.bf16.mxu0 %v578
    %731 = vmatpush1.bf16.msra.mxu0 %v577
    %732 = vmatprep.subr.bf16.mxu0 %v582
    %733 = vmatpush1.bf16.msra.mxu0 %v581
    %734 = vmatprep.subr.bf16.mxu0 %v586
    %735 = vmatpush1.bf16.msra.mxu0 %v585
    %736 = vmatprep.subr.bf16.mxu0 %v590
    %737 = vmatpush1.bf16.msra.mxu0 %v589
    %738 = vmatprep.subr.bf16.mxu0 %v594
    %739 = vmatpush1.bf16.msra.mxu0 %v593
    %740 = vmatprep.subr.bf16.mxu0 %v598
    %741 = vmatpush1.bf16.msra.mxu0 %v597
    %742 = vmatprep.subr.bf16.mxu0 %v602
    %743 = vmatpush1.bf16.msra.mxu0 %v601
    %744 = vmatprep.subr.bf16.mxu0 %v606
    %745 = vmatpush1.bf16.msra.mxu0 %v605
    %746 = vmatprep.mubr.bf16.mxu0 %v264
    %747 = vmatmul.mubr.bf16.gmra.mrb[0].mxu0 %v263
    %v748 = vpop.f32.mrb[0].mxu0
    %v749 = vadd.f32 %v342, %v748
    %v750 = vpop.f32.mrb[0].mxu0
    %v751 = vadd.f32 %v346, %v750
    %v752 = vpop.f32.mrb[0].mxu0
    %v753 = vadd.f32 %v342, %v752
    %v754 = vpop.f32.mrb[0].mxu0
    %v755 = vadd.f32 %v346, %v754
    %756 = vdwg.mxu0
    %v757 = vmax.f32 %v706, 0.0
    %v758 = vmax.f32 %v708, 0.0
    %v759 = vmax.f32 %v749, 0.0
    %v760 = vmax.f32 %v751, 0.0
    %v761 = vmax.f32 %v710, 0.0
    %v762 = vmax.f32 %v712, 0.0
    %v763 = vmax.f32 %v753, 0.0
    %v764 = vmax.f32 %v755, 0.0
    %v765 = vpack.c.bf16 %v761, %v757
    %v766 = vpack.c.bf16 %v762, %v758
    %v767 = vpack.c.bf16 %v763, %v759
    %v768 = vpack.c.bf16 %v764, %v760
    %v769 = vld [vmem:[#allocation9] sm:$0xff]
    %v770 = vld [vmem:[#allocation9 + $0x8] sm:$0xff]
    %v771 = vld [vmem:[#allocation9 + $0x10] sm:$0xff]
    %v772 = vld [vmem:[#allocation9 + $0x18] sm:$0xff]
    %v773 = vld [vmem:[#allocation9 + $0x20] sm:$0xff]
    %v774 = vld [vmem:[#allocation9 + $0x28] sm:$0xff]
    %v775 = vld [vmem:[#allocation9 + $0x30] sm:$0xff]
    %v776 = vld [vmem:[#allocation9 + $0x38] sm:$0xff]
    %v777 = vld [vmem:[#allocation9 + $0x40] sm:$0xff]
    %v778 = vld [vmem:[#allocation9 + $0x48] sm:$0xff]
    %v779 = vld [vmem:[#allocation9 + $0x50] sm:$0xff]
    %v780 = vld [vmem:[#allocation9 + $0x58] sm:$0xff]
    %v781 = vld [vmem:[#allocation9 + $0x60] sm:$0xff]
    %v782 = vld [vmem:[#allocation9 + $0x68] sm:$0xff]
    %v783 = vld [vmem:[#allocation9 + $0x70] sm:$0xff]
    %v784 = vld [vmem:[#allocation9 + $0x78] sm:$0xff]
    %v785 = vld [vmem:[#allocation9 + $0x80] sm:$0xff]
    %v786 = vld [vmem:[#allocation9 + $0x88] sm:$0xff]
    %v787 = vld [vmem:[#allocation9 + $0x90] sm:$0xff]
    %v788 = vld [vmem:[#allocation9 + $0x98] sm:$0xff]
    %v789 = vld [vmem:[#allocation9 + $0xa0] sm:$0xff]
    %v790 = vld [vmem:[#allocation9 + $0xa8] sm:$0xff]
    %v791 = vld [vmem:[#allocation9 + $0xb0] sm:$0xff]
    %v792 = vld [vmem:[#allocation9 + $0xb8] sm:$0xff]
    %v793 = vld [vmem:[#allocation9 + $0xc0] sm:$0xff]
    %v794 = vld [vmem:[#allocation9 + $0xc8] sm:$0xff]
    %v795 = vld [vmem:[#allocation9 + $0xd0] sm:$0xff]
    %v796 = vld [vmem:[#allocation9 + $0xd8] sm:$0xff]
    %v797 = vld [vmem:[#allocation9 + $0xe0] sm:$0xff]
    %v798 = vld [vmem:[#allocation9 + $0xe8] sm:$0xff]
    %v799 = vld [vmem:[#allocation9 + $0xf0] sm:$0xff]
    %v800 = vld [vmem:[#allocation9 + $0xf8] sm:$0xff]
    %v801 = vld [vmem:[#allocation9 + $0x100] sm:$0xff]
    %v802 = vld [vmem:[#allocation9 + $0x108] sm:$0xff]
    %v803 = vld [vmem:[#allocation9 + $0x110] sm:$0xff]
    %v804 = vld [vmem:[#allocation9 + $0x118] sm:$0xff]
    %v805 = vld [vmem:[#allocation9 + $0x120] sm:$0xff]
    %v806 = vld [vmem:[#allocation9 + $0x128] sm:$0xff]
    %v807 = vld [vmem:[#allocation9 + $0x130] sm:$0xff]
    %v808 = vld [vmem:[#allocation9 + $0x138] sm:$0xff]
    %v809 = vld [vmem:[#allocation9 + $0x140] sm:$0xff]
    %v810 = vld [vmem:[#allocation9 + $0x148] sm:$0xff]
    %v811 = vld [vmem:[#allocation9 + $0x150] sm:$0xff]
    %v812 = vld [vmem:[#allocation9 + $0x158] sm:$0xff]
    %v813 = vld [vmem:[#allocation9 + $0x160] sm:$0xff]
    %v814 = vld [vmem:[#allocation9 + $0x168] sm:$0xff]
    %v815 = vld [vmem:[#allocation9 + $0x170] sm:$0xff]
    %v816 = vld [vmem:[#allocation9 + $0x178] sm:$0xff]
    %v817 = vld [vmem:[#allocation9 + $0x180] sm:$0xff]
    %v818 = vld [vmem:[#allocation9 + $0x188] sm:$0xff]
    %v819 = vld [vmem:[#allocation9 + $0x190] sm:$0xff]
    %v820 = vld [vmem:[#allocation9 + $0x198] sm:$0xff]
    %v821 = vld [vmem:[#allocation9 + $0x1a0] sm:$0xff]
    %v822 = vld [vmem:[#allocation9 + $0x1a8] sm:$0xff]
    %v823 = vld [vmem:[#allocation9 + $0x1b0] sm:$0xff]
    %v824 = vld [vmem:[#allocation9 + $0x1b8] sm:$0xff]
    %v825 = vld [vmem:[#allocation9 + $0x1c0] sm:$0xff]
    %v826 = vld [vmem:[#allocation9 + $0x1c8] sm:$0xff]
    %v827 = vld [vmem:[#allocation9 + $0x1d0] sm:$0xff]
    %v828 = vld [vmem:[#allocation9 + $0x1d8] sm:$0xff]
    %v829 = vld [vmem:[#allocation9 + $0x1e0] sm:$0xff]
    %v830 = vld [vmem:[#allocation9 + $0x1e8] sm:$0xff]
    %v831 = vld [vmem:[#allocation9 + $0x1f0] sm:$0xff]
    %v832 = vld [vmem:[#allocation9 + $0x1f8] sm:$0xff]
    %v833 = vld [vmem:[#allocation9 + $0x200] sm:$0xff]
    %v834 = vld [vmem:[#allocation9 + $0x208] sm:$0xff]
    %v835 = vld [vmem:[#allocation9 + $0x210] sm:$0xff]
    %v836 = vld [vmem:[#allocation9 + $0x218] sm:$0xff]
    %v837 = vld [vmem:[#allocation9 + $0x220] sm:$0xff]
    %v838 = vld [vmem:[#allocation9 + $0x228] sm:$0xff]
    %v839 = vld [vmem:[#allocation9 + $0x230] sm:$0xff]
    %v840 = vld [vmem:[#allocation9 + $0x238] sm:$0xff]
    %v841 = vld [vmem:[#allocation9 + $0x240] sm:$0xff]
    %v842 = vld [vmem:[#allocation9 + $0x248] sm:$0xff]
    %v843 = vld [vmem:[#allocation9 + $0x250] sm:$0xff]
    %v844 = vld [vmem:[#allocation9 + $0x258] sm:$0xff]
    %v845 = vld [vmem:[#allocation9 + $0x260] sm:$0xff]
    %v846 = vld [vmem:[#allocation9 + $0x268] sm:$0xff]
    %v847 = vld [vmem:[#allocation9 + $0x270] sm:$0xff]
    %v848 = vld [vmem:[#allocation9 + $0x278] sm:$0xff]
    %v849 = vld [vmem:[#allocation9 + $0x280] sm:$0xff]
    %v850 = vld [vmem:[#allocation9 + $0x288] sm:$0xff]
    %v851 = vld [vmem:[#allocation9 + $0x290] sm:$0xff]
    %v852 = vld [vmem:[#allocation9 + $0x298] sm:$0xff]
    %v853 = vld [vmem:[#allocation9 + $0x2a0] sm:$0xff]
    %v854 = vld [vmem:[#allocation9 + $0x2a8] sm:$0xff]
    %v855 = vld [vmem:[#allocation9 + $0x2b0] sm:$0xff]
    %v856 = vld [vmem:[#allocation9 + $0x2b8] sm:$0xff]
    %v857 = vld [vmem:[#allocation9 + $0x2c0] sm:$0xff]
    %v858 = vld [vmem:[#allocation9 + $0x2c8] sm:$0xff]
    %v859 = vld [vmem:[#allocation9 + $0x2d0] sm:$0xff]
    %v860 = vld [vmem:[#allocation9 + $0x2d8] sm:$0xff]
    %v861 = vld [vmem:[#allocation9 + $0x2e0] sm:$0xff]
    %v862 = vld [vmem:[#allocation9 + $0x2e8] sm:$0xff]
    %v863 = vld [vmem:[#allocation9 + $0x2f0] sm:$0xff]
    %v864 = vld [vmem:[#allocation9 + $0x2f8] sm:$0xff]
    %v865 = vld [vmem:[#allocation9 + $0x300] sm:$0xff]
    %v866 = vld [vmem:[#allocation9 + $0x308] sm:$0xff]
    %v867 = vld [vmem:[#allocation9 + $0x310] sm:$0xff]
    %v868 = vld [vmem:[#allocation9 + $0x318] sm:$0xff]
    %v869 = vld [vmem:[#allocation9 + $0x320] sm:$0xff]
    %v870 = vld [vmem:[#allocation9 + $0x328] sm:$0xff]
    %v871 = vld [vmem:[#allocation9 + $0x330] sm:$0xff]
    %v872 = vld [vmem:[#allocation9 + $0x338] sm:$0xff]
    %v873 = vld [vmem:[#allocation9 + $0x340] sm:$0xff]
    %v874 = vld [vmem:[#allocation9 + $0x348] sm:$0xff]
    %v875 = vld [vmem:[#allocation9 + $0x350] sm:$0xff]
    %v876 = vld [vmem:[#allocation9 + $0x358] sm:$0xff]
    %v877 = vld [vmem:[#allocation9 + $0x360] sm:$0xff]
    %v878 = vld [vmem:[#allocation9 + $0x368] sm:$0xff]
    %v879 = vld [vmem:[#allocation9 + $0x370] sm:$0xff]
    %v880 = vld [vmem:[#allocation9 + $0x378] sm:$0xff]
    %v881 = vld [vmem:[#allocation9 + $0x380] sm:$0xff]
    %v882 = vld [vmem:[#allocation9 + $0x388] sm:$0xff]
    %v883 = vld [vmem:[#allocation9 + $0x390] sm:$0xff]
    %v884 = vld [vmem:[#allocation9 + $0x398] sm:$0xff]
    %v885 = vld [vmem:[#allocation9 + $0x3a0] sm:$0xff]
    %v886 = vld [vmem:[#allocation9 + $0x3a8] sm:$0xff]
    %v887 = vld [vmem:[#allocation9 + $0x3b0] sm:$0xff]
    %v888 = vld [vmem:[#allocation9 + $0x3b8] sm:$0xff]
    %v889 = vld [vmem:[#allocation9 + $0x3c0] sm:$0xff]
    %v890 = vld [vmem:[#allocation9 + $0x3c8] sm:$0xff]
    %v891 = vld [vmem:[#allocation9 + $0x3d0] sm:$0xff]
    %v892 = vld [vmem:[#allocation9 + $0x3d8] sm:$0xff]
    %v893 = vld [vmem:[#allocation9 + $0x3e0] sm:$0xff]
    %v894 = vld [vmem:[#allocation9 + $0x3e8] sm:$0xff]
    %v895 = vld [vmem:[#allocation9 + $0x3f0] sm:$0xff]
    %v896 = vld [vmem:[#allocation9 + $0x3f8] sm:$0xff]
    %v897 = vld [vmem:[%s6] sm:$0xf]
    %v899 = vlaneseq
    %v900 = vshrl.u32 %v899, 7
    %v901 = vsub.s32 0, %v900
    %v902 = vrot.slane %v897, %v901
    %v903 = vlaneseq
    %v904 = vshrl.u32 %v903, 7
    %v905 = vsub.s32 1, %v904
    %v906 = vrot.slane %v897, %v905
    %v907 = vlaneseq
    %v908 = vshrl.u32 %v907, 7
    %v909 = vsub.s32 2, %v908
    %v910 = vrot.slane %v897, %v909
    %v911 = vlaneseq
    %v912 = vshrl.u32 %v911, 7
    %v913 = vsub.s32 3, %v912
    %v914 = vrot.slane %v897, %v913
    %v1047 = vunpack.c.l.b16 %v769
    %v1048 = vunpack.c.h.b16 %v769
    %v1049 = vunpack.c.l.b16 %v770
    %v1050 = vunpack.c.h.b16 %v770
    %v1051 = vunpack.c.l.b16 %v771
    %v1052 = vunpack.c.h.b16 %v771
    %v1053 = vunpack.c.l.b16 %v772
    %v1054 = vunpack.c.h.b16 %v772
    %v1055 = vunpack.c.l.b16 %v773
    %v1056 = vunpack.c.h.b16 %v773
    %v1057 = vunpack.c.l.b16 %v774
    %v1058 = vunpack.c.h.b16 %v774
    %v1059 = vunpack.c.l.b16 %v775
    %v1060 = vunpack.c.h.b16 %v775
    %v1061 = vunpack.c.l.b16 %v776
    %v1062 = vunpack.c.h.b16 %v776
    %v1063 = vunpack.c.l.b16 %v777
    %v1064 = vunpack.c.h.b16 %v777
    %v1065 = vunpack.c.l.b16 %v778
    %v1066 = vunpack.c.h.b16 %v778
    %v1067 = vunpack.c.l.b16 %v779
    %v1068 = vunpack.c.h.b16 %v779
    %v1069 = vunpack.c.l.b16 %v780
    %v1070 = vunpack.c.h.b16 %v780
    %v1071 = vunpack.c.l.b16 %v781
    %v1072 = vunpack.c.h.b16 %v781
    %v1073 = vunpack.c.l.b16 %v782
    %v1074 = vunpack.c.h.b16 %v782
    %v1075 = vunpack.c.l.b16 %v783
    %v1076 = vunpack.c.h.b16 %v783
    %v1077 = vunpack.c.l.b16 %v784
    %v1078 = vunpack.c.h.b16 %v784
    %v1079 = vunpack.c.l.b16 %v785
    %v1080 = vunpack.c.h.b16 %v785
    %v1081 = vunpack.c.l.b16 %v786
    %v1082 = vunpack.c.h.b16 %v786
    %v1083 = vunpack.c.l.b16 %v787
    %v1084 = vunpack.c.h.b16 %v787
    %v1085 = vunpack.c.l.b16 %v788
    %v1086 = vunpack.c.h.b16 %v788
    %v1087 = vunpack.c.l.b16 %v789
    %v1088 = vunpack.c.h.b16 %v789
    %v1089 = vunpack.c.l.b16 %v790
    %v1090 = vunpack.c.h.b16 %v790
    %v1091 = vunpack.c.l.b16 %v791
    %v1092 = vunpack.c.h.b16 %v791
    %v1093 = vunpack.c.l.b16 %v792
    %v1094 = vunpack.c.h.b16 %v792
    %v1095 = vunpack.c.l.b16 %v793
    %v1096 = vunpack.c.h.b16 %v793
    %v1097 = vunpack.c.l.b16 %v794
    %v1098 = vunpack.c.h.b16 %v794
    %v1099 = vunpack.c.l.b16 %v795
    %v1100 = vunpack.c.h.b16 %v795
    %v1101 = vunpack.c.l.b16 %v796
    %v1102 = vunpack.c.h.b16 %v796
    %v1103 = vunpack.c.l.b16 %v797
    %v1104 = vunpack.c.h.b16 %v797
    %v1105 = vunpack.c.l.b16 %v798
    %v1106 = vunpack.c.h.b16 %v798
    %v1107 = vunpack.c.l.b16 %v799
    %v1108 = vunpack.c.h.b16 %v799
    %v1109 = vunpack.c.l.b16 %v800
    %v1110 = vunpack.c.h.b16 %v800
    %v1111 = vunpack.c.l.b16 %v801
    %v1112 = vunpack.c.h.b16 %v801
    %v1113 = vunpack.c.l.b16 %v802
    %v1114 = vunpack.c.h.b16 %v802
    %v1115 = vunpack.c.l.b16 %v803
    %v1116 = vunpack.c.h.b16 %v803
    %v1117 = vunpack.c.l.b16 %v804
    %v1118 = vunpack.c.h.b16 %v804
    %v1119 = vunpack.c.l.b16 %v805
    %v1120 = vunpack.c.h.b16 %v805
    %v1121 = vunpack.c.l.b16 %v806
    %v1122 = vunpack.c.h.b16 %v806
    %v1123 = vunpack.c.l.b16 %v807
    %v1124 = vunpack.c.h.b16 %v807
    %v1125 = vunpack.c.l.b16 %v808
    %v1126 = vunpack.c.h.b16 %v808
    %v1127 = vunpack.c.l.b16 %v809
    %v1128 = vunpack.c.h.b16 %v809
    %v1129 = vunpack.c.l.b16 %v810
    %v1130 = vunpack.c.h.b16 %v810
    %v1131 = vunpack.c.l.b16 %v811
    %v1132 = vunpack.c.h.b16 %v811
    %v1133 = vunpack.c.l.b16 %v812
    %v1134 = vunpack.c.h.b16 %v812
    %v1135 = vunpack.c.l.b16 %v813
    %v1136 = vunpack.c.h.b16 %v813
    %v1137 = vunpack.c.l.b16 %v814
    %v1138 = vunpack.c.h.b16 %v814
    %v1139 = vunpack.c.l.b16 %v815
    %v1140 = vunpack.c.h.b16 %v815
    %v1141 = vunpack.c.l.b16 %v816
    %v1142 = vunpack.c.h.b16 %v816
    %v1143 = vunpack.c.l.b16 %v817
    %v1144 = vunpack.c.h.b16 %v817
    %v1145 = vunpack.c.l.b16 %v818
    %v1146 = vunpack.c.h.b16 %v818
    %v1147 = vunpack.c.l.b16 %v819
    %v1148 = vunpack.c.h.b16 %v819
    %v1149 = vunpack.c.l.b16 %v820
    %v1150 = vunpack.c.h.b16 %v820
    %v1151 = vunpack.c.l.b16 %v821
    %v1152 = vunpack.c.h.b16 %v821
    %v1153 = vunpack.c.l.b16 %v822
    %v1154 = vunpack.c.h.b16 %v822
    %v1155 = vunpack.c.l.b16 %v823
    %v1156 = vunpack.c.h.b16 %v823
    %v1157 = vunpack.c.l.b16 %v824
    %v1158 = vunpack.c.h.b16 %v824
    %v1159 = vunpack.c.l.b16 %v825
    %v1160 = vunpack.c.h.b16 %v825
    %v1161 = vunpack.c.l.b16 %v826
    %v1162 = vunpack.c.h.b16 %v826
    %v1163 = vunpack.c.l.b16 %v827
    %v1164 = vunpack.c.h.b16 %v827
    %v1165 = vunpack.c.l.b16 %v828
    %v1166 = vunpack.c.h.b16 %v828
    %v1167 = vunpack.c.l.b16 %v829
    %v1168 = vunpack.c.h.b16 %v829
    %v1169 = vunpack.c.l.b16 %v830
    %v1170 = vunpack.c.h.b16 %v830
    %v1171 = vunpack.c.l.b16 %v831
    %v1172 = vunpack.c.h.b16 %v831
    %v1173 = vunpack.c.l.b16 %v832
    %v1174 = vunpack.c.h.b16 %v832
    %v1175 = vunpack.c.l.b16 %v833
    %v1176 = vunpack.c.h.b16 %v833
    %v1177 = vunpack.c.l.b16 %v834
    %v1178 = vunpack.c.h.b16 %v834
    %v1179 = vunpack.c.l.b16 %v835
    %v1180 = vunpack.c.h.b16 %v835
    %v1181 = vunpack.c.l.b16 %v836
    %v1182 = vunpack.c.h.b16 %v836
    %v1183 = vunpack.c.l.b16 %v837
    %v1184 = vunpack.c.h.b16 %v837
    %v1185 = vunpack.c.l.b16 %v838
    %v1186 = vunpack.c.h.b16 %v838
    %v1187 = vunpack.c.l.b16 %v839
    %v1188 = vunpack.c.h.b16 %v839
    %v1189 = vunpack.c.l.b16 %v840
    %v1190 = vunpack.c.h.b16 %v840
    %v1191 = vunpack.c.l.b16 %v841
    %v1192 = vunpack.c.h.b16 %v841
    %v1193 = vunpack.c.l.b16 %v842
    %v1194 = vunpack.c.h.b16 %v842
    %v1195 = vunpack.c.l.b16 %v843
    %v1196 = vunpack.c.h.b16 %v843
    %v1197 = vunpack.c.l.b16 %v844
    %v1198 = vunpack.c.h.b16 %v844
    %v1199 = vunpack.c.l.b16 %v845
    %v1200 = vunpack.c.h.b16 %v845
    %v1201 = vunpack.c.l.b16 %v846
    %v1202 = vunpack.c.h.b16 %v846
    %v1203 = vunpack.c.l.b16 %v847
    %v1204 = vunpack.c.h.b16 %v847
    %v1205 = vunpack.c.l.b16 %v848
    %v1206 = vunpack.c.h.b16 %v848
    %v1207 = vunpack.c.l.b16 %v849
    %v1208 = vunpack.c.h.b16 %v849
    %v1209 = vunpack.c.l.b16 %v850
    %v1210 = vunpack.c.h.b16 %v850
    %v1211 = vunpack.c.l.b16 %v851
    %v1212 = vunpack.c.h.b16 %v851
    %v1213 = vunpack.c.l.b16 %v852
    %v1214 = vunpack.c.h.b16 %v852
    %v1215 = vunpack.c.l.b16 %v853
    %v1216 = vunpack.c.h.b16 %v853
    %v1217 = vunpack.c.l.b16 %v854
    %v1218 = vunpack.c.h.b16 %v854
    %v1219 = vunpack.c.l.b16 %v855
    %v1220 = vunpack.c.h.b16 %v855
    %v1221 = vunpack.c.l.b16 %v856
    %v1222 = vunpack.c.h.b16 %v856
    %v1223 = vunpack.c.l.b16 %v857
    %v1224 = vunpack.c.h.b16 %v857
    %v1225 = vunpack.c.l.b16 %v858
    %v1226 = vunpack.c.h.b16 %v858
    %v1227 = vunpack.c.l.b16 %v859
    %v1228 = vunpack.c.h.b16 %v859
    %v1229 = vunpack.c.l.b16 %v860
    %v1230 = vunpack.c.h.b16 %v860
    %v1231 = vunpack.c.l.b16 %v861
    %v1232 = vunpack.c.h.b16 %v861
    %v1233 = vunpack.c.l.b16 %v862
    %v1234 = vunpack.c.h.b16 %v862
    %v1235 = vunpack.c.l.b16 %v863
    %v1236 = vunpack.c.h.b16 %v863
    %v1237 = vunpack.c.l.b16 %v864
    %v1238 = vunpack.c.h.b16 %v864
    %v1239 = vunpack.c.l.b16 %v865
    %v1240 = vunpack.c.h.b16 %v865
    %v1241 = vunpack.c.l.b16 %v866
    %v1242 = vunpack.c.h.b16 %v866
    %v1243 = vunpack.c.l.b16 %v867
    %v1244 = vunpack.c.h.b16 %v867
    %v1245 = vunpack.c.l.b16 %v868
    %v1246 = vunpack.c.h.b16 %v868
    %v1247 = vunpack.c.l.b16 %v869
    %v1248 = vunpack.c.h.b16 %v869
    %v1249 = vunpack.c.l.b16 %v870
    %v1250 = vunpack.c.h.b16 %v870
    %v1251 = vunpack.c.l.b16 %v871
    %v1252 = vunpack.c.h.b16 %v871
    %v1253 = vunpack.c.l.b16 %v872
    %v1254 = vunpack.c.h.b16 %v872
    %v1255 = vunpack.c.l.b16 %v873
    %v1256 = vunpack.c.h.b16 %v873
    %v1257 = vunpack.c.l.b16 %v874
    %v1258 = vunpack.c.h.b16 %v874
    %v1259 = vunpack.c.l.b16 %v875
    %v1260 = vunpack.c.h.b16 %v875
    %v1261 = vunpack.c.l.b16 %v876
    %v1262 = vunpack.c.h.b16 %v876
    %v1263 = vunpack.c.l.b16 %v877
    %v1264 = vunpack.c.h.b16 %v877
    %v1265 = vunpack.c.l.b16 %v878
    %v1266 = vunpack.c.h.b16 %v878
    %v1267 = vunpack.c.l.b16 %v879
    %v1268 = vunpack.c.h.b16 %v879
    %v1269 = vunpack.c.l.b16 %v880
    %v1270 = vunpack.c.h.b16 %v880
    %v1271 = vunpack.c.l.b16 %v881
    %v1272 = vunpack.c.h.b16 %v881
    %v1273 = vunpack.c.l.b16 %v882
    %v1274 = vunpack.c.h.b16 %v882
    %v1275 = vunpack.c.l.b16 %v883
    %v1276 = vunpack.c.h.b16 %v883
    %v1277 = vunpack.c.l.b16 %v884
    %v1278 = vunpack.c.h.b16 %v884
    %v1279 = vunpack.c.l.b16 %v885
    %v1280 = vunpack.c.h.b16 %v885
    %v1281 = vunpack.c.l.b16 %v886
    %v1282 = vunpack.c.h.b16 %v886
    %v1283 = vunpack.c.l.b16 %v887
    %v1284 = vunpack.c.h.b16 %v887
    %v1285 = vunpack.c.l.b16 %v888
    %v1286 = vunpack.c.h.b16 %v888
    %v1287 = vunpack.c.l.b16 %v889
    %v1288 = vunpack.c.h.b16 %v889
    %v1289 = vunpack.c.l.b16 %v890
    %v1290 = vunpack.c.h.b16 %v890
    %v1291 = vunpack.c.l.b16 %v891
    %v1292 = vunpack.c.h.b16 %v891
    %v1293 = vunpack.c.l.b16 %v892
    %v1294 = vunpack.c.h.b16 %v892
    %v1295 = vunpack.c.l.b16 %v893
    %v1296 = vunpack.c.h.b16 %v893
    %v1297 = vunpack.c.l.b16 %v894
    %v1298 = vunpack.c.h.b16 %v894
    %v1299 = vunpack.c.l.b16 %v895
    %v1300 = vunpack.c.h.b16 %v895
    %v1301 = vunpack.c.l.b16 %v896
    %v1302 = vunpack.c.h.b16 %v896
    %v1303 = vpack.c.b16 %v1051, %v1047
    %v1304 = vpack.c.b16 %v1052, %v1048
    %v1305 = vpack.c.b16 %v1053, %v1049
    %v1306 = vpack.c.b16 %v1054, %v1050
    %v1307 = vpack.c.b16 %v1059, %v1055
    %v1308 = vpack.c.b16 %v1060, %v1056
    %v1309 = vpack.c.b16 %v1061, %v1057
    %v1310 = vpack.c.b16 %v1062, %v1058
    %v1311 = vpack.c.b16 %v1067, %v1063
    %v1312 = vpack.c.b16 %v1068, %v1064
    %v1313 = vpack.c.b16 %v1069, %v1065
    %v1314 = vpack.c.b16 %v1070, %v1066
    %v1315 = vpack.c.b16 %v1075, %v1071
    %v1316 = vpack.c.b16 %v1076, %v1072
    %v1317 = vpack.c.b16 %v1077, %v1073
    %v1318 = vpack.c.b16 %v1078, %v1074
    %v1319 = vpack.c.b16 %v1083, %v1079
    %v1320 = vpack.c.b16 %v1084, %v1080
    %v1321 = vpack.c.b16 %v1085, %v1081
    %v1322 = vpack.c.b16 %v1086, %v1082
    %v1323 = vpack.c.b16 %v1091, %v1087
    %v1324 = vpack.c.b16 %v1092, %v1088
    %v1325 = vpack.c.b16 %v1093, %v1089
    %v1326 = vpack.c.b16 %v1094, %v1090
    %v1327 = vpack.c.b16 %v1099, %v1095
    %v1328 = vpack.c.b16 %v1100, %v1096
    %v1329 = vpack.c.b16 %v1101, %v1097
    %v1330 = vpack.c.b16 %v1102, %v1098
    %v1331 = vpack.c.b16 %v1107, %v1103
    %v1332 = vpack.c.b16 %v1108, %v1104
    %v1333 = vpack.c.b16 %v1109, %v1105
    %v1334 = vpack.c.b16 %v1110, %v1106
    %v1335 = vpack.c.b16 %v1115, %v1111
    %v1336 = vpack.c.b16 %v1116, %v1112
    %v1337 = vpack.c.b16 %v1117, %v1113
    %v1338 = vpack.c.b16 %v1118, %v1114
    %v1339 = vpack.c.b16 %v1123, %v1119
    %v1340 = vpack.c.b16 %v1124, %v1120
    %v1341 = vpack.c.b16 %v1125, %v1121
    %v1342 = vpack.c.b16 %v1126, %v1122
    %v1343 = vpack.c.b16 %v1131, %v1127
    %v1344 = vpack.c.b16 %v1132, %v1128
    %v1345 = vpack.c.b16 %v1133, %v1129
    %v1346 = vpack.c.b16 %v1134, %v1130
    %v1347 = vpack.c.b16 %v1139, %v1135
    %v1348 = vpack.c.b16 %v1140, %v1136
    %v1349 = vpack.c.b16 %v1141, %v1137
    %v1350 = vpack.c.b16 %v1142, %v1138
    %v1351 = vpack.c.b16 %v1147, %v1143
    %v1352 = vpack.c.b16 %v1148, %v1144
    %v1353 = vpack.c.b16 %v1149, %v1145
    %v1354 = vpack.c.b16 %v1150, %v1146
    %v1355 = vpack.c.b16 %v1155, %v1151
    %v1356 = vpack.c.b16 %v1156, %v1152
    %v1357 = vpack.c.b16 %v1157, %v1153
    %v1358 = vpack.c.b16 %v1158, %v1154
    %v1359 = vpack.c.b16 %v1163, %v1159
    %v1360 = vpack.c.b16 %v1164, %v1160
    %v1361 = vpack.c.b16 %v1165, %v1161
    %v1362 = vpack.c.b16 %v1166, %v1162
    %v1363 = vpack.c.b16 %v1171, %v1167
    %v1364 = vpack.c.b16 %v1172, %v1168
    %v1365 = vpack.c.b16 %v1173, %v1169
    %v1366 = vpack.c.b16 %v1174, %v1170
    %v1367 = vpack.c.b16 %v1179, %v1175
    %v1368 = vpack.c.b16 %v1180, %v1176
    %v1369 = vpack.c.b16 %v1181, %v1177
    %v1370 = vpack.c.b16 %v1182, %v1178
    %v1371 = vpack.c.b16 %v1187, %v1183
    %v1372 = vpack.c.b16 %v1188, %v1184
    %v1373 = vpack.c.b16 %v1189, %v1185
    %v1374 = vpack.c.b16 %v1190, %v1186
    %v1375 = vpack.c.b16 %v1195, %v1191
    %v1376 = vpack.c.b16 %v1196, %v1192
    %v1377 = vpack.c.b16 %v1197, %v1193
    %v1378 = vpack.c.b16 %v1198, %v1194
    %v1379 = vpack.c.b16 %v1203, %v1199
    %v1380 = vpack.c.b16 %v1204, %v1200
    %v1381 = vpack.c.b16 %v1205, %v1201
    %v1382 = vpack.c.b16 %v1206, %v1202
    %v1383 = vpack.c.b16 %v1211, %v1207
    %v1384 = vpack.c.b16 %v1212, %v1208
    %v1385 = vpack.c.b16 %v1213, %v1209
    %v1386 = vpack.c.b16 %v1214, %v1210
    %v1387 = vpack.c.b16 %v1219, %v1215
    %v1388 = vpack.c.b16 %v1220, %v1216
    %v1389 = vpack.c.b16 %v1221, %v1217
    %v1390 = vpack.c.b16 %v1222, %v1218
    %v1391 = vpack.c.b16 %v1227, %v1223
    %v1392 = vpack.c.b16 %v1228, %v1224
    %v1393 = vpack.c.b16 %v1229, %v1225
    %v1394 = vpack.c.b16 %v1230, %v1226
    %v1395 = vpack.c.b16 %v1235, %v1231
    %v1396 = vpack.c.b16 %v1236, %v1232
    %v1397 = vpack.c.b16 %v1237, %v1233
    %v1398 = vpack.c.b16 %v1238, %v1234
    %v1399 = vpack.c.b16 %v1243, %v1239
    %v1400 = vpack.c.b16 %v1244, %v1240
    %v1401 = vpack.c.b16 %v1245, %v1241
    %v1402 = vpack.c.b16 %v1246, %v1242
    %v1403 = vpack.c.b16 %v1251, %v1247
    %v1404 = vpack.c.b16 %v1252, %v1248
    %v1405 = vpack.c.b16 %v1253, %v1249
    %v1406 = vpack.c.b16 %v1254, %v1250
    %v1407 = vpack.c.b16 %v1259, %v1255
    %v1408 = vpack.c.b16 %v1260, %v1256
    %v1409 = vpack.c.b16 %v1261, %v1257
    %v1410 = vpack.c.b16 %v1262, %v1258
    %v1411 = vpack.c.b16 %v1267, %v1263
    %v1412 = vpack.c.b16 %v1268, %v1264
    %v1413 = vpack.c.b16 %v1269, %v1265
    %v1414 = vpack.c.b16 %v1270, %v1266
    %v1415 = vpack.c.b16 %v1275, %v1271
    %v1416 = vpack.c.b16 %v1276, %v1272
    %v1417 = vpack.c.b16 %v1277, %v1273
    %v1418 = vpack.c.b16 %v1278, %v1274
    %v1419 = vpack.c.b16 %v1283, %v1279
    %v1420 = vpack.c.b16 %v1284, %v1280
    %v1421 = vpack.c.b16 %v1285, %v1281
    %v1422 = vpack.c.b16 %v1286, %v1282
    %v1423 = vpack.c.b16 %v1291, %v1287
    %v1424 = vpack.c.b16 %v1292, %v1288
    %v1425 = vpack.c.b16 %v1293, %v1289
    %v1426 = vpack.c.b16 %v1294, %v1290
    %v1427 = vpack.c.b16 %v1299, %v1295
    %v1428 = vpack.c.b16 %v1300, %v1296
    %v1429 = vpack.c.b16 %v1301, %v1297
    %v1430 = vpack.c.b16 %v1302, %v1298
    %1559 = vmatprep.subr.bf16.mxu0 %v1304
    %1560 = vmatpush1.bf16.msra.mxu0 %v1303
    %1561 = vmatprep.subr.bf16.mxu0 %v1308
    %1562 = vmatpush1.bf16.msra.mxu0 %v1307
    %1563 = vmatprep.subr.bf16.mxu0 %v1312
    %1564 = vmatpush1.bf16.msra.mxu0 %v1311
    %1565 = vmatprep.subr.bf16.mxu0 %v1316
    %1566 = vmatpush1.bf16.msra.mxu0 %v1315
    %1567 = vmatprep.subr.bf16.mxu0 %v1320
    %1568 = vmatpush1.bf16.msra.mxu0 %v1319
    %1569 = vmatprep.subr.bf16.mxu0 %v1324
    %1570 = vmatpush1.bf16.msra.mxu0 %v1323
    %1571 = vmatprep.subr.bf16.mxu0 %v1328
    %1572 = vmatpush1.bf16.msra.mxu0 %v1327
    %1573 = vmatprep.subr.bf16.mxu0 %v1332
    %1574 = vmatpush1.bf16.msra.mxu0 %v1331
    %1575 = vmatprep.subr.bf16.mxu0 %v1336
    %1576 = vmatpush1.bf16.msra.mxu0 %v1335
    %1577 = vmatprep.subr.bf16.mxu0 %v1340
    %1578 = vmatpush1.bf16.msra.mxu0 %v1339
    %1579 = vmatprep.subr.bf16.mxu0 %v1344
    %1580 = vmatpush1.bf16.msra.mxu0 %v1343
    %1581 = vmatprep.subr.bf16.mxu0 %v1348
    %1582 = vmatpush1.bf16.msra.mxu0 %v1347
    %1583 = vmatprep.subr.bf16.mxu0 %v1352
    %1584 = vmatpush1.bf16.msra.mxu0 %v1351
    %1585 = vmatprep.subr.bf16.mxu0 %v1356
    %1586 = vmatpush1.bf16.msra.mxu0 %v1355
    %1587 = vmatprep.subr.bf16.mxu0 %v1360
    %1588 = vmatpush1.bf16.msra.mxu0 %v1359
    %1589 = vmatprep.subr.bf16.mxu0 %v1364
    %1590 = vmatpush1.bf16.msra.mxu0 %v1363
    %1591 = vmatprep.mubr.bf16.mxu0 %v766
    %1592 = vmatmul.mubr.bf16.gmra.mrb[0].mxu0 %v765
    %v1593 = vpop.f32.mrb[0].mxu0
    %v1594 = vadd.f32 %v902, %v1593
    %v1595 = vpop.f32.mrb[0].mxu0
    %v1596 = vadd.f32 %v906, %v1595
    %v1597 = vpop.f32.mrb[0].mxu0
    %v1598 = vadd.f32 %v902, %v1597
    %v1599 = vpop.f32.mrb[0].mxu0
    %v1600 = vadd.f32 %v906, %v1599
    %1601 = vdwg.mxu0
    %1602 = vmatprep.subr.bf16.mxu0 %v1368
    %1603 = vmatpush1.bf16.msra.mxu0 %v1367
    %1604 = vmatprep.subr.bf16.mxu0 %v1372
    %1605 = vmatpush1.bf16.msra.mxu0 %v1371
    %1606 = vmatprep.subr.bf16.mxu0 %v1376
    %1607 = vmatpush1.bf16.msra.mxu0 %v1375
    %1608 = vmatprep.subr.bf16.mxu0 %v1380
    %1609 = vmatpush1.bf16.msra.mxu0 %v1379
    %1610 = vmatprep.subr.bf16.mxu0 %v1384
    %1611 = vmatpush1.bf16.msra.mxu0 %v1383
    %1612 = vmatprep.subr.bf16.mxu0 %v1388
    %1613 = vmatpush1.bf16.msra.mxu0 %v1387
    %1614 = vmatprep.subr.bf16.mxu0 %v1392
    %1615 = vmatpush1.bf16.msra.mxu0 %v1391
    %1616 = vmatprep.subr.bf16.mxu0 %v1396
    %1617 = vmatpush1.bf16.msra.mxu0 %v1395
    %1618 = vmatprep.subr.bf16.mxu0 %v1400
    %1619 = vmatpush1.bf16.msra.mxu0 %v1399
    %1620 = vmatprep.subr.bf16.mxu0 %v1404
    %1621 = vmatpush1.bf16.msra.mxu0 %v1403
    %1622 = vmatprep.subr.bf16.mxu0 %v1408
    %1623 = vmatpush1.bf16.msra.mxu0 %v1407
    %1624 = vmatprep.subr.bf16.mxu0 %v1412
    %1625 = vmatpush1.bf16.msra.mxu0 %v1411
    %1626 = vmatprep.subr.bf16.mxu0 %v1416
    %1627 = vmatpush1.bf16.msra.mxu0 %v1415
    %1628 = vmatprep.subr.bf16.mxu0 %v1420
    %1629 = vmatpush1.bf16.msra.mxu0 %v1419
    %1630 = vmatprep.subr.bf16.mxu0 %v1424
    %1631 = vmatpush1.bf16.msra.mxu0 %v1423
    %1632 = vmatprep.subr.bf16.mxu0 %v1428
    %1633 = vmatpush1.bf16.msra.mxu0 %v1427
    %1634 = vmatprep.mubr.bf16.mxu0 %v768
    %1635 = vmatmul.mubr.bf16.gmra.mrb[0].mxu0 %v767
    %v1636 = vpop.f32.mrb[0].mxu0
    %v1637 = vadd.f32 %v1594, %v1636
    %v1638 = vpop.f32.mrb[0].mxu0
    %v1639 = vadd.f32 %v1596, %v1638
    %v1640 = vpop.f32.mrb[0].mxu0
    %v1641 = vadd.f32 %v1598, %v1640
    %v1642 = vpop.f32.mrb[0].mxu0
    %v1643 = vadd.f32 %v1600, %v1642
    %1644 = vdwg.mxu0
    %1645 = vmatprep.subr.bf16.mxu0 %v1306
    %1646 = vmatpush1.bf16.msra.mxu0 %v1305
    %1647 = vmatprep.subr.bf16.mxu0 %v1310
    %1648 = vmatpush1.bf16.msra.mxu0 %v1309
    %1649 = vmatprep.subr.bf16.mxu0 %v1314
    %1650 = vmatpush1.bf16.msra.mxu0 %v1313
    %1651 = vmatprep.subr.bf16.mxu0 %v1318
    %1652 = vmatpush1.bf16.msra.mxu0 %v1317
    %1653 = vmatprep.subr.bf16.mxu0 %v1322
    %1654 = vmatpush1.bf16.msra.mxu0 %v1321
    %1655 = vmatprep.subr.bf16.mxu0 %v1326
    %1656 = vmatpush1.bf16.msra.mxu0 %v1325
    %1657 = vmatprep.subr.bf16.mxu0 %v1330
    %1658 = vmatpush1.bf16.msra.mxu0 %v1329
    %1659 = vmatprep.subr.bf16.mxu0 %v1334
    %1660 = vmatpush1.bf16.msra.mxu0 %v1333
    %1661 = vmatprep.subr.bf16.mxu0 %v1338
    %1662 = vmatpush1.bf16.msra.mxu0 %v1337
    %1663 = vmatprep.subr.bf16.mxu0 %v1342
    %1664 = vmatpush1.bf16.msra.mxu0 %v1341
    %1665 = vmatprep.subr.bf16.mxu0 %v1346
    %1666 = vmatpush1.bf16.msra.mxu0 %v1345
    %1667 = vmatprep.subr.bf16.mxu0 %v1350
    %1668 = vmatpush1.bf16.msra.mxu0 %v1349
    %1669 = vmatprep.subr.bf16.mxu0 %v1354
    %1670 = vmatpush1.bf16.msra.mxu0 %v1353
    %1671 = vmatprep.subr.bf16.mxu0 %v1358
    %1672 = vmatpush1.bf16.msra.mxu0 %v1357
    %1673 = vmatprep.subr.bf16.mxu0 %v1362
    %1674 = vmatpush1.bf16.msra.mxu0 %v1361
    %1675 = vmatprep.subr.bf16.mxu0 %v1366
    %1676 = vmatpush1.bf16.msra.mxu0 %v1365
    %1677 = vmatprep.mubr.bf16.mxu0 %v766
    %1678 = vmatmul.mubr.bf16.gmra.mrb[0].mxu0 %v765
    %v1679 = vpop.f32.mrb[0].mxu0
    %v1680 = vadd.f32 %v910, %v1679
    %v1681 = vpop.f32.mrb[0].mxu0
    %v1682 = vadd.f32 %v914, %v1681
    %v1683 = vpop.f32.mrb[0].mxu0
    %v1684 = vadd.f32 %v910, %v1683
    %v1685 = vpop.f32.mrb[0].mxu0
    %v1686 = vadd.f32 %v914, %v1685
    %1687 = vdwg.mxu0
    %1688 = vmatprep.subr.bf16.mxu0 %v1370
    %1689 = vmatpush1.bf16.msra.mxu0 %v1369
    %1690 = vmatprep.subr.bf16.mxu0 %v1374
    %1691 = vmatpush1.bf16.msra.mxu0 %v1373
    %1692 = vmatprep.subr.bf16.mxu0 %v1378
    %1693 = vmatpush1.bf16.msra.mxu0 %v1377
    %1694 = vmatprep.subr.bf16.mxu0 %v1382
    %1695 = vmatpush1.bf16.msra.mxu0 %v1381
    %1696 = vmatprep.subr.bf16.mxu0 %v1386
    %1697 = vmatpush1.bf16.msra.mxu0 %v1385
    %1698 = vmatprep.subr.bf16.mxu0 %v1390
    %1699 = vmatpush1.bf16.msra.mxu0 %v1389
    %1700 = vmatprep.subr.bf16.mxu0 %v1394
    %1701 = vmatpush1.bf16.msra.mxu0 %v1393
    %1702 = vmatprep.subr.bf16.mxu0 %v1398
    %1703 = vmatpush1.bf16.msra.mxu0 %v1397
    %1704 = vmatprep.subr.bf16.mxu0 %v1402
    %1705 = vmatpush1.bf16.msra.mxu0 %v1401
    %1706 = vmatprep.subr.bf16.mxu0 %v1406
    %1707 = vmatpush1.bf16.msra.mxu0 %v1405
    %1708 = vmatprep.subr.bf16.mxu0 %v1410
    %1709 = vmatpush1.bf16.msra.mxu0 %v1409
    %1710 = vmatprep.subr.bf16.mxu0 %v1414
    %1711 = vmatpush1.bf16.msra.mxu0 %v1413
    %1712 = vmatprep.subr.bf16.mxu0 %v1418
    %1713 = vmatpush1.bf16.msra.mxu0 %v1417
    %1714 = vmatprep.subr.bf16.mxu0 %v1422
    %1715 = vmatpush1.bf16.msra.mxu0 %v1421
    %1716 = vmatprep.subr.bf16.mxu0 %v1426
    %1717 = vmatpush1.bf16.msra.mxu0 %v1425
    %1718 = vmatprep.subr.bf16.mxu0 %v1430
    %1719 = vmatpush1.bf16.msra.mxu0 %v1429
    %1720 = vmatprep.mubr.bf16.mxu0 %v768
    %1721 = vmatmul.mubr.bf16.gmra.mrb[0].mxu0 %v767
    %v1722 = vpop.f32.mrb[0].mxu0
    %v1723 = vadd.f32 %v1680, %v1722
    %v1724 = vpop.f32.mrb[0].mxu0
    %v1725 = vadd.f32 %v1682, %v1724
    %v1726 = vpop.f32.mrb[0].mxu0
    %v1727 = vadd.f32 %v1684, %v1726
    %v1728 = vpop.f32.mrb[0].mxu0
    %v1729 = vadd.f32 %v1686, %v1728
    %1730 = vdwg.mxu0
    %v1731 = vld [vmem:[#allocation11] sm:$0xff]
    %v1732 = vld [vmem:[#allocation11 + $0x8] sm:$0xff]
    %v1733 = vld [vmem:[#allocation11 + $0x10] sm:$0xff]
    %v1734 = vld [vmem:[#allocation11 + $0x18] sm:$0xff]
    %v1735 = vld [vmem:[#allocation11 + $0x20] sm:$0xff]
    %v1736 = vld [vmem:[#allocation11 + $0x28] sm:$0xff]
    %v1737 = vld [vmem:[#allocation11 + $0x30] sm:$0xff]
    %v1738 = vld [vmem:[#allocation11 + $0x38] sm:$0xff]
    %v1739 = vld [vmem:[#allocation11 + $0x40] sm:$0xff]
    %v1740 = vld [vmem:[#allocation11 + $0x48] sm:$0xff]
    %v1741 = vld [vmem:[#allocation11 + $0x50] sm:$0xff]
    %v1742 = vld [vmem:[#allocation11 + $0x58] sm:$0xff]
    %v1743 = vld [vmem:[#allocation11 + $0x60] sm:$0xff]
    %v1744 = vld [vmem:[#allocation11 + $0x68] sm:$0xff]
    %v1745 = vld [vmem:[#allocation11 + $0x70] sm:$0xff]
    %v1746 = vld [vmem:[#allocation11 + $0x78] sm:$0xff]
    %v1747 = vld [vmem:[#allocation11 + $0x80] sm:$0xff]
    %v1748 = vld [vmem:[#allocation11 + $0x88] sm:$0xff]
    %v1749 = vld [vmem:[#allocation11 + $0x90] sm:$0xff]
    %v1750 = vld [vmem:[#allocation11 + $0x98] sm:$0xff]
    %v1751 = vld [vmem:[#allocation11 + $0xa0] sm:$0xff]
    %v1752 = vld [vmem:[#allocation11 + $0xa8] sm:$0xff]
    %v1753 = vld [vmem:[#allocation11 + $0xb0] sm:$0xff]
    %v1754 = vld [vmem:[#allocation11 + $0xb8] sm:$0xff]
    %v1755 = vld [vmem:[#allocation11 + $0xc0] sm:$0xff]
    %v1756 = vld [vmem:[#allocation11 + $0xc8] sm:$0xff]
    %v1757 = vld [vmem:[#allocation11 + $0xd0] sm:$0xff]
    %v1758 = vld [vmem:[#allocation11 + $0xd8] sm:$0xff]
    %v1759 = vld [vmem:[#allocation11 + $0xe0] sm:$0xff]
    %v1760 = vld [vmem:[#allocation11 + $0xe8] sm:$0xff]
    %v1761 = vld [vmem:[#allocation11 + $0xf0] sm:$0xff]
    %v1762 = vld [vmem:[#allocation11 + $0xf8] sm:$0xff]
    %v1763 = vld [vmem:[#allocation11 + $0x100] sm:$0xff]
    %v1764 = vld [vmem:[#allocation11 + $0x108] sm:$0xff]
    %v1765 = vld [vmem:[#allocation11 + $0x110] sm:$0xff]
    %v1766 = vld [vmem:[#allocation11 + $0x118] sm:$0xff]
    %v1767 = vld [vmem:[#allocation11 + $0x120] sm:$0xff]
    %v1768 = vld [vmem:[#allocation11 + $0x128] sm:$0xff]
    %v1769 = vld [vmem:[#allocation11 + $0x130] sm:$0xff]
    %v1770 = vld [vmem:[#allocation11 + $0x138] sm:$0xff]
    %v1771 = vld [vmem:[#allocation11 + $0x140] sm:$0xff]
    %v1772 = vld [vmem:[#allocation11 + $0x148] sm:$0xff]
    %v1773 = vld [vmem:[#allocation11 + $0x150] sm:$0xff]
    %v1774 = vld [vmem:[#allocation11 + $0x158] sm:$0xff]
    %v1775 = vld [vmem:[#allocation11 + $0x160] sm:$0xff]
    %v1776 = vld [vmem:[#allocation11 + $0x168] sm:$0xff]
    %v1777 = vld [vmem:[#allocation11 + $0x170] sm:$0xff]
    %v1778 = vld [vmem:[#allocation11 + $0x178] sm:$0xff]
    %v1779 = vld [vmem:[#allocation11 + $0x180] sm:$0xff]
    %v1780 = vld [vmem:[#allocation11 + $0x188] sm:$0xff]
    %v1781 = vld [vmem:[#allocation11 + $0x190] sm:$0xff]
    %v1782 = vld [vmem:[#allocation11 + $0x198] sm:$0xff]
    %v1783 = vld [vmem:[#allocation11 + $0x1a0] sm:$0xff]
    %v1784 = vld [vmem:[#allocation11 + $0x1a8] sm:$0xff]
    %v1785 = vld [vmem:[#allocation11 + $0x1b0] sm:$0xff]
    %v1786 = vld [vmem:[#allocation11 + $0x1b8] sm:$0xff]
    %v1787 = vld [vmem:[#allocation11 + $0x1c0] sm:$0xff]
    %v1788 = vld [vmem:[#allocation11 + $0x1c8] sm:$0xff]
    %v1789 = vld [vmem:[#allocation11 + $0x1d0] sm:$0xff]
    %v1790 = vld [vmem:[#allocation11 + $0x1d8] sm:$0xff]
    %v1791 = vld [vmem:[#allocation11 + $0x1e0] sm:$0xff]
    %v1792 = vld [vmem:[#allocation11 + $0x1e8] sm:$0xff]
    %v1793 = vld [vmem:[#allocation11 + $0x1f0] sm:$0xff]
    %v1794 = vld [vmem:[#allocation11 + $0x1f8] sm:$0xff]
    %v1795 = vld [vmem:[#allocation11 + $0x200] sm:$0xff]
    %v1796 = vld [vmem:[#allocation11 + $0x208] sm:$0xff]
    %v1797 = vld [vmem:[#allocation11 + $0x210] sm:$0xff]
    %v1798 = vld [vmem:[#allocation11 + $0x218] sm:$0xff]
    %v1799 = vld [vmem:[#allocation11 + $0x220] sm:$0xff]
    %v1800 = vld [vmem:[#allocation11 + $0x228] sm:$0xff]
    %v1801 = vld [vmem:[#allocation11 + $0x230] sm:$0xff]
    %v1802 = vld [vmem:[#allocation11 + $0x238] sm:$0xff]
    %v1803 = vld [vmem:[#allocation11 + $0x240] sm:$0xff]
    %v1804 = vld [vmem:[#allocation11 + $0x248] sm:$0xff]
    %v1805 = vld [vmem:[#allocation11 + $0x250] sm:$0xff]
    %v1806 = vld [vmem:[#allocation11 + $0x258] sm:$0xff]
    %v1807 = vld [vmem:[#allocation11 + $0x260] sm:$0xff]
    %v1808 = vld [vmem:[#allocation11 + $0x268] sm:$0xff]
    %v1809 = vld [vmem:[#allocation11 + $0x270] sm:$0xff]
    %v1810 = vld [vmem:[#allocation11 + $0x278] sm:$0xff]
    %v1811 = vld [vmem:[#allocation11 + $0x280] sm:$0xff]
    %v1812 = vld [vmem:[#allocation11 + $0x288] sm:$0xff]
    %v1813 = vld [vmem:[#allocation11 + $0x290] sm:$0xff]
    %v1814 = vld [vmem:[#allocation11 + $0x298] sm:$0xff]
    %v1815 = vld [vmem:[#allocation11 + $0x2a0] sm:$0xff]
    %v1816 = vld [vmem:[#allocation11 + $0x2a8] sm:$0xff]
    %v1817 = vld [vmem:[#allocation11 + $0x2b0] sm:$0xff]
    %v1818 = vld [vmem:[#allocation11 + $0x2b8] sm:$0xff]
    %v1819 = vld [vmem:[#allocation11 + $0x2c0] sm:$0xff]
    %v1820 = vld [vmem:[#allocation11 + $0x2c8] sm:$0xff]
    %v1821 = vld [vmem:[#allocation11 + $0x2d0] sm:$0xff]
    %v1822 = vld [vmem:[#allocation11 + $0x2d8] sm:$0xff]
    %v1823 = vld [vmem:[#allocation11 + $0x2e0] sm:$0xff]
    %v1824 = vld [vmem:[#allocation11 + $0x2e8] sm:$0xff]
    %v1825 = vld [vmem:[#allocation11 + $0x2f0] sm:$0xff]
    %v1826 = vld [vmem:[#allocation11 + $0x2f8] sm:$0xff]
    %v1827 = vld [vmem:[#allocation11 + $0x300] sm:$0xff]
    %v1828 = vld [vmem:[#allocation11 + $0x308] sm:$0xff]
    %v1829 = vld [vmem:[#allocation11 + $0x310] sm:$0xff]
    %v1830 = vld [vmem:[#allocation11 + $0x318] sm:$0xff]
    %v1831 = vld [vmem:[#allocation11 + $0x320] sm:$0xff]
    %v1832 = vld [vmem:[#allocation11 + $0x328] sm:$0xff]
    %v1833 = vld [vmem:[#allocation11 + $0x330] sm:$0xff]
    %v1834 = vld [vmem:[#allocation11 + $0x338] sm:$0xff]
    %v1835 = vld [vmem:[#allocation11 + $0x340] sm:$0xff]
    %v1836 = vld [vmem:[#allocation11 + $0x348] sm:$0xff]
    %v1837 = vld [vmem:[#allocation11 + $0x350] sm:$0xff]
    %v1838 = vld [vmem:[#allocation11 + $0x358] sm:$0xff]
    %v1839 = vld [vmem:[#allocation11 + $0x360] sm:$0xff]
    %v1840 = vld [vmem:[#allocation11 + $0x368] sm:$0xff]
    %v1841 = vld [vmem:[#allocation11 + $0x370] sm:$0xff]
    %v1842 = vld [vmem:[#allocation11 + $0x378] sm:$0xff]
    %v1843 = vld [vmem:[#allocation11 + $0x380] sm:$0xff]
    %v1844 = vld [vmem:[#allocation11 + $0x388] sm:$0xff]
    %v1845 = vld [vmem:[#allocation11 + $0x390] sm:$0xff]
    %v1846 = vld [vmem:[#allocation11 + $0x398] sm:$0xff]
    %v1847 = vld [vmem:[#allocation11 + $0x3a0] sm:$0xff]
    %v1848 = vld [vmem:[#allocation11 + $0x3a8] sm:$0xff]
    %v1849 = vld [vmem:[#allocation11 + $0x3b0] sm:$0xff]
    %v1850 = vld [vmem:[#allocation11 + $0x3b8] sm:$0xff]
    %v1851 = vld [vmem:[#allocation11 + $0x3c0] sm:$0xff]
    %v1852 = vld [vmem:[#allocation11 + $0x3c8] sm:$0xff]
    %v1853 = vld [vmem:[#allocation11 + $0x3d0] sm:$0xff]
    %v1854 = vld [vmem:[#allocation11 + $0x3d8] sm:$0xff]
    %v1855 = vld [vmem:[#allocation11 + $0x3e0] sm:$0xff]
    %v1856 = vld [vmem:[#allocation11 + $0x3e8] sm:$0xff]
    %v1857 = vld [vmem:[#allocation11 + $0x3f0] sm:$0xff]
    %v1858 = vld [vmem:[#allocation11 + $0x3f8] sm:$0xff]
    %v1859 = vld [vmem:[%s8] sm:$0xf]
    %v1861 = vlaneseq
    %v1862 = vshrl.u32 %v1861, 7
    %v1863 = vsub.s32 0, %v1862
    %v1864 = vrot.slane %v1859, %v1863
    %v1865 = vlaneseq
    %v1866 = vshrl.u32 %v1865, 7
    %v1867 = vsub.s32 1, %v1866
    %v1868 = vrot.slane %v1859, %v1867
    %v1869 = vlaneseq
    %v1870 = vshrl.u32 %v1869, 7
    %v1871 = vsub.s32 2, %v1870
    %v1872 = vrot.slane %v1859, %v1871
    %v1873 = vlaneseq
    %v1874 = vshrl.u32 %v1873, 7
    %v1875 = vsub.s32 3, %v1874
    %v1876 = vrot.slane %v1859, %v1875
    %v2009 = vunpack.c.l.b16 %v1731
    %v2010 = vunpack.c.h.b16 %v1731
    %v2011 = vunpack.c.l.b16 %v1732
    %v2012 = vunpack.c.h.b16 %v1732
    %v2013 = vunpack.c.l.b16 %v1733
    %v2014 = vunpack.c.h.b16 %v1733
    %v2015 = vunpack.c.l.b16 %v1734
    %v2016 = vunpack.c.h.b16 %v1734
    %v2017 = vunpack.c.l.b16 %v1735
    %v2018 = vunpack.c.h.b16 %v1735
    %v2019 = vunpack.c.l.b16 %v1736
    %v2020 = vunpack.c.h.b16 %v1736
    %v2021 = vunpack.c.l.b16 %v1737
    %v2022 = vunpack.c.h.b16 %v1737
    %v2023 = vunpack.c.l.b16 %v1738
    %v2024 = vunpack.c.h.b16 %v1738
    %v2025 = vunpack.c.l.b16 %v1739
    %v2026 = vunpack.c.h.b16 %v1739
    %v2027 = vunpack.c.l.b16 %v1740
    %v2028 = vunpack.c.h.b16 %v1740
    %v2029 = vunpack.c.l.b16 %v1741
    %v2030 = vunpack.c.h.b16 %v1741
    %v2031 = vunpack.c.l.b16 %v1742
    %v2032 = vunpack.c.h.b16 %v1742
    %v2033 = vunpack.c.l.b16 %v1743
    %v2034 = vunpack.c.h.b16 %v1743
    %v2035 = vunpack.c.l.b16 %v1744
    %v2036 = vunpack.c.h.b16 %v1744
    %v2037 = vunpack.c.l.b16 %v1745
    %v2038 = vunpack.c.h.b16 %v1745
    %v2039 = vunpack.c.l.b16 %v1746
    %v2040 = vunpack.c.h.b16 %v1746
    %v2041 = vunpack.c.l.b16 %v1747
    %v2042 = vunpack.c.h.b16 %v1747
    %v2043 = vunpack.c.l.b16 %v1748
    %v2044 = vunpack.c.h.b16 %v1748
    %v2045 = vunpack.c.l.b16 %v1749
    %v2046 = vunpack.c.h.b16 %v1749
    %v2047 = vunpack.c.l.b16 %v1750
    %v2048 = vunpack.c.h.b16 %v1750
    %v2049 = vunpack.c.l.b16 %v1751
    %v2050 = vunpack.c.h.b16 %v1751
    %v2051 = vunpack.c.l.b16 %v1752
    %v2052 = vunpack.c.h.b16 %v1752
    %v2053 = vunpack.c.l.b16 %v1753
    %v2054 = vunpack.c.h.b16 %v1753
    %v2055 = vunpack.c.l.b16 %v1754
    %v2056 = vunpack.c.h.b16 %v1754
    %v2057 = vunpack.c.l.b16 %v1755
    %v2058 = vunpack.c.h.b16 %v1755
    %v2059 = vunpack.c.l.b16 %v1756
    %v2060 = vunpack.c.h.b16 %v1756
    %v2061 = vunpack.c.l.b16 %v1757
    %v2062 = vunpack.c.h.b16 %v1757
    %v2063 = vunpack.c.l.b16 %v1758
    %v2064 = vunpack.c.h.b16 %v1758
    %v2065 = vunpack.c.l.b16 %v1759
    %v2066 = vunpack.c.h.b16 %v1759
    %v2067 = vunpack.c.l.b16 %v1760
    %v2068 = vunpack.c.h.b16 %v1760
    %v2069 = vunpack.c.l.b16 %v1761
    %v2070 = vunpack.c.h.b16 %v1761
    %v2071 = vunpack.c.l.b16 %v1762
    %v2072 = vunpack.c.h.b16 %v1762
    %v2073 = vunpack.c.l.b16 %v1763
    %v2074 = vunpack.c.h.b16 %v1763
    %v2075 = vunpack.c.l.b16 %v1764
    %v2076 = vunpack.c.h.b16 %v1764
    %v2077 = vunpack.c.l.b16 %v1765
    %v2078 = vunpack.c.h.b16 %v1765
    %v2079 = vunpack.c.l.b16 %v1766
    %v2080 = vunpack.c.h.b16 %v1766
    %v2081 = vunpack.c.l.b16 %v1767
    %v2082 = vunpack.c.h.b16 %v1767
    %v2083 = vunpack.c.l.b16 %v1768
    %v2084 = vunpack.c.h.b16 %v1768
    %v2085 = vunpack.c.l.b16 %v1769
    %v2086 = vunpack.c.h.b16 %v1769
    %v2087 = vunpack.c.l.b16 %v1770
    %v2088 = vunpack.c.h.b16 %v1770
    %v2089 = vunpack.c.l.b16 %v1771
    %v2090 = vunpack.c.h.b16 %v1771
    %v2091 = vunpack.c.l.b16 %v1772
    %v2092 = vunpack.c.h.b16 %v1772
    %v2093 = vunpack.c.l.b16 %v1773
    %v2094 = vunpack.c.h.b16 %v1773
    %v2095 = vunpack.c.l.b16 %v1774
    %v2096 = vunpack.c.h.b16 %v1774
    %v2097 = vunpack.c.l.b16 %v1775
    %v2098 = vunpack.c.h.b16 %v1775
    %v2099 = vunpack.c.l.b16 %v1776
    %v2100 = vunpack.c.h.b16 %v1776
    %v2101 = vunpack.c.l.b16 %v1777
    %v2102 = vunpack.c.h.b16 %v1777
    %v2103 = vunpack.c.l.b16 %v1778
    %v2104 = vunpack.c.h.b16 %v1778
    %v2105 = vunpack.c.l.b16 %v1779
    %v2106 = vunpack.c.h.b16 %v1779
    %v2107 = vunpack.c.l.b16 %v1780
    %v2108 = vunpack.c.h.b16 %v1780
    %v2109 = vunpack.c.l.b16 %v1781
    %v2110 = vunpack.c.h.b16 %v1781
    %v2111 = vunpack.c.l.b16 %v1782
    %v2112 = vunpack.c.h.b16 %v1782
    %v2113 = vunpack.c.l.b16 %v1783
    %v2114 = vunpack.c.h.b16 %v1783
    %v2115 = vunpack.c.l.b16 %v1784
    %v2116 = vunpack.c.h.b16 %v1784
    %v2117 = vunpack.c.l.b16 %v1785
    %v2118 = vunpack.c.h.b16 %v1785
    %v2119 = vunpack.c.l.b16 %v1786
    %v2120 = vunpack.c.h.b16 %v1786
    %v2121 = vunpack.c.l.b16 %v1787
    %v2122 = vunpack.c.h.b16 %v1787
    %v2123 = vunpack.c.l.b16 %v1788
    %v2124 = vunpack.c.h.b16 %v1788
    %v2125 = vunpack.c.l.b16 %v1789
    %v2126 = vunpack.c.h.b16 %v1789
    %v2127 = vunpack.c.l.b16 %v1790
    %v2128 = vunpack.c.h.b16 %v1790
    %v2129 = vunpack.c.l.b16 %v1791
    %v2130 = vunpack.c.h.b16 %v1791
    %v2131 = vunpack.c.l.b16 %v1792
    %v2132 = vunpack.c.h.b16 %v1792
    %v2133 = vunpack.c.l.b16 %v1793
    %v2134 = vunpack.c.h.b16 %v1793
    %v2135 = vunpack.c.l.b16 %v1794
    %v2136 = vunpack.c.h.b16 %v1794
    %v2137 = vunpack.c.l.b16 %v1795
    %v2138 = vunpack.c.h.b16 %v1795
    %v2139 = vunpack.c.l.b16 %v1796
    %v2140 = vunpack.c.h.b16 %v1796
    %v2141 = vunpack.c.l.b16 %v1797
    %v2142 = vunpack.c.h.b16 %v1797
    %v2143 = vunpack.c.l.b16 %v1798
    %v2144 = vunpack.c.h.b16 %v1798
    %v2145 = vunpack.c.l.b16 %v1799
    %v2146 = vunpack.c.h.b16 %v1799
    %v2147 = vunpack.c.l.b16 %v1800
    %v2148 = vunpack.c.h.b16 %v1800
    %v2149 = vunpack.c.l.b16 %v1801
    %v2150 = vunpack.c.h.b16 %v1801
    %v2151 = vunpack.c.l.b16 %v1802
    %v2152 = vunpack.c.h.b16 %v1802
    %v2153 = vunpack.c.l.b16 %v1803
    %v2154 = vunpack.c.h.b16 %v1803
    %v2155 = vunpack.c.l.b16 %v1804
    %v2156 = vunpack.c.h.b16 %v1804
    %v2157 = vunpack.c.l.b16 %v1805
    %v2158 = vunpack.c.h.b16 %v1805
    %v2159 = vunpack.c.l.b16 %v1806
    %v2160 = vunpack.c.h.b16 %v1806
    %v2161 = vunpack.c.l.b16 %v1807
    %v2162 = vunpack.c.h.b16 %v1807
    %v2163 = vunpack.c.l.b16 %v1808
    %v2164 = vunpack.c.h.b16 %v1808
    %v2165 = vunpack.c.l.b16 %v1809
    %v2166 = vunpack.c.h.b16 %v1809
    %v2167 = vunpack.c.l.b16 %v1810
    %v2168 = vunpack.c.h.b16 %v1810
    %v2169 = vunpack.c.l.b16 %v1811
    %v2170 = vunpack.c.h.b16 %v1811
    %v2171 = vunpack.c.l.b16 %v1812
    %v2172 = vunpack.c.h.b16 %v1812
    %v2173 = vunpack.c.l.b16 %v1813
    %v2174 = vunpack.c.h.b16 %v1813
    %v2175 = vunpack.c.l.b16 %v1814
    %v2176 = vunpack.c.h.b16 %v1814
    %v2177 = vunpack.c.l.b16 %v1815
    %v2178 = vunpack.c.h.b16 %v1815
    %v2179 = vunpack.c.l.b16 %v1816
    %v2180 = vunpack.c.h.b16 %v1816
    %v2181 = vunpack.c.l.b16 %v1817
    %v2182 = vunpack.c.h.b16 %v1817
    %v2183 = vunpack.c.l.b16 %v1818
    %v2184 = vunpack.c.h.b16 %v1818
    %v2185 = vunpack.c.l.b16 %v1819
    %v2186 = vunpack.c.h.b16 %v1819
    %v2187 = vunpack.c.l.b16 %v1820
    %v2188 = vunpack.c.h.b16 %v1820
    %v2189 = vunpack.c.l.b16 %v1821
    %v2190 = vunpack.c.h.b16 %v1821
    %v2191 = vunpack.c.l.b16 %v1822
    %v2192 = vunpack.c.h.b16 %v1822
    %v2193 = vunpack.c.l.b16 %v1823
    %v2194 = vunpack.c.h.b16 %v1823
    %v2195 = vunpack.c.l.b16 %v1824
    %v2196 = vunpack.c.h.b16 %v1824
    %v2197 = vunpack.c.l.b16 %v1825
    %v2198 = vunpack.c.h.b16 %v1825
    %v2199 = vunpack.c.l.b16 %v1826
    %v2200 = vunpack.c.h.b16 %v1826
    %v2201 = vunpack.c.l.b16 %v1827
    %v2202 = vunpack.c.h.b16 %v1827
    %v2203 = vunpack.c.l.b16 %v1828
    %v2204 = vunpack.c.h.b16 %v1828
    %v2205 = vunpack.c.l.b16 %v1829
    %v2206 = vunpack.c.h.b16 %v1829
    %v2207 = vunpack.c.l.b16 %v1830
    %v2208 = vunpack.c.h.b16 %v1830
    %v2209 = vunpack.c.l.b16 %v1831
    %v2210 = vunpack.c.h.b16 %v1831
    %v2211 = vunpack.c.l.b16 %v1832
    %v2212 = vunpack.c.h.b16 %v1832
    %v2213 = vunpack.c.l.b16 %v1833
    %v2214 = vunpack.c.h.b16 %v1833
    %v2215 = vunpack.c.l.b16 %v1834
    %v2216 = vunpack.c.h.b16 %v1834
    %v2217 = vunpack.c.l.b16 %v1835
    %v2218 = vunpack.c.h.b16 %v1835
    %v2219 = vunpack.c.l.b16 %v1836
    %v2220 = vunpack.c.h.b16 %v1836
    %v2221 = vunpack.c.l.b16 %v1837
    %v2222 = vunpack.c.h.b16 %v1837
    %v2223 = vunpack.c.l.b16 %v1838
    %v2224 = vunpack.c.h.b16 %v1838
    %v2225 = vunpack.c.l.b16 %v1839
    %v2226 = vunpack.c.h.b16 %v1839
    %v2227 = vunpack.c.l.b16 %v1840
    %v2228 = vunpack.c.h.b16 %v1840
    %v2229 = vunpack.c.l.b16 %v1841
    %v2230 = vunpack.c.h.b16 %v1841
    %v2231 = vunpack.c.l.b16 %v1842
    %v2232 = vunpack.c.h.b16 %v1842
    %v2233 = vunpack.c.l.b16 %v1843
    %v2234 = vunpack.c.h.b16 %v1843
    %v2235 = vunpack.c.l.b16 %v1844
    %v2236 = vunpack.c.h.b16 %v1844
    %v2237 = vunpack.c.l.b16 %v1845
    %v2238 = vunpack.c.h.b16 %v1845
    %v2239 = vunpack.c.l.b16 %v1846
    %v2240 = vunpack.c.h.b16 %v1846
    %v2241 = vunpack.c.l.b16 %v1847
    %v2242 = vunpack.c.h.b16 %v1847
    %v2243 = vunpack.c.l.b16 %v1848
    %v2244 = vunpack.c.h.b16 %v1848
    %v2245 = vunpack.c.l.b16 %v1849
    %v2246 = vunpack.c.h.b16 %v1849
    %v2247 = vunpack.c.l.b16 %v1850
    %v2248 = vunpack.c.h.b16 %v1850
    %v2249 = vunpack.c.l.b16 %v1851
    %v2250 = vunpack.c.h.b16 %v1851
    %v2251 = vunpack.c.l.b16 %v1852
    %v2252 = vunpack.c.h.b16 %v1852
    %v2253 = vunpack.c.l.b16 %v1853
    %v2254 = vunpack.c.h.b16 %v1853
    %v2255 = vunpack.c.l.b16 %v1854
    %v2256 = vunpack.c.h.b16 %v1854
    %v2257 = vunpack.c.l.b16 %v1855
    %v2258 = vunpack.c.h.b16 %v1855
    %v2259 = vunpack.c.l.b16 %v1856
    %v2260 = vunpack.c.h.b16 %v1856
    %v2261 = vunpack.c.l.b16 %v1857
    %v2262 = vunpack.c.h.b16 %v1857
    %v2263 = vunpack.c.l.b16 %v1858
    %v2264 = vunpack.c.h.b16 %v1858
    %v2265 = vpack.c.b16 %v2013, %v2009
    %v2266 = vpack.c.b16 %v2014, %v2010
    %v2267 = vpack.c.b16 %v2015, %v2011
    %v2268 = vpack.c.b16 %v2016, %v2012
    %v2269 = vpack.c.b16 %v2021, %v2017
    %v2270 = vpack.c.b16 %v2022, %v2018
    %v2271 = vpack.c.b16 %v2023, %v2019
    %v2272 = vpack.c.b16 %v2024, %v2020
    %v2273 = vpack.c.b16 %v2029, %v2025
    %v2274 = vpack.c.b16 %v2030, %v2026
    %v2275 = vpack.c.b16 %v2031, %v2027
    %v2276 = vpack.c.b16 %v2032, %v2028
    %v2277 = vpack.c.b16 %v2037, %v2033
    %v2278 = vpack.c.b16 %v2038, %v2034
    %v2279 = vpack.c.b16 %v2039, %v2035
    %v2280 = vpack.c.b16 %v2040, %v2036
    %v2281 = vpack.c.b16 %v2045, %v2041
    %v2282 = vpack.c.b16 %v2046, %v2042
    %v2283 = vpack.c.b16 %v2047, %v2043
    %v2284 = vpack.c.b16 %v2048, %v2044
    %v2285 = vpack.c.b16 %v2053, %v2049
    %v2286 = vpack.c.b16 %v2054, %v2050
    %v2287 = vpack.c.b16 %v2055, %v2051
    %v2288 = vpack.c.b16 %v2056, %v2052
    %v2289 = vpack.c.b16 %v2061, %v2057
    %v2290 = vpack.c.b16 %v2062, %v2058
    %v2291 = vpack.c.b16 %v2063, %v2059
    %v2292 = vpack.c.b16 %v2064, %v2060
    %v2293 = vpack.c.b16 %v2069, %v2065
    %v2294 = vpack.c.b16 %v2070, %v2066
    %v2295 = vpack.c.b16 %v2071, %v2067
    %v2296 = vpack.c.b16 %v2072, %v2068
    %v2297 = vpack.c.b16 %v2077, %v2073
    %v2298 = vpack.c.b16 %v2078, %v2074
    %v2299 = vpack.c.b16 %v2079, %v2075
    %v2300 = vpack.c.b16 %v2080, %v2076
    %v2301 = vpack.c.b16 %v2085, %v2081
    %v2302 = vpack.c.b16 %v2086, %v2082
    %v2303 = vpack.c.b16 %v2087, %v2083
    %v2304 = vpack.c.b16 %v2088, %v2084
    %v2305 = vpack.c.b16 %v2093, %v2089
    %v2306 = vpack.c.b16 %v2094, %v2090
    %v2307 = vpack.c.b16 %v2095, %v2091
    %v2308 = vpack.c.b16 %v2096, %v2092
    %v2309 = vpack.c.b16 %v2101, %v2097
    %v2310 = vpack.c.b16 %v2102, %v2098
    %v2311 = vpack.c.b16 %v2103, %v2099
    %v2312 = vpack.c.b16 %v2104, %v2100
    %v2313 = vpack.c.b16 %v2109, %v2105
    %v2314 = vpack.c.b16 %v2110, %v2106
    %v2315 = vpack.c.b16 %v2111, %v2107
    %v2316 = vpack.c.b16 %v2112, %v2108
    %v2317 = vpack.c.b16 %v2117, %v2113
    %v2318 = vpack.c.b16 %v2118, %v2114
    %v2319 = vpack.c.b16 %v2119, %v2115
    %v2320 = vpack.c.b16 %v2120, %v2116
    %v2321 = vpack.c.b16 %v2125, %v2121
    %v2322 = vpack.c.b16 %v2126, %v2122
    %v2323 = vpack.c.b16 %v2127, %v2123
    %v2324 = vpack.c.b16 %v2128, %v2124
    %v2325 = vpack.c.b16 %v2133, %v2129
    %v2326 = vpack.c.b16 %v2134, %v2130
    %v2327 = vpack.c.b16 %v2135, %v2131
    %v2328 = vpack.c.b16 %v2136, %v2132
    %v2329 = vpack.c.b16 %v2141, %v2137
    %v2330 = vpack.c.b16 %v2142, %v2138
    %v2331 = vpack.c.b16 %v2143, %v2139
    %v2332 = vpack.c.b16 %v2144, %v2140
    %v2333 = vpack.c.b16 %v2149, %v2145
    %v2334 = vpack.c.b16 %v2150, %v2146
    %v2335 = vpack.c.b16 %v2151, %v2147
    %v2336 = vpack.c.b16 %v2152, %v2148
    %v2337 = vpack.c.b16 %v2157, %v2153
    %v2338 = vpack.c.b16 %v2158, %v2154
    %v2339 = vpack.c.b16 %v2159, %v2155
    %v2340 = vpack.c.b16 %v2160, %v2156
    %v2341 = vpack.c.b16 %v2165, %v2161
    %v2342 = vpack.c.b16 %v2166, %v2162
    %v2343 = vpack.c.b16 %v2167, %v2163
    %v2344 = vpack.c.b16 %v2168, %v2164
    %v2345 = vpack.c.b16 %v2173, %v2169
    %v2346 = vpack.c.b16 %v2174, %v2170
    %v2347 = vpack.c.b16 %v2175, %v2171
    %v2348 = vpack.c.b16 %v2176, %v2172
    %v2349 = vpack.c.b16 %v2181, %v2177
    %v2350 = vpack.c.b16 %v2182, %v2178
    %v2351 = vpack.c.b16 %v2183, %v2179
    %v2352 = vpack.c.b16 %v2184, %v2180
    %v2353 = vpack.c.b16 %v2189, %v2185
    %v2354 = vpack.c.b16 %v2190, %v2186
    %v2355 = vpack.c.b16 %v2191, %v2187
    %v2356 = vpack.c.b16 %v2192, %v2188
    %v2357 = vpack.c.b16 %v2197, %v2193
    %v2358 = vpack.c.b16 %v2198, %v2194
    %v2359 = vpack.c.b16 %v2199, %v2195
    %v2360 = vpack.c.b16 %v2200, %v2196
    %v2361 = vpack.c.b16 %v2205, %v2201
    %v2362 = vpack.c.b16 %v2206, %v2202
    %v2363 = vpack.c.b16 %v2207, %v2203
    %v2364 = vpack.c.b16 %v2208, %v2204
    %v2365 = vpack.c.b16 %v2213, %v2209
    %v2366 = vpack.c.b16 %v2214, %v2210
    %v2367 = vpack.c.b16 %v2215, %v2211
    %v2368 = vpack.c.b16 %v2216, %v2212
    %v2369 = vpack.c.b16 %v2221, %v2217
    %v2370 = vpack.c.b16 %v2222, %v2218
    %v2371 = vpack.c.b16 %v2223, %v2219
    %v2372 = vpack.c.b16 %v2224, %v2220
    %v2373 = vpack.c.b16 %v2229, %v2225
    %v2374 = vpack.c.b16 %v2230, %v2226
    %v2375 = vpack.c.b16 %v2231, %v2227
    %v2376 = vpack.c.b16 %v2232, %v2228
    %v2377 = vpack.c.b16 %v2237, %v2233
    %v2378 = vpack.c.b16 %v2238, %v2234
    %v2379 = vpack.c.b16 %v2239, %v2235
    %v2380 = vpack.c.b16 %v2240, %v2236
    %v2381 = vpack.c.b16 %v2245, %v2241
    %v2382 = vpack.c.b16 %v2246, %v2242
    %v2383 = vpack.c.b16 %v2247, %v2243
    %v2384 = vpack.c.b16 %v2248, %v2244
    %v2385 = vpack.c.b16 %v2253, %v2249
    %v2386 = vpack.c.b16 %v2254, %v2250
    %v2387 = vpack.c.b16 %v2255, %v2251
    %v2388 = vpack.c.b16 %v2256, %v2252
    %v2389 = vpack.c.b16 %v2261, %v2257
    %v2390 = vpack.c.b16 %v2262, %v2258
    %v2391 = vpack.c.b16 %v2263, %v2259
    %v2392 = vpack.c.b16 %v2264, %v2260
    %2521 = vmatprep.subr.bf16.mxu0 %v2266
    %2522 = vmatpush1.bf16.msra.mxu0 %v2265
    %2523 = vmatprep.subr.bf16.mxu0 %v2270
    %2524 = vmatpush1.bf16.msra.mxu0 %v2269
    %2525 = vmatprep.subr.bf16.mxu0 %v2274
    %2526 = vmatpush1.bf16.msra.mxu0 %v2273
    %2527 = vmatprep.subr.bf16.mxu0 %v2278
    %2528 = vmatpush1.bf16.msra.mxu0 %v2277
    %2529 = vmatprep.subr.bf16.mxu0 %v2282
    %2530 = vmatpush1.bf16.msra.mxu0 %v2281
    %2531 = vmatprep.subr.bf16.mxu0 %v2286
    %2532 = vmatpush1.bf16.msra.mxu0 %v2285
    %2533 = vmatprep.subr.bf16.mxu0 %v2290
    %2534 = vmatpush1.bf16.msra.mxu0 %v2289
    %2535 = vmatprep.subr.bf16.mxu0 %v2294
    %2536 = vmatpush1.bf16.msra.mxu0 %v2293
    %2537 = vmatprep.subr.bf16.mxu0 %v2298
    %2538 = vmatpush1.bf16.msra.mxu0 %v2297
    %2539 = vmatprep.subr.bf16.mxu0 %v2302
    %2540 = vmatpush1.bf16.msra.mxu0 %v2301
    %2541 = vmatprep.subr.bf16.mxu0 %v2306
    %2542 = vmatpush1.bf16.msra.mxu0 %v2305
    %2543 = vmatprep.subr.bf16.mxu0 %v2310
    %2544 = vmatpush1.bf16.msra.mxu0 %v2309
    %2545 = vmatprep.subr.bf16.mxu0 %v2314
    %2546 = vmatpush1.bf16.msra.mxu0 %v2313
    %2547 = vmatprep.subr.bf16.mxu0 %v2318
    %2548 = vmatpush1.bf16.msra.mxu0 %v2317
    %2549 = vmatprep.subr.bf16.mxu0 %v2322
    %2550 = vmatpush1.bf16.msra.mxu0 %v2321
    %2551 = vmatprep.subr.bf16.mxu0 %v2326
    %2552 = vmatpush1.bf16.msra.mxu0 %v2325
    %2553 = vmatprep.mubr.bf16.mxu0 %v766
    %2554 = vmatmul.mubr.bf16.gmra.mrb[0].mxu0 %v765
    %v2555 = vpop.f32.mrb[0].mxu0
    %v2556 = vadd.f32 %v1864, %v2555
    %v2557 = vpop.f32.mrb[0].mxu0
    %v2558 = vadd.f32 %v1868, %v2557
    %v2559 = vpop.f32.mrb[0].mxu0
    %v2560 = vadd.f32 %v1864, %v2559
    %v2561 = vpop.f32.mrb[0].mxu0
    %v2562 = vadd.f32 %v1868, %v2561
    %2563 = vdwg.mxu0
    %2564 = vmatprep.subr.bf16.mxu0 %v2330
    %2565 = vmatpush1.bf16.msra.mxu0 %v2329
    %2566 = vmatprep.subr.bf16.mxu0 %v2334
    %2567 = vmatpush1.bf16.msra.mxu0 %v2333
    %2568 = vmatprep.subr.bf16.mxu0 %v2338
    %2569 = vmatpush1.bf16.msra.mxu0 %v2337
    %2570 = vmatprep.subr.bf16.mxu0 %v2342
    %2571 = vmatpush1.bf16.msra.mxu0 %v2341
    %2572 = vmatprep.subr.bf16.mxu0 %v2346
    %2573 = vmatpush1.bf16.msra.mxu0 %v2345
    %2574 = vmatprep.subr.bf16.mxu0 %v2350
    %2575 = vmatpush1.bf16.msra.mxu0 %v2349
    %2576 = vmatprep.subr.bf16.mxu0 %v2354
    %2577 = vmatpush1.bf16.msra.mxu0 %v2353
    %2578 = vmatprep.subr.bf16.mxu0 %v2358
    %2579 = vmatpush1.bf16.msra.mxu0 %v2357
    %2580 = vmatprep.subr.bf16.mxu0 %v2362
    %2581 = vmatpush1.bf16.msra.mxu0 %v2361
    %2582 = vmatprep.subr.bf16.mxu0 %v2366
    %2583 = vmatpush1.bf16.msra.mxu0 %v2365
    %2584 = vmatprep.subr.bf16.mxu0 %v2370
    %2585 = vmatpush1.bf16.msra.mxu0 %v2369
    %2586 = vmatprep.subr.bf16.mxu0 %v2374
    %2587 = vmatpush1.bf16.msra.mxu0 %v2373
    %2588 = vmatprep.subr.bf16.mxu0 %v2378
    %2589 = vmatpush1.bf16.msra.mxu0 %v2377
    %2590 = vmatprep.subr.bf16.mxu0 %v2382
    %2591 = vmatpush1.bf16.msra.mxu0 %v2381
    %2592 = vmatprep.subr.bf16.mxu0 %v2386
    %2593 = vmatpush1.bf16.msra.mxu0 %v2385
    %2594 = vmatprep.subr.bf16.mxu0 %v2390
    %2595 = vmatpush1.bf16.msra.mxu0 %v2389
    %2596 = vmatprep.mubr.bf16.mxu0 %v768
    %2597 = vmatmul.mubr.bf16.gmra.mrb[0].mxu0 %v767
    %v2598 = vpop.f32.mrb[0].mxu0
    %v2599 = vadd.f32 %v2556, %v2598
    %v2600 = vpop.f32.mrb[0].mxu0
    %v2601 = vadd.f32 %v2558, %v2600
    %v2602 = vpop.f32.mrb[0].mxu0
    %v2603 = vadd.f32 %v2560, %v2602
    %v2604 = vpop.f32.mrb[0].mxu0
    %v2605 = vadd.f32 %v2562, %v2604
    %2606 = vdwg.mxu0
    %2607 = vmatprep.subr.bf16.mxu0 %v2268
    %2608 = vmatpush1.bf16.msra.mxu0 %v2267
    %2609 = vmatprep.subr.bf16.mxu0 %v2272
    %2610 = vmatpush1.bf16.msra.mxu0 %v2271
    %2611 = vmatprep.subr.bf16.mxu0 %v2276
    %2612 = vmatpush1.bf16.msra.mxu0 %v2275
    %2613 = vmatprep.subr.bf16.mxu0 %v2280
    %2614 = vmatpush1.bf16.msra.mxu0 %v2279
    %2615 = vmatprep.subr.bf16.mxu0 %v2284
    %2616 = vmatpush1.bf16.msra.mxu0 %v2283
    %2617 = vmatprep.subr.bf16.mxu0 %v2288
    %2618 = vmatpush1.bf16.msra.mxu0 %v2287
    %2619 = vmatprep.subr.bf16.mxu0 %v2292
    %2620 = vmatpush1.bf16.msra.mxu0 %v2291
    %2621 = vmatprep.subr.bf16.mxu0 %v2296
    %2622 = vmatpush1.bf16.msra.mxu0 %v2295
    %2623 = vmatprep.subr.bf16.mxu0 %v2300
    %2624 = vmatpush1.bf16.msra.mxu0 %v2299
    %2625 = vmatprep.subr.bf16.mxu0 %v2304
    %2626 = vmatpush1.bf16.msra.mxu0 %v2303
    %2627 = vmatprep.subr.bf16.mxu0 %v2308
    %2628 = vmatpush1.bf16.msra.mxu0 %v2307
    %2629 = vmatprep.subr.bf16.mxu0 %v2312
    %2630 = vmatpush1.bf16.msra.mxu0 %v2311
    %2631 = vmatprep.subr.bf16.mxu0 %v2316
    %2632 = vmatpush1.bf16.msra.mxu0 %v2315
    %2633 = vmatprep.subr.bf16.mxu0 %v2320
    %2634 = vmatpush1.bf16.msra.mxu0 %v2319
    %2635 = vmatprep.subr.bf16.mxu0 %v2324
    %2636 = vmatpush1.bf16.msra.mxu0 %v2323
    %2637 = vmatprep.subr.bf16.mxu0 %v2328
    %2638 = vmatpush1.bf16.msra.mxu0 %v2327
    %2639 = vmatprep.mubr.bf16.mxu0 %v766
    %2640 = vmatmul.mubr.bf16.gmra.mrb[0].mxu0 %v765
    %v2641 = vpop.f32.mrb[0].mxu0
    %v2642 = vadd.f32 %v1872, %v2641
    %v2643 = vpop.f32.mrb[0].mxu0
    %v2644 = vadd.f32 %v1876, %v2643
    %v2645 = vpop.f32.mrb[0].mxu0
    %v2646 = vadd.f32 %v1872, %v2645
    %v2647 = vpop.f32.mrb[0].mxu0
    %v2648 = vadd.f32 %v1876, %v2647
    %2649 = vdwg.mxu0
    %2650 = vmatprep.subr.bf16.mxu0 %v2332
    %2651 = vmatpush1.bf16.msra.mxu0 %v2331
    %2652 = vmatprep.subr.bf16.mxu0 %v2336
    %2653 = vmatpush1.bf16.msra.mxu0 %v2335
    %2654 = vmatprep.subr.bf16.mxu0 %v2340
    %2655 = vmatpush1.bf16.msra.mxu0 %v2339
    %2656 = vmatprep.subr.bf16.mxu0 %v2344
    %2657 = vmatpush1.bf16.msra.mxu0 %v2343
    %2658 = vmatprep.subr.bf16.mxu0 %v2348
    %2659 = vmatpush1.bf16.msra.mxu0 %v2347
    %2660 = vmatprep.subr.bf16.mxu0 %v2352
    %2661 = vmatpush1.bf16.msra.mxu0 %v2351
    %2662 = vmatprep.subr.bf16.mxu0 %v2356
    %2663 = vmatpush1.bf16.msra.mxu0 %v2355
    %2664 = vmatprep.subr.bf16.mxu0 %v2360
    %2665 = vmatpush1.bf16.msra.mxu0 %v2359
    %2666 = vmatprep.subr.bf16.mxu0 %v2364
    %2667 = vmatpush1.bf16.msra.mxu0 %v2363
    %2668 = vmatprep.subr.bf16.mxu0 %v2368
    %2669 = vmatpush1.bf16.msra.mxu0 %v2367
    %2670 = vmatprep.subr.bf16.mxu0 %v2372
    %2671 = vmatpush1.bf16.msra.mxu0 %v2371
    %2672 = vmatprep.subr.bf16.mxu0 %v2376
    %2673 = vmatpush1.bf16.msra.mxu0 %v2375
    %2674 = vmatprep.subr.bf16.mxu0 %v2380
    %2675 = vmatpush1.bf16.msra.mxu0 %v2379
    %2676 = vmatprep.subr.bf16.mxu0 %v2384
    %2677 = vmatpush1.bf16.msra.mxu0 %v2383
    %2678 = vmatprep.subr.bf16.mxu0 %v2388
    %2679 = vmatpush1.bf16.msra.mxu0 %v2387
    %2680 = vmatprep.subr.bf16.mxu0 %v2392
    %2681 = vmatpush1.bf16.msra.mxu0 %v2391
    %2682 = vmatprep.mubr.bf16.mxu0 %v768
    %2683 = vmatmul.mubr.bf16.gmra.mrb[0].mxu0 %v767
    %v2684 = vpop.f32.mrb[0].mxu0
    %v2685 = vadd.f32 %v2642, %v2684
    %v2686 = vpop.f32.mrb[0].mxu0
    %v2687 = vadd.f32 %v2644, %v2686
    %v2688 = vpop.f32.mrb[0].mxu0
    %v2689 = vadd.f32 %v2646, %v2688
    %v2690 = vpop.f32.mrb[0].mxu0
    %v2691 = vadd.f32 %v2648, %v2690
    %2692 = vdwg.mxu0
    %v2693 = vld [vmem:[#allocation12] sm:$0xff]
    %v2694 = vld [vmem:[#allocation12 + $0x8] sm:$0xff]
    %v2695 = vld [vmem:[#allocation12 + $0x10] sm:$0xff]
    %v2696 = vld [vmem:[#allocation12 + $0x18] sm:$0xff]
    %v2697 = vld [vmem:[#allocation12 + $0x20] sm:$0xff]
    %v2698 = vld [vmem:[#allocation12 + $0x28] sm:$0xff]
    %v2699 = vld [vmem:[#allocation12 + $0x30] sm:$0xff]
    %v2700 = vld [vmem:[#allocation12 + $0x38] sm:$0xff]
    %v2701 = vld [vmem:[#allocation12 + $0x40] sm:$0xff]
    %v2702 = vld [vmem:[#allocation12 + $0x48] sm:$0xff]
    %v2703 = vld [vmem:[#allocation12 + $0x50] sm:$0xff]
    %v2704 = vld [vmem:[#allocation12 + $0x58] sm:$0xff]
    %v2705 = vld [vmem:[#allocation12 + $0x60] sm:$0xff]
    %v2706 = vld [vmem:[#allocation12 + $0x68] sm:$0xff]
    %v2707 = vld [vmem:[#allocation12 + $0x70] sm:$0xff]
    %v2708 = vld [vmem:[#allocation12 + $0x78] sm:$0xff]
    %v2709 = vld [vmem:[#allocation12 + $0x80] sm:$0xff]
    %v2710 = vld [vmem:[#allocation12 + $0x88] sm:$0xff]
    %v2711 = vld [vmem:[#allocation12 + $0x90] sm:$0xff]
    %v2712 = vld [vmem:[#allocation12 + $0x98] sm:$0xff]
    %v2713 = vld [vmem:[#allocation12 + $0xa0] sm:$0xff]
    %v2714 = vld [vmem:[#allocation12 + $0xa8] sm:$0xff]
    %v2715 = vld [vmem:[#allocation12 + $0xb0] sm:$0xff]
    %v2716 = vld [vmem:[#allocation12 + $0xb8] sm:$0xff]
    %v2717 = vld [vmem:[#allocation12 + $0xc0] sm:$0xff]
    %v2718 = vld [vmem:[#allocation12 + $0xc8] sm:$0xff]
    %v2719 = vld [vmem:[#allocation12 + $0xd0] sm:$0xff]
    %v2720 = vld [vmem:[#allocation12 + $0xd8] sm:$0xff]
    %v2721 = vld [vmem:[#allocation12 + $0xe0] sm:$0xff]
    %v2722 = vld [vmem:[#allocation12 + $0xe8] sm:$0xff]
    %v2723 = vld [vmem:[#allocation12 + $0xf0] sm:$0xff]
    %v2724 = vld [vmem:[#allocation12 + $0xf8] sm:$0xff]
    %v2725 = vld [vmem:[#allocation12 + $0x100] sm:$0xff]
    %v2726 = vld [vmem:[#allocation12 + $0x108] sm:$0xff]
    %v2727 = vld [vmem:[#allocation12 + $0x110] sm:$0xff]
    %v2728 = vld [vmem:[#allocation12 + $0x118] sm:$0xff]
    %v2729 = vld [vmem:[#allocation12 + $0x120] sm:$0xff]
    %v2730 = vld [vmem:[#allocation12 + $0x128] sm:$0xff]
    %v2731 = vld [vmem:[#allocation12 + $0x130] sm:$0xff]
    %v2732 = vld [vmem:[#allocation12 + $0x138] sm:$0xff]
    %v2733 = vld [vmem:[#allocation12 + $0x140] sm:$0xff]
    %v2734 = vld [vmem:[#allocation12 + $0x148] sm:$0xff]
    %v2735 = vld [vmem:[#allocation12 + $0x150] sm:$0xff]
    %v2736 = vld [vmem:[#allocation12 + $0x158] sm:$0xff]
    %v2737 = vld [vmem:[#allocation12 + $0x160] sm:$0xff]
    %v2738 = vld [vmem:[#allocation12 + $0x168] sm:$0xff]
    %v2739 = vld [vmem:[#allocation12 + $0x170] sm:$0xff]
    %v2740 = vld [vmem:[#allocation12 + $0x178] sm:$0xff]
    %v2741 = vld [vmem:[#allocation12 + $0x180] sm:$0xff]
    %v2742 = vld [vmem:[#allocation12 + $0x188] sm:$0xff]
    %v2743 = vld [vmem:[#allocation12 + $0x190] sm:$0xff]
    %v2744 = vld [vmem:[#allocation12 + $0x198] sm:$0xff]
    %v2745 = vld [vmem:[#allocation12 + $0x1a0] sm:$0xff]
    %v2746 = vld [vmem:[#allocation12 + $0x1a8] sm:$0xff]
    %v2747 = vld [vmem:[#allocation12 + $0x1b0] sm:$0xff]
    %v2748 = vld [vmem:[#allocation12 + $0x1b8] sm:$0xff]
    %v2749 = vld [vmem:[#allocation12 + $0x1c0] sm:$0xff]
    %v2750 = vld [vmem:[#allocation12 + $0x1c8] sm:$0xff]
    %v2751 = vld [vmem:[#allocation12 + $0x1d0] sm:$0xff]
    %v2752 = vld [vmem:[#allocation12 + $0x1d8] sm:$0xff]
    %v2753 = vld [vmem:[#allocation12 + $0x1e0] sm:$0xff]
    %v2754 = vld [vmem:[#allocation12 + $0x1e8] sm:$0xff]
    %v2755 = vld [vmem:[#allocation12 + $0x1f0] sm:$0xff]
    %v2756 = vld [vmem:[#allocation12 + $0x1f8] sm:$0xff]
    %v2757 = vld [vmem:[#allocation12 + $0x200] sm:$0xff]
    %v2758 = vld [vmem:[#allocation12 + $0x208] sm:$0xff]
    %v2759 = vld [vmem:[#allocation12 + $0x210] sm:$0xff]
    %v2760 = vld [vmem:[#allocation12 + $0x218] sm:$0xff]
    %v2761 = vld [vmem:[#allocation12 + $0x220] sm:$0xff]
    %v2762 = vld [vmem:[#allocation12 + $0x228] sm:$0xff]
    %v2763 = vld [vmem:[#allocation12 + $0x230] sm:$0xff]
    %v2764 = vld [vmem:[#allocation12 + $0x238] sm:$0xff]
    %v2765 = vld [vmem:[#allocation12 + $0x240] sm:$0xff]
    %v2766 = vld [vmem:[#allocation12 + $0x248] sm:$0xff]
    %v2767 = vld [vmem:[#allocation12 + $0x250] sm:$0xff]
    %v2768 = vld [vmem:[#allocation12 + $0x258] sm:$0xff]
    %v2769 = vld [vmem:[#allocation12 + $0x260] sm:$0xff]
    %v2770 = vld [vmem:[#allocation12 + $0x268] sm:$0xff]
    %v2771 = vld [vmem:[#allocation12 + $0x270] sm:$0xff]
    %v2772 = vld [vmem:[#allocation12 + $0x278] sm:$0xff]
    %v2773 = vld [vmem:[#allocation12 + $0x280] sm:$0xff]
    %v2774 = vld [vmem:[#allocation12 + $0x288] sm:$0xff]
    %v2775 = vld [vmem:[#allocation12 + $0x290] sm:$0xff]
    %v2776 = vld [vmem:[#allocation12 + $0x298] sm:$0xff]
    %v2777 = vld [vmem:[#allocation12 + $0x2a0] sm:$0xff]
    %v2778 = vld [vmem:[#allocation12 + $0x2a8] sm:$0xff]
    %v2779 = vld [vmem:[#allocation12 + $0x2b0] sm:$0xff]
    %v2780 = vld [vmem:[#allocation12 + $0x2b8] sm:$0xff]
    %v2781 = vld [vmem:[#allocation12 + $0x2c0] sm:$0xff]
    %v2782 = vld [vmem:[#allocation12 + $0x2c8] sm:$0xff]
    %v2783 = vld [vmem:[#allocation12 + $0x2d0] sm:$0xff]
    %v2784 = vld [vmem:[#allocation12 + $0x2d8] sm:$0xff]
    %v2785 = vld [vmem:[#allocation12 + $0x2e0] sm:$0xff]
    %v2786 = vld [vmem:[#allocation12 + $0x2e8] sm:$0xff]
    %v2787 = vld [vmem:[#allocation12 + $0x2f0] sm:$0xff]
    %v2788 = vld [vmem:[#allocation12 + $0x2f8] sm:$0xff]
    %v2789 = vld [vmem:[#allocation12 + $0x300] sm:$0xff]
    %v2790 = vld [vmem:[#allocation12 + $0x308] sm:$0xff]
    %v2791 = vld [vmem:[#allocation12 + $0x310] sm:$0xff]
    %v2792 = vld [vmem:[#allocation12 + $0x318] sm:$0xff]
    %v2793 = vld [vmem:[#allocation12 + $0x320] sm:$0xff]
    %v2794 = vld [vmem:[#allocation12 + $0x328] sm:$0xff]
    %v2795 = vld [vmem:[#allocation12 + $0x330] sm:$0xff]
    %v2796 = vld [vmem:[#allocation12 + $0x338] sm:$0xff]
    %v2797 = vld [vmem:[#allocation12 + $0x340] sm:$0xff]
    %v2798 = vld [vmem:[#allocation12 + $0x348] sm:$0xff]
    %v2799 = vld [vmem:[#allocation12 + $0x350] sm:$0xff]
    %v2800 = vld [vmem:[#allocation12 + $0x358] sm:$0xff]
    %v2801 = vld [vmem:[#allocation12 + $0x360] sm:$0xff]
    %v2802 = vld [vmem:[#allocation12 + $0x368] sm:$0xff]
    %v2803 = vld [vmem:[#allocation12 + $0x370] sm:$0xff]
    %v2804 = vld [vmem:[#allocation12 + $0x378] sm:$0xff]
    %v2805 = vld [vmem:[#allocation12 + $0x380] sm:$0xff]
    %v2806 = vld [vmem:[#allocation12 + $0x388] sm:$0xff]
    %v2807 = vld [vmem:[#allocation12 + $0x390] sm:$0xff]
    %v2808 = vld [vmem:[#allocation12 + $0x398] sm:$0xff]
    %v2809 = vld [vmem:[#allocation12 + $0x3a0] sm:$0xff]
    %v2810 = vld [vmem:[#allocation12 + $0x3a8] sm:$0xff]
    %v2811 = vld [vmem:[#allocation12 + $0x3b0] sm:$0xff]
    %v2812 = vld [vmem:[#allocation12 + $0x3b8] sm:$0xff]
    %v2813 = vld [vmem:[#allocation12 + $0x3c0] sm:$0xff]
    %v2814 = vld [vmem:[#allocation12 + $0x3c8] sm:$0xff]
    %v2815 = vld [vmem:[#allocation12 + $0x3d0] sm:$0xff]
    %v2816 = vld [vmem:[#allocation12 + $0x3d8] sm:$0xff]
    %v2817 = vld [vmem:[#allocation12 + $0x3e0] sm:$0xff]
    %v2818 = vld [vmem:[#allocation12 + $0x3e8] sm:$0xff]
    %v2819 = vld [vmem:[#allocation12 + $0x3f0] sm:$0xff]
    %v2820 = vld [vmem:[#allocation12 + $0x3f8] sm:$0xff]
    %v2821 = vld [vmem:[%s10] sm:$0xf]
    %v2823 = vlaneseq
    %v2824 = vshrl.u32 %v2823, 7
    %v2825 = vsub.s32 0, %v2824
    %v2826 = vrot.slane %v2821, %v2825
    %v2827 = vlaneseq
    %v2828 = vshrl.u32 %v2827, 7
    %v2829 = vsub.s32 1, %v2828
    %v2830 = vrot.slane %v2821, %v2829
    %v2831 = vlaneseq
    %v2832 = vshrl.u32 %v2831, 7
    %v2833 = vsub.s32 2, %v2832
    %v2834 = vrot.slane %v2821, %v2833
    %v2835 = vlaneseq
    %v2836 = vshrl.u32 %v2835, 7
    %v2837 = vsub.s32 3, %v2836
    %v2838 = vrot.slane %v2821, %v2837
    %v2971 = vunpack.c.l.b16 %v2693
    %v2972 = vunpack.c.h.b16 %v2693
    %v2973 = vunpack.c.l.b16 %v2694
    %v2974 = vunpack.c.h.b16 %v2694
    %v2975 = vunpack.c.l.b16 %v2695
    %v2976 = vunpack.c.h.b16 %v2695
    %v2977 = vunpack.c.l.b16 %v2696
    %v2978 = vunpack.c.h.b16 %v2696
    %v2979 = vunpack.c.l.b16 %v2697
    %v2980 = vunpack.c.h.b16 %v2697
    %v2981 = vunpack.c.l.b16 %v2698
    %v2982 = vunpack.c.h.b16 %v2698
    %v2983 = vunpack.c.l.b16 %v2699
    %v2984 = vunpack.c.h.b16 %v2699
    %v2985 = vunpack.c.l.b16 %v2700
    %v2986 = vunpack.c.h.b16 %v2700
    %v2987 = vunpack.c.l.b16 %v2701
    %v2988 = vunpack.c.h.b16 %v2701
    %v2989 = vunpack.c.l.b16 %v2702
    %v2990 = vunpack.c.h.b16 %v2702
    %v2991 = vunpack.c.l.b16 %v2703
    %v2992 = vunpack.c.h.b16 %v2703
    %v2993 = vunpack.c.l.b16 %v2704
    %v2994 = vunpack.c.h.b16 %v2704
    %v2995 = vunpack.c.l.b16 %v2705
    %v2996 = vunpack.c.h.b16 %v2705
    %v2997 = vunpack.c.l.b16 %v2706
    %v2998 = vunpack.c.h.b16 %v2706
    %v2999 = vunpack.c.l.b16 %v2707
    %v3000 = vunpack.c.h.b16 %v2707
    %v3001 = vunpack.c.l.b16 %v2708
    %v3002 = vunpack.c.h.b16 %v2708
    %v3003 = vunpack.c.l.b16 %v2709
    %v3004 = vunpack.c.h.b16 %v2709
    %v3005 = vunpack.c.l.b16 %v2710
    %v3006 = vunpack.c.h.b16 %v2710
    %v3007 = vunpack.c.l.b16 %v2711
    %v3008 = vunpack.c.h.b16 %v2711
    %v3009 = vunpack.c.l.b16 %v2712
    %v3010 = vunpack.c.h.b16 %v2712
    %v3011 = vunpack.c.l.b16 %v2713
    %v3012 = vunpack.c.h.b16 %v2713
    %v3013 = vunpack.c.l.b16 %v2714
    %v3014 = vunpack.c.h.b16 %v2714
    %v3015 = vunpack.c.l.b16 %v2715
    %v3016 = vunpack.c.h.b16 %v2715
    %v3017 = vunpack.c.l.b16 %v2716
    %v3018 = vunpack.c.h.b16 %v2716
    %v3019 = vunpack.c.l.b16 %v2717
    %v3020 = vunpack.c.h.b16 %v2717
    %v3021 = vunpack.c.l.b16 %v2718
    %v3022 = vunpack.c.h.b16 %v2718
    %v3023 = vunpack.c.l.b16 %v2719
    %v3024 = vunpack.c.h.b16 %v2719
    %v3025 = vunpack.c.l.b16 %v2720
    %v3026 = vunpack.c.h.b16 %v2720
    %v3027 = vunpack.c.l.b16 %v2721
    %v3028 = vunpack.c.h.b16 %v2721
    %v3029 = vunpack.c.l.b16 %v2722
    %v3030 = vunpack.c.h.b16 %v2722
    %v3031 = vunpack.c.l.b16 %v2723
    %v3032 = vunpack.c.h.b16 %v2723
    %v3033 = vunpack.c.l.b16 %v2724
    %v3034 = vunpack.c.h.b16 %v2724
    %v3035 = vunpack.c.l.b16 %v2725
    %v3036 = vunpack.c.h.b16 %v2725
    %v3037 = vunpack.c.l.b16 %v2726
    %v3038 = vunpack.c.h.b16 %v2726
    %v3039 = vunpack.c.l.b16 %v2727
    %v3040 = vunpack.c.h.b16 %v2727
    %v3041 = vunpack.c.l.b16 %v2728
    %v3042 = vunpack.c.h.b16 %v2728
    %v3043 = vunpack.c.l.b16 %v2729
    %v3044 = vunpack.c.h.b16 %v2729
    %v3045 = vunpack.c.l.b16 %v2730
    %v3046 = vunpack.c.h.b16 %v2730
    %v3047 = vunpack.c.l.b16 %v2731
    %v3048 = vunpack.c.h.b16 %v2731
    %v3049 = vunpack.c.l.b16 %v2732
    %v3050 = vunpack.c.h.b16 %v2732
    %v3051 = vunpack.c.l.b16 %v2733
    %v3052 = vunpack.c.h.b16 %v2733
    %v3053 = vunpack.c.l.b16 %v2734
    %v3054 = vunpack.c.h.b16 %v2734
    %v3055 = vunpack.c.l.b16 %v2735
    %v3056 = vunpack.c.h.b16 %v2735
    %v3057 = vunpack.c.l.b16 %v2736
    %v3058 = vunpack.c.h.b16 %v2736
    %v3059 = vunpack.c.l.b16 %v2737
    %v3060 = vunpack.c.h.b16 %v2737
    %v3061 = vunpack.c.l.b16 %v2738
    %v3062 = vunpack.c.h.b16 %v2738
    %v3063 = vunpack.c.l.b16 %v2739
    %v3064 = vunpack.c.h.b16 %v2739
    %v3065 = vunpack.c.l.b16 %v2740
    %v3066 = vunpack.c.h.b16 %v2740
    %v3067 = vunpack.c.l.b16 %v2741
    %v3068 = vunpack.c.h.b16 %v2741
    %v3069 = vunpack.c.l.b16 %v2742
    %v3070 = vunpack.c.h.b16 %v2742
    %v3071 = vunpack.c.l.b16 %v2743
    %v3072 = vunpack.c.h.b16 %v2743
    %v3073 = vunpack.c.l.b16 %v2744
    %v3074 = vunpack.c.h.b16 %v2744
    %v3075 = vunpack.c.l.b16 %v2745
    %v3076 = vunpack.c.h.b16 %v2745
    %v3077 = vunpack.c.l.b16 %v2746
    %v3078 = vunpack.c.h.b16 %v2746
    %v3079 = vunpack.c.l.b16 %v2747
    %v3080 = vunpack.c.h.b16 %v2747
    %v3081 = vunpack.c.l.b16 %v2748
    %v3082 = vunpack.c.h.b16 %v2748
    %v3083 = vunpack.c.l.b16 %v2749
    %v3084 = vunpack.c.h.b16 %v2749
    %v3085 = vunpack.c.l.b16 %v2750
    %v3086 = vunpack.c.h.b16 %v2750
    %v3087 = vunpack.c.l.b16 %v2751
    %v3088 = vunpack.c.h.b16 %v2751
    %v3089 = vunpack.c.l.b16 %v2752
    %v3090 = vunpack.c.h.b16 %v2752
    %v3091 = vunpack.c.l.b16 %v2753
    %v3092 = vunpack.c.h.b16 %v2753
    %v3093 = vunpack.c.l.b16 %v2754
    %v3094 = vunpack.c.h.b16 %v2754
    %v3095 = vunpack.c.l.b16 %v2755
    %v3096 = vunpack.c.h.b16 %v2755
    %v3097 = vunpack.c.l.b16 %v2756
    %v3098 = vunpack.c.h.b16 %v2756
    %v3099 = vunpack.c.l.b16 %v2757
    %v3100 = vunpack.c.h.b16 %v2757
    %v3101 = vunpack.c.l.b16 %v2758
    %v3102 = vunpack.c.h.b16 %v2758
    %v3103 = vunpack.c.l.b16 %v2759
    %v3104 = vunpack.c.h.b16 %v2759
    %v3105 = vunpack.c.l.b16 %v2760
    %v3106 = vunpack.c.h.b16 %v2760
    %v3107 = vunpack.c.l.b16 %v2761
    %v3108 = vunpack.c.h.b16 %v2761
    %v3109 = vunpack.c.l.b16 %v2762
    %v3110 = vunpack.c.h.b16 %v2762
    %v3111 = vunpack.c.l.b16 %v2763
    %v3112 = vunpack.c.h.b16 %v2763
    %v3113 = vunpack.c.l.b16 %v2764
    %v3114 = vunpack.c.h.b16 %v2764
    %v3115 = vunpack.c.l.b16 %v2765
    %v3116 = vunpack.c.h.b16 %v2765
    %v3117 = vunpack.c.l.b16 %v2766
    %v3118 = vunpack.c.h.b16 %v2766
    %v3119 = vunpack.c.l.b16 %v2767
    %v3120 = vunpack.c.h.b16 %v2767
    %v3121 = vunpack.c.l.b16 %v2768
    %v3122 = vunpack.c.h.b16 %v2768
    %v3123 = vunpack.c.l.b16 %v2769
    %v3124 = vunpack.c.h.b16 %v2769
    %v3125 = vunpack.c.l.b16 %v2770
    %v3126 = vunpack.c.h.b16 %v2770
    %v3127 = vunpack.c.l.b16 %v2771
    %v3128 = vunpack.c.h.b16 %v2771
    %v3129 = vunpack.c.l.b16 %v2772
    %v3130 = vunpack.c.h.b16 %v2772
    %v3131 = vunpack.c.l.b16 %v2773
    %v3132 = vunpack.c.h.b16 %v2773
    %v3133 = vunpack.c.l.b16 %v2774
    %v3134 = vunpack.c.h.b16 %v2774
    %v3135 = vunpack.c.l.b16 %v2775
    %v3136 = vunpack.c.h.b16 %v2775
    %v3137 = vunpack.c.l.b16 %v2776
    %v3138 = vunpack.c.h.b16 %v2776
    %v3139 = vunpack.c.l.b16 %v2777
    %v3140 = vunpack.c.h.b16 %v2777
    %v3141 = vunpack.c.l.b16 %v2778
    %v3142 = vunpack.c.h.b16 %v2778
    %v3143 = vunpack.c.l.b16 %v2779
    %v3144 = vunpack.c.h.b16 %v2779
    %v3145 = vunpack.c.l.b16 %v2780
    %v3146 = vunpack.c.h.b16 %v2780
    %v3147 = vunpack.c.l.b16 %v2781
    %v3148 = vunpack.c.h.b16 %v2781
    %v3149 = vunpack.c.l.b16 %v2782
    %v3150 = vunpack.c.h.b16 %v2782
    %v3151 = vunpack.c.l.b16 %v2783
    %v3152 = vunpack.c.h.b16 %v2783
    %v3153 = vunpack.c.l.b16 %v2784
    %v3154 = vunpack.c.h.b16 %v2784
    %v3155 = vunpack.c.l.b16 %v2785
    %v3156 = vunpack.c.h.b16 %v2785
    %v3157 = vunpack.c.l.b16 %v2786
    %v3158 = vunpack.c.h.b16 %v2786
    %v3159 = vunpack.c.l.b16 %v2787
    %v3160 = vunpack.c.h.b16 %v2787
    %v3161 = vunpack.c.l.b16 %v2788
    %v3162 = vunpack.c.h.b16 %v2788
    %v3163 = vunpack.c.l.b16 %v2789
    %v3164 = vunpack.c.h.b16 %v2789
    %v3165 = vunpack.c.l.b16 %v2790
    %v3166 = vunpack.c.h.b16 %v2790
    %v3167 = vunpack.c.l.b16 %v2791
    %v3168 = vunpack.c.h.b16 %v2791
    %v3169 = vunpack.c.l.b16 %v2792
    %v3170 = vunpack.c.h.b16 %v2792
    %v3171 = vunpack.c.l.b16 %v2793
    %v3172 = vunpack.c.h.b16 %v2793
    %v3173 = vunpack.c.l.b16 %v2794
    %v3174 = vunpack.c.h.b16 %v2794
    %v3175 = vunpack.c.l.b16 %v2795
    %v3176 = vunpack.c.h.b16 %v2795
    %v3177 = vunpack.c.l.b16 %v2796
    %v3178 = vunpack.c.h.b16 %v2796
    %v3179 = vunpack.c.l.b16 %v2797
    %v3180 = vunpack.c.h.b16 %v2797
    %v3181 = vunpack.c.l.b16 %v2798
    %v3182 = vunpack.c.h.b16 %v2798
    %v3183 = vunpack.c.l.b16 %v2799
    %v3184 = vunpack.c.h.b16 %v2799
    %v3185 = vunpack.c.l.b16 %v2800
    %v3186 = vunpack.c.h.b16 %v2800
    %v3187 = vunpack.c.l.b16 %v2801
    %v3188 = vunpack.c.h.b16 %v2801
    %v3189 = vunpack.c.l.b16 %v2802
    %v3190 = vunpack.c.h.b16 %v2802
    %v3191 = vunpack.c.l.b16 %v2803
    %v3192 = vunpack.c.h.b16 %v2803
    %v3193 = vunpack.c.l.b16 %v2804
    %v3194 = vunpack.c.h.b16 %v2804
    %v3195 = vunpack.c.l.b16 %v2805
    %v3196 = vunpack.c.h.b16 %v2805
    %v3197 = vunpack.c.l.b16 %v2806
    %v3198 = vunpack.c.h.b16 %v2806
    %v3199 = vunpack.c.l.b16 %v2807
    %v3200 = vunpack.c.h.b16 %v2807
    %v3201 = vunpack.c.l.b16 %v2808
    %v3202 = vunpack.c.h.b16 %v2808
    %v3203 = vunpack.c.l.b16 %v2809
    %v3204 = vunpack.c.h.b16 %v2809
    %v3205 = vunpack.c.l.b16 %v2810
    %v3206 = vunpack.c.h.b16 %v2810
    %v3207 = vunpack.c.l.b16 %v2811
    %v3208 = vunpack.c.h.b16 %v2811
    %v3209 = vunpack.c.l.b16 %v2812
    %v3210 = vunpack.c.h.b16 %v2812
    %v3211 = vunpack.c.l.b16 %v2813
    %v3212 = vunpack.c.h.b16 %v2813
    %v3213 = vunpack.c.l.b16 %v2814
    %v3214 = vunpack.c.h.b16 %v2814
    %v3215 = vunpack.c.l.b16 %v2815
    %v3216 = vunpack.c.h.b16 %v2815
    %v3217 = vunpack.c.l.b16 %v2816
    %v3218 = vunpack.c.h.b16 %v2816
    %v3219 = vunpack.c.l.b16 %v2817
    %v3220 = vunpack.c.h.b16 %v2817
    %v3221 = vunpack.c.l.b16 %v2818
    %v3222 = vunpack.c.h.b16 %v2818
    %v3223 = vunpack.c.l.b16 %v2819
    %v3224 = vunpack.c.h.b16 %v2819
    %v3225 = vunpack.c.l.b16 %v2820
    %v3226 = vunpack.c.h.b16 %v2820
    %v3227 = vpack.c.b16 %v2975, %v2971
    %v3228 = vpack.c.b16 %v2976, %v2972
    %v3229 = vpack.c.b16 %v2977, %v2973
    %v3230 = vpack.c.b16 %v2978, %v2974
    %v3231 = vpack.c.b16 %v2983, %v2979
    %v3232 = vpack.c.b16 %v2984, %v2980
    %v3233 = vpack.c.b16 %v2985, %v2981
    %v3234 = vpack.c.b16 %v2986, %v2982
    %v3235 = vpack.c.b16 %v2991, %v2987
    %v3236 = vpack.c.b16 %v2992, %v2988
    %v3237 = vpack.c.b16 %v2993, %v2989
    %v3238 = vpack.c.b16 %v2994, %v2990
    %v3239 = vpack.c.b16 %v2999, %v2995
    %v3240 = vpack.c.b16 %v3000, %v2996
    %v3241 = vpack.c.b16 %v3001, %v2997
    %v3242 = vpack.c.b16 %v3002, %v2998
    %v3243 = vpack.c.b16 %v3007, %v3003
    %v3244 = vpack.c.b16 %v3008, %v3004
    %v3245 = vpack.c.b16 %v3009, %v3005
    %v3246 = vpack.c.b16 %v3010, %v3006
    %v3247 = vpack.c.b16 %v3015, %v3011
    %v3248 = vpack.c.b16 %v3016, %v3012
    %v3249 = vpack.c.b16 %v3017, %v3013
    %v3250 = vpack.c.b16 %v3018, %v3014
    %v3251 = vpack.c.b16 %v3023, %v3019
    %v3252 = vpack.c.b16 %v3024, %v3020
    %v3253 = vpack.c.b16 %v3025, %v3021
    %v3254 = vpack.c.b16 %v3026, %v3022
    %v3255 = vpack.c.b16 %v3031, %v3027
    %v3256 = vpack.c.b16 %v3032, %v3028
    %v3257 = vpack.c.b16 %v3033, %v3029
    %v3258 = vpack.c.b16 %v3034, %v3030
    %v3259 = vpack.c.b16 %v3039, %v3035
    %v3260 = vpack.c.b16 %v3040, %v3036
    %v3261 = vpack.c.b16 %v3041, %v3037
    %v3262 = vpack.c.b16 %v3042, %v3038
    %v3263 = vpack.c.b16 %v3047, %v3043
    %v3264 = vpack.c.b16 %v3048, %v3044
    %v3265 = vpack.c.b16 %v3049, %v3045
    %v3266 = vpack.c.b16 %v3050, %v3046
    %v3267 = vpack.c.b16 %v3055, %v3051
    %v3268 = vpack.c.b16 %v3056, %v3052
    %v3269 = vpack.c.b16 %v3057, %v3053
    %v3270 = vpack.c.b16 %v3058, %v3054
    %v3271 = vpack.c.b16 %v3063, %v3059
    %v3272 = vpack.c.b16 %v3064, %v3060
    %v3273 = vpack.c.b16 %v3065, %v3061
    %v3274 = vpack.c.b16 %v3066, %v3062
    %v3275 = vpack.c.b16 %v3071, %v3067
    %v3276 = vpack.c.b16 %v3072, %v3068
    %v3277 = vpack.c.b16 %v3073, %v3069
    %v3278 = vpack.c.b16 %v3074, %v3070
    %v3279 = vpack.c.b16 %v3079, %v3075
    %v3280 = vpack.c.b16 %v3080, %v3076
    %v3281 = vpack.c.b16 %v3081, %v3077
    %v3282 = vpack.c.b16 %v3082, %v3078
    %v3283 = vpack.c.b16 %v3087, %v3083
    %v3284 = vpack.c.b16 %v3088, %v3084
    %v3285 = vpack.c.b16 %v3089, %v3085
    %v3286 = vpack.c.b16 %v3090, %v3086
    %v3287 = vpack.c.b16 %v3095, %v3091
    %v3288 = vpack.c.b16 %v3096, %v3092
    %v3289 = vpack.c.b16 %v3097, %v3093
    %v3290 = vpack.c.b16 %v3098, %v3094
    %v3291 = vpack.c.b16 %v3103, %v3099
    %v3292 = vpack.c.b16 %v3104, %v3100
    %v3293 = vpack.c.b16 %v3105, %v3101
    %v3294 = vpack.c.b16 %v3106, %v3102
    %v3295 = vpack.c.b16 %v3111, %v3107
    %v3296 = vpack.c.b16 %v3112, %v3108
    %v3297 = vpack.c.b16 %v3113, %v3109
    %v3298 = vpack.c.b16 %v3114, %v3110
    %v3299 = vpack.c.b16 %v3119, %v3115
    %v3300 = vpack.c.b16 %v3120, %v3116
    %v3301 = vpack.c.b16 %v3121, %v3117
    %v3302 = vpack.c.b16 %v3122, %v3118
    %v3303 = vpack.c.b16 %v3127, %v3123
    %v3304 = vpack.c.b16 %v3128, %v3124
    %v3305 = vpack.c.b16 %v3129, %v3125
    %v3306 = vpack.c.b16 %v3130, %v3126
    %v3307 = vpack.c.b16 %v3135, %v3131
    %v3308 = vpack.c.b16 %v3136, %v3132
    %v3309 = vpack.c.b16 %v3137, %v3133
    %v3310 = vpack.c.b16 %v3138, %v3134
    %v3311 = vpack.c.b16 %v3143, %v3139
    %v3312 = vpack.c.b16 %v3144, %v3140
    %v3313 = vpack.c.b16 %v3145, %v3141
    %v3314 = vpack.c.b16 %v3146, %v3142
    %v3315 = vpack.c.b16 %v3151, %v3147
    %v3316 = vpack.c.b16 %v3152, %v3148
    %v3317 = vpack.c.b16 %v3153, %v3149
    %v3318 = vpack.c.b16 %v3154, %v3150
    %v3319 = vpack.c.b16 %v3159, %v3155
    %v3320 = vpack.c.b16 %v3160, %v3156
    %v3321 = vpack.c.b16 %v3161, %v3157
    %v3322 = vpack.c.b16 %v3162, %v3158
    %v3323 = vpack.c.b16 %v3167, %v3163
    %v3324 = vpack.c.b16 %v3168, %v3164
    %v3325 = vpack.c.b16 %v3169, %v3165
    %v3326 = vpack.c.b16 %v3170, %v3166
    %v3327 = vpack.c.b16 %v3175, %v3171
    %v3328 = vpack.c.b16 %v3176, %v3172
    %v3329 = vpack.c.b16 %v3177, %v3173
    %v3330 = vpack.c.b16 %v3178, %v3174
    %v3331 = vpack.c.b16 %v3183, %v3179
    %v3332 = vpack.c.b16 %v3184, %v3180
    %v3333 = vpack.c.b16 %v3185, %v3181
    %v3334 = vpack.c.b16 %v3186, %v3182
    %v3335 = vpack.c.b16 %v3191, %v3187
    %v3336 = vpack.c.b16 %v3192, %v3188
    %v3337 = vpack.c.b16 %v3193, %v3189
    %v3338 = vpack.c.b16 %v3194, %v3190
    %v3339 = vpack.c.b16 %v3199, %v3195
    %v3340 = vpack.c.b16 %v3200, %v3196
    %v3341 = vpack.c.b16 %v3201, %v3197
    %v3342 = vpack.c.b16 %v3202, %v3198
    %v3343 = vpack.c.b16 %v3207, %v3203
    %v3344 = vpack.c.b16 %v3208, %v3204
    %v3345 = vpack.c.b16 %v3209, %v3205
    %v3346 = vpack.c.b16 %v3210, %v3206
    %v3347 = vpack.c.b16 %v3215, %v3211
    %v3348 = vpack.c.b16 %v3216, %v3212
    %v3349 = vpack.c.b16 %v3217, %v3213
    %v3350 = vpack.c.b16 %v3218, %v3214
    %v3351 = vpack.c.b16 %v3223, %v3219
    %v3352 = vpack.c.b16 %v3224, %v3220
    %v3353 = vpack.c.b16 %v3225, %v3221
    %v3354 = vpack.c.b16 %v3226, %v3222
    %3483 = vmatprep.subr.bf16.mxu0 %v3228
    %3484 = vmatpush1.bf16.msra.mxu0 %v3227
    %3485 = vmatprep.subr.bf16.mxu0 %v3232
    %3486 = vmatpush1.bf16.msra.mxu0 %v3231
    %3487 = vmatprep.subr.bf16.mxu0 %v3236
    %3488 = vmatpush1.bf16.msra.mxu0 %v3235
    %3489 = vmatprep.subr.bf16.mxu0 %v3240
    %3490 = vmatpush1.bf16.msra.mxu0 %v3239
    %3491 = vmatprep.subr.bf16.mxu0 %v3244
    %3492 = vmatpush1.bf16.msra.mxu0 %v3243
    %3493 = vmatprep.subr.bf16.mxu0 %v3248
    %3494 = vmatpush1.bf16.msra.mxu0 %v3247
    %3495 = vmatprep.subr.bf16.mxu0 %v3252
    %3496 = vmatpush1.bf16.msra.mxu0 %v3251
    %3497 = vmatprep.subr.bf16.mxu0 %v3256
    %3498 = vmatpush1.bf16.msra.mxu0 %v3255
    %3499 = vmatprep.subr.bf16.mxu0 %v3260
    %3500 = vmatpush1.bf16.msra.mxu0 %v3259
    %3501 = vmatprep.subr.bf16.mxu0 %v3264
    %3502 = vmatpush1.bf16.msra.mxu0 %v3263
    %3503 = vmatprep.subr.bf16.mxu0 %v3268
    %3504 = vmatpush1.bf16.msra.mxu0 %v3267
    %3505 = vmatprep.subr.bf16.mxu0 %v3272
    %3506 = vmatpush1.bf16.msra.mxu0 %v3271
    %3507 = vmatprep.subr.bf16.mxu0 %v3276
    %3508 = vmatpush1.bf16.msra.mxu0 %v3275
    %3509 = vmatprep.subr.bf16.mxu0 %v3280
    %3510 = vmatpush1.bf16.msra.mxu0 %v3279
    %3511 = vmatprep.subr.bf16.mxu0 %v3284
    %3512 = vmatpush1.bf16.msra.mxu0 %v3283
    %3513 = vmatprep.subr.bf16.mxu0 %v3288
    %3514 = vmatpush1.bf16.msra.mxu0 %v3287
    %3515 = vmatprep.mubr.bf16.mxu0 %v766
    %3516 = vmatmul.mubr.bf16.gmra.mrb[0].mxu0 %v765
    %v3517 = vpop.f32.mrb[0].mxu0
    %v3518 = vadd.f32 %v2826, %v3517
    %v3519 = vpop.f32.mrb[0].mxu0
    %v3520 = vadd.f32 %v2830, %v3519
    %v3521 = vpop.f32.mrb[0].mxu0
    %v3522 = vadd.f32 %v2826, %v3521
    %v3523 = vpop.f32.mrb[0].mxu0
    %v3524 = vadd.f32 %v2830, %v3523
    %3525 = vdwg.mxu0
    %3526 = vmatprep.subr.bf16.mxu0 %v3292
    %3527 = vmatpush1.bf16.msra.mxu0 %v3291
    %3528 = vmatprep.subr.bf16.mxu0 %v3296
    %3529 = vmatpush1.bf16.msra.mxu0 %v3295
    %3530 = vmatprep.subr.bf16.mxu0 %v3300
    %3531 = vmatpush1.bf16.msra.mxu0 %v3299
    %3532 = vmatprep.subr.bf16.mxu0 %v3304
    %3533 = vmatpush1.bf16.msra.mxu0 %v3303
    %3534 = vmatprep.subr.bf16.mxu0 %v3308
    %3535 = vmatpush1.bf16.msra.mxu0 %v3307
    %3536 = vmatprep.subr.bf16.mxu0 %v3312
    %3537 = vmatpush1.bf16.msra.mxu0 %v3311
    %3538 = vmatprep.subr.bf16.mxu0 %v3316
    %3539 = vmatpush1.bf16.msra.mxu0 %v3315
    %3540 = vmatprep.subr.bf16.mxu0 %v3320
    %3541 = vmatpush1.bf16.msra.mxu0 %v3319
    %3542 = vmatprep.subr.bf16.mxu0 %v3324
    %3543 = vmatpush1.bf16.msra.mxu0 %v3323
    %3544 = vmatprep.subr.bf16.mxu0 %v3328
    %3545 = vmatpush1.bf16.msra.mxu0 %v3327
    %3546 = vmatprep.subr.bf16.mxu0 %v3332
    %3547 = vmatpush1.bf16.msra.mxu0 %v3331
    %3548 = vmatprep.subr.bf16.mxu0 %v3336
    %3549 = vmatpush1.bf16.msra.mxu0 %v3335
    %3550 = vmatprep.subr.bf16.mxu0 %v3340
    %3551 = vmatpush1.bf16.msra.mxu0 %v3339
    %3552 = vmatprep.subr.bf16.mxu0 %v3344
    %3553 = vmatpush1.bf16.msra.mxu0 %v3343
    %3554 = vmatprep.subr.bf16.mxu0 %v3348
    %3555 = vmatpush1.bf16.msra.mxu0 %v3347
    %3556 = vmatprep.subr.bf16.mxu0 %v3352
    %3557 = vmatpush1.bf16.msra.mxu0 %v3351
    %3558 = vmatprep.mubr.bf16.mxu0 %v768
    %3559 = vmatmul.mubr.bf16.gmra.mrb[0].mxu0 %v767
    %v3560 = vpop.f32.mrb[0].mxu0
    %v3561 = vadd.f32 %v3518, %v3560
    %v3562 = vpop.f32.mrb[0].mxu0
    %v3563 = vadd.f32 %v3520, %v3562
    %v3564 = vpop.f32.mrb[0].mxu0
    %v3565 = vadd.f32 %v3522, %v3564
    %v3566 = vpop.f32.mrb[0].mxu0
    %v3567 = vadd.f32 %v3524, %v3566
    %3568 = vdwg.mxu0
    %3569 = vmatprep.subr.bf16.mxu0 %v3230
    %3570 = vmatpush1.bf16.msra.mxu0 %v3229
    %3571 = vmatprep.subr.bf16.mxu0 %v3234
    %3572 = vmatpush1.bf16.msra.mxu0 %v3233
    %3573 = vmatprep.subr.bf16.mxu0 %v3238
    %3574 = vmatpush1.bf16.msra.mxu0 %v3237
    %3575 = vmatprep.subr.bf16.mxu0 %v3242
    %3576 = vmatpush1.bf16.msra.mxu0 %v3241
    %3577 = vmatprep.subr.bf16.mxu0 %v3246
    %3578 = vmatpush1.bf16.msra.mxu0 %v3245
    %3579 = vmatprep.subr.bf16.mxu0 %v3250
    %3580 = vmatpush1.bf16.msra.mxu0 %v3249
    %3581 = vmatprep.subr.bf16.mxu0 %v3254
    %3582 = vmatpush1.bf16.msra.mxu0 %v3253
    %3583 = vmatprep.subr.bf16.mxu0 %v3258
    %3584 = vmatpush1.bf16.msra.mxu0 %v3257
    %3585 = vmatprep.subr.bf16.mxu0 %v3262
    %3586 = vmatpush1.bf16.msra.mxu0 %v3261
    %3587 = vmatprep.subr.bf16.mxu0 %v3266
    %3588 = vmatpush1.bf16.msra.mxu0 %v3265
    %3589 = vmatprep.subr.bf16.mxu0 %v3270
    %3590 = vmatpush1.bf16.msra.mxu0 %v3269
    %3591 = vmatprep.subr.bf16.mxu0 %v3274
    %3592 = vmatpush1.bf16.msra.mxu0 %v3273
    %3593 = vmatprep.subr.bf16.mxu0 %v3278
    %3594 = vmatpush1.bf16.msra.mxu0 %v3277
    %3595 = vmatprep.subr.bf16.mxu0 %v3282
    %3596 = vmatpush1.bf16.msra.mxu0 %v3281
    %3597 = vmatprep.subr.bf16.mxu0 %v3286
    %3598 = vmatpush1.bf16.msra.mxu0 %v3285
    %3599 = vmatprep.subr.bf16.mxu0 %v3290
    %3600 = vmatpush1.bf16.msra.mxu0 %v3289
    %3601 = vmatprep.mubr.bf16.mxu0 %v766
    %3602 = vmatmul.mubr.bf16.gmra.mrb[0].mxu0 %v765
    %v3603 = vpop.f32.mrb[0].mxu0
    %v3604 = vadd.f32 %v2834, %v3603
    %v3605 = vpop.f32.mrb[0].mxu0
    %v3606 = vadd.f32 %v2838, %v3605
    %v3607 = vpop.f32.mrb[0].mxu0
    %v3608 = vadd.f32 %v2834, %v3607
    %v3609 = vpop.f32.mrb[0].mxu0
    %v3610 = vadd.f32 %v2838, %v3609
    %3611 = vdwg.mxu0
    %3612 = vmatprep.subr.bf16.mxu0 %v3294
    %3613 = vmatpush1.bf16.msra.mxu0 %v3293
    %3614 = vmatprep.subr.bf16.mxu0 %v3298
    %3615 = vmatpush1.bf16.msra.mxu0 %v3297
    %3616 = vmatprep.subr.bf16.mxu0 %v3302
    %3617 = vmatpush1.bf16.msra.mxu0 %v3301
    %3618 = vmatprep.subr.bf16.mxu0 %v3306
    %3619 = vmatpush1.bf16.msra.mxu0 %v3305
    %3620 = vmatprep.subr.bf16.mxu0 %v3310
    %3621 = vmatpush1.bf16.msra.mxu0 %v3309
    %3622 = vmatprep.subr.bf16.mxu0 %v3314
    %3623 = vmatpush1.bf16.msra.mxu0 %v3313
    %3624 = vmatprep.subr.bf16.mxu0 %v3318
    %3625 = vmatpush1.bf16.msra.mxu0 %v3317
    %3626 = vmatprep.subr.bf16.mxu0 %v3322
    %3627 = vmatpush1.bf16.msra.mxu0 %v3321
    %3628 = vmatprep.subr.bf16.mxu0 %v3326
    %3629 = vmatpush1.bf16.msra.mxu0 %v3325
    %3630 = vmatprep.subr.bf16.mxu0 %v3330
    %3631 = vmatpush1.bf16.msra.mxu0 %v3329
    %3632 = vmatprep.subr.bf16.mxu0 %v3334
    %3633 = vmatpush1.bf16.msra.mxu0 %v3333
    %3634 = vmatprep.subr.bf16.mxu0 %v3338
    %3635 = vmatpush1.bf16.msra.mxu0 %v3337
    %3636 = vmatprep.subr.bf16.mxu0 %v3342
    %3637 = vmatpush1.bf16.msra.mxu0 %v3341
    %3638 = vmatprep.subr.bf16.mxu0 %v3346
    %3639 = vmatpush1.bf16.msra.mxu0 %v3345
    %3640 = vmatprep.subr.bf16.mxu0 %v3350
    %3641 = vmatpush1.bf16.msra.mxu0 %v3349
    %3642 = vmatprep.subr.bf16.mxu0 %v3354
    %3643 = vmatpush1.bf16.msra.mxu0 %v3353
    %3644 = vmatprep.mubr.bf16.mxu0 %v768
    %3645 = vmatmul.mubr.bf16.gmra.mrb[0].mxu0 %v767
    %v3646 = vpop.f32.mrb[0].mxu0
    %v3647 = vadd.f32 %v3604, %v3646
    %v3648 = vpop.f32.mrb[0].mxu0
    %v3649 = vadd.f32 %v3606, %v3648
    %v3650 = vpop.f32.mrb[0].mxu0
    %v3651 = vadd.f32 %v3608, %v3650
    %v3652 = vpop.f32.mrb[0].mxu0
    %v3653 = vadd.f32 %v3610, %v3652
    %3654 = vdwg.mxu0
    %v3655 = vpack.c.bf16 %v1641, %v1637
    %v3656 = vpack.c.bf16 %v1643, %v1639
    %v3657 = vpack.c.bf16 %v1727, %v1723
    %v3658 = vpack.c.bf16 %v1729, %v1725
    %v3663 = vunpack.c.l.b16 %v3655
    %v3664 = vunpack.c.l.b16 %v3656
    %v3665 = vunpack.c.l.b16 %v3657
    %v3666 = vunpack.c.l.b16 %v3658
    %v3667 = vunpack.c.h.b16 %v3655
    %v3668 = vunpack.c.h.b16 %v3656
    %v3669 = vunpack.c.h.b16 %v3657
    %v3670 = vunpack.c.h.b16 %v3658
    %v3671 = vpack.c.bf16 %v2603, %v2599
    %v3672 = vpack.c.bf16 %v2605, %v2601
    %v3673 = vpack.c.bf16 %v2689, %v2685
    %v3674 = vpack.c.bf16 %v2691, %v2687
    %v3679 = vunpack.c.l.b16 %v3671
    %v3680 = vunpack.c.l.b16 %v3672
    %v3681 = vunpack.c.l.b16 %v3673
    %v3682 = vunpack.c.l.b16 %v3674
    %v3683 = vunpack.c.h.b16 %v3671
    %v3684 = vunpack.c.h.b16 %v3672
    %v3685 = vunpack.c.h.b16 %v3673
    %v3686 = vunpack.c.h.b16 %v3674
    %v3687 = vpack.c.bf16 %v3565, %v3561
    %v3688 = vpack.c.bf16 %v3567, %v3563
    %v3689 = vpack.c.bf16 %v3651, %v3647
    %v3690 = vpack.c.bf16 %v3653, %v3649
    %v3695 = vunpack.c.l.b16 %v3687
    %v3696 = vunpack.c.l.b16 %v3688
    %v3697 = vunpack.c.l.b16 %v3689
    %v3698 = vunpack.c.l.b16 %v3690
    %v3699 = vunpack.c.h.b16 %v3687
    %v3700 = vunpack.c.h.b16 %v3688
    %v3701 = vunpack.c.h.b16 %v3689
    %v3702 = vunpack.c.h.b16 %v3690
    %v3703 = vpack.c.b16 %v3663, %v3663
    %v3704 = vpack.c.b16 %v3664, %v3664
    %v3705 = vpack.c.b16 %v3665, %v3665
    %v3706 = vpack.c.b16 %v3666, %v3666
    %v3711 = vpack.c.b16 %v3679, %v3679
    %v3712 = vpack.c.b16 %v3680, %v3680
    %v3713 = vpack.c.b16 %v3681, %v3681
    %v3714 = vpack.c.b16 %v3682, %v3682
    %3719 = vmatprep.subr.bf16.mxu0 %v3712
    %3720 = vmatpush1.bf16.xpose.msra.mxu0 %v3711
    %3721 = vmatprep.subr.bf16.mxu0 0
    %3722 = vmatpush1.bf16.xpose.msra.mxu0 0
    %3723 = vmatprep.subr.bf16.mxu0 0
    %3724 = vmatpush1.bf16.xpose.msra.mxu0 0
    %3725 = vmatprep.subr.bf16.mxu0 0
    %3726 = vmatpush1.bf16.xpose.msra.mxu0 0
    %3727 = vmatprep.subr.bf16.mxu0 0
    %3728 = vmatpush1.bf16.xpose.msra.mxu0 0
    %3729 = vmatprep.subr.bf16.mxu0 0
    %3730 = vmatpush1.bf16.xpose.msra.mxu0 0
    %3731 = vmatprep.subr.bf16.mxu0 0
    %3732 = vmatpush1.bf16.xpose.msra.mxu0 0
    %3733 = vmatprep.subr.bf16.mxu0 0
    %3734 = vmatpush1.bf16.xpose.msra.mxu0 0
    %3735 = vmatprep.subr.bf16.mxu0 0
    %3736 = vmatpush1.bf16.xpose.msra.mxu0 0
    %3737 = vmatprep.subr.bf16.mxu0 0
    %3738 = vmatpush1.bf16.xpose.msra.mxu0 0
    %3739 = vmatprep.subr.bf16.mxu0 0
    %3740 = vmatpush1.bf16.xpose.msra.mxu0 0
    %3741 = vmatprep.subr.bf16.mxu0 0
    %3742 = vmatpush1.bf16.xpose.msra.mxu0 0
    %3743 = vmatprep.subr.bf16.mxu0 0
    %3744 = vmatpush1.bf16.xpose.msra.mxu0 0
    %3745 = vmatprep.subr.bf16.mxu0 0
    %3746 = vmatpush1.bf16.xpose.msra.mxu0 0
    %3747 = vmatprep.subr.bf16.mxu0 0
    %3748 = vmatpush1.bf16.xpose.msra.mxu0 0
    %3749 = vmatprep.subr.bf16.mxu0 0
    %3750 = vmatpush1.bf16.xpose.msra.mxu0 0
    %3751 = vmatprep.mubr.bf16.mxu0 %v3704
    %3752 = vmatmul.mubr.bf16.gmra.mrb[0].mxu0 %v3703
    %v3753 = vpop.f32.mrb[0].mxu0
    %v3754 = vadd.f32 0.0, %v3753
    %v3755 = vpop.f32.mrb[0].mxu0
    %v3756 = vpop.f32.mrb[0].mxu0
    %v3757 = vpop.f32.mrb[0].mxu0
    %3758 = vdwg.mxu0
    %3759 = vmatprep.subr.bf16.mxu0 %v3714
    %3760 = vmatpush1.bf16.xpose.msra.mxu0 %v3713
    %3761 = vmatprep.subr.bf16.mxu0 0
    %3762 = vmatpush1.bf16.xpose.msra.mxu0 0
    %3763 = vmatprep.subr.bf16.mxu0 0
    %3764 = vmatpush1.bf16.xpose.msra.mxu0 0
    %3765 = vmatprep.subr.bf16.mxu0 0
    %3766 = vmatpush1.bf16.xpose.msra.mxu0 0
    %3767 = vmatprep.subr.bf16.mxu0 0
    %3768 = vmatpush1.bf16.xpose.msra.mxu0 0
    %3769 = vmatprep.subr.bf16.mxu0 0
    %3770 = vmatpush1.bf16.xpose.msra.mxu0 0
    %3771 = vmatprep.subr.bf16.mxu0 0
    %3772 = vmatpush1.bf16.xpose.msra.mxu0 0
    %3773 = vmatprep.subr.bf16.mxu0 0
    %3774 = vmatpush1.bf16.xpose.msra.mxu0 0
    %3775 = vmatprep.subr.bf16.mxu0 0
    %3776 = vmatpush1.bf16.xpose.msra.mxu0 0
    %3777 = vmatprep.subr.bf16.mxu0 0
    %3778 = vmatpush1.bf16.xpose.msra.mxu0 0
    %3779 = vmatprep.subr.bf16.mxu0 0
    %3780 = vmatpush1.bf16.xpose.msra.mxu0 0
    %3781 = vmatprep.subr.bf16.mxu0 0
    %3782 = vmatpush1.bf16.xpose.msra.mxu0 0
    %3783 = vmatprep.subr.bf16.mxu0 0
    %3784 = vmatpush1.bf16.xpose.msra.mxu0 0
    %3785 = vmatprep.subr.bf16.mxu0 0
    %3786 = vmatpush1.bf16.xpose.msra.mxu0 0
    %3787 = vmatprep.subr.bf16.mxu0 0
    %3788 = vmatpush1.bf16.xpose.msra.mxu0 0
    %3789 = vmatprep.subr.bf16.mxu0 0
    %3790 = vmatpush1.bf16.xpose.msra.mxu0 0
    %3791 = vmatprep.mubr.bf16.mxu0 %v3706
    %3792 = vmatmul.mubr.bf16.gmra.mrb[0].mxu0 %v3705
    %v3793 = vpop.f32.mrb[0].mxu0
    %v3794 = vadd.f32 %v3754, %v3793
    %v3795 = vpop.f32.mrb[0].mxu0
    %v3796 = vpop.f32.mrb[0].mxu0
    %v3797 = vpop.f32.mrb[0].mxu0
    %3798 = vdwg.mxu0
    %v3799 = vpack.c.b16 %v3667, %v3667
    %v3800 = vpack.c.b16 %v3668, %v3668
    %v3801 = vpack.c.b16 %v3669, %v3669
    %v3802 = vpack.c.b16 %v3670, %v3670
    %v3807 = vpack.c.b16 %v3683, %v3683
    %v3808 = vpack.c.b16 %v3684, %v3684
    %v3809 = vpack.c.b16 %v3685, %v3685
    %v3810 = vpack.c.b16 %v3686, %v3686
    %3815 = vmatprep.subr.bf16.mxu0 %v3808
    %3816 = vmatpush1.bf16.xpose.msra.mxu0 %v3807
    %3817 = vmatprep.subr.bf16.mxu0 0
    %3818 = vmatpush1.bf16.xpose.msra.mxu0 0
    %3819 = vmatprep.subr.bf16.mxu0 0
    %3820 = vmatpush1.bf16.xpose.msra.mxu0 0
    %3821 = vmatprep.subr.bf16.mxu0 0
    %3822 = vmatpush1.bf16.xpose.msra.mxu0 0
    %3823 = vmatprep.subr.bf16.mxu0 0
    %3824 = vmatpush1.bf16.xpose.msra.mxu0 0
    %3825 = vmatprep.subr.bf16.mxu0 0
    %3826 = vmatpush1.bf16.xpose.msra.mxu0 0
    %3827 = vmatprep.subr.bf16.mxu0 0
    %3828 = vmatpush1.bf16.xpose.msra.mxu0 0
    %3829 = vmatprep.subr.bf16.mxu0 0
    %3830 = vmatpush1.bf16.xpose.msra.mxu0 0
    %3831 = vmatprep.subr.bf16.mxu0 0
    %3832 = vmatpush1.bf16.xpose.msra.mxu0 0
    %3833 = vmatprep.subr.bf16.mxu0 0
    %3834 = vmatpush1.bf16.xpose.msra.mxu0 0
    %3835 = vmatprep.subr.bf16.mxu0 0
    %3836 = vmatpush1.bf16.xpose.msra.mxu0 0
    %3837 = vmatprep.subr.bf16.mxu0 0
    %3838 = vmatpush1.bf16.xpose.msra.mxu0 0
    %3839 = vmatprep.subr.bf16.mxu0 0
    %3840 = vmatpush1.bf16.xpose.msra.mxu0 0
    %3841 = vmatprep.subr.bf16.mxu0 0
    %3842 = vmatpush1.bf16.xpose.msra.mxu0 0
    %3843 = vmatprep.subr.bf16.mxu0 0
    %3844 = vmatpush1.bf16.xpose.msra.mxu0 0
    %3845 = vmatprep.subr.bf16.mxu0 0
    %3846 = vmatpush1.bf16.xpose.msra.mxu0 0
    %3847 = vmatprep.mubr.bf16.mxu0 %v3800
    %3848 = vmatmul.mubr.bf16.gmra.mrb[0].mxu0 %v3799
    %v3849 = vpop.f32.mrb[0].mxu0
    %v3850 = vadd.f32 0.0, %v3849
    %v3851 = vpop.f32.mrb[0].mxu0
    %v3852 = vpop.f32.mrb[0].mxu0
    %v3853 = vpop.f32.mrb[0].mxu0
    %3854 = vdwg.mxu0
    %3855 = vmatprep.subr.bf16.mxu0 %v3810
    %3856 = vmatpush1.bf16.xpose.msra.mxu0 %v3809
    %3857 = vmatprep.subr.bf16.mxu0 0
    %3858 = vmatpush1.bf16.xpose.msra.mxu0 0
    %3859 = vmatprep.subr.bf16.mxu0 0
    %3860 = vmatpush1.bf16.xpose.msra.mxu0 0
    %3861 = vmatprep.subr.bf16.mxu0 0
    %3862 = vmatpush1.bf16.xpose.msra.mxu0 0
    %3863 = vmatprep.subr.bf16.mxu0 0
    %3864 = vmatpush1.bf16.xpose.msra.mxu0 0
    %3865 = vmatprep.subr.bf16.mxu0 0
    %3866 = vmatpush1.bf16.xpose.msra.mxu0 0
    %3867 = vmatprep.subr.bf16.mxu0 0
    %3868 = vmatpush1.bf16.xpose.msra.mxu0 0
    %3869 = vmatprep.subr.bf16.mxu0 0
    %3870 = vmatpush1.bf16.xpose.msra.mxu0 0
    %3871 = vmatprep.subr.bf16.mxu0 0
    %3872 = vmatpush1.bf16.xpose.msra.mxu0 0
    %3873 = vmatprep.subr.bf16.mxu0 0
    %3874 = vmatpush1.bf16.xpose.msra.mxu0 0
    %3875 = vmatprep.subr.bf16.mxu0 0
    %3876 = vmatpush1.bf16.xpose.msra.mxu0 0
    %3877 = vmatprep.subr.bf16.mxu0 0
    %3878 = vmatpush1.bf16.xpose.msra.mxu0 0
    %3879 = vmatprep.subr.bf16.mxu0 0
    %3880 = vmatpush1.bf16.xpose.msra.mxu0 0
    %3881 = vmatprep.subr.bf16.mxu0 0
    %3882 = vmatpush1.bf16.xpose.msra.mxu0 0
    %3883 = vmatprep.subr.bf16.mxu0 0
    %3884 = vmatpush1.bf16.xpose.msra.mxu0 0
    %3885 = vmatprep.subr.bf16.mxu0 0
    %3886 = vmatpush1.bf16.xpose.msra.mxu0 0
    %3887 = vmatprep.mubr.bf16.mxu0 %v3802
    %3888 = vmatmul.mubr.bf16.gmra.mrb[0].mxu0 %v3801
    %v3889 = vpop.f32.mrb[0].mxu0
    %v3890 = vadd.f32 %v3850, %v3889
    %v3891 = vpop.f32.mrb[0].mxu0
    %v3892 = vpop.f32.mrb[0].mxu0
    %v3893 = vpop.f32.mrb[0].mxu0
    %3894 = vdwg.mxu0
    %vm3895 = vcmask 64512
    %v3896 = vsel %vm3895, %v3794, -inf
    %3897 = vmax.xlane.f32.xlu0 %v3896
    %v3898 = vpop.xlane.xlu0 %3897
    %v3899 = vsel %vm3895, %v3890, -inf
    %3900 = vmax.xlane.f32.xlu0 %v3899
    %v3901 = vpop.xlane.xlu0 %3900
    %v3902 = vsub.f32 %v3794, %v3898
    %v3903 = vsub.f32 %v3890, %v3901
    %v3904 = vmul.f32 %v3902, 1.442695
    %v3905 = vpow.pop %v3904
    %v3906 = vmul.f32 %v3903, 1.442695
    %v3907 = vpow.pop %v3906
    %v3908 = vsel %vm3895, %v3905, 0.0
    %3909 = vadd.xlane.f32.xlu0 %v3908
    %v3910 = vpop.xlane.xlu0 %3909
    %v3911 = vsel %vm3895, %v3907, 0.0
    %3912 = vadd.xlane.f32.xlu0 %v3911
    %v3913 = vpop.xlane.xlu0 %3912
    %v3914 = vrcp.pop %v3910
    %v3915 = vmul.f32 %v3905, %v3914
    %v3916 = vrcp.pop %v3913
    %v3917 = vmul.f32 %v3907, %v3916
    %v3918 = vpack.c.bf16 %v3915, %v3915
    %v3919 = vpack.c.bf16 %v3917, %v3917
    %v3920 = vpack.c.b16 %v3695, %v3695
    %v3921 = vpack.c.b16 %v3696, %v3696
    %v3922 = vpack.c.b16 %v3697, %v3697
    %v3923 = vpack.c.b16 %v3698, %v3698
    %v3925 = vsel %vm3895, %v3918, 0
    %vm3927 = vcmask 1043456
    %v3929 = vsel %vm3927, %v3920, 0
    %v3932 = vsel %vm3927, %v3921, 0
    %v3935 = vsel %vm3927, %v3922, 0
    %v3938 = vsel %vm3927, %v3923, 0
    %3940 = vmatprep.subr.bf16.mxu0 %v3932
    %3941 = vmatpush1.bf16.msra.mxu0 %v3929
    %3942 = vmatprep.subr.bf16.mxu0 0
    %3943 = vmatpush1.bf16.msra.mxu0 0
    %3944 = vmatprep.subr.bf16.mxu0 0
    %3945 = vmatpush1.bf16.msra.mxu0 0
    %3946 = vmatprep.subr.bf16.mxu0 0
    %3947 = vmatpush1.bf16.msra.mxu0 0
    %3948 = vmatprep.subr.bf16.mxu0 0
    %3949 = vmatpush1.bf16.msra.mxu0 0
    %3950 = vmatprep.subr.bf16.mxu0 0
    %3951 = vmatpush1.bf16.msra.mxu0 0
    %3952 = vmatprep.subr.bf16.mxu0 0
    %3953 = vmatpush1.bf16.msra.mxu0 0
    %3954 = vmatprep.subr.bf16.mxu0 0
    %3955 = vmatpush1.bf16.msra.mxu0 0
    %3956 = vmatprep.subr.bf16.mxu0 0
    %3957 = vmatpush1.bf16.msra.mxu0 0
    %3958 = vmatprep.subr.bf16.mxu0 0
    %3959 = vmatpush1.bf16.msra.mxu0 0
    %3960 = vmatprep.subr.bf16.mxu0 0
    %3961 = vmatpush1.bf16.msra.mxu0 0
    %3962 = vmatprep.subr.bf16.mxu0 0
    %3963 = vmatpush1.bf16.msra.mxu0 0
    %3964 = vmatprep.subr.bf16.mxu0 0
    %3965 = vmatpush1.bf16.msra.mxu0 0
    %3966 = vmatprep.subr.bf16.mxu0 0
    %3967 = vmatpush1.bf16.msra.mxu0 0
    %3968 = vmatprep.subr.bf16.mxu0 0
    %3969 = vmatpush1.bf16.msra.mxu0 0
    %3970 = vmatprep.subr.bf16.mxu0 0
    %3971 = vmatpush1.bf16.msra.mxu0 0
    %3972 = vmatprep.mubr.bf16.mxu0 0
    %3973 = vmatmul.mubr.bf16.gmra.mrb[0].mxu0 %v3925
    %v3974 = vpop.f32.mrb[0].mxu0
    %v3975 = vadd.f32 0.0, %v3974
    %v3976 = vpop.f32.mrb[0].mxu0
    %v3977 = vadd.f32 0.0, %v3976
    %v3978 = vpop.f32.mrb[0].mxu0
    %v3979 = vpop.f32.mrb[0].mxu0
    %3980 = vdwg.mxu0
    %3981 = vmatprep.subr.bf16.mxu0 %v3938
    %3982 = vmatpush1.bf16.msra.mxu0 %v3935
    %3983 = vmatprep.subr.bf16.mxu0 0
    %3984 = vmatpush1.bf16.msra.mxu0 0
    %3985 = vmatprep.subr.bf16.mxu0 0
    %3986 = vmatpush1.bf16.msra.mxu0 0
    %3987 = vmatprep.subr.bf16.mxu0 0
    %3988 = vmatpush1.bf16.msra.mxu0 0
    %3989 = vmatprep.subr.bf16.mxu0 0
    %3990 = vmatpush1.bf16.msra.mxu0 0
    %3991 = vmatprep.subr.bf16.mxu0 0
    %3992 = vmatpush1.bf16.msra.mxu0 0
    %3993 = vmatprep.subr.bf16.mxu0 0
    %3994 = vmatpush1.bf16.msra.mxu0 0
    %3995 = vmatprep.subr.bf16.mxu0 0
    %3996 = vmatpush1.bf16.msra.mxu0 0
    %3997 = vmatprep.subr.bf16.mxu0 0
    %3998 = vmatpush1.bf16.msra.mxu0 0
    %3999 = vmatprep.subr.bf16.mxu0 0
    %4000 = vmatpush1.bf16.msra.mxu0 0
    %4001 = vmatprep.subr.bf16.mxu0 0
    %4002 = vmatpush1.bf16.msra.mxu0 0
    %4003 = vmatprep.subr.bf16.mxu0 0
    %4004 = vmatpush1.bf16.msra.mxu0 0
    %4005 = vmatprep.subr.bf16.mxu0 0
    %4006 = vmatpush1.bf16.msra.mxu0 0
    %4007 = vmatprep.subr.bf16.mxu0 0
    %4008 = vmatpush1.bf16.msra.mxu0 0
    %4009 = vmatprep.subr.bf16.mxu0 0
    %4010 = vmatpush1.bf16.msra.mxu0 0
    %4011 = vmatprep.subr.bf16.mxu0 0
    %4012 = vmatpush1.bf16.msra.mxu0 0
    %4013 = vmatprep.mubr.bf16.mxu0 0
    %4014 = vmatmul.mubr.bf16.gmra.mrb[0].mxu0 %v3925
    %v4015 = vpop.f32.mrb[0].mxu0
    %v4016 = vadd.f32 0.0, %v4015
    %v4017 = vpop.f32.mrb[0].mxu0
    %v4018 = vadd.f32 0.0, %v4017
    %v4019 = vpop.f32.mrb[0].mxu0
    %v4020 = vpop.f32.mrb[0].mxu0
    %4021 = vdwg.mxu0
    %v4022 = vpack.c.b16 %v3699, %v3699
    %v4023 = vpack.c.b16 %v3700, %v3700
    %v4024 = vpack.c.b16 %v3701, %v3701
    %v4025 = vpack.c.b16 %v3702, %v3702
    %v4027 = vsel %vm3895, %v3919, 0
    %v4030 = vsel %vm3927, %v4022, 0
    %v4033 = vsel %vm3927, %v4023, 0
    %v4036 = vsel %vm3927, %v4024, 0
    %v4039 = vsel %vm3927, %v4025, 0
    %4041 = vmatprep.subr.bf16.mxu0 %v4033
    %4042 = vmatpush1.bf16.msra.mxu0 %v4030
    %4043 = vmatprep.subr.bf16.mxu0 0
    %4044 = vmatpush1.bf16.msra.mxu0 0
    %4045 = vmatprep.subr.bf16.mxu0 0
    %4046 = vmatpush1.bf16.msra.mxu0 0
    %4047 = vmatprep.subr.bf16.mxu0 0
    %4048 = vmatpush1.bf16.msra.mxu0 0
    %4049 = vmatprep.subr.bf16.mxu0 0
    %4050 = vmatpush1.bf16.msra.mxu0 0
    %4051 = vmatprep.subr.bf16.mxu0 0
    %4052 = vmatpush1.bf16.msra.mxu0 0
    %4053 = vmatprep.subr.bf16.mxu0 0
    %4054 = vmatpush1.bf16.msra.mxu0 0
    %4055 = vmatprep.subr.bf16.mxu0 0
    %4056 = vmatpush1.bf16.msra.mxu0 0
    %4057 = vmatprep.subr.bf16.mxu0 0
    %4058 = vmatpush1.bf16.msra.mxu0 0
    %4059 = vmatprep.subr.bf16.mxu0 0
    %4060 = vmatpush1.bf16.msra.mxu0 0
    %4061 = vmatprep.subr.bf16.mxu0 0
    %4062 = vmatpush1.bf16.msra.mxu0 0
    %4063 = vmatprep.subr.bf16.mxu0 0
    %4064 = vmatpush1.bf16.msra.mxu0 0
    %4065 = vmatprep.subr.bf16.mxu0 0
    %4066 = vmatpush1.bf16.msra.mxu0 0
    %4067 = vmatprep.subr.bf16.mxu0 0
    %4068 = vmatpush1.bf16.msra.mxu0 0
    %4069 = vmatprep.subr.bf16.mxu0 0
    %4070 = vmatpush1.bf16.msra.mxu0 0
    %4071 = vmatprep.subr.bf16.mxu0 0
    %4072 = vmatpush1.bf16.msra.mxu0 0
    %4073 = vmatprep.mubr.bf16.mxu0 0
    %4074 = vmatmul.mubr.bf16.gmra.mrb[0].mxu0 %v4027
    %v4075 = vpop.f32.mrb[0].mxu0
    %v4076 = vadd.f32 0.0, %v4075
    %v4077 = vpop.f32.mrb[0].mxu0
    %v4078 = vadd.f32 0.0, %v4077
    %v4079 = vpop.f32.mrb[0].mxu0
    %v4080 = vpop.f32.mrb[0].mxu0
    %4081 = vdwg.mxu0
    %4082 = vmatprep.subr.bf16.mxu0 %v4039
    %4083 = vmatpush1.bf16.msra.mxu0 %v4036
    %4084 = vmatprep.subr.bf16.mxu0 0
    %4085 = vmatpush1.bf16.msra.mxu0 0
    %4086 = vmatprep.subr.bf16.mxu0 0
    %4087 = vmatpush1.bf16.msra.mxu0 0
    %4088 = vmatprep.subr.bf16.mxu0 0
    %4089 = vmatpush1.bf16.msra.mxu0 0
    %4090 = vmatprep.subr.bf16.mxu0 0
    %4091 = vmatpush1.bf16.msra.mxu0 0
    %4092 = vmatprep.subr.bf16.mxu0 0
    %4093 = vmatpush1.bf16.msra.mxu0 0
    %4094 = vmatprep.subr.bf16.mxu0 0
    %4095 = vmatpush1.bf16.msra.mxu0 0
    %4096 = vmatprep.subr.bf16.mxu0 0
    %4097 = vmatpush1.bf16.msra.mxu0 0
    %4098 = vmatprep.subr.bf16.mxu0 0
    %4099 = vmatpush1.bf16.msra.mxu0 0
    %4100 = vmatprep.subr.bf16.mxu0 0
    %4101 = vmatpush1.bf16.msra.mxu0 0
    %4102 = vmatprep.subr.bf16.mxu0 0
    %4103 = vmatpush1.bf16.msra.mxu0 0
    %4104 = vmatprep.subr.bf16.mxu0 0
    %4105 = vmatpush1.bf16.msra.mxu0 0
    %4106 = vmatprep.subr.bf16.mxu0 0
    %4107 = vmatpush1.bf16.msra.mxu0 0
    %4108 = vmatprep.subr.bf16.mxu0 0
    %4109 = vmatpush1.bf16.msra.mxu0 0
    %4110 = vmatprep.subr.bf16.mxu0 0
    %4111 = vmatpush1.bf16.msra.mxu0 0
    %4112 = vmatprep.subr.bf16.mxu0 0
    %4113 = vmatpush1.bf16.msra.mxu0 0
    %4114 = vmatprep.mubr.bf16.mxu0 0
    %4115 = vmatmul.mubr.bf16.gmra.mrb[0].mxu0 %v4027
    %v4116 = vpop.f32.mrb[0].mxu0
    %v4117 = vadd.f32 0.0, %v4116
    %v4118 = vpop.f32.mrb[0].mxu0
    %v4119 = vadd.f32 0.0, %v4118
    %v4120 = vpop.f32.mrb[0].mxu0
    %v4121 = vpop.f32.mrb[0].mxu0
    %4122 = vdwg.mxu0
    %v4123 = vpack.c.bf16 %v4076, %v3975
    %v4124 = vpack.c.bf16 %v4078, %v3977
    %v4125 = vpack.c.bf16 %v4117, %v4016
    %v4126 = vpack.c.bf16 %v4119, %v4018
    %v4127 = vld [vmem:[#allocation14] sm:$0xff]
    %v4128 = vld [vmem:[#allocation14 + $0x8] sm:$0xff]
    %v4129 = vld [vmem:[#allocation14 + $0x10] sm:$0xff]
    %v4130 = vld [vmem:[#allocation14 + $0x18] sm:$0xff]
    %v4131 = vld [vmem:[#allocation14 + $0x20] sm:$0xff]
    %v4132 = vld [vmem:[#allocation14 + $0x28] sm:$0xff]
    %v4133 = vld [vmem:[#allocation14 + $0x30] sm:$0xff]
    %v4134 = vld [vmem:[#allocation14 + $0x38] sm:$0xff]
    %v4135 = vld [vmem:[#allocation14 + $0x40] sm:$0xff]
    %v4136 = vld [vmem:[#allocation14 + $0x48] sm:$0xff]
    %v4137 = vld [vmem:[#allocation14 + $0x50] sm:$0xff]
    %v4138 = vld [vmem:[#allocation14 + $0x58] sm:$0xff]
    %v4139 = vld [vmem:[#allocation14 + $0x60] sm:$0xff]
    %v4140 = vld [vmem:[#allocation14 + $0x68] sm:$0xff]
    %v4141 = vld [vmem:[#allocation14 + $0x70] sm:$0xff]
    %v4142 = vld [vmem:[#allocation14 + $0x78] sm:$0xff]
    %v4143 = vld [vmem:[#allocation14 + $0x80] sm:$0xff]
    %v4144 = vld [vmem:[#allocation14 + $0x88] sm:$0xff]
    %v4145 = vld [vmem:[#allocation14 + $0x90] sm:$0xff]
    %v4146 = vld [vmem:[#allocation14 + $0x98] sm:$0xff]
    %v4147 = vld [vmem:[#allocation14 + $0xa0] sm:$0xff]
    %v4148 = vld [vmem:[#allocation14 + $0xa8] sm:$0xff]
    %v4149 = vld [vmem:[#allocation14 + $0xb0] sm:$0xff]
    %v4150 = vld [vmem:[#allocation14 + $0xb8] sm:$0xff]
    %v4151 = vld [vmem:[#allocation14 + $0xc0] sm:$0xff]
    %v4152 = vld [vmem:[#allocation14 + $0xc8] sm:$0xff]
    %v4153 = vld [vmem:[#allocation14 + $0xd0] sm:$0xff]
    %v4154 = vld [vmem:[#allocation14 + $0xd8] sm:$0xff]
    %v4155 = vld [vmem:[#allocation14 + $0xe0] sm:$0xff]
    %v4156 = vld [vmem:[#allocation14 + $0xe8] sm:$0xff]
    %v4157 = vld [vmem:[#allocation14 + $0xf0] sm:$0xff]
    %v4158 = vld [vmem:[#allocation14 + $0xf8] sm:$0xff]
    %v4159 = vld [vmem:[#allocation14 + $0x100] sm:$0xff]
    %v4160 = vld [vmem:[#allocation14 + $0x108] sm:$0xff]
    %v4161 = vld [vmem:[#allocation14 + $0x110] sm:$0xff]
    %v4162 = vld [vmem:[#allocation14 + $0x118] sm:$0xff]
    %v4163 = vld [vmem:[#allocation14 + $0x120] sm:$0xff]
    %v4164 = vld [vmem:[#allocation14 + $0x128] sm:$0xff]
    %v4165 = vld [vmem:[#allocation14 + $0x130] sm:$0xff]
    %v4166 = vld [vmem:[#allocation14 + $0x138] sm:$0xff]
    %v4167 = vld [vmem:[#allocation14 + $0x140] sm:$0xff]
    %v4168 = vld [vmem:[#allocation14 + $0x148] sm:$0xff]
    %v4169 = vld [vmem:[#allocation14 + $0x150] sm:$0xff]
    %v4170 = vld [vmem:[#allocation14 + $0x158] sm:$0xff]
    %v4171 = vld [vmem:[#allocation14 + $0x160] sm:$0xff]
    %v4172 = vld [vmem:[#allocation14 + $0x168] sm:$0xff]
    %v4173 = vld [vmem:[#allocation14 + $0x170] sm:$0xff]
    %v4174 = vld [vmem:[#allocation14 + $0x178] sm:$0xff]
    %v4175 = vld [vmem:[#allocation14 + $0x180] sm:$0xff]
    %v4176 = vld [vmem:[#allocation14 + $0x188] sm:$0xff]
    %v4177 = vld [vmem:[#allocation14 + $0x190] sm:$0xff]
    %v4178 = vld [vmem:[#allocation14 + $0x198] sm:$0xff]
    %v4179 = vld [vmem:[#allocation14 + $0x1a0] sm:$0xff]
    %v4180 = vld [vmem:[#allocation14 + $0x1a8] sm:$0xff]
    %v4181 = vld [vmem:[#allocation14 + $0x1b0] sm:$0xff]
    %v4182 = vld [vmem:[#allocation14 + $0x1b8] sm:$0xff]
    %v4183 = vld [vmem:[#allocation14 + $0x1c0] sm:$0xff]
    %v4184 = vld [vmem:[#allocation14 + $0x1c8] sm:$0xff]
    %v4185 = vld [vmem:[#allocation14 + $0x1d0] sm:$0xff]
    %v4186 = vld [vmem:[#allocation14 + $0x1d8] sm:$0xff]
    %v4187 = vld [vmem:[#allocation14 + $0x1e0] sm:$0xff]
    %v4188 = vld [vmem:[#allocation14 + $0x1e8] sm:$0xff]
    %v4189 = vld [vmem:[#allocation14 + $0x1f0] sm:$0xff]
    %v4190 = vld [vmem:[#allocation14 + $0x1f8] sm:$0xff]
    %v4191 = vld [vmem:[#allocation14 + $0x200] sm:$0xff]
    %v4192 = vld [vmem:[#allocation14 + $0x208] sm:$0xff]
    %v4193 = vld [vmem:[#allocation14 + $0x210] sm:$0xff]
    %v4194 = vld [vmem:[#allocation14 + $0x218] sm:$0xff]
    %v4195 = vld [vmem:[#allocation14 + $0x220] sm:$0xff]
    %v4196 = vld [vmem:[#allocation14 + $0x228] sm:$0xff]
    %v4197 = vld [vmem:[#allocation14 + $0x230] sm:$0xff]
    %v4198 = vld [vmem:[#allocation14 + $0x238] sm:$0xff]
    %v4199 = vld [vmem:[#allocation14 + $0x240] sm:$0xff]
    %v4200 = vld [vmem:[#allocation14 + $0x248] sm:$0xff]
    %v4201 = vld [vmem:[#allocation14 + $0x250] sm:$0xff]
    %v4202 = vld [vmem:[#allocation14 + $0x258] sm:$0xff]
    %v4203 = vld [vmem:[#allocation14 + $0x260] sm:$0xff]
    %v4204 = vld [vmem:[#allocation14 + $0x268] sm:$0xff]
    %v4205 = vld [vmem:[#allocation14 + $0x270] sm:$0xff]
    %v4206 = vld [vmem:[#allocation14 + $0x278] sm:$0xff]
    %v4207 = vld [vmem:[#allocation14 + $0x280] sm:$0xff]
    %v4208 = vld [vmem:[#allocation14 + $0x288] sm:$0xff]
    %v4209 = vld [vmem:[#allocation14 + $0x290] sm:$0xff]
    %v4210 = vld [vmem:[#allocation14 + $0x298] sm:$0xff]
    %v4211 = vld [vmem:[#allocation14 + $0x2a0] sm:$0xff]
    %v4212 = vld [vmem:[#allocation14 + $0x2a8] sm:$0xff]
    %v4213 = vld [vmem:[#allocation14 + $0x2b0] sm:$0xff]
    %v4214 = vld [vmem:[#allocation14 + $0x2b8] sm:$0xff]
    %v4215 = vld [vmem:[#allocation14 + $0x2c0] sm:$0xff]
    %v4216 = vld [vmem:[#allocation14 + $0x2c8] sm:$0xff]
    %v4217 = vld [vmem:[#allocation14 + $0x2d0] sm:$0xff]
    %v4218 = vld [vmem:[#allocation14 + $0x2d8] sm:$0xff]
    %v4219 = vld [vmem:[#allocation14 + $0x2e0] sm:$0xff]
    %v4220 = vld [vmem:[#allocation14 + $0x2e8] sm:$0xff]
    %v4221 = vld [vmem:[#allocation14 + $0x2f0] sm:$0xff]
    %v4222 = vld [vmem:[#allocation14 + $0x2f8] sm:$0xff]
    %v4223 = vld [vmem:[#allocation14 + $0x300] sm:$0xff]
    %v4224 = vld [vmem:[#allocation14 + $0x308] sm:$0xff]
    %v4225 = vld [vmem:[#allocation14 + $0x310] sm:$0xff]
    %v4226 = vld [vmem:[#allocation14 + $0x318] sm:$0xff]
    %v4227 = vld [vmem:[#allocation14 + $0x320] sm:$0xff]
    %v4228 = vld [vmem:[#allocation14 + $0x328] sm:$0xff]
    %v4229 = vld [vmem:[#allocation14 + $0x330] sm:$0xff]
    %v4230 = vld [vmem:[#allocation14 + $0x338] sm:$0xff]
    %v4231 = vld [vmem:[#allocation14 + $0x340] sm:$0xff]
    %v4232 = vld [vmem:[#allocation14 + $0x348] sm:$0xff]
    %v4233 = vld [vmem:[#allocation14 + $0x350] sm:$0xff]
    %v4234 = vld [vmem:[#allocation14 + $0x358] sm:$0xff]
    %v4235 = vld [vmem:[#allocation14 + $0x360] sm:$0xff]
    %v4236 = vld [vmem:[#allocation14 + $0x368] sm:$0xff]
    %v4237 = vld [vmem:[#allocation14 + $0x370] sm:$0xff]
    %v4238 = vld [vmem:[#allocation14 + $0x378] sm:$0xff]
    %v4239 = vld [vmem:[#allocation14 + $0x380] sm:$0xff]
    %v4240 = vld [vmem:[#allocation14 + $0x388] sm:$0xff]
    %v4241 = vld [vmem:[#allocation14 + $0x390] sm:$0xff]
    %v4242 = vld [vmem:[#allocation14 + $0x398] sm:$0xff]
    %v4243 = vld [vmem:[#allocation14 + $0x3a0] sm:$0xff]
    %v4244 = vld [vmem:[#allocation14 + $0x3a8] sm:$0xff]
    %v4245 = vld [vmem:[#allocation14 + $0x3b0] sm:$0xff]
    %v4246 = vld [vmem:[#allocation14 + $0x3b8] sm:$0xff]
    %v4247 = vld [vmem:[#allocation14 + $0x3c0] sm:$0xff]
    %v4248 = vld [vmem:[#allocation14 + $0x3c8] sm:$0xff]
    %v4249 = vld [vmem:[#allocation14 + $0x3d0] sm:$0xff]
    %v4250 = vld [vmem:[#allocation14 + $0x3d8] sm:$0xff]
    %v4251 = vld [vmem:[#allocation14 + $0x3e0] sm:$0xff]
    %v4252 = vld [vmem:[#allocation14 + $0x3e8] sm:$0xff]
    %v4253 = vld [vmem:[#allocation14 + $0x3f0] sm:$0xff]
    %v4254 = vld [vmem:[#allocation14 + $0x3f8] sm:$0xff]
    %v4255 = vld [vmem:[%s12] sm:$0xf]
    %v4257 = vlaneseq
    %v4258 = vshrl.u32 %v4257, 7
    %v4259 = vsub.s32 0, %v4258
    %v4260 = vrot.slane %v4255, %v4259
    %v4261 = vlaneseq
    %v4262 = vshrl.u32 %v4261, 7
    %v4263 = vsub.s32 1, %v4262
    %v4264 = vrot.slane %v4255, %v4263
    %v4265 = vlaneseq
    %v4266 = vshrl.u32 %v4265, 7
    %v4267 = vsub.s32 2, %v4266
    %v4268 = vrot.slane %v4255, %v4267
    %v4269 = vlaneseq
    %v4270 = vshrl.u32 %v4269, 7
    %v4271 = vsub.s32 3, %v4270
    %v4272 = vrot.slane %v4255, %v4271
    %v4405 = vunpack.c.l.b16 %v4127
    %v4406 = vunpack.c.h.b16 %v4127
    %v4407 = vunpack.c.l.b16 %v4128
    %v4408 = vunpack.c.h.b16 %v4128
    %v4409 = vunpack.c.l.b16 %v4129
    %v4410 = vunpack.c.h.b16 %v4129
    %v4411 = vunpack.c.l.b16 %v4130
    %v4412 = vunpack.c.h.b16 %v4130
    %v4413 = vunpack.c.l.b16 %v4131
    %v4414 = vunpack.c.h.b16 %v4131
    %v4415 = vunpack.c.l.b16 %v4132
    %v4416 = vunpack.c.h.b16 %v4132
    %v4417 = vunpack.c.l.b16 %v4133
    %v4418 = vunpack.c.h.b16 %v4133
    %v4419 = vunpack.c.l.b16 %v4134
    %v4420 = vunpack.c.h.b16 %v4134
    %v4421 = vunpack.c.l.b16 %v4135
    %v4422 = vunpack.c.h.b16 %v4135
    %v4423 = vunpack.c.l.b16 %v4136
    %v4424 = vunpack.c.h.b16 %v4136
    %v4425 = vunpack.c.l.b16 %v4137
    %v4426 = vunpack.c.h.b16 %v4137
    %v4427 = vunpack.c.l.b16 %v4138
    %v4428 = vunpack.c.h.b16 %v4138
    %v4429 = vunpack.c.l.b16 %v4139
    %v4430 = vunpack.c.h.b16 %v4139
    %v4431 = vunpack.c.l.b16 %v4140
    %v4432 = vunpack.c.h.b16 %v4140
    %v4433 = vunpack.c.l.b16 %v4141
    %v4434 = vunpack.c.h.b16 %v4141
    %v4435 = vunpack.c.l.b16 %v4142
    %v4436 = vunpack.c.h.b16 %v4142
    %v4437 = vunpack.c.l.b16 %v4143
    %v4438 = vunpack.c.h.b16 %v4143
    %v4439 = vunpack.c.l.b16 %v4144
    %v4440 = vunpack.c.h.b16 %v4144
    %v4441 = vunpack.c.l.b16 %v4145
    %v4442 = vunpack.c.h.b16 %v4145
    %v4443 = vunpack.c.l.b16 %v4146
    %v4444 = vunpack.c.h.b16 %v4146
    %v4445 = vunpack.c.l.b16 %v4147
    %v4446 = vunpack.c.h.b16 %v4147
    %v4447 = vunpack.c.l.b16 %v4148
    %v4448 = vunpack.c.h.b16 %v4148
    %v4449 = vunpack.c.l.b16 %v4149
    %v4450 = vunpack.c.h.b16 %v4149
    %v4451 = vunpack.c.l.b16 %v4150
    %v4452 = vunpack.c.h.b16 %v4150
    %v4453 = vunpack.c.l.b16 %v4151
    %v4454 = vunpack.c.h.b16 %v4151
    %v4455 = vunpack.c.l.b16 %v4152
    %v4456 = vunpack.c.h.b16 %v4152
    %v4457 = vunpack.c.l.b16 %v4153
    %v4458 = vunpack.c.h.b16 %v4153
    %v4459 = vunpack.c.l.b16 %v4154
    %v4460 = vunpack.c.h.b16 %v4154
    %v4461 = vunpack.c.l.b16 %v4155
    %v4462 = vunpack.c.h.b16 %v4155
    %v4463 = vunpack.c.l.b16 %v4156
    %v4464 = vunpack.c.h.b16 %v4156
    %v4465 = vunpack.c.l.b16 %v4157
    %v4466 = vunpack.c.h.b16 %v4157
    %v4467 = vunpack.c.l.b16 %v4158
    %v4468 = vunpack.c.h.b16 %v4158
    %v4469 = vunpack.c.l.b16 %v4159
    %v4470 = vunpack.c.h.b16 %v4159
    %v4471 = vunpack.c.l.b16 %v4160
    %v4472 = vunpack.c.h.b16 %v4160
    %v4473 = vunpack.c.l.b16 %v4161
    %v4474 = vunpack.c.h.b16 %v4161
    %v4475 = vunpack.c.l.b16 %v4162
    %v4476 = vunpack.c.h.b16 %v4162
    %v4477 = vunpack.c.l.b16 %v4163
    %v4478 = vunpack.c.h.b16 %v4163
    %v4479 = vunpack.c.l.b16 %v4164
    %v4480 = vunpack.c.h.b16 %v4164
    %v4481 = vunpack.c.l.b16 %v4165
    %v4482 = vunpack.c.h.b16 %v4165
    %v4483 = vunpack.c.l.b16 %v4166
    %v4484 = vunpack.c.h.b16 %v4166
    %v4485 = vunpack.c.l.b16 %v4167
    %v4486 = vunpack.c.h.b16 %v4167
    %v4487 = vunpack.c.l.b16 %v4168
    %v4488 = vunpack.c.h.b16 %v4168
    %v4489 = vunpack.c.l.b16 %v4169
    %v4490 = vunpack.c.h.b16 %v4169
    %v4491 = vunpack.c.l.b16 %v4170
    %v4492 = vunpack.c.h.b16 %v4170
    %v4493 = vunpack.c.l.b16 %v4171
    %v4494 = vunpack.c.h.b16 %v4171
    %v4495 = vunpack.c.l.b16 %v4172
    %v4496 = vunpack.c.h.b16 %v4172
    %v4497 = vunpack.c.l.b16 %v4173
    %v4498 = vunpack.c.h.b16 %v4173
    %v4499 = vunpack.c.l.b16 %v4174
    %v4500 = vunpack.c.h.b16 %v4174
    %v4501 = vunpack.c.l.b16 %v4175
    %v4502 = vunpack.c.h.b16 %v4175
    %v4503 = vunpack.c.l.b16 %v4176
    %v4504 = vunpack.c.h.b16 %v4176
    %v4505 = vunpack.c.l.b16 %v4177
    %v4506 = vunpack.c.h.b16 %v4177
    %v4507 = vunpack.c.l.b16 %v4178
    %v4508 = vunpack.c.h.b16 %v4178
    %v4509 = vunpack.c.l.b16 %v4179
    %v4510 = vunpack.c.h.b16 %v4179
    %v4511 = vunpack.c.l.b16 %v4180
    %v4512 = vunpack.c.h.b16 %v4180
    %v4513 = vunpack.c.l.b16 %v4181
    %v4514 = vunpack.c.h.b16 %v4181
    %v4515 = vunpack.c.l.b16 %v4182
    %v4516 = vunpack.c.h.b16 %v4182
    %v4517 = vunpack.c.l.b16 %v4183
    %v4518 = vunpack.c.h.b16 %v4183
    %v4519 = vunpack.c.l.b16 %v4184
    %v4520 = vunpack.c.h.b16 %v4184
    %v4521 = vunpack.c.l.b16 %v4185
    %v4522 = vunpack.c.h.b16 %v4185
    %v4523 = vunpack.c.l.b16 %v4186
    %v4524 = vunpack.c.h.b16 %v4186
    %v4525 = vunpack.c.l.b16 %v4187
    %v4526 = vunpack.c.h.b16 %v4187
    %v4527 = vunpack.c.l.b16 %v4188
    %v4528 = vunpack.c.h.b16 %v4188
    %v4529 = vunpack.c.l.b16 %v4189
    %v4530 = vunpack.c.h.b16 %v4189
    %v4531 = vunpack.c.l.b16 %v4190
    %v4532 = vunpack.c.h.b16 %v4190
    %v4533 = vunpack.c.l.b16 %v4191
    %v4534 = vunpack.c.h.b16 %v4191
    %v4535 = vunpack.c.l.b16 %v4192
    %v4536 = vunpack.c.h.b16 %v4192
    %v4537 = vunpack.c.l.b16 %v4193
    %v4538 = vunpack.c.h.b16 %v4193
    %v4539 = vunpack.c.l.b16 %v4194
    %v4540 = vunpack.c.h.b16 %v4194
    %v4541 = vunpack.c.l.b16 %v4195
    %v4542 = vunpack.c.h.b16 %v4195
    %v4543 = vunpack.c.l.b16 %v4196
    %v4544 = vunpack.c.h.b16 %v4196
    %v4545 = vunpack.c.l.b16 %v4197
    %v4546 = vunpack.c.h.b16 %v4197
    %v4547 = vunpack.c.l.b16 %v4198
    %v4548 = vunpack.c.h.b16 %v4198
    %v4549 = vunpack.c.l.b16 %v4199
    %v4550 = vunpack.c.h.b16 %v4199
    %v4551 = vunpack.c.l.b16 %v4200
    %v4552 = vunpack.c.h.b16 %v4200
    %v4553 = vunpack.c.l.b16 %v4201
    %v4554 = vunpack.c.h.b16 %v4201
    %v4555 = vunpack.c.l.b16 %v4202
    %v4556 = vunpack.c.h.b16 %v4202
    %v4557 = vunpack.c.l.b16 %v4203
    %v4558 = vunpack.c.h.b16 %v4203
    %v4559 = vunpack.c.l.b16 %v4204
    %v4560 = vunpack.c.h.b16 %v4204
    %v4561 = vunpack.c.l.b16 %v4205
    %v4562 = vunpack.c.h.b16 %v4205
    %v4563 = vunpack.c.l.b16 %v4206
    %v4564 = vunpack.c.h.b16 %v4206
    %v4565 = vunpack.c.l.b16 %v4207
    %v4566 = vunpack.c.h.b16 %v4207
    %v4567 = vunpack.c.l.b16 %v4208
    %v4568 = vunpack.c.h.b16 %v4208
    %v4569 = vunpack.c.l.b16 %v4209
    %v4570 = vunpack.c.h.b16 %v4209
    %v4571 = vunpack.c.l.b16 %v4210
    %v4572 = vunpack.c.h.b16 %v4210
    %v4573 = vunpack.c.l.b16 %v4211
    %v4574 = vunpack.c.h.b16 %v4211
    %v4575 = vunpack.c.l.b16 %v4212
    %v4576 = vunpack.c.h.b16 %v4212
    %v4577 = vunpack.c.l.b16 %v4213
    %v4578 = vunpack.c.h.b16 %v4213
    %v4579 = vunpack.c.l.b16 %v4214
    %v4580 = vunpack.c.h.b16 %v4214
    %v4581 = vunpack.c.l.b16 %v4215
    %v4582 = vunpack.c.h.b16 %v4215
    %v4583 = vunpack.c.l.b16 %v4216
    %v4584 = vunpack.c.h.b16 %v4216
    %v4585 = vunpack.c.l.b16 %v4217
    %v4586 = vunpack.c.h.b16 %v4217
    %v4587 = vunpack.c.l.b16 %v4218
    %v4588 = vunpack.c.h.b16 %v4218
    %v4589 = vunpack.c.l.b16 %v4219
    %v4590 = vunpack.c.h.b16 %v4219
    %v4591 = vunpack.c.l.b16 %v4220
    %v4592 = vunpack.c.h.b16 %v4220
    %v4593 = vunpack.c.l.b16 %v4221
    %v4594 = vunpack.c.h.b16 %v4221
    %v4595 = vunpack.c.l.b16 %v4222
    %v4596 = vunpack.c.h.b16 %v4222
    %v4597 = vunpack.c.l.b16 %v4223
    %v4598 = vunpack.c.h.b16 %v4223
    %v4599 = vunpack.c.l.b16 %v4224
    %v4600 = vunpack.c.h.b16 %v4224
    %v4601 = vunpack.c.l.b16 %v4225
    %v4602 = vunpack.c.h.b16 %v4225
    %v4603 = vunpack.c.l.b16 %v4226
    %v4604 = vunpack.c.h.b16 %v4226
    %v4605 = vunpack.c.l.b16 %v4227
    %v4606 = vunpack.c.h.b16 %v4227
    %v4607 = vunpack.c.l.b16 %v4228
    %v4608 = vunpack.c.h.b16 %v4228
    %v4609 = vunpack.c.l.b16 %v4229
    %v4610 = vunpack.c.h.b16 %v4229
    %v4611 = vunpack.c.l.b16 %v4230
    %v4612 = vunpack.c.h.b16 %v4230
    %v4613 = vunpack.c.l.b16 %v4231
    %v4614 = vunpack.c.h.b16 %v4231
    %v4615 = vunpack.c.l.b16 %v4232
    %v4616 = vunpack.c.h.b16 %v4232
    %v4617 = vunpack.c.l.b16 %v4233
    %v4618 = vunpack.c.h.b16 %v4233
    %v4619 = vunpack.c.l.b16 %v4234
    %v4620 = vunpack.c.h.b16 %v4234
    %v4621 = vunpack.c.l.b16 %v4235
    %v4622 = vunpack.c.h.b16 %v4235
    %v4623 = vunpack.c.l.b16 %v4236
    %v4624 = vunpack.c.h.b16 %v4236
    %v4625 = vunpack.c.l.b16 %v4237
    %v4626 = vunpack.c.h.b16 %v4237
    %v4627 = vunpack.c.l.b16 %v4238
    %v4628 = vunpack.c.h.b16 %v4238
    %v4629 = vunpack.c.l.b16 %v4239
    %v4630 = vunpack.c.h.b16 %v4239
    %v4631 = vunpack.c.l.b16 %v4240
    %v4632 = vunpack.c.h.b16 %v4240
    %v4633 = vunpack.c.l.b16 %v4241
    %v4634 = vunpack.c.h.b16 %v4241
    %v4635 = vunpack.c.l.b16 %v4242
    %v4636 = vunpack.c.h.b16 %v4242
    %v4637 = vunpack.c.l.b16 %v4243
    %v4638 = vunpack.c.h.b16 %v4243
    %v4639 = vunpack.c.l.b16 %v4244
    %v4640 = vunpack.c.h.b16 %v4244
    %v4641 = vunpack.c.l.b16 %v4245
    %v4642 = vunpack.c.h.b16 %v4245
    %v4643 = vunpack.c.l.b16 %v4246
    %v4644 = vunpack.c.h.b16 %v4246
    %v4645 = vunpack.c.l.b16 %v4247
    %v4646 = vunpack.c.h.b16 %v4247
    %v4647 = vunpack.c.l.b16 %v4248
    %v4648 = vunpack.c.h.b16 %v4248
    %v4649 = vunpack.c.l.b16 %v4249
    %v4650 = vunpack.c.h.b16 %v4249
    %v4651 = vunpack.c.l.b16 %v4250
    %v4652 = vunpack.c.h.b16 %v4250
    %v4653 = vunpack.c.l.b16 %v4251
    %v4654 = vunpack.c.h.b16 %v4251
    %v4655 = vunpack.c.l.b16 %v4252
    %v4656 = vunpack.c.h.b16 %v4252
    %v4657 = vunpack.c.l.b16 %v4253
    %v4658 = vunpack.c.h.b16 %v4253
    %v4659 = vunpack.c.l.b16 %v4254
    %v4660 = vunpack.c.h.b16 %v4254
    %v4661 = vpack.c.b16 %v4409, %v4405
    %v4662 = vpack.c.b16 %v4410, %v4406
    %v4663 = vpack.c.b16 %v4411, %v4407
    %v4664 = vpack.c.b16 %v4412, %v4408
    %v4665 = vpack.c.b16 %v4417, %v4413
    %v4666 = vpack.c.b16 %v4418, %v4414
    %v4667 = vpack.c.b16 %v4419, %v4415
    %v4668 = vpack.c.b16 %v4420, %v4416
    %v4669 = vpack.c.b16 %v4425, %v4421
    %v4670 = vpack.c.b16 %v4426, %v4422
    %v4671 = vpack.c.b16 %v4427, %v4423
    %v4672 = vpack.c.b16 %v4428, %v4424
    %v4673 = vpack.c.b16 %v4433, %v4429
    %v4674 = vpack.c.b16 %v4434, %v4430
    %v4675 = vpack.c.b16 %v4435, %v4431
    %v4676 = vpack.c.b16 %v4436, %v4432
    %v4677 = vpack.c.b16 %v4441, %v4437
    %v4678 = vpack.c.b16 %v4442, %v4438
    %v4679 = vpack.c.b16 %v4443, %v4439
    %v4680 = vpack.c.b16 %v4444, %v4440
    %v4681 = vpack.c.b16 %v4449, %v4445
    %v4682 = vpack.c.b16 %v4450, %v4446
    %v4683 = vpack.c.b16 %v4451, %v4447
    %v4684 = vpack.c.b16 %v4452, %v4448
    %v4685 = vpack.c.b16 %v4457, %v4453
    %v4686 = vpack.c.b16 %v4458, %v4454
    %v4687 = vpack.c.b16 %v4459, %v4455
    %v4688 = vpack.c.b16 %v4460, %v4456
    %v4689 = vpack.c.b16 %v4465, %v4461
    %v4690 = vpack.c.b16 %v4466, %v4462
    %v4691 = vpack.c.b16 %v4467, %v4463
    %v4692 = vpack.c.b16 %v4468, %v4464
    %v4693 = vpack.c.b16 %v4473, %v4469
    %v4694 = vpack.c.b16 %v4474, %v4470
    %v4695 = vpack.c.b16 %v4475, %v4471
    %v4696 = vpack.c.b16 %v4476, %v4472
    %v4697 = vpack.c.b16 %v4481, %v4477
    %v4698 = vpack.c.b16 %v4482, %v4478
    %v4699 = vpack.c.b16 %v4483, %v4479
    %v4700 = vpack.c.b16 %v4484, %v4480
    %v4701 = vpack.c.b16 %v4489, %v4485
    %v4702 = vpack.c.b16 %v4490, %v4486
    %v4703 = vpack.c.b16 %v4491, %v4487
    %v4704 = vpack.c.b16 %v4492, %v4488
    %v4705 = vpack.c.b16 %v4497, %v4493
    %v4706 = vpack.c.b16 %v4498, %v4494
    %v4707 = vpack.c.b16 %v4499, %v4495
    %v4708 = vpack.c.b16 %v4500, %v4496
    %v4709 = vpack.c.b16 %v4505, %v4501
    %v4710 = vpack.c.b16 %v4506, %v4502
    %v4711 = vpack.c.b16 %v4507, %v4503
    %v4712 = vpack.c.b16 %v4508, %v4504
    %v4713 = vpack.c.b16 %v4513, %v4509
    %v4714 = vpack.c.b16 %v4514, %v4510
    %v4715 = vpack.c.b16 %v4515, %v4511
    %v4716 = vpack.c.b16 %v4516, %v4512
    %v4717 = vpack.c.b16 %v4521, %v4517
    %v4718 = vpack.c.b16 %v4522, %v4518
    %v4719 = vpack.c.b16 %v4523, %v4519
    %v4720 = vpack.c.b16 %v4524, %v4520
    %v4721 = vpack.c.b16 %v4529, %v4525
    %v4722 = vpack.c.b16 %v4530, %v4526
    %v4723 = vpack.c.b16 %v4531, %v4527
    %v4724 = vpack.c.b16 %v4532, %v4528
    %v4725 = vpack.c.b16 %v4537, %v4533
    %v4726 = vpack.c.b16 %v4538, %v4534
    %v4727 = vpack.c.b16 %v4539, %v4535
    %v4728 = vpack.c.b16 %v4540, %v4536
    %v4729 = vpack.c.b16 %v4545, %v4541
    %v4730 = vpack.c.b16 %v4546, %v4542
    %v4731 = vpack.c.b16 %v4547, %v4543
    %v4732 = vpack.c.b16 %v4548, %v4544
    %v4733 = vpack.c.b16 %v4553, %v4549
    %v4734 = vpack.c.b16 %v4554, %v4550
    %v4735 = vpack.c.b16 %v4555, %v4551
    %v4736 = vpack.c.b16 %v4556, %v4552
    %v4737 = vpack.c.b16 %v4561, %v4557
    %v4738 = vpack.c.b16 %v4562, %v4558
    %v4739 = vpack.c.b16 %v4563, %v4559
    %v4740 = vpack.c.b16 %v4564, %v4560
    %v4741 = vpack.c.b16 %v4569, %v4565
    %v4742 = vpack.c.b16 %v4570, %v4566
    %v4743 = vpack.c.b16 %v4571, %v4567
    %v4744 = vpack.c.b16 %v4572, %v4568
    %v4745 = vpack.c.b16 %v4577, %v4573
    %v4746 = vpack.c.b16 %v4578, %v4574
    %v4747 = vpack.c.b16 %v4579, %v4575
    %v4748 = vpack.c.b16 %v4580, %v4576
    %v4749 = vpack.c.b16 %v4585, %v4581
    %v4750 = vpack.c.b16 %v4586, %v4582
    %v4751 = vpack.c.b16 %v4587, %v4583
    %v4752 = vpack.c.b16 %v4588, %v4584
    %v4753 = vpack.c.b16 %v4593, %v4589
    %v4754 = vpack.c.b16 %v4594, %v4590
    %v4755 = vpack.c.b16 %v4595, %v4591
    %v4756 = vpack.c.b16 %v4596, %v4592
    %v4757 = vpack.c.b16 %v4601, %v4597
    %v4758 = vpack.c.b16 %v4602, %v4598
    %v4759 = vpack.c.b16 %v4603, %v4599
    %v4760 = vpack.c.b16 %v4604, %v4600
    %v4761 = vpack.c.b16 %v4609, %v4605
    %v4762 = vpack.c.b16 %v4610, %v4606
    %v4763 = vpack.c.b16 %v4611, %v4607
    %v4764 = vpack.c.b16 %v4612, %v4608
    %v4765 = vpack.c.b16 %v4617, %v4613
    %v4766 = vpack.c.b16 %v4618, %v4614
    %v4767 = vpack.c.b16 %v4619, %v4615
    %v4768 = vpack.c.b16 %v4620, %v4616
    %v4769 = vpack.c.b16 %v4625, %v4621
    %v4770 = vpack.c.b16 %v4626, %v4622
    %v4771 = vpack.c.b16 %v4627, %v4623
    %v4772 = vpack.c.b16 %v4628, %v4624
    %v4773 = vpack.c.b16 %v4633, %v4629
    %v4774 = vpack.c.b16 %v4634, %v4630
    %v4775 = vpack.c.b16 %v4635, %v4631
    %v4776 = vpack.c.b16 %v4636, %v4632
    %v4777 = vpack.c.b16 %v4641, %v4637
    %v4778 = vpack.c.b16 %v4642, %v4638
    %v4779 = vpack.c.b16 %v4643, %v4639
    %v4780 = vpack.c.b16 %v4644, %v4640
    %v4781 = vpack.c.b16 %v4649, %v4645
    %v4782 = vpack.c.b16 %v4650, %v4646
    %v4783 = vpack.c.b16 %v4651, %v4647
    %v4784 = vpack.c.b16 %v4652, %v4648
    %v4785 = vpack.c.b16 %v4657, %v4653
    %v4786 = vpack.c.b16 %v4658, %v4654
    %v4787 = vpack.c.b16 %v4659, %v4655
    %v4788 = vpack.c.b16 %v4660, %v4656
    %4917 = vmatprep.subr.bf16.mxu0 %v4662
    %4918 = vmatpush1.bf16.msra.mxu0 %v4661
    %4919 = vmatprep.subr.bf16.mxu0 %v4666
    %4920 = vmatpush1.bf16.msra.mxu0 %v4665
    %4921 = vmatprep.subr.bf16.mxu0 %v4670
    %4922 = vmatpush1.bf16.msra.mxu0 %v4669
    %4923 = vmatprep.subr.bf16.mxu0 %v4674
    %4924 = vmatpush1.bf16.msra.mxu0 %v4673
    %4925 = vmatprep.subr.bf16.mxu0 %v4678
    %4926 = vmatpush1.bf16.msra.mxu0 %v4677
    %4927 = vmatprep.subr.bf16.mxu0 %v4682
    %4928 = vmatpush1.bf16.msra.mxu0 %v4681
    %4929 = vmatprep.subr.bf16.mxu0 %v4686
    %4930 = vmatpush1.bf16.msra.mxu0 %v4685
    %4931 = vmatprep.subr.bf16.mxu0 %v4690
    %4932 = vmatpush1.bf16.msra.mxu0 %v4689
    %4933 = vmatprep.subr.bf16.mxu0 %v4694
    %4934 = vmatpush1.bf16.msra.mxu0 %v4693
    %4935 = vmatprep.subr.bf16.mxu0 %v4698
    %4936 = vmatpush1.bf16.msra.mxu0 %v4697
    %4937 = vmatprep.subr.bf16.mxu0 %v4702
    %4938 = vmatpush1.bf16.msra.mxu0 %v4701
    %4939 = vmatprep.subr.bf16.mxu0 %v4706
    %4940 = vmatpush1.bf16.msra.mxu0 %v4705
    %4941 = vmatprep.subr.bf16.mxu0 %v4710
    %4942 = vmatpush1.bf16.msra.mxu0 %v4709
    %4943 = vmatprep.subr.bf16.mxu0 %v4714
    %4944 = vmatpush1.bf16.msra.mxu0 %v4713
    %4945 = vmatprep.subr.bf16.mxu0 %v4718
    %4946 = vmatpush1.bf16.msra.mxu0 %v4717
    %4947 = vmatprep.subr.bf16.mxu0 %v4722
    %4948 = vmatpush1.bf16.msra.mxu0 %v4721
    %4949 = vmatprep.mubr.bf16.mxu0 %v4124
    %4950 = vmatmul.mubr.bf16.gmra.mrb[0].mxu0 %v4123
    %v4951 = vpop.f32.mrb[0].mxu0
    %v4952 = vadd.f32 %v4260, %v4951
    %v4953 = vpop.f32.mrb[0].mxu0
    %v4954 = vadd.f32 %v4264, %v4953
    %v4955 = vpop.f32.mrb[0].mxu0
    %v4956 = vadd.f32 %v4260, %v4955
    %v4957 = vpop.f32.mrb[0].mxu0
    %v4958 = vadd.f32 %v4264, %v4957
    %4959 = vdwg.mxu0
    %4960 = vmatprep.subr.bf16.mxu0 %v4726
    %4961 = vmatpush1.bf16.msra.mxu0 %v4725
    %4962 = vmatprep.subr.bf16.mxu0 %v4730
    %4963 = vmatpush1.bf16.msra.mxu0 %v4729
    %4964 = vmatprep.subr.bf16.mxu0 %v4734
    %4965 = vmatpush1.bf16.msra.mxu0 %v4733
    %4966 = vmatprep.subr.bf16.mxu0 %v4738
    %4967 = vmatpush1.bf16.msra.mxu0 %v4737
    %4968 = vmatprep.subr.bf16.mxu0 %v4742
    %4969 = vmatpush1.bf16.msra.mxu0 %v4741
    %4970 = vmatprep.subr.bf16.mxu0 %v4746
    %4971 = vmatpush1.bf16.msra.mxu0 %v4745
    %4972 = vmatprep.subr.bf16.mxu0 %v4750
    %4973 = vmatpush1.bf16.msra.mxu0 %v4749
    %4974 = vmatprep.subr.bf16.mxu0 %v4754
    %4975 = vmatpush1.bf16.msra.mxu0 %v4753
    %4976 = vmatprep.subr.bf16.mxu0 %v4758
    %4977 = vmatpush1.bf16.msra.mxu0 %v4757
    %4978 = vmatprep.subr.bf16.mxu0 %v4762
    %4979 = vmatpush1.bf16.msra.mxu0 %v4761
    %4980 = vmatprep.subr.bf16.mxu0 %v4766
    %4981 = vmatpush1.bf16.msra.mxu0 %v4765
    %4982 = vmatprep.subr.bf16.mxu0 %v4770
    %4983 = vmatpush1.bf16.msra.mxu0 %v4769
    %4984 = vmatprep.subr.bf16.mxu0 %v4774
    %4985 = vmatpush1.bf16.msra.mxu0 %v4773
    %4986 = vmatprep.subr.bf16.mxu0 %v4778
    %4987 = vmatpush1.bf16.msra.mxu0 %v4777
    %4988 = vmatprep.subr.bf16.mxu0 %v4782
    %4989 = vmatpush1.bf16.msra.mxu0 %v4781
    %4990 = vmatprep.subr.bf16.mxu0 %v4786
    %4991 = vmatpush1.bf16.msra.mxu0 %v4785
    %4992 = vmatprep.mubr.bf16.mxu0 %v4126
    %4993 = vmatmul.mubr.bf16.gmra.mrb[0].mxu0 %v4125
    %v4994 = vpop.f32.mrb[0].mxu0
    %v4995 = vadd.f32 %v4952, %v4994
    %v4996 = vpop.f32.mrb[0].mxu0
    %v4997 = vadd.f32 %v4954, %v4996
    %v4998 = vpop.f32.mrb[0].mxu0
    %v4999 = vadd.f32 %v4956, %v4998
    %v5000 = vpop.f32.mrb[0].mxu0
    %v5001 = vadd.f32 %v4958, %v5000
    %5002 = vdwg.mxu0
    %5003 = vmatprep.subr.bf16.mxu0 %v4664
    %5004 = vmatpush1.bf16.msra.mxu0 %v4663
    %5005 = vmatprep.subr.bf16.mxu0 %v4668
    %5006 = vmatpush1.bf16.msra.mxu0 %v4667
    %5007 = vmatprep.subr.bf16.mxu0 %v4672
    %5008 = vmatpush1.bf16.msra.mxu0 %v4671
    %5009 = vmatprep.subr.bf16.mxu0 %v4676
    %5010 = vmatpush1.bf16.msra.mxu0 %v4675
    %5011 = vmatprep.subr.bf16.mxu0 %v4680
    %5012 = vmatpush1.bf16.msra.mxu0 %v4679
    %5013 = vmatprep.subr.bf16.mxu0 %v4684
    %5014 = vmatpush1.bf16.msra.mxu0 %v4683
    %5015 = vmatprep.subr.bf16.mxu0 %v4688
    %5016 = vmatpush1.bf16.msra.mxu0 %v4687
    %5017 = vmatprep.subr.bf16.mxu0 %v4692
    %5018 = vmatpush1.bf16.msra.mxu0 %v4691
    %5019 = vmatprep.subr.bf16.mxu0 %v4696
    %5020 = vmatpush1.bf16.msra.mxu0 %v4695
    %5021 = vmatprep.subr.bf16.mxu0 %v4700
    %5022 = vmatpush1.bf16.msra.mxu0 %v4699
    %5023 = vmatprep.subr.bf16.mxu0 %v4704
    %5024 = vmatpush1.bf16.msra.mxu0 %v4703
    %5025 = vmatprep.subr.bf16.mxu0 %v4708
    %5026 = vmatpush1.bf16.msra.mxu0 %v4707
    %5027 = vmatprep.subr.bf16.mxu0 %v4712
    %5028 = vmatpush1.bf16.msra.mxu0 %v4711
    %5029 = vmatprep.subr.bf16.mxu0 %v4716
    %5030 = vmatpush1.bf16.msra.mxu0 %v4715
    %5031 = vmatprep.subr.bf16.mxu0 %v4720
    %5032 = vmatpush1.bf16.msra.mxu0 %v4719
    %5033 = vmatprep.subr.bf16.mxu0 %v4724
    %5034 = vmatpush1.bf16.msra.mxu0 %v4723
    %5035 = vmatprep.mubr.bf16.mxu0 %v4124
    %5036 = vmatmul.mubr.bf16.gmra.mrb[0].mxu0 %v4123
    %v5037 = vpop.f32.mrb[0].mxu0
    %v5038 = vadd.f32 %v4268, %v5037
    %v5039 = vpop.f32.mrb[0].mxu0
    %v5040 = vadd.f32 %v4272, %v5039
    %v5041 = vpop.f32.mrb[0].mxu0
    %v5042 = vadd.f32 %v4268, %v5041
    %v5043 = vpop.f32.mrb[0].mxu0
    %v5044 = vadd.f32 %v4272, %v5043
    %5045 = vdwg.mxu0
    %5046 = vmatprep.subr.bf16.mxu0 %v4728
    %5047 = vmatpush1.bf16.msra.mxu0 %v4727
    %5048 = vmatprep.subr.bf16.mxu0 %v4732
    %5049 = vmatpush1.bf16.msra.mxu0 %v4731
    %5050 = vmatprep.subr.bf16.mxu0 %v4736
    %5051 = vmatpush1.bf16.msra.mxu0 %v4735
    %5052 = vmatprep.subr.bf16.mxu0 %v4740
    %5053 = vmatpush1.bf16.msra.mxu0 %v4739
    %5054 = vmatprep.subr.bf16.mxu0 %v4744
    %5055 = vmatpush1.bf16.msra.mxu0 %v4743
    %5056 = vmatprep.subr.bf16.mxu0 %v4748
    %5057 = vmatpush1.bf16.msra.mxu0 %v4747
    %5058 = vmatprep.subr.bf16.mxu0 %v4752
    %5059 = vmatpush1.bf16.msra.mxu0 %v4751
    %5060 = vmatprep.subr.bf16.mxu0 %v4756
    %5061 = vmatpush1.bf16.msra.mxu0 %v4755
    %5062 = vmatprep.subr.bf16.mxu0 %v4760
    %5063 = vmatpush1.bf16.msra.mxu0 %v4759
    %5064 = vmatprep.subr.bf16.mxu0 %v4764
    %5065 = vmatpush1.bf16.msra.mxu0 %v4763
    %5066 = vmatprep.subr.bf16.mxu0 %v4768
    %5067 = vmatpush1.bf16.msra.mxu0 %v4767
    %5068 = vmatprep.subr.bf16.mxu0 %v4772
    %5069 = vmatpush1.bf16.msra.mxu0 %v4771
    %5070 = vmatprep.subr.bf16.mxu0 %v4776
    %5071 = vmatpush1.bf16.msra.mxu0 %v4775
    %5072 = vmatprep.subr.bf16.mxu0 %v4780
    %5073 = vmatpush1.bf16.msra.mxu0 %v4779
    %5074 = vmatprep.subr.bf16.mxu0 %v4784
    %5075 = vmatpush1.bf16.msra.mxu0 %v4783
    %5076 = vmatprep.subr.bf16.mxu0 %v4788
    %5077 = vmatpush1.bf16.msra.mxu0 %v4787
    %5078 = vmatprep.mubr.bf16.mxu0 %v4126
    %5079 = vmatmul.mubr.bf16.gmra.mrb[0].mxu0 %v4125
    %v5080 = vpop.f32.mrb[0].mxu0
    %v5081 = vadd.f32 %v5038, %v5080
    %v5082 = vpop.f32.mrb[0].mxu0
    %v5083 = vadd.f32 %v5040, %v5082
    %v5084 = vpop.f32.mrb[0].mxu0
    %v5085 = vadd.f32 %v5042, %v5084
    %v5086 = vpop.f32.mrb[0].mxu0
    %v5087 = vadd.f32 %v5044, %v5086
    %5088 = vdwg.mxu0
    %v5089 = vadd.f32 %v757, %v4995
    %v5090 = vadd.f32 %v758, %v4997
    %v5091 = vadd.f32 %v759, %v5081
    %v5092 = vadd.f32 %v760, %v5083
    %v5093 = vadd.f32 %v761, %v4999
    %v5094 = vadd.f32 %v762, %v5001
    %v5095 = vadd.f32 %v763, %v5085
    %v5096 = vadd.f32 %v764, %v5087
    %v5097 = vld [vmem:[%s13] sm:$0xf]
    %v5099 = vlaneseq
    %v5100 = vshrl.u32 %v5099, 7
    %v5101 = vsub.s32 0, %v5100
    %v5102 = vrot.slane %v5097, %v5101
    %v5103 = vlaneseq
    %v5104 = vshrl.u32 %v5103, 7
    %v5105 = vsub.s32 1, %v5104
    %v5106 = vrot.slane %v5097, %v5105
    %v5107 = vlaneseq
    %v5108 = vshrl.u32 %v5107, 7
    %v5109 = vsub.s32 2, %v5108
    %v5110 = vrot.slane %v5097, %v5109
    %v5111 = vlaneseq
    %v5112 = vshrl.u32 %v5111, 7
    %v5113 = vsub.s32 3, %v5112
    %v5114 = vrot.slane %v5097, %v5113
    %v5119 = vmul.f32 %v5089, %v5102
    %v5120 = vmul.f32 %v5090, %v5106
    %v5121 = vmul.f32 %v5091, %v5110
    %v5122 = vmul.f32 %v5092, %v5114
    %v5123 = vmul.f32 %v5093, %v5102
    %v5124 = vmul.f32 %v5094, %v5106
    %v5125 = vmul.f32 %v5095, %v5110
    %v5126 = vmul.f32 %v5096, %v5114
    %v5127 = vadd.f32 %v5119, %v5120
    %v5128 = vadd.f32 %v5127, %v5121
    %v5129 = vadd.f32 %v5128, %v5122
    %5130 = vadd.xlane.f32.xlu0 %v5129
    %v5131 = vpop.xlane.xlu0 %5130
    %v5132 = vadd.f32 %v5123, %v5124
    %v5133 = vadd.f32 %v5132, %v5125
    %v5134 = vadd.f32 %v5133, %v5126
    %5135 = vadd.xlane.f32.xlu0 %v5134
    %v5136 = vpop.xlane.xlu0 %5135
    %v5137 = vld [vmem:[#allocation2] sm:$0x1]
    %v5139 = vlaneseq
    %v5140 = vshrl.u32 %v5139, 7
    %v5141 = vsub.s32 0, %v5140
    %v5142 = vrot.slane %v5137, %v5141
    %5143 = vset.pattern.permute.xlu0 0
    %5144 = vperm.xlu0 %5143, %v5142
    %v5145 = vpop.permute.xlu0 %5144
    %v5147 = vadd.f32 %v5131, %v5145
    %v5148 = vadd.f32 %v5136, %v5145
    %v5151 = vlaneseq
    %v5152 = vand.u32 %v5151, 127
    %v5153 = vlaneseq
    %v5154 = vshrl.u32 %v5153, 7
    %v5155 = vsub.s32 %v5152, %v5154
    %v5156 = vrot.slane %v5147, %v5155
    %v5157 = vlaneseq
    %v5158 = vshrl.u32 %v5157, 7
    %v5159 = vsub.s32 %v5152, %v5158
    %v5160 = vrot.slane %v5148, %v5159
    %vm5161 = vcmask 1041409
    %v5162 = vsel %vm5161, %v5160, %v5156
    %vm5164 = vcmask 58368
    %5165 = vst.msk [vmem:[#allocation15] sm:$0x3] %vm5164, %v5162
    // Predicated region
    $region90: #{tpu_custom_call.1} parent=1 // pred_check
      _
    $region91: #{tpu_custom_call.1} parent=1 // pred_check_branch
      %5167 = sbr.rel (0) target = $region93
    $region92: #{tpu_custom_call.1} parent=1 // pred_region
      %s5169 = ssub.s32 32, 32
      %5170 = vsyncadd [#allocation5], %s5169
      %s5172 = sshll.u32 [#allocation15], 4
      %s5173 = int_to_ptr.vmem [resolvable:$true] %s5172
      %5175 = dma.vmem_to_hbm [thread:$0]  %s5173, 32, %s15, [#allocation5]
    $region93: #{tpu_custom_call.1} parent=1 // pred_fallthru
      _
    // Predicated region
    $region94: #{tpu_custom_call.1} parent=1 // pred_check
      _
    $region95: #{tpu_custom_call.1} parent=1 // pred_check_branch
      %5177 = sbr.rel (0) target = $region97
    $region96: #{tpu_custom_call.1} parent=1 // pred_region
      %5178 = dma.done [#allocation5], 32
    $region97: #{tpu_custom_call.1} parent=1 // pred_fallthru
      _
    %5179 = vsyncpa [#allocation4], 1
    %5180 = vsyncpa [#allocation7], 1
    %5181 = vsyncpa [#allocation10], 1
    %5182 = vsyncpa [#allocation13], 1
    %5183 = vsyncpa [#allocation5], 1

// kernel: tpu_custom_call.1
$region0: #{tpu_custom_call.1}
  #allocation0 [shape = 'u32[]', space=smem, size = 0x4, offset = 0x4, fixed_abs, tag = 'smem constant byte address 0x4 - core index']
  #allocation1 [shape = 'u32[144,128]{1,0:T(1,128)}', space=vmem, size = 0x12000, scoped, tag = 'internal scratch']
  #allocation2 [shape = 'f32[1,1]{1,0:T(1,128)S(1)}', space=vmem, size = 0x200, scoped, tag = 'scoped memory for tpu_custom_call.1']
  %s0 = inlined_call_operand.hbm [shape: f32[2,8,64], index: 0, kind: input, shape index: {}]
  %s1 = inlined_call_operand.hbm [shape: bf16[64,256], index: 1, kind: input, shape index: {}]
  %s2 = inlined_call_operand.vmem [shape: f32[1,256], index: 2, kind: input, shape index: {}]
  %s3 = inlined_call_operand.hbm [shape: bf16[256,512], index: 3, kind: input, shape index: {}]
  %s4 = inlined_call_operand.vmem [shape: f32[1,512], index: 4, kind: input, shape index: {}]
  %s5 = inlined_call_operand.hbm [shape: bf16[512,512], index: 5, kind: input, shape index: {}]
  %s6 = inlined_call_operand.vmem [shape: f32[1,512], index: 6, kind: input, shape index: {}]
  %s7 = inlined_call_operand.hbm [shape: bf16[512,512], index: 7, kind: input, shape index: {}]
  %s8 = inlined_call_operand.vmem [shape: f32[1,512], index: 8, kind: input, shape index: {}]
  %s9 = inlined_call_operand.hbm [shape: bf16[512,512], index: 9, kind: input, shape index: {}]
  %s10 = inlined_call_operand.vmem [shape: f32[1,512], index: 10, kind: input, shape index: {}]
  %s11 = inlined_call_operand.hbm [shape: bf16[512,512], index: 11, kind: input, shape index: {}]
  %s12 = inlined_call_operand.vmem [shape: f32[1,512], index: 12, kind: input, shape index: {}]
  %s13 = inlined_call_operand.vmem [shape: f32[1,512], index: 13, kind: input, shape index: {}]
  %s14 = inlined_call_operand.<no memory space> [shape: f32[1,1], index: 14, kind: input, shape index: {}]
  %s15 = inlined_call_operand.hbm [shape: f32[2,8], index: 15, kind: output, shape index: {}]
  %s16 = sld [smem:[#allocation0]]
  $region98: #{tpu_custom_call.1} parent=0
    _
  %s18 = ssub.s32 1, %s16
  %s19 = scalar_select 0, %s18, %s16
  %v20 = vstv %s14
  %21 = vst [vmem:[#allocation2] sm:$0x1] %v20
  $region1: #{tpu_custom_call.1} parent=0
    #allocation3 [shape = 'u8[8192]{0}', space=vmem, size = 0x2000, scoped, tag = 'input window, operand 0, single buffered']
    #allocation4 [shape = 's32[1]{0}', space=sflag, size = 0x4, scoped, tag = 'scoped memory for tpu_custom_call.1']
    #allocation5 [shape = 's32[1]{0}', space=sflag, size = 0x4, scoped, tag = 'scoped memory for tpu_custom_call.1']
    #allocation6 [shape = 'u8[32768]{0}', space=vmem, size = 0x8000, scoped, tag = 'input window, operand 1, single buffered']
    #allocation7 [shape = 's32[1]{0}', space=sflag, size = 0x4, scoped, tag = 'scoped memory for tpu_custom_call.1']
    #allocation8 [shape = 'u8[262144]{0}', space=vmem, size = 0x40000, scoped, tag = 'input window, operand 3, single buffered']
    #allocation9 [shape = 'u8[524288]{0}', space=vmem, size = 0x80000, scoped, tag = 'input window, operand 5, single buffered']
    #allocation10 [shape = 's32[1]{0}', space=sflag, size = 0x4, scoped, tag = 'scoped memory for tpu_custom_call.1']
    #allocation11 [shape = 'u8[524288]{0}', space=vmem, size = 0x80000, scoped, tag = 'input window, operand 7, single buffered']
    #allocation12 [shape = 'u8[524288]{0}', space=vmem, size = 0x80000, scoped, tag = 'input window, operand 9, single buffered']
    #allocation13 [shape = 's32[1]{0}', space=sflag, size = 0x4, scoped, tag = 'scoped memory for tpu_custom_call.1']
    #allocation14 [shape = 'u8[524288]{0}', space=vmem, size = 0x80000, scoped, tag = 'input window, operand 11, single buffered']
    #allocation15 [shape = 'u8[1024]{0}', space=vmem, size = 0x400, scoped, tag = 'output window, operand 0, single buffered']
    %22 = vsyncpa [#allocation4], 0
    %23 = vsyncpa [#allocation7], 0
    %24 = vsyncpa [#allocation10], 0
    %25 = vsyncpa [#allocation13], 0
    %26 = vsyncpa [#allocation5], 0
    // Predicated region
    $region2: #{tpu_custom_call.1} parent=1 // pred_check
      _
    $region3: #{tpu_custom_call.1} parent=1 // pred_check_branch
      %28 = sbr.rel (0) target = $region5
    $region4: #{tpu_custom_call.1} parent=1 // pred_region
      %s30 = ssub.s32 256, 256
      %31 = vsyncadd [#allocation4], %s30
      %s32 = sshll.u32 [#allocation3], 4
      %s33 = int_to_ptr.vmem [resolvable:$true] %s32
      %38 = dma.hbm_to_vmem [thread:$0]  %s0, 256, %s33, [#allocation4], 128, 128, 8
    $region5: #{tpu_custom_call.1} parent=1 // pred_fallthru
      _
    // Predicated region
    $region6: #{tpu_custom_call.1} parent=1 // pred_check
      _
    $region7: #{tpu_custom_call.1} parent=1 // pred_check_branch
      %40 = sbr.rel (0) target = $region9
    $region8: #{tpu_custom_call.1} parent=1 // pred_region
      %s42 = ssub.s32 1024, 1024
      %43 = vsyncadd [#allocation7], %s42
      %s44 = sshll.u32 [#allocation6], 4
      %s45 = int_to_ptr.vmem [resolvable:$true] %s44
      %50 = dma.hbm_to_vmem [thread:$0]  %s1, 1024, %s45, [#allocation7], 128, 128, 8
    $region9: #{tpu_custom_call.1} parent=1 // pred_fallthru
      _
    // Predicated region
    $region10: #{tpu_custom_call.1} parent=1 // pred_check
      _
    $region11: #{tpu_custom_call.1} parent=1 // pred_check_branch
      %52 = sbr.rel (0) target = $region13
    $region12: #{tpu_custom_call.1} parent=1 // pred_region
      _
    $region13: #{tpu_custom_call.1} parent=1 // pred_fallthru
      _
    // Predicated region
    $region14: #{tpu_custom_call.1} parent=1 // pred_check
      _
    $region15: #{tpu_custom_call.1} parent=1 // pred_check_branch
      %54 = sbr.rel (0) target = $region17
    $region16: #{tpu_custom_call.1} parent=1 // pred_region
      %s56 = ssub.s32 8192, 8192
      %57 = vsyncadd [#allocation7], %s56
      %s58 = sshll.u32 [#allocation8], 4
      %s59 = int_to_ptr.vmem [resolvable:$true] %s58
      %64 = dma.hbm_to_vmem [thread:$0]  %s3, 8192, %s59, [#allocation7], 256, 256, 16
    $region17: #{tpu_custom_call.1} parent=1 // pred_fallthru
      _
    // Predicated region
    $region18: #{tpu_custom_call.1} parent=1 // pred_check
      _
    $region19: #{tpu_custom_call.1} parent=1 // pred_check_branch
      %66 = sbr.rel (0) target = $region21
    $region20: #{tpu_custom_call.1} parent=1 // pred_region
      _
    $region21: #{tpu_custom_call.1} parent=1 // pred_fallthru
      _
    // Predicated region
    $region22: #{tpu_custom_call.1} parent=1 // pred_check
      _
    $region23: #{tpu_custom_call.1} parent=1 // pred_check_branch
      %68 = sbr.rel (0) target = $region25
    $region24: #{tpu_custom_call.1} parent=1 // pred_region
      %s70 = ssub.s32 16384, 16384
      %71 = vsyncadd [#allocation10], %s70
      %s72 = sshll.u32 [#allocation9], 4
      %s73 = int_to_ptr.vmem [resolvable:$true] %s72
      %78 = dma.hbm_to_vmem [thread:$0]  %s5, 16384, %s73, [#allocation10], 256, 256, 16
    $region25: #{tpu_custom_call.1} parent=1 // pred_fallthru
      _
    // Predicated region
    $region26: #{tpu_custom_call.1} parent=1 // pred_check
      _
    $region27: #{tpu_custom_call.1} parent=1 // pred_check_branch
      %80 = sbr.rel (0) target = $region29
    $region28: #{tpu_custom_call.1} parent=1 // pred_region
      _
    $region29: #{tpu_custom_call.1} parent=1 // pred_fallthru
      _
    // Predicated region
    $region30: #{tpu_custom_call.1} parent=1 // pred_check
      _
    $region31: #{tpu_custom_call.1} parent=1 // pred_check_branch
      %82 = sbr.rel (0) target = $region33
    $region32: #{tpu_custom_call.1} parent=1 // pred_region
      %s84 = ssub.s32 16384, 16384
      %85 = vsyncadd [#allocation10], %s84
      %s86 = sshll.u32 [#allocation11], 4
      %s87 = int_to_ptr.vmem [resolvable:$true] %s86
      %92 = dma.hbm_to_vmem [thread:$0]  %s7, 16384, %s87, [#allocation10], 256, 256, 16
    $region33: #{tpu_custom_call.1} parent=1 // pred_fallthru
      _
    // Predicated region
    $region34: #{tpu_custom_call.1} parent=1 // pred_check
      _
    $region35: #{tpu_custom_call.1} parent=1 // pred_check_branch
      %94 = sbr.rel (0) target = $region37
    $region36: #{tpu_custom_call.1} parent=1 // pred_region
      _
    $region37: #{tpu_custom_call.1} parent=1 // pred_fallthru
      _
    // Predicated region
    $region38: #{tpu_custom_call.1} parent=1 // pred_check
      _
    $region39: #{tpu_custom_call.1} parent=1 // pred_check_branch
      %96 = sbr.rel (0) target = $region41
    $region40: #{tpu_custom_call.1} parent=1 // pred_region
      %s98 = ssub.s32 16384, 16384
      %99 = vsyncadd [#allocation13], %s98
      %s100 = sshll.u32 [#allocation12], 4
      %s101 = int_to_ptr.vmem [resolvable:$true] %s100
      %106 = dma.hbm_to_vmem [thread:$0]  %s9, 16384, %s101, [#allocation13], 256, 256, 16
    $region41: #{tpu_custom_call.1} parent=1 // pred_fallthru
      _
    // Predicated region
    $region42: #{tpu_custom_call.1} parent=1 // pred_check
      _
    $region43: #{tpu_custom_call.1} parent=1 // pred_check_branch
      %108 = sbr.rel (0) target = $region45
    $region44: #{tpu_custom_call.1} parent=1 // pred_region
      _
    $region45: #{tpu_custom_call.1} parent=1 // pred_fallthru
      _
    // Predicated region
    $region46: #{tpu_custom_call.1} parent=1 // pred_check
      _
    $region47: #{tpu_custom_call.1} parent=1 // pred_check_branch
      %110 = sbr.rel (0) target = $region49
    $region48: #{tpu_custom_call.1} parent=1 // pred_region
      %s112 = ssub.s32 16384, 16384
      %113 = vsyncadd [#allocation13], %s112
      %s114 = sshll.u32 [#allocation14], 4
      %s115 = int_to_ptr.vmem [resolvable:$true] %s114
      %120 = dma.hbm_to_vmem [thread:$0]  %s11, 16384, %s115, [#allocation13], 256, 256, 16
    $region49: #{tpu_custom_call.1} parent=1 // pred_fallthru
      _
    // Predicated region
    $region50: #{tpu_custom_call.1} parent=1 // pred_check
      _
    $region51: #{tpu_custom_call.1} parent=1 // pred_check_branch
      %122 = sbr.rel (0) target = $region53
    $region52: #{tpu_custom_call.1} parent=1 // pred_region
      _
    $region53: #{tpu_custom_call.1} parent=1 // pred_fallthru
      _
    // Predicated region
    $region54: #{tpu_custom_call.1} parent=1 // pred_check
      _
    $region55: #{tpu_custom_call.1} parent=1 // pred_check_branch
      %124 = sbr.rel (0) target = $region57
    $region56: #{tpu_custom_call.1} parent=1 // pred_region
      _
    $region57: #{tpu_custom_call.1} parent=1 // pred_fallthru
      _
    // Predicated region
    $region58: #{tpu_custom_call.1} parent=1 // pred_check
      _
    $region59: #{tpu_custom_call.1} parent=1 // pred_check_branch
      %126 = sbr.rel (0) target = $region61
    $region60: #{tpu_custom_call.1} parent=1 // pred_region
      _
    $region61: #{tpu_custom_call.1} parent=1 // pred_fallthru
      _
    // Predicated region
    $region62: #{tpu_custom_call.1} parent=1 // pred_check
      _
    $region63: #{tpu_custom_call.1} parent=1 // pred_check_branch
      %128 = sbr.rel (0) target = $region65
    $region64: #{tpu_custom_call.1} parent=1 // pred_region
      %129 = dma.done [#allocation4], 256
    $region65: #{tpu_custom_call.1} parent=1 // pred_fallthru
      _
    // Predicated region
    $region66: #{tpu_custom_call.1} parent=1 // pred_check
      _
    $region67: #{tpu_custom_call.1} parent=1 // pred_check_branch
      %131 = sbr.rel (0) target = $region69
    $region68: #{tpu_custom_call.1} parent=1 // pred_region
      %132 = dma.done [#allocation7], 1024
    $region69: #{tpu_custom_call.1} parent=1 // pred_fallthru
      _
    // Predicated region
    $region70: #{tpu_custom_call.1} parent=1 // pred_check
      _
    $region71: #{tpu_custom_call.1} parent=1 // pred_check_branch
      %134 = sbr.rel (0) target = $region73
    $region72: #{tpu_custom_call.1} parent=1 // pred_region
      %135 = dma.done [#allocation7], 8192
    $region73: #{tpu_custom_call.1} parent=1 // pred_fallthru
      _
    // Predicated region
    $region74: #{tpu_custom_call.1} parent=1 // pred_check
      _
    $region75: #{tpu_custom_call.1} parent=1 // pred_check_branch
      %137 = sbr.rel (0) target = $region77
    $region76: #{tpu_custom_call.1} parent=1 // pred_region
      %138 = dma.done [#allocation10], 16384
    $region77: #{tpu_custom_call.1} parent=1 // pred_fallthru
      _
    // Predicated region
    $region78: #{tpu_custom_call.1} parent=1 // pred_check
      _
    $region79: #{tpu_custom_call.1} parent=1 // pred_check_branch
      %140 = sbr.rel (0) target = $region81
    $region80: #{tpu_custom_call.1} parent=1 // pred_region
      %141 = dma.done [#allocation10], 16384
    $region81: #{tpu_custom_call.1} parent=1 // pred_fallthru
      _
    // Predicated region
    $region82: #{tpu_custom_call.1} parent=1 // pred_check
      _
    $region83: #{tpu_custom_call.1} parent=1 // pred_check_branch
      %143 = sbr.rel (0) target = $region85
    $region84: #{tpu_custom_call.1} parent=1 // pred_region
      %144 = dma.done [#allocation13], 16384
    $region85: #{tpu_custom_call.1} parent=1 // pred_fallthru
      _
    // Predicated region
    $region86: #{tpu_custom_call.1} parent=1 // pred_check
      _
    $region87: #{tpu_custom_call.1} parent=1 // pred_check_branch
      %146 = sbr.rel (0) target = $region89
    $region88: #{tpu_custom_call.1} parent=1 // pred_region
      %147 = dma.done [#allocation13], 16384
    $region89: #{tpu_custom_call.1} parent=1 // pred_fallthru
      _
    %v149 = vld [vmem:[#allocation3] sm:$0xff]
    %v150 = vld [vmem:[#allocation3 + $0x8] sm:$0xff]
    %v151 = vpack.c.bf16 %v150, %v149
    %v152 = vld [vmem:[#allocation6] sm:$0xff]
    %v153 = vld [vmem:[#allocation6 + $0x8] sm:$0xff]
    %v154 = vld [vmem:[#allocation6 + $0x10] sm:$0xff]
    %v155 = vld [vmem:[#allocation6 + $0x18] sm:$0xff]
    %v156 = vld [vmem:[#allocation6 + $0x20] sm:$0xff]
    %v157 = vld [vmem:[#allocation6 + $0x28] sm:$0xff]
    %v158 = vld [vmem:[#allocation6 + $0x30] sm:$0xff]
    %v159 = vld [vmem:[#allocation6 + $0x38] sm:$0xff]
    %v160 = vld [vmem:[%s2] sm:$0x3]
    %v162 = vlaneseq
    %v163 = vshrl.u32 %v162, 7
    %v164 = vsub.s32 0, %v163
    %v165 = vrot.slane %v160, %v164
    %v166 = vlaneseq
    %v167 = vshrl.u32 %v166, 7
    %v168 = vsub.s32 1, %v167
    %v169 = vrot.slane %v160, %v168
    %v180 = vunpack.c.l.b16 %v152
    %v181 = vunpack.c.h.b16 %v152
    %v182 = vunpack.c.l.b16 %v153
    %v183 = vunpack.c.h.b16 %v153
    %v184 = vunpack.c.l.b16 %v154
    %v185 = vunpack.c.h.b16 %v154
    %v186 = vunpack.c.l.b16 %v155
    %v187 = vunpack.c.h.b16 %v155
    %v188 = vunpack.c.l.b16 %v156
    %v189 = vunpack.c.h.b16 %v156
    %v190 = vunpack.c.l.b16 %v157
    %v191 = vunpack.c.h.b16 %v157
    %v192 = vunpack.c.l.b16 %v158
    %v193 = vunpack.c.h.b16 %v158
    %v194 = vunpack.c.l.b16 %v159
    %v195 = vunpack.c.h.b16 %v159
    %v196 = vpack.c.b16 %v182, %v180
    %v197 = vpack.c.b16 %v183, %v181
    %v198 = vpack.c.b16 %v186, %v184
    %v199 = vpack.c.b16 %v187, %v185
    %v200 = vpack.c.b16 %v190, %v188
    %v201 = vpack.c.b16 %v191, %v189
    %v202 = vpack.c.b16 %v194, %v192
    %v203 = vpack.c.b16 %v195, %v193
    %vm212 = vcmask 523264
    %v214 = vsel %vm212, %v151, 0
    %216 = vmatprep.subr.bf16.mxu0 %v197
    %217 = vmatpush1.bf16.msra.mxu0 %v196
    %218 = vmatprep.subr.bf16.mxu0 %v199
    %219 = vmatpush1.bf16.msra.mxu0 %v198
    %220 = vmatprep.subr.bf16.mxu0 %v201
    %221 = vmatpush1.bf16.msra.mxu0 %v200
    %222 = vmatprep.subr.bf16.mxu0 %v203
    %223 = vmatpush1.bf16.msra.mxu0 %v202
    %224 = vmatprep.subr.bf16.mxu0 0
    %225 = vmatpush1.bf16.msra.mxu0 0
    %226 = vmatprep.subr.bf16.mxu0 0
    %227 = vmatpush1.bf16.msra.mxu0 0
    %228 = vmatprep.subr.bf16.mxu0 0
    %229 = vmatpush1.bf16.msra.mxu0 0
    %230 = vmatprep.subr.bf16.mxu0 0
    %231 = vmatpush1.bf16.msra.mxu0 0
    %232 = vmatprep.subr.bf16.mxu0 0
    %233 = vmatpush1.bf16.msra.mxu0 0
    %234 = vmatprep.subr.bf16.mxu0 0
    %235 = vmatpush1.bf16.msra.mxu0 0
    %236 = vmatprep.subr.bf16.mxu0 0
    %237 = vmatpush1.bf16.msra.mxu0 0
    %238 = vmatprep.subr.bf16.mxu0 0
    %239 = vmatpush1.bf16.msra.mxu0 0
    %240 = vmatprep.subr.bf16.mxu0 0
    %241 = vmatpush1.bf16.msra.mxu0 0
    %242 = vmatprep.subr.bf16.mxu0 0
    %243 = vmatpush1.bf16.msra.mxu0 0
    %244 = vmatprep.subr.bf16.mxu0 0
    %245 = vmatpush1.bf16.msra.mxu0 0
    %246 = vmatprep.subr.bf16.mxu0 0
    %247 = vmatpush1.bf16.msra.mxu0 0
    %248 = vmatprep.mubr.bf16.mxu0 0
    %249 = vmatmul.mubr.bf16.gmra.mrb[0].mxu0 %v214
    %v250 = vpop.f32.mrb[0].mxu0
    %v251 = vadd.f32 %v165, %v250
    %v252 = vpop.f32.mrb[0].mxu0
    %v253 = vadd.f32 %v169, %v252
    %v254 = vpop.f32.mrb[0].mxu0
    %v255 = vadd.f32 %v165, %v254
    %v256 = vpop.f32.mrb[0].mxu0
    %v257 = vadd.f32 %v169, %v256
    %258 = vdwg.mxu0
    %v259 = vmax.f32 %v251, 0.0
    %v260 = vmax.f32 %v253, 0.0
    %v261 = vmax.f32 %v255, 0.0
    %v262 = vmax.f32 %v257, 0.0
    %v263 = vpack.c.bf16 %v261, %v259
    %v264 = vpack.c.bf16 %v262, %v260
    %v265 = vld [vmem:[#allocation8] sm:$0xff]
    %v266 = vld [vmem:[#allocation8 + $0x8] sm:$0xff]
    %v267 = vld [vmem:[#allocation8 + $0x10] sm:$0xff]
    %v268 = vld [vmem:[#allocation8 + $0x18] sm:$0xff]
    %v269 = vld [vmem:[#allocation8 + $0x20] sm:$0xff]
    %v270 = vld [vmem:[#allocation8 + $0x28] sm:$0xff]
    %v271 = vld [vmem:[#allocation8 + $0x30] sm:$0xff]
    %v272 = vld [vmem:[#allocation8 + $0x38] sm:$0xff]
    %v273 = vld [vmem:[#allocation8 + $0x40] sm:$0xff]
    %v274 = vld [vmem:[#allocation8 + $0x48] sm:$0xff]
    %v275 = vld [vmem:[#allocation8 + $0x50] sm:$0xff]
    %v276 = vld [vmem:[#allocation8 + $0x58] sm:$0xff]
    %v277 = vld [vmem:[#allocation8 + $0x60] sm:$0xff]
    %v278 = vld [vmem:[#allocation8 + $0x68] sm:$0xff]
    %v279 = vld [vmem:[#allocation8 + $0x70] sm:$0xff]
    %v280 = vld [vmem:[#allocation8 + $0x78] sm:$0xff]
    %v281 = vld [vmem:[#allocation8 + $0x80] sm:$0xff]
    %v282 = vld [vmem:[#allocation8 + $0x88] sm:$0xff]
    %v283 = vld [vmem:[#allocation8 + $0x90] sm:$0xff]
    %v284 = vld [vmem:[#allocation8 + $0x98] sm:$0xff]
    %v285 = vld [vmem:[#allocation8 + $0xa0] sm:$0xff]
    %v286 = vld [vmem:[#allocation8 + $0xa8] sm:$0xff]
    %v287 = vld [vmem:[#allocation8 + $0xb0] sm:$0xff]
    %v288 = vld [vmem:[#allocation8 + $0xb8] sm:$0xff]
    %v289 = vld [vmem:[#allocation8 + $0xc0] sm:$0xff]
    %v290 = vld [vmem:[#allocation8 + $0xc8] sm:$0xff]
    %v291 = vld [vmem:[#allocation8 + $0xd0] sm:$0xff]
    %v292 = vld [vmem:[#allocation8 + $0xd8] sm:$0xff]
    %v293 = vld [vmem:[#allocation8 + $0xe0] sm:$0xff]
    %v294 = vld [vmem:[#allocation8 + $0xe8] sm:$0xff]
    %v295 = vld [vmem:[#allocation8 + $0xf0] sm:$0xff]
    %v296 = vld [vmem:[#allocation8 + $0xf8] sm:$0xff]
    %v297 = vld [vmem:[#allocation8 + $0x100] sm:$0xff]
    %v298 = vld [vmem:[#allocation8 + $0x108] sm:$0xff]
    %v299 = vld [vmem:[#allocation8 + $0x110] sm:$0xff]
    %v300 = vld [vmem:[#allocation8 + $0x118] sm:$0xff]
    %v301 = vld [vmem:[#allocation8 + $0x120] sm:$0xff]
    %v302 = vld [vmem:[#allocation8 + $0x128] sm:$0xff]
    %v303 = vld [vmem:[#allocation8 + $0x130] sm:$0xff]
    %v304 = vld [vmem:[#allocation8 + $0x138] sm:$0xff]
    %v305 = vld [vmem:[#allocation8 + $0x140] sm:$0xff]
    %v306 = vld [vmem:[#allocation8 + $0x148] sm:$0xff]
    %v307 = vld [vmem:[#allocation8 + $0x150] sm:$0xff]
    %v308 = vld [vmem:[#allocation8 + $0x158] sm:$0xff]
    %v309 = vld [vmem:[#allocation8 + $0x160] sm:$0xff]
    %v310 = vld [vmem:[#allocation8 + $0x168] sm:$0xff]
    %v311 = vld [vmem:[#allocation8 + $0x170] sm:$0xff]
    %v312 = vld [vmem:[#allocation8 + $0x178] sm:$0xff]
    %v313 = vld [vmem:[#allocation8 + $0x180] sm:$0xff]
    %v314 = vld [vmem:[#allocation8 + $0x188] sm:$0xff]
    %v315 = vld [vmem:[#allocation8 + $0x190] sm:$0xff]
    %v316 = vld [vmem:[#allocation8 + $0x198] sm:$0xff]
    %v317 = vld [vmem:[#allocation8 + $0x1a0] sm:$0xff]
    %v318 = vld [vmem:[#allocation8 + $0x1a8] sm:$0xff]
    %v319 = vld [vmem:[#allocation8 + $0x1b0] sm:$0xff]
    %v320 = vld [vmem:[#allocation8 + $0x1b8] sm:$0xff]
    %v321 = vld [vmem:[#allocation8 + $0x1c0] sm:$0xff]
    %v322 = vld [vmem:[#allocation8 + $0x1c8] sm:$0xff]
    %v323 = vld [vmem:[#allocation8 + $0x1d0] sm:$0xff]
    %v324 = vld [vmem:[#allocation8 + $0x1d8] sm:$0xff]
    %v325 = vld [vmem:[#allocation8 + $0x1e0] sm:$0xff]
    %v326 = vld [vmem:[#allocation8 + $0x1e8] sm:$0xff]
    %v327 = vld [vmem:[#allocation8 + $0x1f0] sm:$0xff]
    %v328 = vld [vmem:[#allocation8 + $0x1f8] sm:$0xff]
    %v329 = vld [vmem:[%s4] sm:$0xf]
    %v331 = vlaneseq
    %v332 = vshrl.u32 %v331, 7
    %v333 = vsub.s32 0, %v332
    %v334 = vrot.slane %v329, %v333
    %v335 = vlaneseq
    %v336 = vshrl.u32 %v335, 7
    %v337 = vsub.s32 1, %v336
    %v338 = vrot.slane %v329, %v337
    %v339 = vlaneseq
    %v340 = vshrl.u32 %v339, 7
    %v341 = vsub.s32 2, %v340
    %v342 = vrot.slane %v329, %v341
    %v343 = vlaneseq
    %v344 = vshrl.u32 %v343, 7
    %v345 = vsub.s32 3, %v344
    %v346 = vrot.slane %v329, %v345
    %v415 = vunpack.c.l.b16 %v265
    %v416 = vunpack.c.h.b16 %v265
    %v417 = vunpack.c.l.b16 %v266
    %v418 = vunpack.c.h.b16 %v266
    %v419 = vunpack.c.l.b16 %v267
    %v420 = vunpack.c.h.b16 %v267
    %v421 = vunpack.c.l.b16 %v268
    %v422 = vunpack.c.h.b16 %v268
    %v423 = vunpack.c.l.b16 %v269
    %v424 = vunpack.c.h.b16 %v269
    %v425 = vunpack.c.l.b16 %v270
    %v426 = vunpack.c.h.b16 %v270
    %v427 = vunpack.c.l.b16 %v271
    %v428 = vunpack.c.h.b16 %v271
    %v429 = vunpack.c.l.b16 %v272
    %v430 = vunpack.c.h.b16 %v272
    %v431 = vunpack.c.l.b16 %v273
    %v432 = vunpack.c.h.b16 %v273
    %v433 = vunpack.c.l.b16 %v274
    %v434 = vunpack.c.h.b16 %v274
    %v435 = vunpack.c.l.b16 %v275
    %v436 = vunpack.c.h.b16 %v275
    %v437 = vunpack.c.l.b16 %v276
    %v438 = vunpack.c.h.b16 %v276
    %v439 = vunpack.c.l.b16 %v277
    %v440 = vunpack.c.h.b16 %v277
    %v441 = vunpack.c.l.b16 %v278
    %v442 = vunpack.c.h.b16 %v278
    %v443 = vunpack.c.l.b16 %v279
    %v444 = vunpack.c.h.b16 %v279
    %v445 = vunpack.c.l.b16 %v280
    %v446 = vunpack.c.h.b16 %v280
    %v447 = vunpack.c.l.b16 %v281
    %v448 = vunpack.c.h.b16 %v281
    %v449 = vunpack.c.l.b16 %v282
    %v450 = vunpack.c.h.b16 %v282
    %v451 = vunpack.c.l.b16 %v283
    %v452 = vunpack.c.h.b16 %v283
    %v453 = vunpack.c.l.b16 %v284
    %v454 = vunpack.c.h.b16 %v284
    %v455 = vunpack.c.l.b16 %v285
    %v456 = vunpack.c.h.b16 %v285
    %v457 = vunpack.c.l.b16 %v286
    %v458 = vunpack.c.h.b16 %v286
    %v459 = vunpack.c.l.b16 %v287
    %v460 = vunpack.c.h.b16 %v287
    %v461 = vunpack.c.l.b16 %v288
    %v462 = vunpack.c.h.b16 %v288
    %v463 = vunpack.c.l.b16 %v289
    %v464 = vunpack.c.h.b16 %v289
    %v465 = vunpack.c.l.b16 %v290
    %v466 = vunpack.c.h.b16 %v290
    %v467 = vunpack.c.l.b16 %v291
    %v468 = vunpack.c.h.b16 %v291
    %v469 = vunpack.c.l.b16 %v292
    %v470 = vunpack.c.h.b16 %v292
    %v471 = vunpack.c.l.b16 %v293
    %v472 = vunpack.c.h.b16 %v293
    %v473 = vunpack.c.l.b16 %v294
    %v474 = vunpack.c.h.b16 %v294
    %v475 = vunpack.c.l.b16 %v295
    %v476 = vunpack.c.h.b16 %v295
    %v477 = vunpack.c.l.b16 %v296
    %v478 = vunpack.c.h.b16 %v296
    %v479 = vunpack.c.l.b16 %v297
    %v480 = vunpack.c.h.b16 %v297
    %v481 = vunpack.c.l.b16 %v298
    %v482 = vunpack.c.h.b16 %v298
    %v483 = vunpack.c.l.b16 %v299
    %v484 = vunpack.c.h.b16 %v299
    %v485 = vunpack.c.l.b16 %v300
    %v486 = vunpack.c.h.b16 %v300
    %v487 = vunpack.c.l.b16 %v301
    %v488 = vunpack.c.h.b16 %v301
    %v489 = vunpack.c.l.b16 %v302
    %v490 = vunpack.c.h.b16 %v302
    %v491 = vunpack.c.l.b16 %v303
    %v492 = vunpack.c.h.b16 %v303
    %v493 = vunpack.c.l.b16 %v304
    %v494 = vunpack.c.h.b16 %v304
    %v495 = vunpack.c.l.b16 %v305
    %v496 = vunpack.c.h.b16 %v305
    %v497 = vunpack.c.l.b16 %v306
    %v498 = vunpack.c.h.b16 %v306
    %v499 = vunpack.c.l.b16 %v307
    %v500 = vunpack.c.h.b16 %v307
    %v501 = vunpack.c.l.b16 %v308
    %v502 = vunpack.c.h.b16 %v308
    %v503 = vunpack.c.l.b16 %v309
    %v504 = vunpack.c.h.b16 %v309
    %v505 = vunpack.c.l.b16 %v310
    %v506 = vunpack.c.h.b16 %v310
    %v507 = vunpack.c.l.b16 %v311
    %v508 = vunpack.c.h.b16 %v311
    %v509 = vunpack.c.l.b16 %v312
    %v510 = vunpack.c.h.b16 %v312
    %v511 = vunpack.c.l.b16 %v313
    %v512 = vunpack.c.h.b16 %v313
    %v513 = vunpack.c.l.b16 %v314
    %v514 = vunpack.c.h.b16 %v314
    %v515 = vunpack.c.l.b16 %v315
    %v516 = vunpack.c.h.b16 %v315
    %v517 = vunpack.c.l.b16 %v316
    %v518 = vunpack.c.h.b16 %v316
    %v519 = vunpack.c.l.b16 %v317
    %v520 = vunpack.c.h.b16 %v317
    %v521 = vunpack.c.l.b16 %v318
    %v522 = vunpack.c.h.b16 %v318
    %v523 = vunpack.c.l.b16 %v319
    %v524 = vunpack.c.h.b16 %v319
    %v525 = vunpack.c.l.b16 %v320
    %v526 = vunpack.c.h.b16 %v320
    %v527 = vunpack.c.l.b16 %v321
    %v528 = vunpack.c.h.b16 %v321
    %v529 = vunpack.c.l.b16 %v322
    %v530 = vunpack.c.h.b16 %v322
    %v531 = vunpack.c.l.b16 %v323
    %v532 = vunpack.c.h.b16 %v323
    %v533 = vunpack.c.l.b16 %v324
    %v534 = vunpack.c.h.b16 %v324
    %v535 = vunpack.c.l.b16 %v325
    %v536 = vunpack.c.h.b16 %v325
    %v537 = vunpack.c.l.b16 %v326
    %v538 = vunpack.c.h.b16 %v326
    %v539 = vunpack.c.l.b16 %v327
    %v540 = vunpack.c.h.b16 %v327
    %v541 = vunpack.c.l.b16 %v328
    %v542 = vunpack.c.h.b16 %v328
    %v543 = vpack.c.b16 %v419, %v415
    %v544 = vpack.c.b16 %v420, %v416
    %v545 = vpack.c.b16 %v421, %v417
    %v546 = vpack.c.b16 %v422, %v418
    %v547 = vpack.c.b16 %v427, %v423
    %v548 = vpack.c.b16 %v428, %v424
    %v549 = vpack.c.b16 %v429, %v425
    %v550 = vpack.c.b16 %v430, %v426
    %v551 = vpack.c.b16 %v435, %v431
    %v552 = vpack.c.b16 %v436, %v432
    %v553 = vpack.c.b16 %v437, %v433
    %v554 = vpack.c.b16 %v438, %v434
    %v555 = vpack.c.b16 %v443, %v439
    %v556 = vpack.c.b16 %v444, %v440
    %v557 = vpack.c.b16 %v445, %v441
    %v558 = vpack.c.b16 %v446, %v442
    %v559 = vpack.c.b16 %v451, %v447
    %v560 = vpack.c.b16 %v452, %v448
    %v561 = vpack.c.b16 %v453, %v449
    %v562 = vpack.c.b16 %v454, %v450
    %v563 = vpack.c.b16 %v459, %v455
    %v564 = vpack.c.b16 %v460, %v456
    %v565 = vpack.c.b16 %v461, %v457
    %v566 = vpack.c.b16 %v462, %v458
    %v567 = vpack.c.b16 %v467, %v463
    %v568 = vpack.c.b16 %v468, %v464
    %v569 = vpack.c.b16 %v469, %v465
    %v570 = vpack.c.b16 %v470, %v466
    %v571 = vpack.c.b16 %v475, %v471
    %v572 = vpack.c.b16 %v476, %v472
    %v573 = vpack.c.b16 %v477, %v473
    %v574 = vpack.c.b16 %v478, %v474
    %v575 = vpack.c.b16 %v483, %v479
    %v576 = vpack.c.b16 %v484, %v480
    %v577 = vpack.c.b16 %v485, %v481
    %v578 = vpack.c.b16 %v486, %v482
    %v579 = vpack.c.b16 %v491, %v487
    %v580 = vpack.c.b16 %v492, %v488
    %v581 = vpack.c.b16 %v493, %v489
    %v582 = vpack.c.b16 %v494, %v490
    %v583 = vpack.c.b16 %v499, %v495
    %v584 = vpack.c.b16 %v500, %v496
    %v585 = vpack.c.b16 %v501, %v497
    %v586 = vpack.c.b16 %v502, %v498
    %v587 = vpack.c.b16 %v507, %v503
    %v588 = vpack.c.b16 %v508, %v504
    %v589 = vpack.c.b16 %v509, %v505
    %v590 = vpack.c.b16 %v510, %v506
    %v591 = vpack.c.b16 %v515, %v511
    %v592 = vpack.c.b16 %v516, %v512
    %v593 = vpack.c.b16 %v517, %v513
    %v594 = vpack.c.b16 %v518, %v514
    %v595 = vpack.c.b16 %v523, %v519
    %v596 = vpack.c.b16 %v524, %v520
    %v597 = vpack.c.b16 %v525, %v521
    %v598 = vpack.c.b16 %v526, %v522
    %v599 = vpack.c.b16 %v531, %v527
    %v600 = vpack.c.b16 %v532, %v528
    %v601 = vpack.c.b16 %v533, %v529
    %v602 = vpack.c.b16 %v534, %v530
    %v603 = vpack.c.b16 %v539, %v535
    %v604 = vpack.c.b16 %v540, %v536
    %v605 = vpack.c.b16 %v541, %v537
    %v606 = vpack.c.b16 %v542, %v538
    %671 = vmatprep.subr.bf16.mxu0 %v544
    %672 = vmatpush1.bf16.msra.mxu0 %v543
    %673 = vmatprep.subr.bf16.mxu0 %v548
    %674 = vmatpush1.bf16.msra.mxu0 %v547
    %675 = vmatprep.subr.bf16.mxu0 %v552
    %676 = vmatpush1.bf16.msra.mxu0 %v551
    %677 = vmatprep.subr.bf16.mxu0 %v556
    %678 = vmatpush1.bf16.msra.mxu0 %v555
    %679 = vmatprep.subr.bf16.mxu0 %v560
    %680 = vmatpush1.bf16.msra.mxu0 %v559
    %681 = vmatprep.subr.bf16.mxu0 %v564
    %682 = vmatpush1.bf16.msra.mxu0 %v563
    %683 = vmatprep.subr.bf16.mxu0 %v568
    %684 = vmatpush1.bf16.msra.mxu0 %v567
    %685 = vmatprep.subr.bf16.mxu0 %v572
    %686 = vmatpush1.bf16.msra.mxu0 %v571
    %687 = vmatprep.subr.bf16.mxu0 %v576
    %688 = vmatpush1.bf16.msra.mxu0 %v575
    %689 = vmatprep.subr.bf16.mxu0 %v580
    %690 = vmatpush1.bf16.msra.mxu0 %v579
    %691 = vmatprep.subr.bf16.mxu0 %v584
    %692 = vmatpush1.bf16.msra.mxu0 %v583
    %693 = vmatprep.subr.bf16.mxu0 %v588
    %694 = vmatpush1.bf16.msra.mxu0 %v587
    %695 = vmatprep.subr.bf16.mxu0 %v592
    %696 = vmatpush1.bf16.msra.mxu0 %v591
    %697 = vmatprep.subr.bf16.mxu0 %v596
    %698 = vmatpush1.bf16.msra.mxu0 %v595
    %699 = vmatprep.subr.bf16.mxu0 %v600
    %700 = vmatpush1.bf16.msra.mxu0 %v599
    %701 = vmatprep.subr.bf16.mxu0 %v604
    %702 = vmatpush1.bf16.msra.mxu0 %v603
    %703 = vmatprep.mubr.bf16.mxu0 %v264
    %704 = vmatmul.mubr.bf16.gmra.mrb[0].mxu0 %v263
    %v705 = vpop.f32.mrb[0].mxu0
    %v706 = vadd.f32 %v334, %v705
    %v707 = vpop.f32.mrb[0].mxu0
    %v708 = vadd.f32 %v338, %v707
    %v709 = vpop.f32.mrb[0].mxu0
    %v710 = vadd.f32 %v334, %v709
    %v711 = vpop.f32.mrb[0].mxu0
    %v712 = vadd.f32 %v338, %v711
    %713 = vdwg.mxu0
    %714 = vmatprep.subr.bf16.mxu0 %v546
    %715 = vmatpush1.bf16.msra.mxu0 %v545
    %716 = vmatprep.subr.bf16.mxu0 %v550
    %717 = vmatpush1.bf16.msra.mxu0 %v549
    %718 = vmatprep.subr.bf16.mxu0 %v554
    %719 = vmatpush1.bf16.msra.mxu0 %v553
    %720 = vmatprep.subr.bf16.mxu0 %v558
    %721 = vmatpush1.bf16.msra.mxu0 %v557
    %722 = vmatprep.subr.bf16.mxu0 %v562
    %723 = vmatpush1.bf16.msra.mxu0 %v561
    %724 = vmatprep.subr.bf16.mxu0 %v566
    %725 = vmatpush1.bf16.msra.mxu0 %v565
    %726 = vmatprep.subr.bf16.mxu0 %v570
    %727 = vmatpush1.bf16.msra.mxu0 %v569
    %728 = vmatprep.subr.bf16.mxu0 %v574
    %729 = vmatpush1.bf16.msra.mxu0 %v573
    %730 = vmatprep.subr.bf16.mxu0 %v578
    %731 = vmatpush1.bf16.msra.mxu0 %v577
    %732 = vmatprep.subr.bf16.mxu0 %v582
    %733 = vmatpush1.bf16.msra.mxu0 %v581
    %734 = vmatprep.subr.bf16.mxu0 %v586
    %735 = vmatpush1.bf16.msra.mxu0 %v585
    %736 = vmatprep.subr.bf16.mxu0 %v590
    %737 = vmatpush1.bf16.msra.mxu0 %v589
    %738 = vmatprep.subr.bf16.mxu0 %v594
    %739 = vmatpush1.bf16.msra.mxu0 %v593
    %740 = vmatprep.subr.bf16.mxu0 %v598
    %741 = vmatpush1.bf16.msra.mxu0 %v597
    %742 = vmatprep.subr.bf16.mxu0 %v602
    %743 = vmatpush1.bf16.msra.mxu0 %v601
    %744 = vmatprep.subr.bf16.mxu0 %v606
    %745 = vmatpush1.bf16.msra.mxu0 %v605
    %746 = vmatprep.mubr.bf16.mxu0 %v264
    %747 = vmatmul.mubr.bf16.gmra.mrb[0].mxu0 %v263
    %v748 = vpop.f32.mrb[0].mxu0
    %v749 = vadd.f32 %v342, %v748
    %v750 = vpop.f32.mrb[0].mxu0
    %v751 = vadd.f32 %v346, %v750
    %v752 = vpop.f32.mrb[0].mxu0
    %v753 = vadd.f32 %v342, %v752
    %v754 = vpop.f32.mrb[0].mxu0
    %v755 = vadd.f32 %v346, %v754
    %756 = vdwg.mxu0
    %v757 = vmax.f32 %v706, 0.0
    %v758 = vmax.f32 %v708, 0.0
    %v759 = vmax.f32 %v749, 0.0
    %v760 = vmax.f32 %v751, 0.0
    %v761 = vmax.f32 %v710, 0.0
    %v762 = vmax.f32 %v712, 0.0
    %v763 = vmax.f32 %v753, 0.0
    %v764 = vmax.f32 %v755, 0.0
    %v765 = vpack.c.bf16 %v761, %v757
    %v766 = vpack.c.bf16 %v762, %v758
    %v767 = vpack.c.bf16 %v763, %v759
    %v768 = vpack.c.bf16 %v764, %v760
    %v769 = vld [vmem:[#allocation9] sm:$0xff]
    %v770 = vld [vmem:[#allocation9 + $0x8] sm:$0xff]
    %v771 = vld [vmem:[#allocation9 + $0x10] sm:$0xff]
    %v772 = vld [vmem:[#allocation9 + $0x18] sm:$0xff]
    %v773 = vld [vmem:[#allocation9 + $0x20] sm:$0xff]
    %v774 = vld [vmem:[#allocation9 + $0x28] sm:$0xff]
    %v775 = vld [vmem:[#allocation9 + $0x30] sm:$0xff]
    %v776 = vld [vmem:[#allocation9 + $0x38] sm:$0xff]
    %v777 = vld [vmem:[#allocation9 + $0x40] sm:$0xff]
    %v778 = vld [vmem:[#allocation9 + $0x48] sm:$0xff]
    %v779 = vld [vmem:[#allocation9 + $0x50] sm:$0xff]
    %v780 = vld [vmem:[#allocation9 + $0x58] sm:$0xff]
    %v781 = vld [vmem:[#allocation9 + $0x60] sm:$0xff]
    %v782 = vld [vmem:[#allocation9 + $0x68] sm:$0xff]
    %v783 = vld [vmem:[#allocation9 + $0x70] sm:$0xff]
    %v784 = vld [vmem:[#allocation9 + $0x78] sm:$0xff]
    %v785 = vld [vmem:[#allocation9 + $0x80] sm:$0xff]
    %v786 = vld [vmem:[#allocation9 + $0x88] sm:$0xff]
    %v787 = vld [vmem:[#allocation9 + $0x90] sm:$0xff]
    %v788 = vld [vmem:[#allocation9 + $0x98] sm:$0xff]
    %v789 = vld [vmem:[#allocation9 + $0xa0] sm:$0xff]
    %v790 = vld [vmem:[#allocation9 + $0xa8] sm:$0xff]
    %v791 = vld [vmem:[#allocation9 + $0xb0] sm:$0xff]
    %v792 = vld [vmem:[#allocation9 + $0xb8] sm:$0xff]
    %v793 = vld [vmem:[#allocation9 + $0xc0] sm:$0xff]
    %v794 = vld [vmem:[#allocation9 + $0xc8] sm:$0xff]
    %v795 = vld [vmem:[#allocation9 + $0xd0] sm:$0xff]
    %v796 = vld [vmem:[#allocation9 + $0xd8] sm:$0xff]
    %v797 = vld [vmem:[#allocation9 + $0xe0] sm:$0xff]
    %v798 = vld [vmem:[#allocation9 + $0xe8] sm:$0xff]
    %v799 = vld [vmem:[#allocation9 + $0xf0] sm:$0xff]
    %v800 = vld [vmem:[#allocation9 + $0xf8] sm:$0xff]
    %v801 = vld [vmem:[#allocation9 + $0x100] sm:$0xff]
    %v802 = vld [vmem:[#allocation9 + $0x108] sm:$0xff]
    %v803 = vld [vmem:[#allocation9 + $0x110] sm:$0xff]
    %v804 = vld [vmem:[#allocation9 + $0x118] sm:$0xff]
    %v805 = vld [vmem:[#allocation9 + $0x120] sm:$0xff]
    %v806 = vld [vmem:[#allocation9 + $0x128] sm:$0xff]
    %v807 = vld [vmem:[#allocation9 + $0x130] sm:$0xff]
    %v808 = vld [vmem:[#allocation9 + $0x138] sm:$0xff]
    %v809 = vld [vmem:[#allocation9 + $0x140] sm:$0xff]
    %v810 = vld [vmem:[#allocation9 + $0x148] sm:$0xff]
    %v811 = vld [vmem:[#allocation9 + $0x150] sm:$0xff]
    %v812 = vld [vmem:[#allocation9 + $0x158] sm:$0xff]
    %v813 = vld [vmem:[#allocation9 + $0x160] sm:$0xff]
    %v814 = vld [vmem:[#allocation9 + $0x168] sm:$0xff]
    %v815 = vld [vmem:[#allocation9 + $0x170] sm:$0xff]
    %v816 = vld [vmem:[#allocation9 + $0x178] sm:$0xff]
    %v817 = vld [vmem:[#allocation9 + $0x180] sm:$0xff]
    %v818 = vld [vmem:[#allocation9 + $0x188] sm:$0xff]
    %v819 = vld [vmem:[#allocation9 + $0x190] sm:$0xff]
    %v820 = vld [vmem:[#allocation9 + $0x198] sm:$0xff]
    %v821 = vld [vmem:[#allocation9 + $0x1a0] sm:$0xff]
    %v822 = vld [vmem:[#allocation9 + $0x1a8] sm:$0xff]
    %v823 = vld [vmem:[#allocation9 + $0x1b0] sm:$0xff]
    %v824 = vld [vmem:[#allocation9 + $0x1b8] sm:$0xff]
    %v825 = vld [vmem:[#allocation9 + $0x1c0] sm:$0xff]
    %v826 = vld [vmem:[#allocation9 + $0x1c8] sm:$0xff]
    %v827 = vld [vmem:[#allocation9 + $0x1d0] sm:$0xff]
    %v828 = vld [vmem:[#allocation9 + $0x1d8] sm:$0xff]
    %v829 = vld [vmem:[#allocation9 + $0x1e0] sm:$0xff]
    %v830 = vld [vmem:[#allocation9 + $0x1e8] sm:$0xff]
    %v831 = vld [vmem:[#allocation9 + $0x1f0] sm:$0xff]
    %v832 = vld [vmem:[#allocation9 + $0x1f8] sm:$0xff]
    %v833 = vld [vmem:[#allocation9 + $0x200] sm:$0xff]
    %v834 = vld [vmem:[#allocation9 + $0x208] sm:$0xff]
    %v835 = vld [vmem:[#allocation9 + $0x210] sm:$0xff]
    %v836 = vld [vmem:[#allocation9 + $0x218] sm:$0xff]
    %v837 = vld [vmem:[#allocation9 + $0x220] sm:$0xff]
    %v838 = vld [vmem:[#allocation9 + $0x228] sm:$0xff]
    %v839 = vld [vmem:[#allocation9 + $0x230] sm:$0xff]
    %v840 = vld [vmem:[#allocation9 + $0x238] sm:$0xff]
    %v841 = vld [vmem:[#allocation9 + $0x240] sm:$0xff]
    %v842 = vld [vmem:[#allocation9 + $0x248] sm:$0xff]
    %v843 = vld [vmem:[#allocation9 + $0x250] sm:$0xff]
    %v844 = vld [vmem:[#allocation9 + $0x258] sm:$0xff]
    %v845 = vld [vmem:[#allocation9 + $0x260] sm:$0xff]
    %v846 = vld [vmem:[#allocation9 + $0x268] sm:$0xff]
    %v847 = vld [vmem:[#allocation9 + $0x270] sm:$0xff]
    %v848 = vld [vmem:[#allocation9 + $0x278] sm:$0xff]
    %v849 = vld [vmem:[#allocation9 + $0x280] sm:$0xff]
    %v850 = vld [vmem:[#allocation9 + $0x288] sm:$0xff]
    %v851 = vld [vmem:[#allocation9 + $0x290] sm:$0xff]
    %v852 = vld [vmem:[#allocation9 + $0x298] sm:$0xff]
    %v853 = vld [vmem:[#allocation9 + $0x2a0] sm:$0xff]
    %v854 = vld [vmem:[#allocation9 + $0x2a8] sm:$0xff]
    %v855 = vld [vmem:[#allocation9 + $0x2b0] sm:$0xff]
    %v856 = vld [vmem:[#allocation9 + $0x2b8] sm:$0xff]
    %v857 = vld [vmem:[#allocation9 + $0x2c0] sm:$0xff]
    %v858 = vld [vmem:[#allocation9 + $0x2c8] sm:$0xff]
    %v859 = vld [vmem:[#allocation9 + $0x2d0] sm:$0xff]
    %v860 = vld [vmem:[#allocation9 + $0x2d8] sm:$0xff]
    %v861 = vld [vmem:[#allocation9 + $0x2e0] sm:$0xff]
    %v862 = vld [vmem:[#allocation9 + $0x2e8] sm:$0xff]
    %v863 = vld [vmem:[#allocation9 + $0x2f0] sm:$0xff]
    %v864 = vld [vmem:[#allocation9 + $0x2f8] sm:$0xff]
    %v865 = vld [vmem:[#allocation9 + $0x300] sm:$0xff]
    %v866 = vld [vmem:[#allocation9 + $0x308] sm:$0xff]
    %v867 = vld [vmem:[#allocation9 + $0x310] sm:$0xff]
    %v868 = vld [vmem:[#allocation9 + $0x318] sm:$0xff]
    %v869 = vld [vmem:[#allocation9 + $0x320] sm:$0xff]
    %v870 = vld [vmem:[#allocation9 + $0x328] sm:$0xff]
    %v871 = vld [vmem:[#allocation9 + $0x330] sm:$0xff]
    %v872 = vld [vmem:[#allocation9 + $0x338] sm:$0xff]
    %v873 = vld [vmem:[#allocation9 + $0x340] sm:$0xff]
    %v874 = vld [vmem:[#allocation9 + $0x348] sm:$0xff]
    %v875 = vld [vmem:[#allocation9 + $0x350] sm:$0xff]
    %v876 = vld [vmem:[#allocation9 + $0x358] sm:$0xff]
    %v877 = vld [vmem:[#allocation9 + $0x360] sm:$0xff]
    %v878 = vld [vmem:[#allocation9 + $0x368] sm:$0xff]
    %v879 = vld [vmem:[#allocation9 + $0x370] sm:$0xff]
    %v880 = vld [vmem:[#allocation9 + $0x378] sm:$0xff]
    %v881 = vld [vmem:[#allocation9 + $0x380] sm:$0xff]
    %v882 = vld [vmem:[#allocation9 + $0x388] sm:$0xff]
    %v883 = vld [vmem:[#allocation9 + $0x390] sm:$0xff]
    %v884 = vld [vmem:[#allocation9 + $0x398] sm:$0xff]
    %v885 = vld [vmem:[#allocation9 + $0x3a0] sm:$0xff]
    %v886 = vld [vmem:[#allocation9 + $0x3a8] sm:$0xff]
    %v887 = vld [vmem:[#allocation9 + $0x3b0] sm:$0xff]
    %v888 = vld [vmem:[#allocation9 + $0x3b8] sm:$0xff]
    %v889 = vld [vmem:[#allocation9 + $0x3c0] sm:$0xff]
    %v890 = vld [vmem:[#allocation9 + $0x3c8] sm:$0xff]
    %v891 = vld [vmem:[#allocation9 + $0x3d0] sm:$0xff]
    %v892 = vld [vmem:[#allocation9 + $0x3d8] sm:$0xff]
    %v893 = vld [vmem:[#allocation9 + $0x3e0] sm:$0xff]
    %v894 = vld [vmem:[#allocation9 + $0x3e8] sm:$0xff]
    %v895 = vld [vmem:[#allocation9 + $0x3f0] sm:$0xff]
    %v896 = vld [vmem:[#allocation9 + $0x3f8] sm:$0xff]
    %v897 = vld [vmem:[%s6] sm:$0xf]
    %v899 = vlaneseq
    %v900 = vshrl.u32 %v899, 7
    %v901 = vsub.s32 0, %v900
    %v902 = vrot.slane %v897, %v901
    %v903 = vlaneseq
    %v904 = vshrl.u32 %v903, 7
    %v905 = vsub.s32 1, %v904
    %v906 = vrot.slane %v897, %v905
    %v907 = vlaneseq
    %v908 = vshrl.u32 %v907, 7
    %v909 = vsub.s32 2, %v908
    %v910 = vrot.slane %v897, %v909
    %v911 = vlaneseq
    %v912 = vshrl.u32 %v911, 7
    %v913 = vsub.s32 3, %v912
    %v914 = vrot.slane %v897, %v913
    %v1047 = vunpack.c.l.b16 %v769
    %v1048 = vunpack.c.h.b16 %v769
    %v1049 = vunpack.c.l.b16 %v770
    %v1050 = vunpack.c.h.b16 %v770
    %v1051 = vunpack.c.l.b16 %v771
    %v1052 = vunpack.c.h.b16 %v771
    %v1053 = vunpack.c.l.b16 %v772
    %v1054 = vunpack.c.h.b16 %v772
    %v1055 = vunpack.c.l.b16 %v773
    %v1056 = vunpack.c.h.b16 %v773
    %v1057 = vunpack.c.l.b16 %v774
    %v1058 = vunpack.c.h.b16 %v774
    %v1059 = vunpack.c.l.b16 %v775
    %v1060 = vunpack.c.h.b16 %v775
    %v1061 = vunpack.c.l.b16 %v776
    %v1062 = vunpack.c.h.b16 %v776
    %v1063 = vunpack.c.l.b16 %v777
    %v1064 = vunpack.c.h.b16 %v777
    %v1065 = vunpack.c.l.b16 %v778
    %v1066 = vunpack.c.h.b16 %v778
    %v1067 = vunpack.c.l.b16 %v779
    %v1068 = vunpack.c.h.b16 %v779
    %v1069 = vunpack.c.l.b16 %v780
    %v1070 = vunpack.c.h.b16 %v780
    %v1071 = vunpack.c.l.b16 %v781
    %v1072 = vunpack.c.h.b16 %v781
    %v1073 = vunpack.c.l.b16 %v782
    %v1074 = vunpack.c.h.b16 %v782
    %v1075 = vunpack.c.l.b16 %v783
    %v1076 = vunpack.c.h.b16 %v783
    %v1077 = vunpack.c.l.b16 %v784
    %v1078 = vunpack.c.h.b16 %v784
    %v1079 = vunpack.c.l.b16 %v785
    %v1080 = vunpack.c.h.b16 %v785
    %v1081 = vunpack.c.l.b16 %v786
    %v1082 = vunpack.c.h.b16 %v786
    %v1083 = vunpack.c.l.b16 %v787
    %v1084 = vunpack.c.h.b16 %v787
    %v1085 = vunpack.c.l.b16 %v788
    %v1086 = vunpack.c.h.b16 %v788
    %v1087 = vunpack.c.l.b16 %v789
    %v1088 = vunpack.c.h.b16 %v789
    %v1089 = vunpack.c.l.b16 %v790
    %v1090 = vunpack.c.h.b16 %v790
    %v1091 = vunpack.c.l.b16 %v791
    %v1092 = vunpack.c.h.b16 %v791
    %v1093 = vunpack.c.l.b16 %v792
    %v1094 = vunpack.c.h.b16 %v792
    %v1095 = vunpack.c.l.b16 %v793
    %v1096 = vunpack.c.h.b16 %v793
    %v1097 = vunpack.c.l.b16 %v794
    %v1098 = vunpack.c.h.b16 %v794
    %v1099 = vunpack.c.l.b16 %v795
    %v1100 = vunpack.c.h.b16 %v795
    %v1101 = vunpack.c.l.b16 %v796
    %v1102 = vunpack.c.h.b16 %v796
    %v1103 = vunpack.c.l.b16 %v797
    %v1104 = vunpack.c.h.b16 %v797
    %v1105 = vunpack.c.l.b16 %v798
    %v1106 = vunpack.c.h.b16 %v798
    %v1107 = vunpack.c.l.b16 %v799
    %v1108 = vunpack.c.h.b16 %v799
    %v1109 = vunpack.c.l.b16 %v800
    %v1110 = vunpack.c.h.b16 %v800
    %v1111 = vunpack.c.l.b16 %v801
    %v1112 = vunpack.c.h.b16 %v801
    %v1113 = vunpack.c.l.b16 %v802
    %v1114 = vunpack.c.h.b16 %v802
    %v1115 = vunpack.c.l.b16 %v803
    %v1116 = vunpack.c.h.b16 %v803
    %v1117 = vunpack.c.l.b16 %v804
    %v1118 = vunpack.c.h.b16 %v804
    %v1119 = vunpack.c.l.b16 %v805
    %v1120 = vunpack.c.h.b16 %v805
    %v1121 = vunpack.c.l.b16 %v806
    %v1122 = vunpack.c.h.b16 %v806
    %v1123 = vunpack.c.l.b16 %v807
    %v1124 = vunpack.c.h.b16 %v807
    %v1125 = vunpack.c.l.b16 %v808
    %v1126 = vunpack.c.h.b16 %v808
    %v1127 = vunpack.c.l.b16 %v809
    %v1128 = vunpack.c.h.b16 %v809
    %v1129 = vunpack.c.l.b16 %v810
    %v1130 = vunpack.c.h.b16 %v810
    %v1131 = vunpack.c.l.b16 %v811
    %v1132 = vunpack.c.h.b16 %v811
    %v1133 = vunpack.c.l.b16 %v812
    %v1134 = vunpack.c.h.b16 %v812
    %v1135 = vunpack.c.l.b16 %v813
    %v1136 = vunpack.c.h.b16 %v813
    %v1137 = vunpack.c.l.b16 %v814
    %v1138 = vunpack.c.h.b16 %v814
    %v1139 = vunpack.c.l.b16 %v815
    %v1140 = vunpack.c.h.b16 %v815
    %v1141 = vunpack.c.l.b16 %v816
    %v1142 = vunpack.c.h.b16 %v816
    %v1143 = vunpack.c.l.b16 %v817
    %v1144 = vunpack.c.h.b16 %v817
    %v1145 = vunpack.c.l.b16 %v818
    %v1146 = vunpack.c.h.b16 %v818
    %v1147 = vunpack.c.l.b16 %v819
    %v1148 = vunpack.c.h.b16 %v819
    %v1149 = vunpack.c.l.b16 %v820
    %v1150 = vunpack.c.h.b16 %v820
    %v1151 = vunpack.c.l.b16 %v821
    %v1152 = vunpack.c.h.b16 %v821
    %v1153 = vunpack.c.l.b16 %v822
    %v1154 = vunpack.c.h.b16 %v822
    %v1155 = vunpack.c.l.b16 %v823
    %v1156 = vunpack.c.h.b16 %v823
    %v1157 = vunpack.c.l.b16 %v824
    %v1158 = vunpack.c.h.b16 %v824
    %v1159 = vunpack.c.l.b16 %v825
    %v1160 = vunpack.c.h.b16 %v825
    %v1161 = vunpack.c.l.b16 %v826
    %v1162 = vunpack.c.h.b16 %v826
    %v1163 = vunpack.c.l.b16 %v827
    %v1164 = vunpack.c.h.b16 %v827
    %v1165 = vunpack.c.l.b16 %v828
    %v1166 = vunpack.c.h.b16 %v828
    %v1167 = vunpack.c.l.b16 %v829
    %v1168 = vunpack.c.h.b16 %v829
    %v1169 = vunpack.c.l.b16 %v830
    %v1170 = vunpack.c.h.b16 %v830
    %v1171 = vunpack.c.l.b16 %v831
    %v1172 = vunpack.c.h.b16 %v831
    %v1173 = vunpack.c.l.b16 %v832
    %v1174 = vunpack.c.h.b16 %v832
    %v1175 = vunpack.c.l.b16 %v833
    %v1176 = vunpack.c.h.b16 %v833
    %v1177 = vunpack.c.l.b16 %v834
    %v1178 = vunpack.c.h.b16 %v834
    %v1179 = vunpack.c.l.b16 %v835
    %v1180 = vunpack.c.h.b16 %v835
    %v1181 = vunpack.c.l.b16 %v836
    %v1182 = vunpack.c.h.b16 %v836
    %v1183 = vunpack.c.l.b16 %v837
    %v1184 = vunpack.c.h.b16 %v837
    %v1185 = vunpack.c.l.b16 %v838
    %v1186 = vunpack.c.h.b16 %v838
    %v1187 = vunpack.c.l.b16 %v839
    %v1188 = vunpack.c.h.b16 %v839
    %v1189 = vunpack.c.l.b16 %v840
    %v1190 = vunpack.c.h.b16 %v840
    %v1191 = vunpack.c.l.b16 %v841
    %v1192 = vunpack.c.h.b16 %v841
    %v1193 = vunpack.c.l.b16 %v842
    %v1194 = vunpack.c.h.b16 %v842
    %v1195 = vunpack.c.l.b16 %v843
    %v1196 = vunpack.c.h.b16 %v843
    %v1197 = vunpack.c.l.b16 %v844
    %v1198 = vunpack.c.h.b16 %v844
    %v1199 = vunpack.c.l.b16 %v845
    %v1200 = vunpack.c.h.b16 %v845
    %v1201 = vunpack.c.l.b16 %v846
    %v1202 = vunpack.c.h.b16 %v846
    %v1203 = vunpack.c.l.b16 %v847
    %v1204 = vunpack.c.h.b16 %v847
    %v1205 = vunpack.c.l.b16 %v848
    %v1206 = vunpack.c.h.b16 %v848
    %v1207 = vunpack.c.l.b16 %v849
    %v1208 = vunpack.c.h.b16 %v849
    %v1209 = vunpack.c.l.b16 %v850
    %v1210 = vunpack.c.h.b16 %v850
    %v1211 = vunpack.c.l.b16 %v851
    %v1212 = vunpack.c.h.b16 %v851
    %v1213 = vunpack.c.l.b16 %v852
    %v1214 = vunpack.c.h.b16 %v852
    %v1215 = vunpack.c.l.b16 %v853
    %v1216 = vunpack.c.h.b16 %v853
    %v1217 = vunpack.c.l.b16 %v854
    %v1218 = vunpack.c.h.b16 %v854
    %v1219 = vunpack.c.l.b16 %v855
    %v1220 = vunpack.c.h.b16 %v855
    %v1221 = vunpack.c.l.b16 %v856
    %v1222 = vunpack.c.h.b16 %v856
    %v1223 = vunpack.c.l.b16 %v857
    %v1224 = vunpack.c.h.b16 %v857
    %v1225 = vunpack.c.l.b16 %v858
    %v1226 = vunpack.c.h.b16 %v858
    %v1227 = vunpack.c.l.b16 %v859
    %v1228 = vunpack.c.h.b16 %v859
    %v1229 = vunpack.c.l.b16 %v860
    %v1230 = vunpack.c.h.b16 %v860
    %v1231 = vunpack.c.l.b16 %v861
    %v1232 = vunpack.c.h.b16 %v861
    %v1233 = vunpack.c.l.b16 %v862
    %v1234 = vunpack.c.h.b16 %v862
    %v1235 = vunpack.c.l.b16 %v863
    %v1236 = vunpack.c.h.b16 %v863
    %v1237 = vunpack.c.l.b16 %v864
    %v1238 = vunpack.c.h.b16 %v864
    %v1239 = vunpack.c.l.b16 %v865
    %v1240 = vunpack.c.h.b16 %v865
    %v1241 = vunpack.c.l.b16 %v866
    %v1242 = vunpack.c.h.b16 %v866
    %v1243 = vunpack.c.l.b16 %v867
    %v1244 = vunpack.c.h.b16 %v867
    %v1245 = vunpack.c.l.b16 %v868
    %v1246 = vunpack.c.h.b16 %v868
    %v1247 = vunpack.c.l.b16 %v869
    %v1248 = vunpack.c.h.b16 %v869
    %v1249 = vunpack.c.l.b16 %v870
    %v1250 = vunpack.c.h.b16 %v870
    %v1251 = vunpack.c.l.b16 %v871
    %v1252 = vunpack.c.h.b16 %v871
    %v1253 = vunpack.c.l.b16 %v872
    %v1254 = vunpack.c.h.b16 %v872
    %v1255 = vunpack.c.l.b16 %v873
    %v1256 = vunpack.c.h.b16 %v873
    %v1257 = vunpack.c.l.b16 %v874
    %v1258 = vunpack.c.h.b16 %v874
    %v1259 = vunpack.c.l.b16 %v875
    %v1260 = vunpack.c.h.b16 %v875
    %v1261 = vunpack.c.l.b16 %v876
    %v1262 = vunpack.c.h.b16 %v876
    %v1263 = vunpack.c.l.b16 %v877
    %v1264 = vunpack.c.h.b16 %v877
    %v1265 = vunpack.c.l.b16 %v878
    %v1266 = vunpack.c.h.b16 %v878
    %v1267 = vunpack.c.l.b16 %v879
    %v1268 = vunpack.c.h.b16 %v879
    %v1269 = vunpack.c.l.b16 %v880
    %v1270 = vunpack.c.h.b16 %v880
    %v1271 = vunpack.c.l.b16 %v881
    %v1272 = vunpack.c.h.b16 %v881
    %v1273 = vunpack.c.l.b16 %v882
    %v1274 = vunpack.c.h.b16 %v882
    %v1275 = vunpack.c.l.b16 %v883
    %v1276 = vunpack.c.h.b16 %v883
    %v1277 = vunpack.c.l.b16 %v884
    %v1278 = vunpack.c.h.b16 %v884
    %v1279 = vunpack.c.l.b16 %v885
    %v1280 = vunpack.c.h.b16 %v885
    %v1281 = vunpack.c.l.b16 %v886
    %v1282 = vunpack.c.h.b16 %v886
    %v1283 = vunpack.c.l.b16 %v887
    %v1284 = vunpack.c.h.b16 %v887
    %v1285 = vunpack.c.l.b16 %v888
    %v1286 = vunpack.c.h.b16 %v888
    %v1287 = vunpack.c.l.b16 %v889
    %v1288 = vunpack.c.h.b16 %v889
    %v1289 = vunpack.c.l.b16 %v890
    %v1290 = vunpack.c.h.b16 %v890
    %v1291 = vunpack.c.l.b16 %v891
    %v1292 = vunpack.c.h.b16 %v891
    %v1293 = vunpack.c.l.b16 %v892
    %v1294 = vunpack.c.h.b16 %v892
    %v1295 = vunpack.c.l.b16 %v893
    %v1296 = vunpack.c.h.b16 %v893
    %v1297 = vunpack.c.l.b16 %v894
    %v1298 = vunpack.c.h.b16 %v894
    %v1299 = vunpack.c.l.b16 %v895
    %v1300 = vunpack.c.h.b16 %v895
    %v1301 = vunpack.c.l.b16 %v896
    %v1302 = vunpack.c.h.b16 %v896
    %v1303 = vpack.c.b16 %v1051, %v1047
    %v1304 = vpack.c.b16 %v1052, %v1048
    %v1305 = vpack.c.b16 %v1053, %v1049
    %v1306 = vpack.c.b16 %v1054, %v1050
    %v1307 = vpack.c.b16 %v1059, %v1055
    %v1308 = vpack.c.b16 %v1060, %v1056
    %v1309 = vpack.c.b16 %v1061, %v1057
    %v1310 = vpack.c.b16 %v1062, %v1058
    %v1311 = vpack.c.b16 %v1067, %v1063
    %v1312 = vpack.c.b16 %v1068, %v1064
    %v1313 = vpack.c.b16 %v1069, %v1065
    %v1314 = vpack.c.b16 %v1070, %v1066
    %v1315 = vpack.c.b16 %v1075, %v1071
    %v1316 = vpack.c.b16 %v1076, %v1072
    %v1317 = vpack.c.b16 %v1077, %v1073
    %v1318 = vpack.c.b16 %v1078, %v1074
    %v1319 = vpack.c.b16 %v1083, %v1079
    %v1320 = vpack.c.b16 %v1084, %v1080
    %v1321 = vpack.c.b16 %v1085, %v1081
    %v1322 = vpack.c.b16 %v1086, %v1082
    %v1323 = vpack.c.b16 %v1091, %v1087
    %v1324 = vpack.c.b16 %v1092, %v1088
    %v1325 = vpack.c.b16 %v1093, %v1089
    %v1326 = vpack.c.b16 %v1094, %v1090
    %v1327 = vpack.c.b16 %v1099, %v1095
    %v1328 = vpack.c.b16 %v1100, %v1096
    %v1329 = vpack.c.b16 %v1101, %v1097
    %v1330 = vpack.c.b16 %v1102, %v1098
    %v1331 = vpack.c.b16 %v1107, %v1103
    %v1332 = vpack.c.b16 %v1108, %v1104
    %v1333 = vpack.c.b16 %v1109, %v1105
    %v1334 = vpack.c.b16 %v1110, %v1106
    %v1335 = vpack.c.b16 %v1115, %v1111
    %v1336 = vpack.c.b16 %v1116, %v1112
    %v1337 = vpack.c.b16 %v1117, %v1113
    %v1338 = vpack.c.b16 %v1118, %v1114
    %v1339 = vpack.c.b16 %v1123, %v1119
    %v1340 = vpack.c.b16 %v1124, %v1120
    %v1341 = vpack.c.b16 %v1125, %v1121
    %v1342 = vpack.c.b16 %v1126, %v1122
    %v1343 = vpack.c.b16 %v1131, %v1127
    %v1344 = vpack.c.b16 %v1132, %v1128
    %v1345 = vpack.c.b16 %v1133, %v1129
    %v1346 = vpack.c.b16 %v1134, %v1130
    %v1347 = vpack.c.b16 %v1139, %v1135
    %v1348 = vpack.c.b16 %v1140, %v1136
    %v1349 = vpack.c.b16 %v1141, %v1137
    %v1350 = vpack.c.b16 %v1142, %v1138
    %v1351 = vpack.c.b16 %v1147, %v1143
    %v1352 = vpack.c.b16 %v1148, %v1144
    %v1353 = vpack.c.b16 %v1149, %v1145
    %v1354 = vpack.c.b16 %v1150, %v1146
    %v1355 = vpack.c.b16 %v1155, %v1151
    %v1356 = vpack.c.b16 %v1156, %v1152
    %v1357 = vpack.c.b16 %v1157, %v1153
    %v1358 = vpack.c.b16 %v1158, %v1154
    %v1359 = vpack.c.b16 %v1163, %v1159
    %v1360 = vpack.c.b16 %v1164, %v1160
    %v1361 = vpack.c.b16 %v1165, %v1161
    %v1362 = vpack.c.b16 %v1166, %v1162
    %v1363 = vpack.c.b16 %v1171, %v1167
    %v1364 = vpack.c.b16 %v1172, %v1168
    %v1365 = vpack.c.b16 %v1173, %v1169
    %v1366 = vpack.c.b16 %v1174, %v1170
    %v1367 = vpack.c.b16 %v1179, %v1175
    %v1368 = vpack.c.b16 %v1180, %v1176
    %v1369 = vpack.c.b16 %v1181, %v1177
    %v1370 = vpack.c.b16 %v1182, %v1178
    %v1371 = vpack.c.b16 %v1187, %v1183
    %v1372 = vpack.c.b16 %v1188, %v1184
    %v1373 = vpack.c.b16 %v1189, %v1185
    %v1374 = vpack.c.b16 %v1190, %v1186
    %v1375 = vpack.c.b16 %v1195, %v1191
    %v1376 = vpack.c.b16 %v1196, %v1192
    %v1377 = vpack.c.b16 %v1197, %v1193
    %v1378 = vpack.c.b16 %v1198, %v1194
    %v1379 = vpack.c.b16 %v1203, %v1199
    %v1380 = vpack.c.b16 %v1204, %v1200
    %v1381 = vpack.c.b16 %v1205, %v1201
    %v1382 = vpack.c.b16 %v1206, %v1202
    %v1383 = vpack.c.b16 %v1211, %v1207
    %v1384 = vpack.c.b16 %v1212, %v1208
    %v1385 = vpack.c.b16 %v1213, %v1209
    %v1386 = vpack.c.b16 %v1214, %v1210
    %v1387 = vpack.c.b16 %v1219, %v1215
    %v1388 = vpack.c.b16 %v1220, %v1216
    %v1389 = vpack.c.b16 %v1221, %v1217
    %v1390 = vpack.c.b16 %v1222, %v1218
    %v1391 = vpack.c.b16 %v1227, %v1223
    %v1392 = vpack.c.b16 %v1228, %v1224
    %v1393 = vpack.c.b16 %v1229, %v1225
    %v1394 = vpack.c.b16 %v1230, %v1226
    %v1395 = vpack.c.b16 %v1235, %v1231
    %v1396 = vpack.c.b16 %v1236, %v1232
    %v1397 = vpack.c.b16 %v1237, %v1233
    %v1398 = vpack.c.b16 %v1238, %v1234
    %v1399 = vpack.c.b16 %v1243, %v1239
    %v1400 = vpack.c.b16 %v1244, %v1240
    %v1401 = vpack.c.b16 %v1245, %v1241
    %v1402 = vpack.c.b16 %v1246, %v1242
    %v1403 = vpack.c.b16 %v1251, %v1247
    %v1404 = vpack.c.b16 %v1252, %v1248
    %v1405 = vpack.c.b16 %v1253, %v1249
    %v1406 = vpack.c.b16 %v1254, %v1250
    %v1407 = vpack.c.b16 %v1259, %v1255
    %v1408 = vpack.c.b16 %v1260, %v1256
    %v1409 = vpack.c.b16 %v1261, %v1257
    %v1410 = vpack.c.b16 %v1262, %v1258
    %v1411 = vpack.c.b16 %v1267, %v1263
    %v1412 = vpack.c.b16 %v1268, %v1264
    %v1413 = vpack.c.b16 %v1269, %v1265
    %v1414 = vpack.c.b16 %v1270, %v1266
    %v1415 = vpack.c.b16 %v1275, %v1271
    %v1416 = vpack.c.b16 %v1276, %v1272
    %v1417 = vpack.c.b16 %v1277, %v1273
    %v1418 = vpack.c.b16 %v1278, %v1274
    %v1419 = vpack.c.b16 %v1283, %v1279
    %v1420 = vpack.c.b16 %v1284, %v1280
    %v1421 = vpack.c.b16 %v1285, %v1281
    %v1422 = vpack.c.b16 %v1286, %v1282
    %v1423 = vpack.c.b16 %v1291, %v1287
    %v1424 = vpack.c.b16 %v1292, %v1288
    %v1425 = vpack.c.b16 %v1293, %v1289
    %v1426 = vpack.c.b16 %v1294, %v1290
    %v1427 = vpack.c.b16 %v1299, %v1295
    %v1428 = vpack.c.b16 %v1300, %v1296
    %v1429 = vpack.c.b16 %v1301, %v1297
    %v1430 = vpack.c.b16 %v1302, %v1298
    %1559 = vmatprep.subr.bf16.mxu0 %v1304
    %1560 = vmatpush1.bf16.msra.mxu0 %v1303
    %1561 = vmatprep.subr.bf16.mxu0 %v1308
    %1562 = vmatpush1.bf16.msra.mxu0 %v1307
    %1563 = vmatprep.subr.bf16.mxu0 %v1312
    %1564 = vmatpush1.bf16.msra.mxu0 %v1311
    %1565 = vmatprep.subr.bf16.mxu0 %v1316
    %1566 = vmatpush1.bf16.msra.mxu0 %v1315
    %1567 = vmatprep.subr.bf16.mxu0 %v1320
    %1568 = vmatpush1.bf16.msra.mxu0 %v1319
    %1569 = vmatprep.subr.bf16.mxu0 %v1324
    %1570 = vmatpush1.bf16.msra.mxu0 %v1323
    %1571 = vmatprep.subr.bf16.mxu0 %v1328
    %1572 = vmatpush1.bf16.msra.mxu0 %v1327
    %1573 = vmatprep.subr.bf16.mxu0 %v1332
    %1574 = vmatpush1.bf16.msra.mxu0 %v1331
    %1575 = vmatprep.subr.bf16.mxu0 %v1336
    %1576 = vmatpush1.bf16.msra.mxu0 %v1335
    %1577 = vmatprep.subr.bf16.mxu0 %v1340
    %1578 = vmatpush1.bf16.msra.mxu0 %v1339
    %1579 = vmatprep.subr.bf16.mxu0 %v1344
    %1580 = vmatpush1.bf16.msra.mxu0 %v1343
    %1581 = vmatprep.subr.bf16.mxu0 %v1348
    %1582 = vmatpush1.bf16.msra.mxu0 %v1347
    %1583 = vmatprep.subr.bf16.mxu0 %v1352
    %1584 = vmatpush1.bf16.msra.mxu0 %v1351
    %1585 = vmatprep.subr.bf16.mxu0 %v1356
    %1586 = vmatpush1.bf16.msra.mxu0 %v1355
    %1587 = vmatprep.subr.bf16.mxu0 %v1360
    %1588 = vmatpush1.bf16.msra.mxu0 %v1359
    %1589 = vmatprep.subr.bf16.mxu0 %v1364
    %1590 = vmatpush1.bf16.msra.mxu0 %v1363
    %1591 = vmatprep.mubr.bf16.mxu0 %v766
    %1592 = vmatmul.mubr.bf16.gmra.mrb[0].mxu0 %v765
    %v1593 = vpop.f32.mrb[0].mxu0
    %v1594 = vadd.f32 %v902, %v1593
    %v1595 = vpop.f32.mrb[0].mxu0
    %v1596 = vadd.f32 %v906, %v1595
    %v1597 = vpop.f32.mrb[0].mxu0
    %v1598 = vadd.f32 %v902, %v1597
    %v1599 = vpop.f32.mrb[0].mxu0
    %v1600 = vadd.f32 %v906, %v1599
    %1601 = vdwg.mxu0
    %1602 = vmatprep.subr.bf16.mxu0 %v1368
    %1603 = vmatpush1.bf16.msra.mxu0 %v1367
    %1604 = vmatprep.subr.bf16.mxu0 %v1372
    %1605 = vmatpush1.bf16.msra.mxu0 %v1371
    %1606 = vmatprep.subr.bf16.mxu0 %v1376
    %1607 = vmatpush1.bf16.msra.mxu0 %v1375
    %1608 = vmatprep.subr.bf16.mxu0 %v1380
    %1609 = vmatpush1.bf16.msra.mxu0 %v1379
    %1610 = vmatprep.subr.bf16.mxu0 %v1384
    %1611 = vmatpush1.bf16.msra.mxu0 %v1383
    %1612 = vmatprep.subr.bf16.mxu0 %v1388
    %1613 = vmatpush1.bf16.msra.mxu0 %v1387
    %1614 = vmatprep.subr.bf16.mxu0 %v1392
    %1615 = vmatpush1.bf16.msra.mxu0 %v1391
    %1616 = vmatprep.subr.bf16.mxu0 %v1396
    %1617 = vmatpush1.bf16.msra.mxu0 %v1395
    %1618 = vmatprep.subr.bf16.mxu0 %v1400
    %1619 = vmatpush1.bf16.msra.mxu0 %v1399
    %1620 = vmatprep.subr.bf16.mxu0 %v1404
    %1621 = vmatpush1.bf16.msra.mxu0 %v1403
    %1622 = vmatprep.subr.bf16.mxu0 %v1408
    %1623 = vmatpush1.bf16.msra.mxu0 %v1407
    %1624 = vmatprep.subr.bf16.mxu0 %v1412
    %1625 = vmatpush1.bf16.msra.mxu0 %v1411
    %1626 = vmatprep.subr.bf16.mxu0 %v1416
    %1627 = vmatpush1.bf16.msra.mxu0 %v1415
    %1628 = vmatprep.subr.bf16.mxu0 %v1420
    %1629 = vmatpush1.bf16.msra.mxu0 %v1419
    %1630 = vmatprep.subr.bf16.mxu0 %v1424
    %1631 = vmatpush1.bf16.msra.mxu0 %v1423
    %1632 = vmatprep.subr.bf16.mxu0 %v1428
    %1633 = vmatpush1.bf16.msra.mxu0 %v1427
    %1634 = vmatprep.mubr.bf16.mxu0 %v768
    %1635 = vmatmul.mubr.bf16.gmra.mrb[0].mxu0 %v767
    %v1636 = vpop.f32.mrb[0].mxu0
    %v1637 = vadd.f32 %v1594, %v1636
    %v1638 = vpop.f32.mrb[0].mxu0
    %v1639 = vadd.f32 %v1596, %v1638
    %v1640 = vpop.f32.mrb[0].mxu0
    %v1641 = vadd.f32 %v1598, %v1640
    %v1642 = vpop.f32.mrb[0].mxu0
    %v1643 = vadd.f32 %v1600, %v1642
    %1644 = vdwg.mxu0
    %1645 = vmatprep.subr.bf16.mxu0 %v1306
    %1646 = vmatpush1.bf16.msra.mxu0 %v1305
    %1647 = vmatprep.subr.bf16.mxu0 %v1310
    %1648 = vmatpush1.bf16.msra.mxu0 %v1309
    %1649 = vmatprep.subr.bf16.mxu0 %v1314
    %1650 = vmatpush1.bf16.msra.mxu0 %v1313
    %1651 = vmatprep.subr.bf16.mxu0 %v1318
    %1652 = vmatpush1.bf16.msra.mxu0 %v1317
    %1653 = vmatprep.subr.bf16.mxu0 %v1322
    %1654 = vmatpush1.bf16.msra.mxu0 %v1321
    %1655 = vmatprep.subr.bf16.mxu0 %v1326
    %1656 = vmatpush1.bf16.msra.mxu0 %v1325
    %1657 = vmatprep.subr.bf16.mxu0 %v1330
    %1658 = vmatpush1.bf16.msra.mxu0 %v1329
    %1659 = vmatprep.subr.bf16.mxu0 %v1334
    %1660 = vmatpush1.bf16.msra.mxu0 %v1333
    %1661 = vmatprep.subr.bf16.mxu0 %v1338
    %1662 = vmatpush1.bf16.msra.mxu0 %v1337
    %1663 = vmatprep.subr.bf16.mxu0 %v1342
    %1664 = vmatpush1.bf16.msra.mxu0 %v1341
    %1665 = vmatprep.subr.bf16.mxu0 %v1346
    %1666 = vmatpush1.bf16.msra.mxu0 %v1345
    %1667 = vmatprep.subr.bf16.mxu0 %v1350
    %1668 = vmatpush1.bf16.msra.mxu0 %v1349
    %1669 = vmatprep.subr.bf16.mxu0 %v1354
    %1670 = vmatpush1.bf16.msra.mxu0 %v1353
    %1671 = vmatprep.subr.bf16.mxu0 %v1358
    %1672 = vmatpush1.bf16.msra.mxu0 %v1357
    %1673 = vmatprep.subr.bf16.mxu0 %v1362
    %1674 = vmatpush1.bf16.msra.mxu0 %v1361
    %1675 = vmatprep.subr.bf16.mxu0 %v1366
    %1676 = vmatpush1.bf16.msra.mxu0 %v1365
    %1677 = vmatprep.mubr.bf16.mxu0 %v766
    %1678 = vmatmul.mubr.bf16.gmra.mrb[0].mxu0 %v765
    %v1679 = vpop.f32.mrb[0].mxu0
    %v1680 = vadd.f32 %v910, %v1679
    %v1681 = vpop.f32.mrb[0].mxu0
    %v1682 = vadd.f32 %v914, %v1681
    %v1683 = vpop.f32.mrb[0].mxu0
    %v1684 = vadd.f32 %v910, %v1683
    %v1685 = vpop.f32.mrb[0].mxu0
    %v1686 = vadd.f32 %v914, %v1685
    %1687 = vdwg.mxu0
    %1688 = vmatprep.subr.bf16.mxu0 %v1370
    %1689 = vmatpush1.bf16.msra.mxu0 %v1369
    %1690 = vmatprep.subr.bf16.mxu0 %v1374
    %1691 = vmatpush1.bf16.msra.mxu0 %v1373
    %1692 = vmatprep.subr.bf16.mxu0 %v1378
    %1693 = vmatpush1.bf16.msra.mxu0 %v1377
    %1694 = vmatprep.subr.bf16.mxu0 %v1382
    %1695 = vmatpush1.bf16.msra.mxu0 %v1381
    %1696 = vmatprep.subr.bf16.mxu0 %v1386
    %1697 = vmatpush1.bf16.msra.mxu0 %v1385
    %1698 = vmatprep.subr.bf16.mxu0 %v1390
    %1699 = vmatpush1.bf16.msra.mxu0 %v1389
    %1700 = vmatprep.subr.bf16.mxu0 %v1394
    %1701 = vmatpush1.bf16.msra.mxu0 %v1393
    %1702 = vmatprep.subr.bf16.mxu0 %v1398
    %1703 = vmatpush1.bf16.msra.mxu0 %v1397
    %1704 = vmatprep.subr.bf16.mxu0 %v1402
    %1705 = vmatpush1.bf16.msra.mxu0 %v1401
    %1706 = vmatprep.subr.bf16.mxu0 %v1406
    %1707 = vmatpush1.bf16.msra.mxu0 %v1405
    %1708 = vmatprep.subr.bf16.mxu0 %v1410
    %1709 = vmatpush1.bf16.msra.mxu0 %v1409
    %1710 = vmatprep.subr.bf16.mxu0 %v1414
    %1711 = vmatpush1.bf16.msra.mxu0 %v1413
    %1712 = vmatprep.subr.bf16.mxu0 %v1418
    %1713 = vmatpush1.bf16.msra.mxu0 %v1417
    %1714 = vmatprep.subr.bf16.mxu0 %v1422
    %1715 = vmatpush1.bf16.msra.mxu0 %v1421
    %1716 = vmatprep.subr.bf16.mxu0 %v1426
    %1717 = vmatpush1.bf16.msra.mxu0 %v1425
    %1718 = vmatprep.subr.bf16.mxu0 %v1430
    %1719 = vmatpush1.bf16.msra.mxu0 %v1429
    %1720 = vmatprep.mubr.bf16.mxu0 %v768
    %1721 = vmatmul.mubr.bf16.gmra.mrb[0].mxu0 %v767
    %v1722 = vpop.f32.mrb[0].mxu0
    %v1723 = vadd.f32 %v1680, %v1722
    %v1724 = vpop.f32.mrb[0].mxu0
    %v1725 = vadd.f32 %v1682, %v1724
    %v1726 = vpop.f32.mrb[0].mxu0
    %v1727 = vadd.f32 %v1684, %v1726
    %v1728 = vpop.f32.mrb[0].mxu0
    %v1729 = vadd.f32 %v1686, %v1728
    %1730 = vdwg.mxu0
    %v1731 = vld [vmem:[#allocation11] sm:$0xff]
    %v1732 = vld [vmem:[#allocation11 + $0x8] sm:$0xff]
    %v1733 = vld [vmem:[#allocation11 + $0x10] sm:$0xff]
    %v1734 = vld [vmem:[#allocation11 + $0x18] sm:$0xff]
    %v1735 = vld [vmem:[#allocation11 + $0x20] sm:$0xff]
    %v1736 = vld [vmem:[#allocation11 + $0x28] sm:$0xff]
    %v1737 = vld [vmem:[#allocation11 + $0x30] sm:$0xff]
    %v1738 = vld [vmem:[#allocation11 + $0x38] sm:$0xff]
    %v1739 = vld [vmem:[#allocation11 + $0x40] sm:$0xff]
    %v1740 = vld [vmem:[#allocation11 + $0x48] sm:$0xff]
    %v1741 = vld [vmem:[#allocation11 + $0x50] sm:$0xff]
    %v1742 = vld [vmem:[#allocation11 + $0x58] sm:$0xff]
    %v1743 = vld [vmem:[#allocation11 + $0x60] sm:$0xff]
    %v1744 = vld [vmem:[#allocation11 + $0x68] sm:$0xff]
    %v1745 = vld [vmem:[#allocation11 + $0x70] sm:$0xff]
    %v1746 = vld [vmem:[#allocation11 + $0x78] sm:$0xff]
    %v1747 = vld [vmem:[#allocation11 + $0x80] sm:$0xff]
    %v1748 = vld [vmem:[#allocation11 + $0x88] sm:$0xff]
    %v1749 = vld [vmem:[#allocation11 + $0x90] sm:$0xff]
    %v1750 = vld [vmem:[#allocation11 + $0x98] sm:$0xff]
    %v1751 = vld [vmem:[#allocation11 + $0xa0] sm:$0xff]
    %v1752 = vld [vmem:[#allocation11 + $0xa8] sm:$0xff]
    %v1753 = vld [vmem:[#allocation11 + $0xb0] sm:$0xff]
    %v1754 = vld [vmem:[#allocation11 + $0xb8] sm:$0xff]
    %v1755 = vld [vmem:[#allocation11 + $0xc0] sm:$0xff]
    %v1756 = vld [vmem:[#allocation11 + $0xc8] sm:$0xff]
    %v1757 = vld [vmem:[#allocation11 + $0xd0] sm:$0xff]
    %v1758 = vld [vmem:[#allocation11 + $0xd8] sm:$0xff]
    %v1759 = vld [vmem:[#allocation11 + $0xe0] sm:$0xff]
    %v1760 = vld [vmem:[#allocation11 + $0xe8] sm:$0xff]
    %v1761 = vld [vmem:[#allocation11 + $0xf0] sm:$0xff]
    %v1762 = vld [vmem:[#allocation11 + $0xf8] sm:$0xff]
    %v1763 = vld [vmem:[#allocation11 + $0x100] sm:$0xff]
    %v1764 = vld [vmem:[#allocation11 + $0x108] sm:$0xff]
    %v1765 = vld [vmem:[#allocation11 + $0x110] sm:$0xff]
    %v1766 = vld [vmem:[#allocation11 + $0x118] sm:$0xff]
    %v1767 = vld [vmem:[#allocation11 + $0x120] sm:$0xff]
    %v1768 = vld [vmem:[#allocation11 + $0x128] sm:$0xff]
    %v1769 = vld [vmem:[#allocation11 + $0x130] sm:$0xff]
    %v1770 = vld [vmem:[#allocation11 + $0x138] sm:$0xff]
    %v1771 = vld [vmem:[#allocation11 + $0x140] sm:$0xff]
    %v1772 = vld [vmem:[#allocation11 + $0x148] sm:$0xff]
    %v1773 = vld [vmem:[#allocation11 + $0x150] sm:$0xff]
    %v1774 = vld [vmem:[#allocation11 + $0x158] sm:$0xff]
    %v1775 = vld [vmem:[#allocation11 + $0x160] sm:$0xff]
    %v1776 = vld [vmem:[#allocation11 + $0x168] sm:$0xff]
    %v1777 = vld [vmem:[#allocation11 + $0x170] sm:$0xff]
    %v1778 = vld [vmem:[#allocation11 + $0x178] sm:$0xff]
    %v1779 = vld [vmem:[#allocation11 + $0x180] sm:$0xff]
    %v1780 = vld [vmem:[#allocation11 + $0x188] sm:$0xff]
    %v1781 = vld [vmem:[#allocation11 + $0x190] sm:$0xff]
    %v1782 = vld [vmem:[#allocation11 + $0x198] sm:$0xff]
    %v1783 = vld [vmem:[#allocation11 + $0x1a0] sm:$0xff]
    %v1784 = vld [vmem:[#allocation11 + $0x1a8] sm:$0xff]
    %v1785 = vld [vmem:[#allocation11 + $0x1b0] sm:$0xff]
    %v1786 = vld [vmem:[#allocation11 + $0x1b8] sm:$0xff]
    %v1787 = vld [vmem:[#allocation11 + $0x1c0] sm:$0xff]
    %v1788 = vld [vmem:[#allocation11 + $0x1c8] sm:$0xff]
    %v1789 = vld [vmem:[#allocation11 + $0x1d0] sm:$0xff]
    %v1790 = vld [vmem:[#allocation11 + $0x1d8] sm:$0xff]
    %v1791 = vld [vmem:[#allocation11 + $0x1e0] sm:$0xff]
    %v1792 = vld [vmem:[#allocation11 + $0x1e8] sm:$0xff]
    %v1793 = vld [vmem:[#allocation11 + $0x1f0] sm:$0xff]
    %v1794 = vld [vmem:[#allocation11 + $0x1f8] sm:$0xff]
    %v1795 = vld [vmem:[#allocation11 + $0x200] sm:$0xff]
    %v1796 = vld [vmem:[#allocation11 + $0x208] sm:$0xff]
    %v1797 = vld [vmem:[#allocation11 + $0x210] sm:$0xff]
    %v1798 = vld [vmem:[#allocation11 + $0x218] sm:$0xff]
    %v1799 = vld [vmem:[#allocation11 + $0x220] sm:$0xff]
    %v1800 = vld [vmem:[#allocation11 + $0x228] sm:$0xff]
    %v1801 = vld [vmem:[#allocation11 + $0x230] sm:$0xff]
    %v1802 = vld [vmem:[#allocation11 + $0x238] sm:$0xff]
    %v1803 = vld [vmem:[#allocation11 + $0x240] sm:$0xff]
    %v1804 = vld [vmem:[#allocation11 + $0x248] sm:$0xff]
    %v1805 = vld [vmem:[#allocation11 + $0x250] sm:$0xff]
    %v1806 = vld [vmem:[#allocation11 + $0x258] sm:$0xff]
    %v1807 = vld [vmem:[#allocation11 + $0x260] sm:$0xff]
    %v1808 = vld [vmem:[#allocation11 + $0x268] sm:$0xff]
    %v1809 = vld [vmem:[#allocation11 + $0x270] sm:$0xff]
    %v1810 = vld [vmem:[#allocation11 + $0x278] sm:$0xff]
    %v1811 = vld [vmem:[#allocation11 + $0x280] sm:$0xff]
    %v1812 = vld [vmem:[#allocation11 + $0x288] sm:$0xff]
    %v1813 = vld [vmem:[#allocation11 + $0x290] sm:$0xff]
    %v1814 = vld [vmem:[#allocation11 + $0x298] sm:$0xff]
    %v1815 = vld [vmem:[#allocation11 + $0x2a0] sm:$0xff]
    %v1816 = vld [vmem:[#allocation11 + $0x2a8] sm:$0xff]
    %v1817 = vld [vmem:[#allocation11 + $0x2b0] sm:$0xff]
    %v1818 = vld [vmem:[#allocation11 + $0x2b8] sm:$0xff]
    %v1819 = vld [vmem:[#allocation11 + $0x2c0] sm:$0xff]
    %v1820 = vld [vmem:[#allocation11 + $0x2c8] sm:$0xff]
    %v1821 = vld [vmem:[#allocation11 + $0x2d0] sm:$0xff]
    %v1822 = vld [vmem:[#allocation11 + $0x2d8] sm:$0xff]
    %v1823 = vld [vmem:[#allocation11 + $0x2e0] sm:$0xff]
    %v1824 = vld [vmem:[#allocation11 + $0x2e8] sm:$0xff]
    %v1825 = vld [vmem:[#allocation11 + $0x2f0] sm:$0xff]
    %v1826 = vld [vmem:[#allocation11 + $0x2f8] sm:$0xff]
    %v1827 = vld [vmem:[#allocation11 + $0x300] sm:$0xff]
    %v1828 = vld [vmem:[#allocation11 + $0x308] sm:$0xff]
    %v1829 = vld [vmem:[#allocation11 + $0x310] sm:$0xff]
    %v1830 = vld [vmem:[#allocation11 + $0x318] sm:$0xff]
    %v1831 = vld [vmem:[#allocation11 + $0x320] sm:$0xff]
    %v1832 = vld [vmem:[#allocation11 + $0x328] sm:$0xff]
    %v1833 = vld [vmem:[#allocation11 + $0x330] sm:$0xff]
    %v1834 = vld [vmem:[#allocation11 + $0x338] sm:$0xff]
    %v1835 = vld [vmem:[#allocation11 + $0x340] sm:$0xff]
    %v1836 = vld [vmem:[#allocation11 + $0x348] sm:$0xff]
    %v1837 = vld [vmem:[#allocation11 + $0x350] sm:$0xff]
    %v1838 = vld [vmem:[#allocation11 + $0x358] sm:$0xff]
    %v1839 = vld [vmem:[#allocation11 + $0x360] sm:$0xff]
    %v1840 = vld [vmem:[#allocation11 + $0x368] sm:$0xff]
    %v1841 = vld [vmem:[#allocation11 + $0x370] sm:$0xff]
    %v1842 = vld [vmem:[#allocation11 + $0x378] sm:$0xff]
    %v1843 = vld [vmem:[#allocation11 + $0x380] sm:$0xff]
    %v1844 = vld [vmem:[#allocation11 + $0x388] sm:$0xff]
    %v1845 = vld [vmem:[#allocation11 + $0x390] sm:$0xff]
    %v1846 = vld [vmem:[#allocation11 + $0x398] sm:$0xff]
    %v1847 = vld [vmem:[#allocation11 + $0x3a0] sm:$0xff]
    %v1848 = vld [vmem:[#allocation11 + $0x3a8] sm:$0xff]
    %v1849 = vld [vmem:[#allocation11 + $0x3b0] sm:$0xff]
    %v1850 = vld [vmem:[#allocation11 + $0x3b8] sm:$0xff]
    %v1851 = vld [vmem:[#allocation11 + $0x3c0] sm:$0xff]
    %v1852 = vld [vmem:[#allocation11 + $0x3c8] sm:$0xff]
    %v1853 = vld [vmem:[#allocation11 + $0x3d0] sm:$0xff]
    %v1854 = vld [vmem:[#allocation11 + $0x3d8] sm:$0xff]
    %v1855 = vld [vmem:[#allocation11 + $0x3e0] sm:$0xff]
    %v1856 = vld [vmem:[#allocation11 + $0x3e8] sm:$0xff]
    %v1857 = vld [vmem:[#allocation11 + $0x3f0] sm:$0xff]
    %v1858 = vld [vmem:[#allocation11 + $0x3f8] sm:$0xff]
    %v1859 = vld [vmem:[%s8] sm:$0xf]
    %v1861 = vlaneseq
    %v1862 = vshrl.u32 %v1861, 7
    %v1863 = vsub.s32 0, %v1862
    %v1864 = vrot.slane %v1859, %v1863
    %v1865 = vlaneseq
    %v1866 = vshrl.u32 %v1865, 7
    %v1867 = vsub.s32 1, %v1866
    %v1868 = vrot.slane %v1859, %v1867
    %v1869 = vlaneseq
    %v1870 = vshrl.u32 %v1869, 7
    %v1871 = vsub.s32 2, %v1870
    %v1872 = vrot.slane %v1859, %v1871
    %v1873 = vlaneseq
    %v1874 = vshrl.u32 %v1873, 7
    %v1875 = vsub.s32 3, %v1874
    %v1876 = vrot.slane %v1859, %v1875
    %v2009 = vunpack.c.l.b16 %v1731
    %v2010 = vunpack.c.h.b16 %v1731
    %v2011 = vunpack.c.l.b16 %v1732
    %v2012 = vunpack.c.h.b16 %v1732
    %v2013 = vunpack.c.l.b16 %v1733
    %v2014 = vunpack.c.h.b16 %v1733
    %v2015 = vunpack.c.l.b16 %v1734
    %v2016 = vunpack.c.h.b16 %v1734
    %v2017 = vunpack.c.l.b16 %v1735
    %v2018 = vunpack.c.h.b16 %v1735
    %v2019 = vunpack.c.l.b16 %v1736
    %v2020 = vunpack.c.h.b16 %v1736
    %v2021 = vunpack.c.l.b16 %v1737
    %v2022 = vunpack.c.h.b16 %v1737
    %v2023 = vunpack.c.l.b16 %v1738
    %v2024 = vunpack.c.h.b16 %v1738
    %v2025 = vunpack.c.l.b16 %v1739
    %v2026 = vunpack.c.h.b16 %v1739
    %v2027 = vunpack.c.l.b16 %v1740
    %v2028 = vunpack.c.h.b16 %v1740
    %v2029 = vunpack.c.l.b16 %v1741
    %v2030 = vunpack.c.h.b16 %v1741
    %v2031 = vunpack.c.l.b16 %v1742
    %v2032 = vunpack.c.h.b16 %v1742
    %v2033 = vunpack.c.l.b16 %v1743
    %v2034 = vunpack.c.h.b16 %v1743
    %v2035 = vunpack.c.l.b16 %v1744
    %v2036 = vunpack.c.h.b16 %v1744
    %v2037 = vunpack.c.l.b16 %v1745
    %v2038 = vunpack.c.h.b16 %v1745
    %v2039 = vunpack.c.l.b16 %v1746
    %v2040 = vunpack.c.h.b16 %v1746
    %v2041 = vunpack.c.l.b16 %v1747
    %v2042 = vunpack.c.h.b16 %v1747
    %v2043 = vunpack.c.l.b16 %v1748
    %v2044 = vunpack.c.h.b16 %v1748
    %v2045 = vunpack.c.l.b16 %v1749
    %v2046 = vunpack.c.h.b16 %v1749
    %v2047 = vunpack.c.l.b16 %v1750
    %v2048 = vunpack.c.h.b16 %v1750
    %v2049 = vunpack.c.l.b16 %v1751
    %v2050 = vunpack.c.h.b16 %v1751
    %v2051 = vunpack.c.l.b16 %v1752
    %v2052 = vunpack.c.h.b16 %v1752
    %v2053 = vunpack.c.l.b16 %v1753
    %v2054 = vunpack.c.h.b16 %v1753
    %v2055 = vunpack.c.l.b16 %v1754
    %v2056 = vunpack.c.h.b16 %v1754
    %v2057 = vunpack.c.l.b16 %v1755
    %v2058 = vunpack.c.h.b16 %v1755
    %v2059 = vunpack.c.l.b16 %v1756
    %v2060 = vunpack.c.h.b16 %v1756
    %v2061 = vunpack.c.l.b16 %v1757
    %v2062 = vunpack.c.h.b16 %v1757
    %v2063 = vunpack.c.l.b16 %v1758
    %v2064 = vunpack.c.h.b16 %v1758
    %v2065 = vunpack.c.l.b16 %v1759
    %v2066 = vunpack.c.h.b16 %v1759
    %v2067 = vunpack.c.l.b16 %v1760
    %v2068 = vunpack.c.h.b16 %v1760
    %v2069 = vunpack.c.l.b16 %v1761
    %v2070 = vunpack.c.h.b16 %v1761
    %v2071 = vunpack.c.l.b16 %v1762
    %v2072 = vunpack.c.h.b16 %v1762
    %v2073 = vunpack.c.l.b16 %v1763
    %v2074 = vunpack.c.h.b16 %v1763
    %v2075 = vunpack.c.l.b16 %v1764
    %v2076 = vunpack.c.h.b16 %v1764
    %v2077 = vunpack.c.l.b16 %v1765
    %v2078 = vunpack.c.h.b16 %v1765
    %v2079 = vunpack.c.l.b16 %v1766
    %v2080 = vunpack.c.h.b16 %v1766
    %v2081 = vunpack.c.l.b16 %v1767
    %v2082 = vunpack.c.h.b16 %v1767
    %v2083 = vunpack.c.l.b16 %v1768
    %v2084 = vunpack.c.h.b16 %v1768
    %v2085 = vunpack.c.l.b16 %v1769
    %v2086 = vunpack.c.h.b16 %v1769
    %v2087 = vunpack.c.l.b16 %v1770
    %v2088 = vunpack.c.h.b16 %v1770
    %v2089 = vunpack.c.l.b16 %v1771
    %v2090 = vunpack.c.h.b16 %v1771
    %v2091 = vunpack.c.l.b16 %v1772
    %v2092 = vunpack.c.h.b16 %v1772
    %v2093 = vunpack.c.l.b16 %v1773
    %v2094 = vunpack.c.h.b16 %v1773
    %v2095 = vunpack.c.l.b16 %v1774
    %v2096 = vunpack.c.h.b16 %v1774
    %v2097 = vunpack.c.l.b16 %v1775
    %v2098 = vunpack.c.h.b16 %v1775
    %v2099 = vunpack.c.l.b16 %v1776
    %v2100 = vunpack.c.h.b16 %v1776
    %v2101 = vunpack.c.l.b16 %v1777
    %v2102 = vunpack.c.h.b16 %v1777
    %v2103 = vunpack.c.l.b16 %v1778
    %v2104 = vunpack.c.h.b16 %v1778
    %v2105 = vunpack.c.l.b16 %v1779
    %v2106 = vunpack.c.h.b16 %v1779
    %v2107 = vunpack.c.l.b16 %v1780
    %v2108 = vunpack.c.h.b16 %v1780
    %v2109 = vunpack.c.l.b16 %v1781
    %v2110 = vunpack.c.h.b16 %v1781
    %v2111 = vunpack.c.l.b16 %v1782
    %v2112 = vunpack.c.h.b16 %v1782
    %v2113 = vunpack.c.l.b16 %v1783
    %v2114 = vunpack.c.h.b16 %v1783
    %v2115 = vunpack.c.l.b16 %v1784
    %v2116 = vunpack.c.h.b16 %v1784
    %v2117 = vunpack.c.l.b16 %v1785
    %v2118 = vunpack.c.h.b16 %v1785
    %v2119 = vunpack.c.l.b16 %v1786
    %v2120 = vunpack.c.h.b16 %v1786
    %v2121 = vunpack.c.l.b16 %v1787
    %v2122 = vunpack.c.h.b16 %v1787
    %v2123 = vunpack.c.l.b16 %v1788
    %v2124 = vunpack.c.h.b16 %v1788
    %v2125 = vunpack.c.l.b16 %v1789
    %v2126 = vunpack.c.h.b16 %v1789
    %v2127 = vunpack.c.l.b16 %v1790
    %v2128 = vunpack.c.h.b16 %v1790
    %v2129 = vunpack.c.l.b16 %v1791
    %v2130 = vunpack.c.h.b16 %v1791
    %v2131 = vunpack.c.l.b16 %v1792
    %v2132 = vunpack.c.h.b16 %v1792
    %v2133 = vunpack.c.l.b16 %v1793
    %v2134 = vunpack.c.h.b16 %v1793
    %v2135 = vunpack.c.l.b16 %v1794
    %v2136 = vunpack.c.h.b16 %v1794
    %v2137 = vunpack.c.l.b16 %v1795
    %v2138 = vunpack.c.h.b16 %v1795
    %v2139 = vunpack.c.l.b16 %v1796
    %v2140 = vunpack.c.h.b16 %v1796
    %v2141 = vunpack.c.l.b16 %v1797
    %v2142 = vunpack.c.h.b16 %v1797
    %v2143 = vunpack.c.l.b16 %v1798
    %v2144 = vunpack.c.h.b16 %v1798
    %v2145 = vunpack.c.l.b16 %v1799
    %v2146 = vunpack.c.h.b16 %v1799
    %v2147 = vunpack.c.l.b16 %v1800
    %v2148 = vunpack.c.h.b16 %v1800
    %v2149 = vunpack.c.l.b16 %v1801
    %v2150 = vunpack.c.h.b16 %v1801
    %v2151 = vunpack.c.l.b16 %v1802
    %v2152 = vunpack.c.h.b16 %v1802
    %v2153 = vunpack.c.l.b16 %v1803
    %v2154 = vunpack.c.h.b16 %v1803
    %v2155 = vunpack.c.l.b16 %v1804
    %v2156 = vunpack.c.h.b16 %v1804
    %v2157 = vunpack.c.l.b16 %v1805
    %v2158 = vunpack.c.h.b16 %v1805
    %v2159 = vunpack.c.l.b16 %v1806
    %v2160 = vunpack.c.h.b16 %v1806
    %v2161 = vunpack.c.l.b16 %v1807
    %v2162 = vunpack.c.h.b16 %v1807
    %v2163 = vunpack.c.l.b16 %v1808
    %v2164 = vunpack.c.h.b16 %v1808
    %v2165 = vunpack.c.l.b16 %v1809
    %v2166 = vunpack.c.h.b16 %v1809
    %v2167 = vunpack.c.l.b16 %v1810
    %v2168 = vunpack.c.h.b16 %v1810
    %v2169 = vunpack.c.l.b16 %v1811
    %v2170 = vunpack.c.h.b16 %v1811
    %v2171 = vunpack.c.l.b16 %v1812
    %v2172 = vunpack.c.h.b16 %v1812
    %v2173 = vunpack.c.l.b16 %v1813
    %v2174 = vunpack.c.h.b16 %v1813
    %v2175 = vunpack.c.l.b16 %v1814
    %v2176 = vunpack.c.h.b16 %v1814
    %v2177 = vunpack.c.l.b16 %v1815
    %v2178 = vunpack.c.h.b16 %v1815
    %v2179 = vunpack.c.l.b16 %v1816
    %v2180 = vunpack.c.h.b16 %v1816
    %v2181 = vunpack.c.l.b16 %v1817
    %v2182 = vunpack.c.h.b16 %v1817
    %v2183 = vunpack.c.l.b16 %v1818
    %v2184 = vunpack.c.h.b16 %v1818
    %v2185 = vunpack.c.l.b16 %v1819
    %v2186 = vunpack.c.h.b16 %v1819
    %v2187 = vunpack.c.l.b16 %v1820
    %v2188 = vunpack.c.h.b16 %v1820
    %v2189 = vunpack.c.l.b16 %v1821
    %v2190 = vunpack.c.h.b16 %v1821
    %v2191 = vunpack.c.l.b16 %v1822
    %v2192 = vunpack.c.h.b16 %v1822
    %v2193 = vunpack.c.l.b16 %v1823
    %v2194 = vunpack.c.h.b16 %v1823
    %v2195 = vunpack.c.l.b16 %v1824
    %v2196 = vunpack.c.h.b16 %v1824
    %v2197 = vunpack.c.l.b16 %v1825
    %v2198 = vunpack.c.h.b16 %v1825
    %v2199 = vunpack.c.l.b16 %v1826
    %v2200 = vunpack.c.h.b16 %v1826
    %v2201 = vunpack.c.l.b16 %v1827
    %v2202 = vunpack.c.h.b16 %v1827
    %v2203 = vunpack.c.l.b16 %v1828
    %v2204 = vunpack.c.h.b16 %v1828
    %v2205 = vunpack.c.l.b16 %v1829
    %v2206 = vunpack.c.h.b16 %v1829
    %v2207 = vunpack.c.l.b16 %v1830
    %v2208 = vunpack.c.h.b16 %v1830
    %v2209 = vunpack.c.l.b16 %v1831
    %v2210 = vunpack.c.h.b16 %v1831
    %v2211 = vunpack.c.l.b16 %v1832
    %v2212 = vunpack.c.h.b16 %v1832
    %v2213 = vunpack.c.l.b16 %v1833
    %v2214 = vunpack.c.h.b16 %v1833
    %v2215 = vunpack.c.l.b16 %v1834
    %v2216 = vunpack.c.h.b16 %v1834
    %v2217 = vunpack.c.l.b16 %v1835
    %v2218 = vunpack.c.h.b16 %v1835
    %v2219 = vunpack.c.l.b16 %v1836
    %v2220 = vunpack.c.h.b16 %v1836
    %v2221 = vunpack.c.l.b16 %v1837
    %v2222 = vunpack.c.h.b16 %v1837
    %v2223 = vunpack.c.l.b16 %v1838
    %v2224 = vunpack.c.h.b16 %v1838
    %v2225 = vunpack.c.l.b16 %v1839
    %v2226 = vunpack.c.h.b16 %v1839
    %v2227 = vunpack.c.l.b16 %v1840
    %v2228 = vunpack.c.h.b16 %v1840
    %v2229 = vunpack.c.l.b16 %v1841
    %v2230 = vunpack.c.h.b16 %v1841
    %v2231 = vunpack.c.l.b16 %v1842
    %v2232 = vunpack.c.h.b16 %v1842
    %v2233 = vunpack.c.l.b16 %v1843
    %v2234 = vunpack.c.h.b16 %v1843
    %v2235 = vunpack.c.l.b16 %v1844
    %v2236 = vunpack.c.h.b16 %v1844
    %v2237 = vunpack.c.l.b16 %v1845
    %v2238 = vunpack.c.h.b16 %v1845
    %v2239 = vunpack.c.l.b16 %v1846
    %v2240 = vunpack.c.h.b16 %v1846
    %v2241 = vunpack.c.l.b16 %v1847
    %v2242 = vunpack.c.h.b16 %v1847
    %v2243 = vunpack.c.l.b16 %v1848
    %v2244 = vunpack.c.h.b16 %v1848
    %v2245 = vunpack.c.l.b16 %v1849
    %v2246 = vunpack.c.h.b16 %v1849
    %v2247 = vunpack.c.l.b16 %v1850
    %v2248 = vunpack.c.h.b16 %v1850
    %v2249 = vunpack.c.l.b16 %v1851
    %v2250 = vunpack.c.h.b16 %v1851
    %v2251 = vunpack.c.l.b16 %v1852
    %v2252 = vunpack.c.h.b16 %v1852
    %v2253 = vunpack.c.l.b16 %v1853
    %v2254 = vunpack.c.h.b16 %v1853
    %v2255 = vunpack.c.l.b16 %v1854
    %v2256 = vunpack.c.h.b16 %v1854
    %v2257 = vunpack.c.l.b16 %v1855
    %v2258 = vunpack.c.h.b16 %v1855
    %v2259 = vunpack.c.l.b16 %v1856
    %v2260 = vunpack.c.h.b16 %v1856
    %v2261 = vunpack.c.l.b16 %v1857
    %v2262 = vunpack.c.h.b16 %v1857
    %v2263 = vunpack.c.l.b16 %v1858
    %v2264 = vunpack.c.h.b16 %v1858
    %v2265 = vpack.c.b16 %v2013, %v2009
    %v2266 = vpack.c.b16 %v2014, %v2010
    %v2267 = vpack.c.b16 %v2015, %v2011
    %v2268 = vpack.c.b16 %v2016, %v2012
    %v2269 = vpack.c.b16 %v2021, %v2017
    %v2270 = vpack.c.b16 %v2022, %v2018
    %v2271 = vpack.c.b16 %v2023, %v2019
    %v2272 = vpack.c.b16 %v2024, %v2020
    %v2273 = vpack.c.b16 %v2029, %v2025
    %v2274 = vpack.c.b16 %v2030, %v2026
    %v2275 = vpack.c.b16 %v2031, %v2027
    %v2276 = vpack.c.b16 %v2032, %v2028
    %v2277 = vpack.c.b16 %v2037, %v2033
    %v2278 = vpack.c.b16 %v2038, %v2034
    %v2279 = vpack.c.b16 %v2039, %v2035
    %v2280 = vpack.c.b16 %v2040, %v2036
    %v2281 = vpack.c.b16 %v2045, %v2041
    %v2282 = vpack.c.b16 %v2046, %v2042
    %v2283 = vpack.c.b16 %v2047, %v2043
    %v2284 = vpack.c.b16 %v2048, %v2044
    %v2285 = vpack.c.b16 %v2053, %v2049
    %v2286 = vpack.c.b16 %v2054, %v2050
    %v2287 = vpack.c.b16 %v2055, %v2051
    %v2288 = vpack.c.b16 %v2056, %v2052
    %v2289 = vpack.c.b16 %v2061, %v2057
    %v2290 = vpack.c.b16 %v2062, %v2058
    %v2291 = vpack.c.b16 %v2063, %v2059
    %v2292 = vpack.c.b16 %v2064, %v2060
    %v2293 = vpack.c.b16 %v2069, %v2065
    %v2294 = vpack.c.b16 %v2070, %v2066
    %v2295 = vpack.c.b16 %v2071, %v2067
    %v2296 = vpack.c.b16 %v2072, %v2068
    %v2297 = vpack.c.b16 %v2077, %v2073
    %v2298 = vpack.c.b16 %v2078, %v2074
    %v2299 = vpack.c.b16 %v2079, %v2075
    %v2300 = vpack.c.b16 %v2080, %v2076
    %v2301 = vpack.c.b16 %v2085, %v2081
    %v2302 = vpack.c.b16 %v2086, %v2082
    %v2303 = vpack.c.b16 %v2087, %v2083
    %v2304 = vpack.c.b16 %v2088, %v2084
    %v2305 = vpack.c.b16 %v2093, %v2089
    %v2306 = vpack.c.b16 %v2094, %v2090
    %v2307 = vpack.c.b16 %v2095, %v2091
    %v2308 = vpack.c.b16 %v2096, %v2092
    %v2309 = vpack.c.b16 %v2101, %v2097
    %v2310 = vpack.c.b16 %v2102, %v2098
    %v2311 = vpack.c.b16 %v2103, %v2099
    %v2312 = vpack.c.b16 %v2104, %v2100
    %v2313 = vpack.c.b16 %v2109, %v2105
    %v2314 = vpack.c.b16 %v2110, %v2106
    %v2315 = vpack.c.b16 %v2111, %v2107
    %v2316 = vpack.c.b16 %v2112, %v2108
    %v2317 = vpack.c.b16 %v2117, %v2113
    %v2318 = vpack.c.b16 %v2118, %v2114
    %v2319 = vpack.c.b16 %v2119, %v2115
    %v2320 = vpack.c.b16 %v2120, %v2116
    %v2321 = vpack.c.b16 %v2125, %v2121
    %v2322 = vpack.c.b16 %v2126, %v2122
    %v2323 = vpack.c.b16 %v2127, %v2123
    %v2324 = vpack.c.b16 %v2128, %v2124
    %v2325 = vpack.c.b16 %v2133, %v2129
    %v2326 = vpack.c.b16 %v2134, %v2130
    %v2327 = vpack.c.b16 %v2135, %v2131
    %v2328 = vpack.c.b16 %v2136, %v2132
    %v2329 = vpack.c.b16 %v2141, %v2137
    %v2330 = vpack.c.b16 %v2142, %v2138
    %v2331 = vpack.c.b16 %v2143, %v2139
    %v2332 = vpack.c.b16 %v2144, %v2140
    %v2333 = vpack.c.b16 %v2149, %v2145
    %v2334 = vpack.c.b16 %v2150, %v2146
    %v2335 = vpack.c.b16 %v2151, %v2147
    %v2336 = vpack.c.b16 %v2152, %v2148
    %v2337 = vpack.c.b16 %v2157, %v2153
    %v2338 = vpack.c.b16 %v2158, %v2154
    %v2339 = vpack.c.b16 %v2159, %v2155
    %v2340 = vpack.c.b16 %v2160, %v2156
    %v2341 = vpack.c.b16 %v2165, %v2161
    %v2342 = vpack.c.b16 %v2166, %v2162
    %v2343 = vpack.c.b16 %v2167, %v2163
    %v2344 = vpack.c.b16 %v2168, %v2164
    %v2345 = vpack.c.b16 %v2173, %v2169
    %v2346 = vpack.c.b16 %v2174, %v2170
    %v2347 = vpack.c.b16 %v2175, %v2171
    %v2348 = vpack.c.b16 %v2176, %v2172
    %v2349 = vpack.c.b16 %v2181, %v2177
    %v2350 = vpack.c.b16 %v2182, %v2178
    %v2351 = vpack.c.b16 %v2183, %v2179
    %v2352 = vpack.c.b16 %v2184, %v2180
    %v2353 = vpack.c.b16 %v2189, %v2185
    %v2354 = vpack.c.b16 %v2190, %v2186
    %v2355 = vpack.c.b16 %v2191, %v2187
    %v2356 = vpack.c.b16 %v2192, %v2188
    %v2357 = vpack.c.b16 %v2197, %v2193
    %v2358 = vpack.c.b16 %v2198, %v2194
    %v2359 = vpack.c.b16 %v2199, %v2195
    %v2360 = vpack.c.b16 %v2200, %v2196
    %v2361 = vpack.c.b16 %v2205, %v2201
    %v2362 = vpack.c.b16 %v2206, %v2202
    %v2363 = vpack.c.b16 %v2207, %v2203
    %v2364 = vpack.c.b16 %v2208, %v2204
    %v2365 = vpack.c.b16 %v2213, %v2209
    %v2366 = vpack.c.b16 %v2214, %v2210
    %v2367 = vpack.c.b16 %v2215, %v2211
    %v2368 = vpack.c.b16 %v2216, %v2212
    %v2369 = vpack.c.b16 %v2221, %v2217
    %v2370 = vpack.c.b16 %v2222, %v2218
    %v2371 = vpack.c.b16 %v2223, %v2219
    %v2372 = vpack.c.b16 %v2224, %v2220
    %v2373 = vpack.c.b16 %v2229, %v2225
    %v2374 = vpack.c.b16 %v2230, %v2226
    %v2375 = vpack.c.b16 %v2231, %v2227
    %v2376 = vpack.c.b16 %v2232, %v2228
    %v2377 = vpack.c.b16 %v2237, %v2233
    %v2378 = vpack.c.b16 %v2238, %v2234
    %v2379 = vpack.c.b16 %v2239, %v2235
    %v2380 = vpack.c.b16 %v2240, %v2236
    %v2381 = vpack.c.b16 %v2245, %v2241
    %v2382 = vpack.c.b16 %v2246, %v2242
    %v2383 = vpack.c.b16 %v2247, %v2243
    %v2384 = vpack.c.b16 %v2248, %v2244
    %v2385 = vpack.c.b16 %v2253, %v2249
    %v2386 = vpack.c.b16 %v2254, %v2250
    %v2387 = vpack.c.b16 %v2255, %v2251
    %v2388 = vpack.c.b16 %v2256, %v2252
    %v2389 = vpack.c.b16 %v2261, %v2257
    %v2390 = vpack.c.b16 %v2262, %v2258
    %v2391 = vpack.c.b16 %v2263, %v2259
    %v2392 = vpack.c.b16 %v2264, %v2260
    %2521 = vmatprep.subr.bf16.mxu0 %v2266
    %2522 = vmatpush1.bf16.msra.mxu0 %v2265
    %2523 = vmatprep.subr.bf16.mxu0 %v2270
    %2524 = vmatpush1.bf16.msra.mxu0 %v2269
    %2525 = vmatprep.subr.bf16.mxu0 %v2274
    %2526 = vmatpush1.bf16.msra.mxu0 %v2273
    %2527 = vmatprep.subr.bf16.mxu0 %v2278
    %2528 = vmatpush1.bf16.msra.mxu0 %v2277
    %2529 = vmatprep.subr.bf16.mxu0 %v2282
    %2530 = vmatpush1.bf16.msra.mxu0 %v2281
    %2531 = vmatprep.subr.bf16.mxu0 %v2286
    %2532 = vmatpush1.bf16.msra.mxu0 %v2285
    %2533 = vmatprep.subr.bf16.mxu0 %v2290
    %2534 = vmatpush1.bf16.msra.mxu0 %v2289
    %2535 = vmatprep.subr.bf16.mxu0 %v2294
    %2536 = vmatpush1.bf16.msra.mxu0 %v2293
    %2537 = vmatprep.subr.bf16.mxu0 %v2298
    %2538 = vmatpush1.bf16.msra.mxu0 %v2297
    %2539 = vmatprep.subr.bf16.mxu0 %v2302
    %2540 = vmatpush1.bf16.msra.mxu0 %v2301
    %2541 = vmatprep.subr.bf16.mxu0 %v2306
    %2542 = vmatpush1.bf16.msra.mxu0 %v2305
    %2543 = vmatprep.subr.bf16.mxu0 %v2310
    %2544 = vmatpush1.bf16.msra.mxu0 %v2309
    %2545 = vmatprep.subr.bf16.mxu0 %v2314
    %2546 = vmatpush1.bf16.msra.mxu0 %v2313
    %2547 = vmatprep.subr.bf16.mxu0 %v2318
    %2548 = vmatpush1.bf16.msra.mxu0 %v2317
    %2549 = vmatprep.subr.bf16.mxu0 %v2322
    %2550 = vmatpush1.bf16.msra.mxu0 %v2321
    %2551 = vmatprep.subr.bf16.mxu0 %v2326
    %2552 = vmatpush1.bf16.msra.mxu0 %v2325
    %2553 = vmatprep.mubr.bf16.mxu0 %v766
    %2554 = vmatmul.mubr.bf16.gmra.mrb[0].mxu0 %v765
    %v2555 = vpop.f32.mrb[0].mxu0
    %v2556 = vadd.f32 %v1864, %v2555
    %v2557 = vpop.f32.mrb[0].mxu0
    %v2558 = vadd.f32 %v1868, %v2557
    %v2559 = vpop.f32.mrb[0].mxu0
    %v2560 = vadd.f32 %v1864, %v2559
    %v2561 = vpop.f32.mrb[0].mxu0
    %v2562 = vadd.f32 %v1868, %v2561
    %2563 = vdwg.mxu0
    %2564 = vmatprep.subr.bf16.mxu0 %v2330
    %2565 = vmatpush1.bf16.msra.mxu0 %v2329
    %2566 = vmatprep.subr.bf16.mxu0 %v2334
    %2567 = vmatpush1.bf16.msra.mxu0 %v2333
    %2568 = vmatprep.subr.bf16.mxu0 %v2338
    %2569 = vmatpush1.bf16.msra.mxu0 %v2337
    %2570 = vmatprep.subr.bf16.mxu0 %v2342
    %2571 = vmatpush1.bf16.msra.mxu0 %v2341
    %2572 = vmatprep.subr.bf16.mxu0 %v2346
    %2573 = vmatpush1.bf16.msra.mxu0 %v2345
    %2574 = vmatprep.subr.bf16.mxu0 %v2350
    %2575 = vmatpush1.bf16.msra.mxu0 %v2349
    %2576 = vmatprep.subr.bf16.mxu0 %v2354
    %2577 = vmatpush1.bf16.msra.mxu0 %v2353
    %2578 = vmatprep.subr.bf16.mxu0 %v2358
    %2579 = vmatpush1.bf16.msra.mxu0 %v2357
    %2580 = vmatprep.subr.bf16.mxu0 %v2362
    %2581 = vmatpush1.bf16.msra.mxu0 %v2361
    %2582 = vmatprep.subr.bf16.mxu0 %v2366
    %2583 = vmatpush1.bf16.msra.mxu0 %v2365
    %2584 = vmatprep.subr.bf16.mxu0 %v2370
    %2585 = vmatpush1.bf16.msra.mxu0 %v2369
    %2586 = vmatprep.subr.bf16.mxu0 %v2374
    %2587 = vmatpush1.bf16.msra.mxu0 %v2373
    %2588 = vmatprep.subr.bf16.mxu0 %v2378
    %2589 = vmatpush1.bf16.msra.mxu0 %v2377
    %2590 = vmatprep.subr.bf16.mxu0 %v2382
    %2591 = vmatpush1.bf16.msra.mxu0 %v2381
    %2592 = vmatprep.subr.bf16.mxu0 %v2386
    %2593 = vmatpush1.bf16.msra.mxu0 %v2385
    %2594 = vmatprep.subr.bf16.mxu0 %v2390
    %2595 = vmatpush1.bf16.msra.mxu0 %v2389
    %2596 = vmatprep.mubr.bf16.mxu0 %v768
    %2597 = vmatmul.mubr.bf16.gmra.mrb[0].mxu0 %v767
    %v2598 = vpop.f32.mrb[0].mxu0
    %v2599 = vadd.f32 %v2556, %v2598
    %v2600 = vpop.f32.mrb[0].mxu0
    %v2601 = vadd.f32 %v2558, %v2600
    %v2602 = vpop.f32.mrb[0].mxu0
    %v2603 = vadd.f32 %v2560, %v2602
    %v2604 = vpop.f32.mrb[0].mxu0
    %v2605 = vadd.f32 %v2562, %v2604
    %2606 = vdwg.mxu0
    %2607 = vmatprep.subr.bf16.mxu0 %v2268
    %2608 = vmatpush1.bf16.msra.mxu0 %v2267
    %2609 = vmatprep.subr.bf16.mxu0 %v2272
    %2610 = vmatpush1.bf16.msra.mxu0 %v2271
    %2611 = vmatprep.subr.bf16.mxu0 %v2276
    %2612 = vmatpush1.bf16.msra.mxu0 %v2275
    %2613 = vmatprep.subr.bf16.mxu0 %v2280
    %2614 = vmatpush1.bf16.msra.mxu0 %v2279
    %2615 = vmatprep.subr.bf16.mxu0 %v2284
    %2616 = vmatpush1.bf16.msra.mxu0 %v2283
    %2617 = vmatprep.subr.bf16.mxu0 %v2288
    %2618 = vmatpush1.bf16.msra.mxu0 %v2287
    %2619 = vmatprep.subr.bf16.mxu0 %v2292
    %2620 = vmatpush1.bf16.msra.mxu0 %v2291
    %2621 = vmatprep.subr.bf16.mxu0 %v2296
    %2622 = vmatpush1.bf16.msra.mxu0 %v2295
    %2623 = vmatprep.subr.bf16.mxu0 %v2300
    %2624 = vmatpush1.bf16.msra.mxu0 %v2299
    %2625 = vmatprep.subr.bf16.mxu0 %v2304
    %2626 = vmatpush1.bf16.msra.mxu0 %v2303
    %2627 = vmatprep.subr.bf16.mxu0 %v2308
    %2628 = vmatpush1.bf16.msra.mxu0 %v2307
    %2629 = vmatprep.subr.bf16.mxu0 %v2312
    %2630 = vmatpush1.bf16.msra.mxu0 %v2311
    %2631 = vmatprep.subr.bf16.mxu0 %v2316
    %2632 = vmatpush1.bf16.msra.mxu0 %v2315
    %2633 = vmatprep.subr.bf16.mxu0 %v2320
    %2634 = vmatpush1.bf16.msra.mxu0 %v2319
    %2635 = vmatprep.subr.bf16.mxu0 %v2324
    %2636 = vmatpush1.bf16.msra.mxu0 %v2323
    %2637 = vmatprep.subr.bf16.mxu0 %v2328
    %2638 = vmatpush1.bf16.msra.mxu0 %v2327
    %2639 = vmatprep.mubr.bf16.mxu0 %v766
    %2640 = vmatmul.mubr.bf16.gmra.mrb[0].mxu0 %v765
    %v2641 = vpop.f32.mrb[0].mxu0
    %v2642 = vadd.f32 %v1872, %v2641
    %v2643 = vpop.f32.mrb[0].mxu0
    %v2644 = vadd.f32 %v1876, %v2643
    %v2645 = vpop.f32.mrb[0].mxu0
    %v2646 = vadd.f32 %v1872, %v2645
    %v2647 = vpop.f32.mrb[0].mxu0
    %v2648 = vadd.f32 %v1876, %v2647
    %2649 = vdwg.mxu0
    %2650 = vmatprep.subr.bf16.mxu0 %v2332
    %2651 = vmatpush1.bf16.msra.mxu0 %v2331
    %2652 = vmatprep.subr.bf16.mxu0 %v2336
    %2653 = vmatpush1.bf16.msra.mxu0 %v2335
    %2654 = vmatprep.subr.bf16.mxu0 %v2340
    %2655 = vmatpush1.bf16.msra.mxu0 %v2339
    %2656 = vmatprep.subr.bf16.mxu0 %v2344
    %2657 = vmatpush1.bf16.msra.mxu0 %v2343
    %2658 = vmatprep.subr.bf16.mxu0 %v2348
    %2659 = vmatpush1.bf16.msra.mxu0 %v2347
    %2660 = vmatprep.subr.bf16.mxu0 %v2352
    %2661 = vmatpush1.bf16.msra.mxu0 %v2351
    %2662 = vmatprep.subr.bf16.mxu0 %v2356
    %2663 = vmatpush1.bf16.msra.mxu0 %v2355
    %2664 = vmatprep.subr.bf16.mxu0 %v2360
    %2665 = vmatpush1.bf16.msra.mxu0 %v2359
    %2666 = vmatprep.subr.bf16.mxu0 %v2364
    %2667 = vmatpush1.bf16.msra.mxu0 %v2363
    %2668 = vmatprep.subr.bf16.mxu0 %v2368
    %2669 = vmatpush1.bf16.msra.mxu0 %v2367
    %2670 = vmatprep.subr.bf16.mxu0 %v2372
    %2671 = vmatpush1.bf16.msra.mxu0 %v2371
    %2672 = vmatprep.subr.bf16.mxu0 %v2376
    %2673 = vmatpush1.bf16.msra.mxu0 %v2375
    %2674 = vmatprep.subr.bf16.mxu0 %v2380
    %2675 = vmatpush1.bf16.msra.mxu0 %v2379
    %2676 = vmatprep.subr.bf16.mxu0 %v2384
    %2677 = vmatpush1.bf16.msra.mxu0 %v2383
    %2678 = vmatprep.subr.bf16.mxu0 %v2388
    %2679 = vmatpush1.bf16.msra.mxu0 %v2387
    %2680 = vmatprep.subr.bf16.mxu0 %v2392
    %2681 = vmatpush1.bf16.msra.mxu0 %v2391
    %2682 = vmatprep.mubr.bf16.mxu0 %v768
    %2683 = vmatmul.mubr.bf16.gmra.mrb[0].mxu0 %v767
    %v2684 = vpop.f32.mrb[0].mxu0
    %v2685 = vadd.f32 %v2642, %v2684
    %v2686 = vpop.f32.mrb[0].mxu0
    %v2687 = vadd.f32 %v2644, %v2686
    %v2688 = vpop.f32.mrb[0].mxu0
    %v2689 = vadd.f32 %v2646, %v2688
    %v2690 = vpop.f32.mrb[0].mxu0
    %v2691 = vadd.f32 %v2648, %v2690
    %2692 = vdwg.mxu0
    %v2693 = vld [vmem:[#allocation12] sm:$0xff]
    %v2694 = vld [vmem:[#allocation12 + $0x8] sm:$0xff]
    %v2695 = vld [vmem:[#allocation12 + $0x10] sm:$0xff]
    %v2696 = vld [vmem:[#allocation12 + $0x18] sm:$0xff]
    %v2697 = vld [vmem:[#allocation12 + $0x20] sm:$0xff]
    %v2698 = vld [vmem:[#allocation12 + $0x28] sm:$0xff]
    %v2699 = vld [vmem:[#allocation12 + $0x30] sm:$0xff]
    %v2700 = vld [vmem:[#allocation12 + $0x38] sm:$0xff]
    %v2701 = vld [vmem:[#allocation12 + $0x40] sm:$0xff]
    %v2702 = vld [vmem:[#allocation12 + $0x48] sm:$0xff]
    %v2703 = vld [vmem:[#allocation12 + $0x50] sm:$0xff]
    %v2704 = vld [vmem:[#allocation12 + $0x58] sm:$0xff]
    %v2705 = vld [vmem:[#allocation12 + $0x60] sm:$0xff]
    %v2706 = vld [vmem:[#allocation12 + $0x68] sm:$0xff]
    %v2707 = vld [vmem:[#allocation12 + $0x70] sm:$0xff]
    %v2708 = vld [vmem:[#allocation12 + $0x78] sm:$0xff]
    %v2709 = vld [vmem:[#allocation12 + $0x80] sm:$0xff]
    %v2710 = vld [vmem:[#allocation12 + $0x88] sm:$0xff]
    %v2711 = vld [vmem:[#allocation12 + $0x90] sm:$0xff]
    %v2712 = vld [vmem:[#allocation12 + $0x98] sm:$0xff]
    %v2713 = vld [vmem:[#allocation12 + $0xa0] sm:$0xff]
    %v2714 = vld [vmem:[#allocation12 + $0xa8] sm:$0xff]
    %v2715 = vld [vmem:[#allocation12 + $0xb0] sm:$0xff]
    %v2716 = vld [vmem:[#allocation12 + $0xb8] sm:$0xff]
    %v2717 = vld [vmem:[#allocation12 + $0xc0] sm:$0xff]
    %v2718 = vld [vmem:[#allocation12 + $0xc8] sm:$0xff]
    %v2719 = vld [vmem:[#allocation12 + $0xd0] sm:$0xff]
    %v2720 = vld [vmem:[#allocation12 + $0xd8] sm:$0xff]
    %v2721 = vld [vmem:[#allocation12 + $0xe0] sm:$0xff]
    %v2722 = vld [vmem:[#allocation12 + $0xe8] sm:$0xff]
    %v2723 = vld [vmem:[#allocation12 + $0xf0] sm:$0xff]
    %v2724 = vld [vmem:[#allocation12 + $0xf8] sm:$0xff]
    %v2725 = vld [vmem:[#allocation12 + $0x100] sm:$0xff]
    %v2726 = vld [vmem:[#allocation12 + $0x108] sm:$0xff]
    %v2727 = vld [vmem:[#allocation12 + $0x110] sm:$0xff]
    %v2728 = vld [vmem:[#allocation12 + $0x118] sm:$0xff]
    %v2729 = vld [vmem:[#allocation12 + $0x120] sm:$0xff]
    %v2730 = vld [vmem:[#allocation12 + $0x128] sm:$0xff]
    %v2731 = vld [vmem:[#allocation12 + $0x130] sm:$0xff]
    %v2732 = vld [vmem:[#allocation12 + $0x138] sm:$0xff]
    %v2733 = vld [vmem:[#allocation12 + $0x140] sm:$0xff]
    %v2734 = vld [vmem:[#allocation12 + $0x148] sm:$0xff]
    %v2735 = vld [vmem:[#allocation12 + $0x150] sm:$0xff]
    %v2736 = vld [vmem:[#allocation12 + $0x158] sm:$0xff]
    %v2737 = vld [vmem:[#allocation12 + $0x160] sm:$0xff]
    %v2738 = vld [vmem:[#allocation12 + $0x168] sm:$0xff]
    %v2739 = vld [vmem:[#allocation12 + $0x170] sm:$0xff]
    %v2740 = vld [vmem:[#allocation12 + $0x178] sm:$0xff]
    %v2741 = vld [vmem:[#allocation12 + $0x180] sm:$0xff]
    %v2742 = vld [vmem:[#allocation12 + $0x188] sm:$0xff]
    %v2743 = vld [vmem:[#allocation12 + $0x190] sm:$0xff]
    %v2744 = vld [vmem:[#allocation12 + $0x198] sm:$0xff]
    %v2745 = vld [vmem:[#allocation12 + $0x1a0] sm:$0xff]
    %v2746 = vld [vmem:[#allocation12 + $0x1a8] sm:$0xff]
    %v2747 = vld [vmem:[#allocation12 + $0x1b0] sm:$0xff]
    %v2748 = vld [vmem:[#allocation12 + $0x1b8] sm:$0xff]
    %v2749 = vld [vmem:[#allocation12 + $0x1c0] sm:$0xff]
    %v2750 = vld [vmem:[#allocation12 + $0x1c8] sm:$0xff]
    %v2751 = vld [vmem:[#allocation12 + $0x1d0] sm:$0xff]
    %v2752 = vld [vmem:[#allocation12 + $0x1d8] sm:$0xff]
    %v2753 = vld [vmem:[#allocation12 + $0x1e0] sm:$0xff]
    %v2754 = vld [vmem:[#allocation12 + $0x1e8] sm:$0xff]
    %v2755 = vld [vmem:[#allocation12 + $0x1f0] sm:$0xff]
    %v2756 = vld [vmem:[#allocation12 + $0x1f8] sm:$0xff]
    %v2757 = vld [vmem:[#allocation12 + $0x200] sm:$0xff]
    %v2758 = vld [vmem:[#allocation12 + $0x208] sm:$0xff]
    %v2759 = vld [vmem:[#allocation12 + $0x210] sm:$0xff]
    %v2760 = vld [vmem:[#allocation12 + $0x218] sm:$0xff]
    %v2761 = vld [vmem:[#allocation12 + $0x220] sm:$0xff]
    %v2762 = vld [vmem:[#allocation12 + $0x228] sm:$0xff]
    %v2763 = vld [vmem:[#allocation12 + $0x230] sm:$0xff]
    %v2764 = vld [vmem:[#allocation12 + $0x238] sm:$0xff]
    %v2765 = vld [vmem:[#allocation12 + $0x240] sm:$0xff]
    %v2766 = vld [vmem:[#allocation12 + $0x248] sm:$0xff]
    %v2767 = vld [vmem:[#allocation12 + $0x250] sm:$0xff]
    %v2768 = vld [vmem:[#allocation12 + $0x258] sm:$0xff]
    %v2769 = vld [vmem:[#allocation12 + $0x260] sm:$0xff]
    %v2770 = vld [vmem:[#allocation12 + $0x268] sm:$0xff]
    %v2771 = vld [vmem:[#allocation12 + $0x270] sm:$0xff]
    %v2772 = vld [vmem:[#allocation12 + $0x278] sm:$0xff]
    %v2773 = vld [vmem:[#allocation12 + $0x280] sm:$0xff]
    %v2774 = vld [vmem:[#allocation12 + $0x288] sm:$0xff]
    %v2775 = vld [vmem:[#allocation12 + $0x290] sm:$0xff]
    %v2776 = vld [vmem:[#allocation12 + $0x298] sm:$0xff]
    %v2777 = vld [vmem:[#allocation12 + $0x2a0] sm:$0xff]
    %v2778 = vld [vmem:[#allocation12 + $0x2a8] sm:$0xff]
    %v2779 = vld [vmem:[#allocation12 + $0x2b0] sm:$0xff]
    %v2780 = vld [vmem:[#allocation12 + $0x2b8] sm:$0xff]
    %v2781 = vld [vmem:[#allocation12 + $0x2c0] sm:$0xff]
    %v2782 = vld [vmem:[#allocation12 + $0x2c8] sm:$0xff]
    %v2783 = vld [vmem:[#allocation12 + $0x2d0] sm:$0xff]
    %v2784 = vld [vmem:[#allocation12 + $0x2d8] sm:$0xff]
    %v2785 = vld [vmem:[#allocation12 + $0x2e0] sm:$0xff]
    %v2786 = vld [vmem:[#allocation12 + $0x2e8] sm:$0xff]
    %v2787 = vld [vmem:[#allocation12 + $0x2f0] sm:$0xff]
    %v2788 = vld [vmem:[#allocation12 + $0x2f8] sm:$0xff]
    %v2789 = vld [vmem:[#allocation12 + $0x300] sm:$0xff]
    %v2790 = vld [vmem:[#allocation12 + $0x308] sm:$0xff]
    %v2791 = vld [vmem:[#allocation12 + $0x310] sm:$0xff]
    %v2792 = vld [vmem:[#allocation12 + $0x318] sm:$0xff]
    %v2793 = vld [vmem:[#allocation12 + $0x320] sm:$0xff]
    %v2794 = vld [vmem:[#allocation12 + $0x328] sm:$0xff]
    %v2795 = vld [vmem:[#allocation12 + $0x330] sm:$0xff]
    %v2796 = vld [vmem:[#allocation12 + $0x338] sm:$0xff]
    %v2797 = vld [vmem:[#allocation12 + $0x340] sm:$0xff]
    %v2798 = vld [vmem:[#allocation12 + $0x348] sm:$0xff]
    %v2799 = vld [vmem:[#allocation12 + $0x350] sm:$0xff]
    %v2800 = vld [vmem:[#allocation12 + $0x358] sm:$0xff]
    %v2801 = vld [vmem:[#allocation12 + $0x360] sm:$0xff]
    %v2802 = vld [vmem:[#allocation12 + $0x368] sm:$0xff]
    %v2803 = vld [vmem:[#allocation12 + $0x370] sm:$0xff]
    %v2804 = vld [vmem:[#allocation12 + $0x378] sm:$0xff]
    %v2805 = vld [vmem:[#allocation12 + $0x380] sm:$0xff]
    %v2806 = vld [vmem:[#allocation12 + $0x388] sm:$0xff]
    %v2807 = vld [vmem:[#allocation12 + $0x390] sm:$0xff]
    %v2808 = vld [vmem:[#allocation12 + $0x398] sm:$0xff]
    %v2809 = vld [vmem:[#allocation12 + $0x3a0] sm:$0xff]
    %v2810 = vld [vmem:[#allocation12 + $0x3a8] sm:$0xff]
    %v2811 = vld [vmem:[#allocation12 + $0x3b0] sm:$0xff]
    %v2812 = vld [vmem:[#allocation12 + $0x3b8] sm:$0xff]
    %v2813 = vld [vmem:[#allocation12 + $0x3c0] sm:$0xff]
    %v2814 = vld [vmem:[#allocation12 + $0x3c8] sm:$0xff]
    %v2815 = vld [vmem:[#allocation12 + $0x3d0] sm:$0xff]
    %v2816 = vld [vmem:[#allocation12 + $0x3d8] sm:$0xff]
    %v2817 = vld [vmem:[#allocation12 + $0x3e0] sm:$0xff]
    %v2818 = vld [vmem:[#allocation12 + $0x3e8] sm:$0xff]
    %v2819 = vld [vmem:[#allocation12 + $0x3f0] sm:$0xff]
    %v2820 = vld [vmem:[#allocation12 + $0x3f8] sm:$0xff]
    %v2821 = vld [vmem:[%s10] sm:$0xf]
    %v2823 = vlaneseq
    %v2824 = vshrl.u32 %v2823, 7
    %v2825 = vsub.s32 0, %v2824
    %v2826 = vrot.slane %v2821, %v2825
    %v2827 = vlaneseq
    %v2828 = vshrl.u32 %v2827, 7
    %v2829 = vsub.s32 1, %v2828
    %v2830 = vrot.slane %v2821, %v2829
    %v2831 = vlaneseq
    %v2832 = vshrl.u32 %v2831, 7
    %v2833 = vsub.s32 2, %v2832
    %v2834 = vrot.slane %v2821, %v2833
    %v2835 = vlaneseq
    %v2836 = vshrl.u32 %v2835, 7
    %v2837 = vsub.s32 3, %v2836
    %v2838 = vrot.slane %v2821, %v2837
    %v2971 = vunpack.c.l.b16 %v2693
    %v2972 = vunpack.c.h.b16 %v2693
    %v2973 = vunpack.c.l.b16 %v2694
    %v2974 = vunpack.c.h.b16 %v2694
    %v2975 = vunpack.c.l.b16 %v2695
    %v2976 = vunpack.c.h.b16 %v2695
    %v2977 = vunpack.c.l.b16 %v2696
    %v2978 = vunpack.c.h.b16 %v2696
    %v2979 = vunpack.c.l.b16 %v2697
    %v2980 = vunpack.c.h.b16 %v2697
    %v2981 = vunpack.c.l.b16 %v2698
    %v2982 = vunpack.c.h.b16 %v2698
    %v2983 = vunpack.c.l.b16 %v2699
    %v2984 = vunpack.c.h.b16 %v2699
    %v2985 = vunpack.c.l.b16 %v2700
    %v2986 = vunpack.c.h.b16 %v2700
    %v2987 = vunpack.c.l.b16 %v2701
    %v2988 = vunpack.c.h.b16 %v2701
    %v2989 = vunpack.c.l.b16 %v2702
    %v2990 = vunpack.c.h.b16 %v2702
    %v2991 = vunpack.c.l.b16 %v2703
    %v2992 = vunpack.c.h.b16 %v2703
    %v2993 = vunpack.c.l.b16 %v2704
    %v2994 = vunpack.c.h.b16 %v2704
    %v2995 = vunpack.c.l.b16 %v2705
    %v2996 = vunpack.c.h.b16 %v2705
    %v2997 = vunpack.c.l.b16 %v2706
    %v2998 = vunpack.c.h.b16 %v2706
    %v2999 = vunpack.c.l.b16 %v2707
    %v3000 = vunpack.c.h.b16 %v2707
    %v3001 = vunpack.c.l.b16 %v2708
    %v3002 = vunpack.c.h.b16 %v2708
    %v3003 = vunpack.c.l.b16 %v2709
    %v3004 = vunpack.c.h.b16 %v2709
    %v3005 = vunpack.c.l.b16 %v2710
    %v3006 = vunpack.c.h.b16 %v2710
    %v3007 = vunpack.c.l.b16 %v2711
    %v3008 = vunpack.c.h.b16 %v2711
    %v3009 = vunpack.c.l.b16 %v2712
    %v3010 = vunpack.c.h.b16 %v2712
    %v3011 = vunpack.c.l.b16 %v2713
    %v3012 = vunpack.c.h.b16 %v2713
    %v3013 = vunpack.c.l.b16 %v2714
    %v3014 = vunpack.c.h.b16 %v2714
    %v3015 = vunpack.c.l.b16 %v2715
    %v3016 = vunpack.c.h.b16 %v2715
    %v3017 = vunpack.c.l.b16 %v2716
    %v3018 = vunpack.c.h.b16 %v2716
    %v3019 = vunpack.c.l.b16 %v2717
    %v3020 = vunpack.c.h.b16 %v2717
    %v3021 = vunpack.c.l.b16 %v2718
    %v3022 = vunpack.c.h.b16 %v2718
    %v3023 = vunpack.c.l.b16 %v2719
    %v3024 = vunpack.c.h.b16 %v2719
    %v3025 = vunpack.c.l.b16 %v2720
    %v3026 = vunpack.c.h.b16 %v2720
    %v3027 = vunpack.c.l.b16 %v2721
    %v3028 = vunpack.c.h.b16 %v2721
    %v3029 = vunpack.c.l.b16 %v2722
    %v3030 = vunpack.c.h.b16 %v2722
    %v3031 = vunpack.c.l.b16 %v2723
    %v3032 = vunpack.c.h.b16 %v2723
    %v3033 = vunpack.c.l.b16 %v2724
    %v3034 = vunpack.c.h.b16 %v2724
    %v3035 = vunpack.c.l.b16 %v2725
    %v3036 = vunpack.c.h.b16 %v2725
    %v3037 = vunpack.c.l.b16 %v2726
    %v3038 = vunpack.c.h.b16 %v2726
    %v3039 = vunpack.c.l.b16 %v2727
    %v3040 = vunpack.c.h.b16 %v2727
    %v3041 = vunpack.c.l.b16 %v2728
    %v3042 = vunpack.c.h.b16 %v2728
    %v3043 = vunpack.c.l.b16 %v2729
    %v3044 = vunpack.c.h.b16 %v2729
    %v3045 = vunpack.c.l.b16 %v2730
    %v3046 = vunpack.c.h.b16 %v2730
    %v3047 = vunpack.c.l.b16 %v2731
    %v3048 = vunpack.c.h.b16 %v2731
    %v3049 = vunpack.c.l.b16 %v2732
    %v3050 = vunpack.c.h.b16 %v2732
    %v3051 = vunpack.c.l.b16 %v2733
    %v3052 = vunpack.c.h.b16 %v2733
    %v3053 = vunpack.c.l.b16 %v2734
    %v3054 = vunpack.c.h.b16 %v2734
    %v3055 = vunpack.c.l.b16 %v2735
    %v3056 = vunpack.c.h.b16 %v2735
    %v3057 = vunpack.c.l.b16 %v2736
    %v3058 = vunpack.c.h.b16 %v2736
    %v3059 = vunpack.c.l.b16 %v2737
    %v3060 = vunpack.c.h.b16 %v2737
    %v3061 = vunpack.c.l.b16 %v2738
    %v3062 = vunpack.c.h.b16 %v2738
    %v3063 = vunpack.c.l.b16 %v2739
    %v3064 = vunpack.c.h.b16 %v2739
    %v3065 = vunpack.c.l.b16 %v2740
    %v3066 = vunpack.c.h.b16 %v2740
    %v3067 = vunpack.c.l.b16 %v2741
    %v3068 = vunpack.c.h.b16 %v2741
    %v3069 = vunpack.c.l.b16 %v2742
    %v3070 = vunpack.c.h.b16 %v2742
    %v3071 = vunpack.c.l.b16 %v2743
    %v3072 = vunpack.c.h.b16 %v2743
    %v3073 = vunpack.c.l.b16 %v2744
    %v3074 = vunpack.c.h.b16 %v2744
    %v3075 = vunpack.c.l.b16 %v2745
    %v3076 = vunpack.c.h.b16 %v2745
    %v3077 = vunpack.c.l.b16 %v2746
    %v3078 = vunpack.c.h.b16 %v2746
    %v3079 = vunpack.c.l.b16 %v2747
    %v3080 = vunpack.c.h.b16 %v2747
    %v3081 = vunpack.c.l.b16 %v2748
    %v3082 = vunpack.c.h.b16 %v2748
    %v3083 = vunpack.c.l.b16 %v2749
    %v3084 = vunpack.c.h.b16 %v2749
    %v3085 = vunpack.c.l.b16 %v2750
    %v3086 = vunpack.c.h.b16 %v2750
    %v3087 = vunpack.c.l.b16 %v2751
    %v3088 = vunpack.c.h.b16 %v2751
    %v3089 = vunpack.c.l.b16 %v2752
    %v3090 = vunpack.c.h.b16 %v2752
    %v3091 = vunpack.c.l.b16 %v2753
    %v3092 = vunpack.c.h.b16 %v2753
    %v3093 = vunpack.c.l.b16 %v2754
    %v3094 = vunpack.c.h.b16 %v2754
    %v3095 = vunpack.c.l.b16 %v2755
    %v3096 = vunpack.c.h.b16 %v2755
    %v3097 = vunpack.c.l.b16 %v2756
    %v3098 = vunpack.c.h.b16 %v2756
    %v3099 = vunpack.c.l.b16 %v2757
    %v3100 = vunpack.c.h.b16 %v2757
    %v3101 = vunpack.c.l.b16 %v2758
    %v3102 = vunpack.c.h.b16 %v2758
    %v3103 = vunpack.c.l.b16 %v2759
    %v3104 = vunpack.c.h.b16 %v2759
    %v3105 = vunpack.c.l.b16 %v2760
    %v3106 = vunpack.c.h.b16 %v2760
    %v3107 = vunpack.c.l.b16 %v2761
    %v3108 = vunpack.c.h.b16 %v2761
    %v3109 = vunpack.c.l.b16 %v2762
    %v3110 = vunpack.c.h.b16 %v2762
    %v3111 = vunpack.c.l.b16 %v2763
    %v3112 = vunpack.c.h.b16 %v2763
    %v3113 = vunpack.c.l.b16 %v2764
    %v3114 = vunpack.c.h.b16 %v2764
    %v3115 = vunpack.c.l.b16 %v2765
    %v3116 = vunpack.c.h.b16 %v2765
    %v3117 = vunpack.c.l.b16 %v2766
    %v3118 = vunpack.c.h.b16 %v2766
    %v3119 = vunpack.c.l.b16 %v2767
    %v3120 = vunpack.c.h.b16 %v2767
    %v3121 = vunpack.c.l.b16 %v2768
    %v3122 = vunpack.c.h.b16 %v2768
    %v3123 = vunpack.c.l.b16 %v2769
    %v3124 = vunpack.c.h.b16 %v2769
    %v3125 = vunpack.c.l.b16 %v2770
    %v3126 = vunpack.c.h.b16 %v2770
    %v3127 = vunpack.c.l.b16 %v2771
    %v3128 = vunpack.c.h.b16 %v2771
    %v3129 = vunpack.c.l.b16 %v2772
    %v3130 = vunpack.c.h.b16 %v2772
    %v3131 = vunpack.c.l.b16 %v2773
    %v3132 = vunpack.c.h.b16 %v2773
    %v3133 = vunpack.c.l.b16 %v2774
    %v3134 = vunpack.c.h.b16 %v2774
    %v3135 = vunpack.c.l.b16 %v2775
    %v3136 = vunpack.c.h.b16 %v2775
    %v3137 = vunpack.c.l.b16 %v2776
    %v3138 = vunpack.c.h.b16 %v2776
    %v3139 = vunpack.c.l.b16 %v2777
    %v3140 = vunpack.c.h.b16 %v2777
    %v3141 = vunpack.c.l.b16 %v2778
    %v3142 = vunpack.c.h.b16 %v2778
    %v3143 = vunpack.c.l.b16 %v2779
    %v3144 = vunpack.c.h.b16 %v2779
    %v3145 = vunpack.c.l.b16 %v2780
    %v3146 = vunpack.c.h.b16 %v2780
    %v3147 = vunpack.c.l.b16 %v2781
    %v3148 = vunpack.c.h.b16 %v2781
    %v3149 = vunpack.c.l.b16 %v2782
    %v3150 = vunpack.c.h.b16 %v2782
    %v3151 = vunpack.c.l.b16 %v2783
    %v3152 = vunpack.c.h.b16 %v2783
    %v3153 = vunpack.c.l.b16 %v2784
    %v3154 = vunpack.c.h.b16 %v2784
    %v3155 = vunpack.c.l.b16 %v2785
    %v3156 = vunpack.c.h.b16 %v2785
    %v3157 = vunpack.c.l.b16 %v2786
    %v3158 = vunpack.c.h.b16 %v2786
    %v3159 = vunpack.c.l.b16 %v2787
    %v3160 = vunpack.c.h.b16 %v2787
    %v3161 = vunpack.c.l.b16 %v2788
    %v3162 = vunpack.c.h.b16 %v2788
    %v3163 = vunpack.c.l.b16 %v2789
    %v3164 = vunpack.c.h.b16 %v2789
    %v3165 = vunpack.c.l.b16 %v2790
    %v3166 = vunpack.c.h.b16 %v2790
    %v3167 = vunpack.c.l.b16 %v2791
    %v3168 = vunpack.c.h.b16 %v2791
    %v3169 = vunpack.c.l.b16 %v2792
    %v3170 = vunpack.c.h.b16 %v2792
    %v3171 = vunpack.c.l.b16 %v2793
    %v3172 = vunpack.c.h.b16 %v2793
    %v3173 = vunpack.c.l.b16 %v2794
    %v3174 = vunpack.c.h.b16 %v2794
    %v3175 = vunpack.c.l.b16 %v2795
    %v3176 = vunpack.c.h.b16 %v2795
    %v3177 = vunpack.c.l.b16 %v2796
    %v3178 = vunpack.c.h.b16 %v2796
    %v3179 = vunpack.c.l.b16 %v2797
    %v3180 = vunpack.c.h.b16 %v2797
    %v3181 = vunpack.c.l.b16 %v2798
    %v3182 = vunpack.c.h.b16 %v2798
    %v3183 = vunpack.c.l.b16 %v2799
    %v3184 = vunpack.c.h.b16 %v2799
    %v3185 = vunpack.c.l.b16 %v2800
    %v3186 = vunpack.c.h.b16 %v2800
    %v3187 = vunpack.c.l.b16 %v2801
    %v3188 = vunpack.c.h.b16 %v2801
    %v3189 = vunpack.c.l.b16 %v2802
    %v3190 = vunpack.c.h.b16 %v2802
    %v3191 = vunpack.c.l.b16 %v2803
    %v3192 = vunpack.c.h.b16 %v2803
    %v3193 = vunpack.c.l.b16 %v2804
    %v3194 = vunpack.c.h.b16 %v2804
    %v3195 = vunpack.c.l.b16 %v2805
    %v3196 = vunpack.c.h.b16 %v2805
    %v3197 = vunpack.c.l.b16 %v2806
    %v3198 = vunpack.c.h.b16 %v2806
    %v3199 = vunpack.c.l.b16 %v2807
    %v3200 = vunpack.c.h.b16 %v2807
    %v3201 = vunpack.c.l.b16 %v2808
    %v3202 = vunpack.c.h.b16 %v2808
    %v3203 = vunpack.c.l.b16 %v2809
    %v3204 = vunpack.c.h.b16 %v2809
    %v3205 = vunpack.c.l.b16 %v2810
    %v3206 = vunpack.c.h.b16 %v2810
    %v3207 = vunpack.c.l.b16 %v2811
    %v3208 = vunpack.c.h.b16 %v2811
    %v3209 = vunpack.c.l.b16 %v2812
    %v3210 = vunpack.c.h.b16 %v2812
    %v3211 = vunpack.c.l.b16 %v2813
    %v3212 = vunpack.c.h.b16 %v2813
    %v3213 = vunpack.c.l.b16 %v2814
    %v3214 = vunpack.c.h.b16 %v2814
    %v3215 = vunpack.c.l.b16 %v2815
    %v3216 = vunpack.c.h.b16 %v2815
    %v3217 = vunpack.c.l.b16 %v2816
    %v3218 = vunpack.c.h.b16 %v2816
    %v3219 = vunpack.c.l.b16 %v2817
    %v3220 = vunpack.c.h.b16 %v2817
    %v3221 = vunpack.c.l.b16 %v2818
    %v3222 = vunpack.c.h.b16 %v2818
    %v3223 = vunpack.c.l.b16 %v2819
    %v3224 = vunpack.c.h.b16 %v2819
    %v3225 = vunpack.c.l.b16 %v2820
    %v3226 = vunpack.c.h.b16 %v2820
    %v3227 = vpack.c.b16 %v2975, %v2971
    %v3228 = vpack.c.b16 %v2976, %v2972
    %v3229 = vpack.c.b16 %v2977, %v2973
    %v3230 = vpack.c.b16 %v2978, %v2974
    %v3231 = vpack.c.b16 %v2983, %v2979
    %v3232 = vpack.c.b16 %v2984, %v2980
    %v3233 = vpack.c.b16 %v2985, %v2981
    %v3234 = vpack.c.b16 %v2986, %v2982
    %v3235 = vpack.c.b16 %v2991, %v2987
    %v3236 = vpack.c.b16 %v2992, %v2988
    %v3237 = vpack.c.b16 %v2993, %v2989
    %v3238 = vpack.c.b16 %v2994, %v2990
    %v3239 = vpack.c.b16 %v2999, %v2995
    %v3240 = vpack.c.b16 %v3000, %v2996
    %v3241 = vpack.c.b16 %v3001, %v2997
    %v3242 = vpack.c.b16 %v3002, %v2998
    %v3243 = vpack.c.b16 %v3007, %v3003
    %v3244 = vpack.c.b16 %v3008, %v3004
    %v3245 = vpack.c.b16 %v3009, %v3005
    %v3246 = vpack.c.b16 %v3010, %v3006
    %v3247 = vpack.c.b16 %v3015, %v3011
    %v3248 = vpack.c.b16 %v3016, %v3012
    %v3249 = vpack.c.b16 %v3017, %v3013
    %v3250 = vpack.c.b16 %v3018, %v3014
    %v3251 = vpack.c.b16 %v3023, %v3019
    %v3252 = vpack.c.b16 %v3024, %v3020
    %v3253 = vpack.c.b16 %v3025, %v3021
    %v3254 = vpack.c.b16 %v3026, %v3022
    %v3255 = vpack.c.b16 %v3031, %v3027
    %v3256 = vpack.c.b16 %v3032, %v3028
    %v3257 = vpack.c.b16 %v3033, %v3029
    %v3258 = vpack.c.b16 %v3034, %v3030
    %v3259 = vpack.c.b16 %v3039, %v3035
    %v3260 = vpack.c.b16 %v3040, %v3036
    %v3261 = vpack.c.b16 %v3041, %v3037
    %v3262 = vpack.c.b16 %v3042, %v3038
    %v3263 = vpack.c.b16 %v3047, %v3043
    %v3264 = vpack.c.b16 %v3048, %v3044
    %v3265 = vpack.c.b16 %v3049, %v3045
    %v3266 = vpack.c.b16 %v3050, %v3046
    %v3267 = vpack.c.b16 %v3055, %v3051
    %v3268 = vpack.c.b16 %v3056, %v3052
    %v3269 = vpack.c.b16 %v3057, %v3053
    %v3270 = vpack.c.b16 %v3058, %v3054
    %v3271 = vpack.c.b16 %v3063, %v3059
    %v3272 = vpack.c.b16 %v3064, %v3060
    %v3273 = vpack.c.b16 %v3065, %v3061
    %v3274 = vpack.c.b16 %v3066, %v3062
    %v3275 = vpack.c.b16 %v3071, %v3067
    %v3276 = vpack.c.b16 %v3072, %v3068
    %v3277 = vpack.c.b16 %v3073, %v3069
    %v3278 = vpack.c.b16 %v3074, %v3070
    %v3279 = vpack.c.b16 %v3079, %v3075
    %v3280 = vpack.c.b16 %v3080, %v3076
    %v3281 = vpack.c.b16 %v3081, %v3077
    %v3282 = vpack.c.b16 %v3082, %v3078
    %v3283 = vpack.c.b16 %v3087, %v3083
    %v3284 = vpack.c.b16 %v3088, %v3084
    %v3285 = vpack.c.b16 %v3089, %v3085
    %v3286 = vpack.c.b16 %v3090, %v3086
    %v3287 = vpack.c.b16 %v3095, %v3091
    %v3288 = vpack.c.b16 %v3096, %v3092
    %v3289 = vpack.c.b16 %v3097, %v3093
    %v3290 = vpack.c.b16 %v3098, %v3094
    %v3291 = vpack.c.b16 %v3103, %v3099
    %v3292 = vpack.c.b16 %v3104, %v3100
    %v3293 = vpack.c.b16 %v3105, %v3101
    %v3294 = vpack.c.b16 %v3106, %v3102
    %v3295 = vpack.c.b16 %v3111, %v3107
    %v3296 = vpack.c.b16 %v3112, %v3108
    %v3297 = vpack.c.b16 %v3113, %v3109
    %v3298 = vpack.c.b16 %v3114, %v3110
    %v3299 = vpack.c.b16 %v3119, %v3115
    %v3300 = vpack.c.b16 %v3120, %v3116
    %v3301 = vpack.c.b16 %v3121, %v3117
    %v3302 = vpack.c.b16 %v3122, %v3118
    %v3303 = vpack.c.b16 %v3127, %v3123
    %v3304 = vpack.c.b16 %v3128, %v3124
    %v3305 = vpack.c.b16 %v3129, %v3125
    %v3306 = vpack.c.b16 %v3130, %v3126
    %v3307 = vpack.c.b16 %v3135, %v3131
    %v3308 = vpack.c.b16 %v3136, %v3132
    %v3309 = vpack.c.b16 %v3137, %v3133
    %v3310 = vpack.c.b16 %v3138, %v3134
    %v3311 = vpack.c.b16 %v3143, %v3139
    %v3312 = vpack.c.b16 %v3144, %v3140
    %v3313 = vpack.c.b16 %v3145, %v3141
    %v3314 = vpack.c.b16 %v3146, %v3142
    %v3315 = vpack.c.b16 %v3151, %v3147
    %v3316 = vpack.c.b16 %v3152, %v3148
    %v3317 = vpack.c.b16 %v3153, %v3149
    %v3318 = vpack.c.b16 %v3154, %v3150
    %v3319 = vpack.c.b16 %v3159, %v3155
    %v3320 = vpack.c.b16 %v3160, %v3156
    %v3321 = vpack.c.b16 %v3161, %v3157
    %v3322 = vpack.c.b16 %v3162, %v3158
    %v3323 = vpack.c.b16 %v3167, %v3163
    %v3324 = vpack.c.b16 %v3168, %v3164
    %v3325 = vpack.c.b16 %v3169, %v3165
    %v3326 = vpack.c.b16 %v3170, %v3166
    %v3327 = vpack.c.b16 %v3175, %v3171
    %v3328 = vpack.c.b16 %v3176, %v3172
    %v3329 = vpack.c.b16 %v3177, %v3173
    %v3330 = vpack.c.b16 %v3178, %v3174
    %v3331 = vpack.c.b16 %v3183, %v3179
    %v3332 = vpack.c.b16 %v3184, %v3180
    %v3333 = vpack.c.b16 %v3185, %v3181
    %v3334 = vpack.c.b16 %v3186, %v3182
    %v3335 = vpack.c.b16 %v3191, %v3187
    %v3336 = vpack.c.b16 %v3192, %v3188
    %v3337 = vpack.c.b16 %v3193, %v3189
    %v3338 = vpack.c.b16 %v3194, %v3190
    %v3339 = vpack.c.b16 %v3199, %v3195
    %v3340 = vpack.c.b16 %v3200, %v3196
    %v3341 = vpack.c.b16 %v3201, %v3197
    %v3342 = vpack.c.b16 %v3202, %v3198
    %v3343 = vpack.c.b16 %v3207, %v3203
    %v3344 = vpack.c.b16 %v3208, %v3204
    %v3345 = vpack.c.b16 %v3209, %v3205
    %v3346 = vpack.c.b16 %v3210, %v3206
    %v3347 = vpack.c.b16 %v3215, %v3211
    %v3348 = vpack.c.b16 %v3216, %v3212
    %v3349 = vpack.c.b16 %v3217, %v3213
    %v3350 = vpack.c.b16 %v3218, %v3214
    %v3351 = vpack.c.b16 %v3223, %v3219
    %v3352 = vpack.c.b16 %v3224, %v3220
    %v3353 = vpack.c.b16 %v3225, %v3221
    %v3354 = vpack.c.b16 %v3226, %v3222
    %3483 = vmatprep.subr.bf16.mxu0 %v3228
    %3484 = vmatpush1.bf16.msra.mxu0 %v3227
    %3485 = vmatprep.subr.bf16.mxu0 %v3232
    %3486 = vmatpush1.bf16.msra.mxu0 %v3231
    %3487 = vmatprep.subr.bf16.mxu0 %v3236
    %3488 = vmatpush1.bf16.msra.mxu0 %v3235
    %3489 = vmatprep.subr.bf16.mxu0 %v3240
    %3490 = vmatpush1.bf16.msra.mxu0 %v3239
    %3491 = vmatprep.subr.bf16.mxu0 %v3244
    %3492 = vmatpush1.bf16.msra.mxu0 %v3243
    %3493 = vmatprep.subr.bf16.mxu0 %v3248
    %3494 = vmatpush1.bf16.msra.mxu0 %v3247
    %3495 = vmatprep.subr.bf16.mxu0 %v3252
    %3496 = vmatpush1.bf16.msra.mxu0 %v3251
    %3497 = vmatprep.subr.bf16.mxu0 %v3256
    %3498 = vmatpush1.bf16.msra.mxu0 %v3255
    %3499 = vmatprep.subr.bf16.mxu0 %v3260
    %3500 = vmatpush1.bf16.msra.mxu0 %v3259
    %3501 = vmatprep.subr.bf16.mxu0 %v3264
    %3502 = vmatpush1.bf16.msra.mxu0 %v3263
    %3503 = vmatprep.subr.bf16.mxu0 %v3268
    %3504 = vmatpush1.bf16.msra.mxu0 %v3267
    %3505 = vmatprep.subr.bf16.mxu0 %v3272
    %3506 = vmatpush1.bf16.msra.mxu0 %v3271
    %3507 = vmatprep.subr.bf16.mxu0 %v3276
    %3508 = vmatpush1.bf16.msra.mxu0 %v3275
    %3509 = vmatprep.subr.bf16.mxu0 %v3280
    %3510 = vmatpush1.bf16.msra.mxu0 %v3279
    %3511 = vmatprep.subr.bf16.mxu0 %v3284
    %3512 = vmatpush1.bf16.msra.mxu0 %v3283
    %3513 = vmatprep.subr.bf16.mxu0 %v3288
    %3514 = vmatpush1.bf16.msra.mxu0 %v3287
    %3515 = vmatprep.mubr.bf16.mxu0 %v766
    %3516 = vmatmul.mubr.bf16.gmra.mrb[0].mxu0 %v765
    %v3517 = vpop.f32.mrb[0].mxu0
    %v3518 = vadd.f32 %v2826, %v3517
    %v3519 = vpop.f32.mrb[0].mxu0
    %v3520 = vadd.f32 %v2830, %v3519
    %v3521 = vpop.f32.mrb[0].mxu0
    %v3522 = vadd.f32 %v2826, %v3521
    %v3523 = vpop.f32.mrb[0].mxu0
    %v3524 = vadd.f32 %v2830, %v3523
    %3525 = vdwg.mxu0
    %3526 = vmatprep.subr.bf16.mxu0 %v3292
    %3527 = vmatpush1.bf16.msra.mxu0 %v3291
    %3528 = vmatprep.subr.bf16.mxu0 %v3296
    %3529 = vmatpush1.bf16.msra.mxu0 %v3295
    %3530 = vmatprep.subr.bf16.mxu0 %v3300
    %3531 = vmatpush1.bf16.msra.mxu0 %v3299
    %3532 = vmatprep.subr.bf16.mxu0 %v3304
    %3533 = vmatpush1.bf16.msra.mxu0 %v3303
    %3534 = vmatprep.subr.bf16.mxu0 %v3308
    %3535 = vmatpush1.bf16.msra.mxu0 %v3307
    %3536 = vmatprep.subr.bf16.mxu0 %v3312
    %3537 = vmatpush1.bf16.msra.mxu0 %v3311
    %3538 = vmatprep.subr.bf16.mxu0 %v3316
    %3539 = vmatpush1.bf16.msra.mxu0 %v3315
    %3540 = vmatprep.subr.bf16.mxu0 %v3320
    %3541 = vmatpush1.bf16.msra.mxu0 %v3319
    %3542 = vmatprep.subr.bf16.mxu0 %v3324
    %3543 = vmatpush1.bf16.msra.mxu0 %v3323
    %3544 = vmatprep.subr.bf16.mxu0 %v3328
    %3545 = vmatpush1.bf16.msra.mxu0 %v3327
    %3546 = vmatprep.subr.bf16.mxu0 %v3332
    %3547 = vmatpush1.bf16.msra.mxu0 %v3331
    %3548 = vmatprep.subr.bf16.mxu0 %v3336
    %3549 = vmatpush1.bf16.msra.mxu0 %v3335
    %3550 = vmatprep.subr.bf16.mxu0 %v3340
    %3551 = vmatpush1.bf16.msra.mxu0 %v3339
    %3552 = vmatprep.subr.bf16.mxu0 %v3344
    %3553 = vmatpush1.bf16.msra.mxu0 %v3343
    %3554 = vmatprep.subr.bf16.mxu0 %v3348
    %3555 = vmatpush1.bf16.msra.mxu0 %v3347
    %3556 = vmatprep.subr.bf16.mxu0 %v3352
    %3557 = vmatpush1.bf16.msra.mxu0 %v3351
    %3558 = vmatprep.mubr.bf16.mxu0 %v768
    %3559 = vmatmul.mubr.bf16.gmra.mrb[0].mxu0 %v767
    %v3560 = vpop.f32.mrb[0].mxu0
    %v3561 = vadd.f32 %v3518, %v3560
    %v3562 = vpop.f32.mrb[0].mxu0
    %v3563 = vadd.f32 %v3520, %v3562
    %v3564 = vpop.f32.mrb[0].mxu0
    %v3565 = vadd.f32 %v3522, %v3564
    %v3566 = vpop.f32.mrb[0].mxu0
    %v3567 = vadd.f32 %v3524, %v3566
    %3568 = vdwg.mxu0
    %3569 = vmatprep.subr.bf16.mxu0 %v3230
    %3570 = vmatpush1.bf16.msra.mxu0 %v3229
    %3571 = vmatprep.subr.bf16.mxu0 %v3234
    %3572 = vmatpush1.bf16.msra.mxu0 %v3233
    %3573 = vmatprep.subr.bf16.mxu0 %v3238
    %3574 = vmatpush1.bf16.msra.mxu0 %v3237
    %3575 = vmatprep.subr.bf16.mxu0 %v3242
    %3576 = vmatpush1.bf16.msra.mxu0 %v3241
    %3577 = vmatprep.subr.bf16.mxu0 %v3246
    %3578 = vmatpush1.bf16.msra.mxu0 %v3245
    %3579 = vmatprep.subr.bf16.mxu0 %v3250
    %3580 = vmatpush1.bf16.msra.mxu0 %v3249
    %3581 = vmatprep.subr.bf16.mxu0 %v3254
    %3582 = vmatpush1.bf16.msra.mxu0 %v3253
    %3583 = vmatprep.subr.bf16.mxu0 %v3258
    %3584 = vmatpush1.bf16.msra.mxu0 %v3257
    %3585 = vmatprep.subr.bf16.mxu0 %v3262
    %3586 = vmatpush1.bf16.msra.mxu0 %v3261
    %3587 = vmatprep.subr.bf16.mxu0 %v3266
    %3588 = vmatpush1.bf16.msra.mxu0 %v3265
    %3589 = vmatprep.subr.bf16.mxu0 %v3270
    %3590 = vmatpush1.bf16.msra.mxu0 %v3269
    %3591 = vmatprep.subr.bf16.mxu0 %v3274
    %3592 = vmatpush1.bf16.msra.mxu0 %v3273
    %3593 = vmatprep.subr.bf16.mxu0 %v3278
    %3594 = vmatpush1.bf16.msra.mxu0 %v3277
    %3595 = vmatprep.subr.bf16.mxu0 %v3282
    %3596 = vmatpush1.bf16.msra.mxu0 %v3281
    %3597 = vmatprep.subr.bf16.mxu0 %v3286
    %3598 = vmatpush1.bf16.msra.mxu0 %v3285
    %3599 = vmatprep.subr.bf16.mxu0 %v3290
    %3600 = vmatpush1.bf16.msra.mxu0 %v3289
    %3601 = vmatprep.mubr.bf16.mxu0 %v766
    %3602 = vmatmul.mubr.bf16.gmra.mrb[0].mxu0 %v765
    %v3603 = vpop.f32.mrb[0].mxu0
    %v3604 = vadd.f32 %v2834, %v3603
    %v3605 = vpop.f32.mrb[0].mxu0
    %v3606 = vadd.f32 %v2838, %v3605
    %v3607 = vpop.f32.mrb[0].mxu0
    %v3608 = vadd.f32 %v2834, %v3607
    %v3609 = vpop.f32.mrb[0].mxu0
    %v3610 = vadd.f32 %v2838, %v3609
    %3611 = vdwg.mxu0
    %3612 = vmatprep.subr.bf16.mxu0 %v3294
    %3613 = vmatpush1.bf16.msra.mxu0 %v3293
    %3614 = vmatprep.subr.bf16.mxu0 %v3298
    %3615 = vmatpush1.bf16.msra.mxu0 %v3297
    %3616 = vmatprep.subr.bf16.mxu0 %v3302
    %3617 = vmatpush1.bf16.msra.mxu0 %v3301
    %3618 = vmatprep.subr.bf16.mxu0 %v3306
    %3619 = vmatpush1.bf16.msra.mxu0 %v3305
    %3620 = vmatprep.subr.bf16.mxu0 %v3310
    %3621 = vmatpush1.bf16.msra.mxu0 %v3309
    %3622 = vmatprep.subr.bf16.mxu0 %v3314
    %3623 = vmatpush1.bf16.msra.mxu0 %v3313
    %3624 = vmatprep.subr.bf16.mxu0 %v3318
    %3625 = vmatpush1.bf16.msra.mxu0 %v3317
    %3626 = vmatprep.subr.bf16.mxu0 %v3322
    %3627 = vmatpush1.bf16.msra.mxu0 %v3321
    %3628 = vmatprep.subr.bf16.mxu0 %v3326
    %3629 = vmatpush1.bf16.msra.mxu0 %v3325
    %3630 = vmatprep.subr.bf16.mxu0 %v3330
    %3631 = vmatpush1.bf16.msra.mxu0 %v3329
    %3632 = vmatprep.subr.bf16.mxu0 %v3334
    %3633 = vmatpush1.bf16.msra.mxu0 %v3333
    %3634 = vmatprep.subr.bf16.mxu0 %v3338
    %3635 = vmatpush1.bf16.msra.mxu0 %v3337
    %3636 = vmatprep.subr.bf16.mxu0 %v3342
    %3637 = vmatpush1.bf16.msra.mxu0 %v3341
    %3638 = vmatprep.subr.bf16.mxu0 %v3346
    %3639 = vmatpush1.bf16.msra.mxu0 %v3345
    %3640 = vmatprep.subr.bf16.mxu0 %v3350
    %3641 = vmatpush1.bf16.msra.mxu0 %v3349
    %3642 = vmatprep.subr.bf16.mxu0 %v3354
    %3643 = vmatpush1.bf16.msra.mxu0 %v3353
    %3644 = vmatprep.mubr.bf16.mxu0 %v768
    %3645 = vmatmul.mubr.bf16.gmra.mrb[0].mxu0 %v767
    %v3646 = vpop.f32.mrb[0].mxu0
    %v3647 = vadd.f32 %v3604, %v3646
    %v3648 = vpop.f32.mrb[0].mxu0
    %v3649 = vadd.f32 %v3606, %v3648
    %v3650 = vpop.f32.mrb[0].mxu0
    %v3651 = vadd.f32 %v3608, %v3650
    %v3652 = vpop.f32.mrb[0].mxu0
    %v3653 = vadd.f32 %v3610, %v3652
    %3654 = vdwg.mxu0
    %v3655 = vpack.c.bf16 %v1641, %v1637
    %v3656 = vpack.c.bf16 %v1643, %v1639
    %v3657 = vpack.c.bf16 %v1727, %v1723
    %v3658 = vpack.c.bf16 %v1729, %v1725
    %v3663 = vunpack.c.l.b16 %v3655
    %v3664 = vunpack.c.l.b16 %v3656
    %v3665 = vunpack.c.l.b16 %v3657
    %v3666 = vunpack.c.l.b16 %v3658
    %v3667 = vunpack.c.h.b16 %v3655
    %v3668 = vunpack.c.h.b16 %v3656
    %v3669 = vunpack.c.h.b16 %v3657
    %v3670 = vunpack.c.h.b16 %v3658
    %v3671 = vpack.c.bf16 %v2603, %v2599
    %v3672 = vpack.c.bf16 %v2605, %v2601
    %v3673 = vpack.c.bf16 %v2689, %v2685
    %v3674 = vpack.c.bf16 %v2691, %v2687
    %v3679 = vunpack.c.l.b16 %v3671
    %v3680 = vunpack.c.l.b16 %v3672
    %v3681 = vunpack.c.l.b16 %v3673
    %v3682 = vunpack.c.l.b16 %v3674
    %v3683 = vunpack.c.h.b16 %v3671
    %v3684 = vunpack.c.h.b16 %v3672
    %v3685 = vunpack.c.h.b16 %v3673
    %v3686 = vunpack.c.h.b16 %v3674
    %v3687 = vpack.c.bf16 %v3565, %v3561
    %v3688 = vpack.c.bf16 %v3567, %v3563
    %v3689 = vpack.c.bf16 %v3651, %v3647
    %v3690 = vpack.c.bf16 %v3653, %v3649
    %v3695 = vunpack.c.l.b16 %v3687
    %v3696 = vunpack.c.l.b16 %v3688
    %v3697 = vunpack.c.l.b16 %v3689
    %v3698 = vunpack.c.l.b16 %v3690
    %v3699 = vunpack.c.h.b16 %v3687
    %v3700 = vunpack.c.h.b16 %v3688
    %v3701 = vunpack.c.h.b16 %v3689
    %v3702 = vunpack.c.h.b16 %v3690
    %v3703 = vpack.c.b16 %v3663, %v3663
    %v3704 = vpack.c.b16 %v3664, %v3664
    %v3705 = vpack.c.b16 %v3665, %v3665
    %v3706 = vpack.c.b16 %v3666, %v3666
    %v3711 = vpack.c.b16 %v3679, %v3679
    %v3712 = vpack.c.b16 %v3680, %v3680
    %v3713 = vpack.c.b16 %v3681, %v3681
    %v3714 = vpack.c.b16 %v3682, %v3682
    %3719 = vmatprep.subr.bf16.mxu0 %v3712
    %3720 = vmatpush1.bf16.xpose.msra.mxu0 %v3711
    %3721 = vmatprep.subr.bf16.mxu0 0
    %3722 = vmatpush1.bf16.xpose.msra.mxu0 0
    %3723 = vmatprep.subr.bf16.mxu0 0
    %3724 = vmatpush1.bf16.xpose.msra.mxu0 0
    %3725 = vmatprep.subr.bf16.mxu0 0
    %3726 = vmatpush1.bf16.xpose.msra.mxu0 0
    %3727 = vmatprep.subr.bf16.mxu0 0
    %3728 = vmatpush1.bf16.xpose.msra.mxu0 0
    %3729 = vmatprep.subr.bf16.mxu0 0
    %3730 = vmatpush1.bf16.xpose.msra.mxu0 0
    %3731 = vmatprep.subr.bf16.mxu0 0
    %3732 = vmatpush1.bf16.xpose.msra.mxu0 0
    %3733 = vmatprep.subr.bf16.mxu0 0
    %3734 = vmatpush1.bf16.xpose.msra.mxu0 0
    %3735 = vmatprep.subr.bf16.mxu0 0
    %3736 = vmatpush1.bf16.xpose.msra.mxu0 0
    %3737 = vmatprep.subr.bf16.mxu0 0
    %3738 = vmatpush1.bf16.xpose.msra.mxu0 0
    %3739 = vmatprep.subr.bf16.mxu0 0
    %3740 = vmatpush1.bf16.xpose.msra.mxu0 0
    %3741 = vmatprep.subr.bf16.mxu0 0
    %3742 = vmatpush1.bf16.xpose.msra.mxu0 0
    %3743 = vmatprep.subr.bf16.mxu0 0
    %3744 = vmatpush1.bf16.xpose.msra.mxu0 0
    %3745 = vmatprep.subr.bf16.mxu0 0
    %3746 = vmatpush1.bf16.xpose.msra.mxu0 0
    %3747 = vmatprep.subr.bf16.mxu0 0
    %3748 = vmatpush1.bf16.xpose.msra.mxu0 0
    %3749 = vmatprep.subr.bf16.mxu0 0
    %3750 = vmatpush1.bf16.xpose.msra.mxu0 0
    %3751 = vmatprep.mubr.bf16.mxu0 %v3704
    %3752 = vmatmul.mubr.bf16.gmra.mrb[0].mxu0 %v3703
    %v3753 = vpop.f32.mrb[0].mxu0
    %v3754 = vadd.f32 0.0, %v3753
    %v3755 = vpop.f32.mrb[0].mxu0
    %v3756 = vpop.f32.mrb[0].mxu0
    %v3757 = vpop.f32.mrb[0].mxu0
    %3758 = vdwg.mxu0
    %3759 = vmatprep.subr.bf16.mxu0 %v3714
    %3760 = vmatpush1.bf16.xpose.msra.mxu0 %v3713
    %3761 = vmatprep.subr.bf16.mxu0 0
    %3762 = vmatpush1.bf16.xpose.msra.mxu0 0
    %3763 = vmatprep.subr.bf16.mxu0 0
    %3764 = vmatpush1.bf16.xpose.msra.mxu0 0
    %3765 = vmatprep.subr.bf16.mxu0 0
    %3766 = vmatpush1.bf16.xpose.msra.mxu0 0
    %3767 = vmatprep.subr.bf16.mxu0 0
    %3768 = vmatpush1.bf16.xpose.msra.mxu0 0
    %3769 = vmatprep.subr.bf16.mxu0 0
    %3770 = vmatpush1.bf16.xpose.msra.mxu0 0
    %3771 = vmatprep.subr.bf16.mxu0 0
    %3772 = vmatpush1.bf16.xpose.msra.mxu0 0
    %3773 = vmatprep.subr.bf16.mxu0 0
    %3774 = vmatpush1.bf16.xpose.msra.mxu0 0
    %3775 = vmatprep.subr.bf16.mxu0 0
    %3776 = vmatpush1.bf16.xpose.msra.mxu0 0
    %3777 = vmatprep.subr.bf16.mxu0 0
    %3778 = vmatpush1.bf16.xpose.msra.mxu0 0
    %3779 = vmatprep.subr.bf16.mxu0 0
    %3780 = vmatpush1.bf16.xpose.msra.mxu0 0
    %3781 = vmatprep.subr.bf16.mxu0 0
    %3782 = vmatpush1.bf16.xpose.msra.mxu0 0
    %3783 = vmatprep.subr.bf16.mxu0 0
    %3784 = vmatpush1.bf16.xpose.msra.mxu0 0
    %3785 = vmatprep.subr.bf16.mxu0 0
    %3786 = vmatpush1.bf16.xpose.msra.mxu0 0
    %3787 = vmatprep.subr.bf16.mxu0 0
    %3788 = vmatpush1.bf16.xpose.msra.mxu0 0
    %3789 = vmatprep.subr.bf16.mxu0 0
    %3790 = vmatpush1.bf16.xpose.msra.mxu0 0
    %3791 = vmatprep.mubr.bf16.mxu0 %v3706
    %3792 = vmatmul.mubr.bf16.gmra.mrb[0].mxu0 %v3705
    %v3793 = vpop.f32.mrb[0].mxu0
    %v3794 = vadd.f32 %v3754, %v3793
    %v3795 = vpop.f32.mrb[0].mxu0
    %v3796 = vpop.f32.mrb[0].mxu0
    %v3797 = vpop.f32.mrb[0].mxu0
    %3798 = vdwg.mxu0
    %v3799 = vpack.c.b16 %v3667, %v3667
    %v3800 = vpack.c.b16 %v3668, %v3668
    %v3801 = vpack.c.b16 %v3669, %v3669
    %v3802 = vpack.c.b16 %v3670, %v3670
    %v3807 = vpack.c.b16 %v3683, %v3683
    %v3808 = vpack.c.b16 %v3684, %v3684
    %v3809 = vpack.c.b16 %v3685, %v3685
    %v3810 = vpack.c.b16 %v3686, %v3686
    %3815 = vmatprep.subr.bf16.mxu0 %v3808
    %3816 = vmatpush1.bf16.xpose.msra.mxu0 %v3807
    %3817 = vmatprep.subr.bf16.mxu0 0
    %3818 = vmatpush1.bf16.xpose.msra.mxu0 0
    %3819 = vmatprep.subr.bf16.mxu0 0
    %3820 = vmatpush1.bf16.xpose.msra.mxu0 0
    %3821 = vmatprep.subr.bf16.mxu0 0
    %3822 = vmatpush1.bf16.xpose.msra.mxu0 0
    %3823 = vmatprep.subr.bf16.mxu0 0
    %3824 = vmatpush1.bf16.xpose.msra.mxu0 0
    %3825 = vmatprep.subr.bf16.mxu0 0
    %3826 = vmatpush1.bf16.xpose.msra.mxu0 0
    %3827 = vmatprep.subr.bf16.mxu0 0
    %3828 = vmatpush1.bf16.xpose.msra.mxu0 0
    %3829 = vmatprep.subr.bf16.mxu0 0
    %3830 = vmatpush1.bf16.xpose.msra.mxu0 0
    %3831 = vmatprep.subr.bf16.mxu0 0
    %3832 = vmatpush1.bf16.xpose.msra.mxu0 0
    %3833 = vmatprep.subr.bf16.mxu0 0
    %3834 = vmatpush1.bf16.xpose.msra.mxu0 0
    %3835 = vmatprep.subr.bf16.mxu0 0
    %3836 = vmatpush1.bf16.xpose.msra.mxu0 0
    %3837 = vmatprep.subr.bf16.mxu0 0
    %3838 = vmatpush1.bf16.xpose.msra.mxu0 0
    %3839 = vmatprep.subr.bf16.mxu0 0
    %3840 = vmatpush1.bf16.xpose.msra.mxu0 0
    %3841 = vmatprep.subr.bf16.mxu0 0
    %3842 = vmatpush1.bf16.xpose.msra.mxu0 0
    %3843 = vmatprep.subr.bf16.mxu0 0
    %3844 = vmatpush1.bf16.xpose.msra.mxu0 0
    %3845 = vmatprep.subr.bf16.mxu0 0
    %3846 = vmatpush1.bf16.xpose.msra.mxu0 0
    %3847 = vmatprep.mubr.bf16.mxu0 %v3800
    %3848 = vmatmul.mubr.bf16.gmra.mrb[0].mxu0 %v3799
    %v3849 = vpop.f32.mrb[0].mxu0
    %v3850 = vadd.f32 0.0, %v3849
    %v3851 = vpop.f32.mrb[0].mxu0
    %v3852 = vpop.f32.mrb[0].mxu0
    %v3853 = vpop.f32.mrb[0].mxu0
    %3854 = vdwg.mxu0
    %3855 = vmatprep.subr.bf16.mxu0 %v3810
    %3856 = vmatpush1.bf16.xpose.msra.mxu0 %v3809
    %3857 = vmatprep.subr.bf16.mxu0 0
    %3858 = vmatpush1.bf16.xpose.msra.mxu0 0
    %3859 = vmatprep.subr.bf16.mxu0 0
    %3860 = vmatpush1.bf16.xpose.msra.mxu0 0
    %3861 = vmatprep.subr.bf16.mxu0 0
    %3862 = vmatpush1.bf16.xpose.msra.mxu0 0
    %3863 = vmatprep.subr.bf16.mxu0 0
    %3864 = vmatpush1.bf16.xpose.msra.mxu0 0
    %3865 = vmatprep.subr.bf16.mxu0 0
    %3866 = vmatpush1.bf16.xpose.msra.mxu0 0
    %3867 = vmatprep.subr.bf16.mxu0 0
    %3868 = vmatpush1.bf16.xpose.msra.mxu0 0
    %3869 = vmatprep.subr.bf16.mxu0 0
    %3870 = vmatpush1.bf16.xpose.msra.mxu0 0
    %3871 = vmatprep.subr.bf16.mxu0 0
    %3872 = vmatpush1.bf16.xpose.msra.mxu0 0
    %3873 = vmatprep.subr.bf16.mxu0 0
    %3874 = vmatpush1.bf16.xpose.msra.mxu0 0
    %3875 = vmatprep.subr.bf16.mxu0 0
    %3876 = vmatpush1.bf16.xpose.msra.mxu0 0
    %3877 = vmatprep.subr.bf16.mxu0 0
    %3878 = vmatpush1.bf16.xpose.msra.mxu0 0
    %3879 = vmatprep.subr.bf16.mxu0 0
    %3880 = vmatpush1.bf16.xpose.msra.mxu0 0
    %3881 = vmatprep.subr.bf16.mxu0 0
    %3882 = vmatpush1.bf16.xpose.msra.mxu0 0
    %3883 = vmatprep.subr.bf16.mxu0 0
    %3884 = vmatpush1.bf16.xpose.msra.mxu0 0
    %3885 = vmatprep.subr.bf16.mxu0 0
    %3886 = vmatpush1.bf16.xpose.msra.mxu0 0
    %3887 = vmatprep.mubr.bf16.mxu0 %v3802
    %3888 = vmatmul.mubr.bf16.gmra.mrb[0].mxu0 %v3801
    %v3889 = vpop.f32.mrb[0].mxu0
    %v3890 = vadd.f32 %v3850, %v3889
    %v3891 = vpop.f32.mrb[0].mxu0
    %v3892 = vpop.f32.mrb[0].mxu0
    %v3893 = vpop.f32.mrb[0].mxu0
    %3894 = vdwg.mxu0
    %vm3895 = vcmask 64512
    %v3896 = vsel %vm3895, %v3794, -inf
    %3897 = vmax.xlane.f32.xlu0 %v3896
    %v3898 = vpop.xlane.xlu0 %3897
    %v3899 = vsel %vm3895, %v3890, -inf
    %3900 = vmax.xlane.f32.xlu0 %v3899
    %v3901 = vpop.xlane.xlu0 %3900
    %v3902 = vsub.f32 %v3794, %v3898
    %v3903 = vsub.f32 %v3890, %v3901
    %v3904 = vmul.f32 %v3902, 1.442695
    %v3905 = vpow.pop %v3904
    %v3906 = vmul.f32 %v3903, 1.442695
    %v3907 = vpow.pop %v3906
    %v3908 = vsel %vm3895, %v3905, 0.0
    %3909 = vadd.xlane.f32.xlu0 %v3908
    %v3910 = vpop.xlane.xlu0 %3909
    %v3911 = vsel %vm3895, %v3907, 0.0
    %3912 = vadd.xlane.f32.xlu0 %v3911
    %v3913 = vpop.xlane.xlu0 %3912
    %v3914 = vrcp.pop %v3910
    %v3915 = vmul.f32 %v3905, %v3914
    %v3916 = vrcp.pop %v3913
    %v3917 = vmul.f32 %v3907, %v3916
    %v3918 = vpack.c.bf16 %v3915, %v3915
    %v3919 = vpack.c.bf16 %v3917, %v3917
    %v3920 = vpack.c.b16 %v3695, %v3695
    %v3921 = vpack.c.b16 %v3696, %v3696
    %v3922 = vpack.c.b16 %v3697, %v3697
    %v3923 = vpack.c.b16 %v3698, %v3698
    %v3925 = vsel %vm3895, %v3918, 0
    %vm3927 = vcmask 1043456
    %v3929 = vsel %vm3927, %v3920, 0
    %v3932 = vsel %vm3927, %v3921, 0
    %v3935 = vsel %vm3927, %v3922, 0
    %v3938 = vsel %vm3927, %v3923, 0
    %3940 = vmatprep.subr.bf16.mxu0 %v3932
    %3941 = vmatpush1.bf16.msra.mxu0 %v3929
    %3942 = vmatprep.subr.bf16.mxu0 0
    %3943 = vmatpush1.bf16.msra.mxu0 0
    %3944 = vmatprep.subr.bf16.mxu0 0
    %3945 = vmatpush1.bf16.msra.mxu0 0
    %3946 = vmatprep.subr.bf16.mxu0 0
    %3947 = vmatpush1.bf16.msra.mxu0 0
    %3948 = vmatprep.subr.bf16.mxu0 0
    %3949 = vmatpush1.bf16.msra.mxu0 0
    %3950 = vmatprep.subr.bf16.mxu0 0
    %3951 = vmatpush1.bf16.msra.mxu0 0
    %3952 = vmatprep.subr.bf16.mxu0 0
    %3953 = vmatpush1.bf16.msra.mxu0 0
    %3954 = vmatprep.subr.bf16.mxu0 0
    %3955 = vmatpush1.bf16.msra.mxu0 0
    %3956 = vmatprep.subr.bf16.mxu0 0
    %3957 = vmatpush1.bf16.msra.mxu0 0
    %3958 = vmatprep.subr.bf16.mxu0 0
    %3959 = vmatpush1.bf16.msra.mxu0 0
    %3960 = vmatprep.subr.bf16.mxu0 0
    %3961 = vmatpush1.bf16.msra.mxu0 0
    %3962 = vmatprep.subr.bf16.mxu0 0
    %3963 = vmatpush1.bf16.msra.mxu0 0
    %3964 = vmatprep.subr.bf16.mxu0 0
    %3965 = vmatpush1.bf16.msra.mxu0 0
    %3966 = vmatprep.subr.bf16.mxu0 0
    %3967 = vmatpush1.bf16.msra.mxu0 0
    %3968 = vmatprep.subr.bf16.mxu0 0
    %3969 = vmatpush1.bf16.msra.mxu0 0
    %3970 = vmatprep.subr.bf16.mxu0 0
    %3971 = vmatpush1.bf16.msra.mxu0 0
    %3972 = vmatprep.mubr.bf16.mxu0 0
    %3973 = vmatmul.mubr.bf16.gmra.mrb[0].mxu0 %v3925
    %v3974 = vpop.f32.mrb[0].mxu0
    %v3975 = vadd.f32 0.0, %v3974
    %v3976 = vpop.f32.mrb[0].mxu0
    %v3977 = vadd.f32 0.0, %v3976
    %v3978 = vpop.f32.mrb[0].mxu0
    %v3979 = vpop.f32.mrb[0].mxu0
    %3980 = vdwg.mxu0
    %3981 = vmatprep.subr.bf16.mxu0 %v3938
    %3982 = vmatpush1.bf16.msra.mxu0 %v3935
    %3983 = vmatprep.subr.bf16.mxu0 0
    %3984 = vmatpush1.bf16.msra.mxu0 0
    %3985 = vmatprep.subr.bf16.mxu0 0
    %3986 = vmatpush1.bf16.msra.mxu0 0
    %3987 = vmatprep.subr.bf16.mxu0 0
    %3988 = vmatpush1.bf16.msra.mxu0 0
    %3989 = vmatprep.subr.bf16.mxu0 0
    %3990 = vmatpush1.bf16.msra.mxu0 0
    %3991 = vmatprep.subr.bf16.mxu0 0
    %3992 = vmatpush1.bf16.msra.mxu0 0
    %3993 = vmatprep.subr.bf16.mxu0 0
    %3994 = vmatpush1.bf16.msra.mxu0 0
    %3995 = vmatprep.subr.bf16.mxu0 0
    %3996 = vmatpush1.bf16.msra.mxu0 0
    %3997 = vmatprep.subr.bf16.mxu0 0
    %3998 = vmatpush1.bf16.msra.mxu0 0
    %3999 = vmatprep.subr.bf16.mxu0 0
    %4000 = vmatpush1.bf16.msra.mxu0 0
    %4001 = vmatprep.subr.bf16.mxu0 0
    %4002 = vmatpush1.bf16.msra.mxu0 0
    %4003 = vmatprep.subr.bf16.mxu0 0
    %4004 = vmatpush1.bf16.msra.mxu0 0
    %4005 = vmatprep.subr.bf16.mxu0 0
    %4006 = vmatpush1.bf16.msra.mxu0 0
    %4007 = vmatprep.subr.bf16.mxu0 0
    %4008 = vmatpush1.bf16.msra.mxu0 0
    %4009 = vmatprep.subr.bf16.mxu0 0
    %4010 = vmatpush1.bf16.msra.mxu0 0
    %4011 = vmatprep.subr.bf16.mxu0 0
    %4012 = vmatpush1.bf16.msra.mxu0 0
    %4013 = vmatprep.mubr.bf16.mxu0 0
    %4014 = vmatmul.mubr.bf16.gmra.mrb[0].mxu0 %v3925
    %v4015 = vpop.f32.mrb[0].mxu0
    %v4016 = vadd.f32 0.0, %v4015
    %v4017 = vpop.f32.mrb[0].mxu0
    %v4018 = vadd.f32 0.0, %v4017
    %v4019 = vpop.f32.mrb[0].mxu0
    %v4020 = vpop.f32.mrb[0].mxu0
    %4021 = vdwg.mxu0
    %v4022 = vpack.c.b16 %v3699, %v3699
    %v4023 = vpack.c.b16 %v3700, %v3700
    %v4024 = vpack.c.b16 %v3701, %v3701
    %v4025 = vpack.c.b16 %v3702, %v3702
    %v4027 = vsel %vm3895, %v3919, 0
    %v4030 = vsel %vm3927, %v4022, 0
    %v4033 = vsel %vm3927, %v4023, 0
    %v4036 = vsel %vm3927, %v4024, 0
    %v4039 = vsel %vm3927, %v4025, 0
    %4041 = vmatprep.subr.bf16.mxu0 %v4033
    %4042 = vmatpush1.bf16.msra.mxu0 %v4030
    %4043 = vmatprep.subr.bf16.mxu0 0
    %4044 = vmatpush1.bf16.msra.mxu0 0
    %4045 = vmatprep.subr.bf16.mxu0 0
    %4046 = vmatpush1.bf16.msra.mxu0 0
    %4047 = vmatprep.subr.bf16.mxu0 0
    %4048 = vmatpush1.bf16.msra.mxu0 0
    %4049 = vmatprep.subr.bf16.mxu0 0
    %4050 = vmatpush1.bf16.msra.mxu0 0
    %4051 = vmatprep.subr.bf16.mxu0 0
    %4052 = vmatpush1.bf16.msra.mxu0 0
    %4053 = vmatprep.subr.bf16.mxu0 0
    %4054 = vmatpush1.bf16.msra.mxu0 0
    %4055 = vmatprep.subr.bf16.mxu0 0
    %4056 = vmatpush1.bf16.msra.mxu0 0
    %4057 = vmatprep.subr.bf16.mxu0 0
    %4058 = vmatpush1.bf16.msra.mxu0 0
    %4059 = vmatprep.subr.bf16.mxu0 0
    %4060 = vmatpush1.bf16.msra.mxu0 0
    %4061 = vmatprep.subr.bf16.mxu0 0
    %4062 = vmatpush1.bf16.msra.mxu0 0
    %4063 = vmatprep.subr.bf16.mxu0 0
    %4064 = vmatpush1.bf16.msra.mxu0 0
    %4065 = vmatprep.subr.bf16.mxu0 0
    %4066 = vmatpush1.bf16.msra.mxu0 0
    %4067 = vmatprep.subr.bf16.mxu0 0
    %4068 = vmatpush1.bf16.msra.mxu0 0
    %4069 = vmatprep.subr.bf16.mxu0 0
    %4070 = vmatpush1.bf16.msra.mxu0 0
    %4071 = vmatprep.subr.bf16.mxu0 0
    %4072 = vmatpush1.bf16.msra.mxu0 0
    %4073 = vmatprep.mubr.bf16.mxu0 0
    %4074 = vmatmul.mubr.bf16.gmra.mrb[0].mxu0 %v4027
    %v4075 = vpop.f32.mrb[0].mxu0
    %v4076 = vadd.f32 0.0, %v4075
    %v4077 = vpop.f32.mrb[0].mxu0
    %v4078 = vadd.f32 0.0, %v4077
    %v4079 = vpop.f32.mrb[0].mxu0
    %v4080 = vpop.f32.mrb[0].mxu0
    %4081 = vdwg.mxu0
    %4082 = vmatprep.subr.bf16.mxu0 %v4039
    %4083 = vmatpush1.bf16.msra.mxu0 %v4036
    %4084 = vmatprep.subr.bf16.mxu0 0
    %4085 = vmatpush1.bf16.msra.mxu0 0
    %4086 = vmatprep.subr.bf16.mxu0 0
    %4087 = vmatpush1.bf16.msra.mxu0 0
    %4088 = vmatprep.subr.bf16.mxu0 0
    %4089 = vmatpush1.bf16.msra.mxu0 0
    %4090 = vmatprep.subr.bf16.mxu0 0
    %4091 = vmatpush1.bf16.msra.mxu0 0
    %4092 = vmatprep.subr.bf16.mxu0 0
    %4093 = vmatpush1.bf16.msra.mxu0 0
    %4094 = vmatprep.subr.bf16.mxu0 0
    %4095 = vmatpush1.bf16.msra.mxu0 0
    %4096 = vmatprep.subr.bf16.mxu0 0
    %4097 = vmatpush1.bf16.msra.mxu0 0
    %4098 = vmatprep.subr.bf16.mxu0 0
    %4099 = vmatpush1.bf16.msra.mxu0 0
    %4100 = vmatprep.subr.bf16.mxu0 0
    %4101 = vmatpush1.bf16.msra.mxu0 0
    %4102 = vmatprep.subr.bf16.mxu0 0
    %4103 = vmatpush1.bf16.msra.mxu0 0
    %4104 = vmatprep.subr.bf16.mxu0 0
    %4105 = vmatpush1.bf16.msra.mxu0 0
    %4106 = vmatprep.subr.bf16.mxu0 0
    %4107 = vmatpush1.bf16.msra.mxu0 0
    %4108 = vmatprep.subr.bf16.mxu0 0
    %4109 = vmatpush1.bf16.msra.mxu0 0
    %4110 = vmatprep.subr.bf16.mxu0 0
    %4111 = vmatpush1.bf16.msra.mxu0 0
    %4112 = vmatprep.subr.bf16.mxu0 0
    %4113 = vmatpush1.bf16.msra.mxu0 0
    %4114 = vmatprep.mubr.bf16.mxu0 0
    %4115 = vmatmul.mubr.bf16.gmra.mrb[0].mxu0 %v4027
    %v4116 = vpop.f32.mrb[0].mxu0
    %v4117 = vadd.f32 0.0, %v4116
    %v4118 = vpop.f32.mrb[0].mxu0
    %v4119 = vadd.f32 0.0, %v4118
    %v4120 = vpop.f32.mrb[0].mxu0
    %v4121 = vpop.f32.mrb[0].mxu0
    %4122 = vdwg.mxu0
    %v4123 = vpack.c.bf16 %v4076, %v3975
    %v4124 = vpack.c.bf16 %v4078, %v3977
    %v4125 = vpack.c.bf16 %v4117, %v4016
    %v4126 = vpack.c.bf16 %v4119, %v4018
    %v4127 = vld [vmem:[#allocation14] sm:$0xff]
    %v4128 = vld [vmem:[#allocation14 + $0x8] sm:$0xff]
    %v4129 = vld [vmem:[#allocation14 + $0x10] sm:$0xff]
    %v4130 = vld [vmem:[#allocation14 + $0x18] sm:$0xff]
    %v4131 = vld [vmem:[#allocation14 + $0x20] sm:$0xff]
    %v4132 = vld [vmem:[#allocation14 + $0x28] sm:$0xff]
    %v4133 = vld [vmem:[#allocation14 + $0x30] sm:$0xff]
    %v4134 = vld [vmem:[#allocation14 + $0x38] sm:$0xff]
    %v4135 = vld [vmem:[#allocation14 + $0x40] sm:$0xff]
    %v4136 = vld [vmem:[#allocation14 + $0x48] sm:$0xff]
    %v4137 = vld [vmem:[#allocation14 + $0x50] sm:$0xff]
    %v4138 = vld [vmem:[#allocation14 + $0x58] sm:$0xff]
    %v4139 = vld [vmem:[#allocation14 + $0x60] sm:$0xff]
    %v4140 = vld [vmem:[#allocation14 + $0x68] sm:$0xff]
    %v4141 = vld [vmem:[#allocation14 + $0x70] sm:$0xff]
    %v4142 = vld [vmem:[#allocation14 + $0x78] sm:$0xff]
    %v4143 = vld [vmem:[#allocation14 + $0x80] sm:$0xff]
    %v4144 = vld [vmem:[#allocation14 + $0x88] sm:$0xff]
    %v4145 = vld [vmem:[#allocation14 + $0x90] sm:$0xff]
    %v4146 = vld [vmem:[#allocation14 + $0x98] sm:$0xff]
    %v4147 = vld [vmem:[#allocation14 + $0xa0] sm:$0xff]
    %v4148 = vld [vmem:[#allocation14 + $0xa8] sm:$0xff]
    %v4149 = vld [vmem:[#allocation14 + $0xb0] sm:$0xff]
    %v4150 = vld [vmem:[#allocation14 + $0xb8] sm:$0xff]
    %v4151 = vld [vmem:[#allocation14 + $0xc0] sm:$0xff]
    %v4152 = vld [vmem:[#allocation14 + $0xc8] sm:$0xff]
    %v4153 = vld [vmem:[#allocation14 + $0xd0] sm:$0xff]
    %v4154 = vld [vmem:[#allocation14 + $0xd8] sm:$0xff]
    %v4155 = vld [vmem:[#allocation14 + $0xe0] sm:$0xff]
    %v4156 = vld [vmem:[#allocation14 + $0xe8] sm:$0xff]
    %v4157 = vld [vmem:[#allocation14 + $0xf0] sm:$0xff]
    %v4158 = vld [vmem:[#allocation14 + $0xf8] sm:$0xff]
    %v4159 = vld [vmem:[#allocation14 + $0x100] sm:$0xff]
    %v4160 = vld [vmem:[#allocation14 + $0x108] sm:$0xff]
    %v4161 = vld [vmem:[#allocation14 + $0x110] sm:$0xff]
    %v4162 = vld [vmem:[#allocation14 + $0x118] sm:$0xff]
    %v4163 = vld [vmem:[#allocation14 + $0x120] sm:$0xff]
    %v4164 = vld [vmem:[#allocation14 + $0x128] sm:$0xff]
    %v4165 = vld [vmem:[#allocation14 + $0x130] sm:$0xff]
    %v4166 = vld [vmem:[#allocation14 + $0x138] sm:$0xff]
    %v4167 = vld [vmem:[#allocation14 + $0x140] sm:$0xff]
    %v4168 = vld [vmem:[#allocation14 + $0x148] sm:$0xff]
    %v4169 = vld [vmem:[#allocation14 + $0x150] sm:$0xff]
    %v4170 = vld [vmem:[#allocation14 + $0x158] sm:$0xff]
    %v4171 = vld [vmem:[#allocation14 + $0x160] sm:$0xff]
    %v4172 = vld [vmem:[#allocation14 + $0x168] sm:$0xff]
    %v4173 = vld [vmem:[#allocation14 + $0x170] sm:$0xff]
    %v4174 = vld [vmem:[#allocation14 + $0x178] sm:$0xff]
    %v4175 = vld [vmem:[#allocation14 + $0x180] sm:$0xff]
    %v4176 = vld [vmem:[#allocation14 + $0x188] sm:$0xff]
    %v4177 = vld [vmem:[#allocation14 + $0x190] sm:$0xff]
    %v4178 = vld [vmem:[#allocation14 + $0x198] sm:$0xff]
    %v4179 = vld [vmem:[#allocation14 + $0x1a0] sm:$0xff]
    %v4180 = vld [vmem:[#allocation14 + $0x1a8] sm:$0xff]
    %v4181 = vld [vmem:[#allocation14 + $0x1b0] sm:$0xff]
    %v4182 = vld [vmem:[#allocation14 + $0x1b8] sm:$0xff]
    %v4183 = vld [vmem:[#allocation14 + $0x1c0] sm:$0xff]
    %v4184 = vld [vmem:[#allocation14 + $0x1c8] sm:$0xff]
    %v4185 = vld [vmem:[#allocation14 + $0x1d0] sm:$0xff]
    %v4186 = vld [vmem:[#allocation14 + $0x1d8] sm:$0xff]
    %v4187 = vld [vmem:[#allocation14 + $0x1e0] sm:$0xff]
    %v4188 = vld [vmem:[#allocation14 + $0x1e8] sm:$0xff]
    %v4189 = vld [vmem:[#allocation14 + $0x1f0] sm:$0xff]
    %v4190 = vld [vmem:[#allocation14 + $0x1f8] sm:$0xff]
    %v4191 = vld [vmem:[#allocation14 + $0x200] sm:$0xff]
    %v4192 = vld [vmem:[#allocation14 + $0x208] sm:$0xff]
    %v4193 = vld [vmem:[#allocation14 + $0x210] sm:$0xff]
    %v4194 = vld [vmem:[#allocation14 + $0x218] sm:$0xff]
    %v4195 = vld [vmem:[#allocation14 + $0x220] sm:$0xff]
    %v4196 = vld [vmem:[#allocation14 + $0x228] sm:$0xff]
    %v4197 = vld [vmem:[#allocation14 + $0x230] sm:$0xff]
    %v4198 = vld [vmem:[#allocation14 + $0x238] sm:$0xff]
    %v4199 = vld [vmem:[#allocation14 + $0x240] sm:$0xff]
    %v4200 = vld [vmem:[#allocation14 + $0x248] sm:$0xff]
    %v4201 = vld [vmem:[#allocation14 + $0x250] sm:$0xff]
    %v4202 = vld [vmem:[#allocation14 + $0x258] sm:$0xff]
    %v4203 = vld [vmem:[#allocation14 + $0x260] sm:$0xff]
    %v4204 = vld [vmem:[#allocation14 + $0x268] sm:$0xff]
    %v4205 = vld [vmem:[#allocation14 + $0x270] sm:$0xff]
    %v4206 = vld [vmem:[#allocation14 + $0x278] sm:$0xff]
    %v4207 = vld [vmem:[#allocation14 + $0x280] sm:$0xff]
    %v4208 = vld [vmem:[#allocation14 + $0x288] sm:$0xff]
    %v4209 = vld [vmem:[#allocation14 + $0x290] sm:$0xff]
    %v4210 = vld [vmem:[#allocation14 + $0x298] sm:$0xff]
    %v4211 = vld [vmem:[#allocation14 + $0x2a0] sm:$0xff]
    %v4212 = vld [vmem:[#allocation14 + $0x2a8] sm:$0xff]
    %v4213 = vld [vmem:[#allocation14 + $0x2b0] sm:$0xff]
    %v4214 = vld [vmem:[#allocation14 + $0x2b8] sm:$0xff]
    %v4215 = vld [vmem:[#allocation14 + $0x2c0] sm:$0xff]
    %v4216 = vld [vmem:[#allocation14 + $0x2c8] sm:$0xff]
    %v4217 = vld [vmem:[#allocation14 + $0x2d0] sm:$0xff]
    %v4218 = vld [vmem:[#allocation14 + $0x2d8] sm:$0xff]
    %v4219 = vld [vmem:[#allocation14 + $0x2e0] sm:$0xff]
    %v4220 = vld [vmem:[#allocation14 + $0x2e8] sm:$0xff]
    %v4221 = vld [vmem:[#allocation14 + $0x2f0] sm:$0xff]
    %v4222 = vld [vmem:[#allocation14 + $0x2f8] sm:$0xff]
    %v4223 = vld [vmem:[#allocation14 + $0x300] sm:$0xff]
    %v4224 = vld [vmem:[#allocation14 + $0x308] sm:$0xff]
    %v4225 = vld [vmem:[#allocation14 + $0x310] sm:$0xff]
    %v4226 = vld [vmem:[#allocation14 + $0x318] sm:$0xff]
    %v4227 = vld [vmem:[#allocation14 + $0x320] sm:$0xff]
    %v4228 = vld [vmem:[#allocation14 + $0x328] sm:$0xff]
    %v4229 = vld [vmem:[#allocation14 + $0x330] sm:$0xff]
    %v4230 = vld [vmem:[#allocation14 + $0x338] sm:$0xff]
    %v4231 = vld [vmem:[#allocation14 + $0x340] sm:$0xff]
    %v4232 = vld [vmem:[#allocation14 + $0x348] sm:$0xff]
    %v4233 = vld [vmem:[#allocation14 + $0x350] sm:$0xff]
    %v4234 = vld [vmem:[#allocation14 + $0x358] sm:$0xff]
    %v4235 = vld [vmem:[#allocation14 + $0x360] sm:$0xff]
    %v4236 = vld [vmem:[#allocation14 + $0x368] sm:$0xff]
    %v4237 = vld [vmem:[#allocation14 + $0x370] sm:$0xff]
    %v4238 = vld [vmem:[#allocation14 + $0x378] sm:$0xff]
    %v4239 = vld [vmem:[#allocation14 + $0x380] sm:$0xff]
    %v4240 = vld [vmem:[#allocation14 + $0x388] sm:$0xff]
    %v4241 = vld [vmem:[#allocation14 + $0x390] sm:$0xff]
    %v4242 = vld [vmem:[#allocation14 + $0x398] sm:$0xff]
    %v4243 = vld [vmem:[#allocation14 + $0x3a0] sm:$0xff]
    %v4244 = vld [vmem:[#allocation14 + $0x3a8] sm:$0xff]
    %v4245 = vld [vmem:[#allocation14 + $0x3b0] sm:$0xff]
    %v4246 = vld [vmem:[#allocation14 + $0x3b8] sm:$0xff]
    %v4247 = vld [vmem:[#allocation14 + $0x3c0] sm:$0xff]
    %v4248 = vld [vmem:[#allocation14 + $0x3c8] sm:$0xff]
    %v4249 = vld [vmem:[#allocation14 + $0x3d0] sm:$0xff]
    %v4250 = vld [vmem:[#allocation14 + $0x3d8] sm:$0xff]
    %v4251 = vld [vmem:[#allocation14 + $0x3e0] sm:$0xff]
    %v4252 = vld [vmem:[#allocation14 + $0x3e8] sm:$0xff]
    %v4253 = vld [vmem:[#allocation14 + $0x3f0] sm:$0xff]
    %v4254 = vld [vmem:[#allocation14 + $0x3f8] sm:$0xff]
    %v4255 = vld [vmem:[%s12] sm:$0xf]
    %v4257 = vlaneseq
    %v4258 = vshrl.u32 %v4257, 7
    %v4259 = vsub.s32 0, %v4258
    %v4260 = vrot.slane %v4255, %v4259
    %v4261 = vlaneseq
    %v4262 = vshrl.u32 %v4261, 7
    %v4263 = vsub.s32 1, %v4262
    %v4264 = vrot.slane %v4255, %v4263
    %v4265 = vlaneseq
    %v4266 = vshrl.u32 %v4265, 7
    %v4267 = vsub.s32 2, %v4266
    %v4268 = vrot.slane %v4255, %v4267
    %v4269 = vlaneseq
    %v4270 = vshrl.u32 %v4269, 7
    %v4271 = vsub.s32 3, %v4270
    %v4272 = vrot.slane %v4255, %v4271
    %v4405 = vunpack.c.l.b16 %v4127
    %v4406 = vunpack.c.h.b16 %v4127
    %v4407 = vunpack.c.l.b16 %v4128
    %v4408 = vunpack.c.h.b16 %v4128
    %v4409 = vunpack.c.l.b16 %v4129
    %v4410 = vunpack.c.h.b16 %v4129
    %v4411 = vunpack.c.l.b16 %v4130
    %v4412 = vunpack.c.h.b16 %v4130
    %v4413 = vunpack.c.l.b16 %v4131
    %v4414 = vunpack.c.h.b16 %v4131
    %v4415 = vunpack.c.l.b16 %v4132
    %v4416 = vunpack.c.h.b16 %v4132
    %v4417 = vunpack.c.l.b16 %v4133
    %v4418 = vunpack.c.h.b16 %v4133
    %v4419 = vunpack.c.l.b16 %v4134
    %v4420 = vunpack.c.h.b16 %v4134
    %v4421 = vunpack.c.l.b16 %v4135
    %v4422 = vunpack.c.h.b16 %v4135
    %v4423 = vunpack.c.l.b16 %v4136
    %v4424 = vunpack.c.h.b16 %v4136
    %v4425 = vunpack.c.l.b16 %v4137
    %v4426 = vunpack.c.h.b16 %v4137
    %v4427 = vunpack.c.l.b16 %v4138
    %v4428 = vunpack.c.h.b16 %v4138
    %v4429 = vunpack.c.l.b16 %v4139
    %v4430 = vunpack.c.h.b16 %v4139
    %v4431 = vunpack.c.l.b16 %v4140
    %v4432 = vunpack.c.h.b16 %v4140
    %v4433 = vunpack.c.l.b16 %v4141
    %v4434 = vunpack.c.h.b16 %v4141
    %v4435 = vunpack.c.l.b16 %v4142
    %v4436 = vunpack.c.h.b16 %v4142
    %v4437 = vunpack.c.l.b16 %v4143
    %v4438 = vunpack.c.h.b16 %v4143
    %v4439 = vunpack.c.l.b16 %v4144
    %v4440 = vunpack.c.h.b16 %v4144
    %v4441 = vunpack.c.l.b16 %v4145
    %v4442 = vunpack.c.h.b16 %v4145
    %v4443 = vunpack.c.l.b16 %v4146
    %v4444 = vunpack.c.h.b16 %v4146
    %v4445 = vunpack.c.l.b16 %v4147
    %v4446 = vunpack.c.h.b16 %v4147
    %v4447 = vunpack.c.l.b16 %v4148
    %v4448 = vunpack.c.h.b16 %v4148
    %v4449 = vunpack.c.l.b16 %v4149
    %v4450 = vunpack.c.h.b16 %v4149
    %v4451 = vunpack.c.l.b16 %v4150
    %v4452 = vunpack.c.h.b16 %v4150
    %v4453 = vunpack.c.l.b16 %v4151
    %v4454 = vunpack.c.h.b16 %v4151
    %v4455 = vunpack.c.l.b16 %v4152
    %v4456 = vunpack.c.h.b16 %v4152
    %v4457 = vunpack.c.l.b16 %v4153
    %v4458 = vunpack.c.h.b16 %v4153
    %v4459 = vunpack.c.l.b16 %v4154
    %v4460 = vunpack.c.h.b16 %v4154
    %v4461 = vunpack.c.l.b16 %v4155
    %v4462 = vunpack.c.h.b16 %v4155
    %v4463 = vunpack.c.l.b16 %v4156
    %v4464 = vunpack.c.h.b16 %v4156
    %v4465 = vunpack.c.l.b16 %v4157
    %v4466 = vunpack.c.h.b16 %v4157
    %v4467 = vunpack.c.l.b16 %v4158
    %v4468 = vunpack.c.h.b16 %v4158
    %v4469 = vunpack.c.l.b16 %v4159
    %v4470 = vunpack.c.h.b16 %v4159
    %v4471 = vunpack.c.l.b16 %v4160
    %v4472 = vunpack.c.h.b16 %v4160
    %v4473 = vunpack.c.l.b16 %v4161
    %v4474 = vunpack.c.h.b16 %v4161
    %v4475 = vunpack.c.l.b16 %v4162
    %v4476 = vunpack.c.h.b16 %v4162
    %v4477 = vunpack.c.l.b16 %v4163
    %v4478 = vunpack.c.h.b16 %v4163
    %v4479 = vunpack.c.l.b16 %v4164
    %v4480 = vunpack.c.h.b16 %v4164
    %v4481 = vunpack.c.l.b16 %v4165
    %v4482 = vunpack.c.h.b16 %v4165
    %v4483 = vunpack.c.l.b16 %v4166
    %v4484 = vunpack.c.h.b16 %v4166
    %v4485 = vunpack.c.l.b16 %v4167
    %v4486 = vunpack.c.h.b16 %v4167
    %v4487 = vunpack.c.l.b16 %v4168
    %v4488 = vunpack.c.h.b16 %v4168
    %v4489 = vunpack.c.l.b16 %v4169
    %v4490 = vunpack.c.h.b16 %v4169
    %v4491 = vunpack.c.l.b16 %v4170
    %v4492 = vunpack.c.h.b16 %v4170
    %v4493 = vunpack.c.l.b16 %v4171
    %v4494 = vunpack.c.h.b16 %v4171
    %v4495 = vunpack.c.l.b16 %v4172
    %v4496 = vunpack.c.h.b16 %v4172
    %v4497 = vunpack.c.l.b16 %v4173
    %v4498 = vunpack.c.h.b16 %v4173
    %v4499 = vunpack.c.l.b16 %v4174
    %v4500 = vunpack.c.h.b16 %v4174
    %v4501 = vunpack.c.l.b16 %v4175
    %v4502 = vunpack.c.h.b16 %v4175
    %v4503 = vunpack.c.l.b16 %v4176
    %v4504 = vunpack.c.h.b16 %v4176
    %v4505 = vunpack.c.l.b16 %v4177
    %v4506 = vunpack.c.h.b16 %v4177
    %v4507 = vunpack.c.l.b16 %v4178
    %v4508 = vunpack.c.h.b16 %v4178
    %v4509 = vunpack.c.l.b16 %v4179
    %v4510 = vunpack.c.h.b16 %v4179
    %v4511 = vunpack.c.l.b16 %v4180
    %v4512 = vunpack.c.h.b16 %v4180
    %v4513 = vunpack.c.l.b16 %v4181
    %v4514 = vunpack.c.h.b16 %v4181
    %v4515 = vunpack.c.l.b16 %v4182
    %v4516 = vunpack.c.h.b16 %v4182
    %v4517 = vunpack.c.l.b16 %v4183
    %v4518 = vunpack.c.h.b16 %v4183
    %v4519 = vunpack.c.l.b16 %v4184
    %v4520 = vunpack.c.h.b16 %v4184
    %v4521 = vunpack.c.l.b16 %v4185
    %v4522 = vunpack.c.h.b16 %v4185
    %v4523 = vunpack.c.l.b16 %v4186
    %v4524 = vunpack.c.h.b16 %v4186
    %v4525 = vunpack.c.l.b16 %v4187
    %v4526 = vunpack.c.h.b16 %v4187
    %v4527 = vunpack.c.l.b16 %v4188
    %v4528 = vunpack.c.h.b16 %v4188
    %v4529 = vunpack.c.l.b16 %v4189
    %v4530 = vunpack.c.h.b16 %v4189
    %v4531 = vunpack.c.l.b16 %v4190
    %v4532 = vunpack.c.h.b16 %v4190
    %v4533 = vunpack.c.l.b16 %v4191
    %v4534 = vunpack.c.h.b16 %v4191
    %v4535 = vunpack.c.l.b16 %v4192
    %v4536 = vunpack.c.h.b16 %v4192
    %v4537 = vunpack.c.l.b16 %v4193
    %v4538 = vunpack.c.h.b16 %v4193
    %v4539 = vunpack.c.l.b16 %v4194
    %v4540 = vunpack.c.h.b16 %v4194
    %v4541 = vunpack.c.l.b16 %v4195
    %v4542 = vunpack.c.h.b16 %v4195
    %v4543 = vunpack.c.l.b16 %v4196
    %v4544 = vunpack.c.h.b16 %v4196
    %v4545 = vunpack.c.l.b16 %v4197
    %v4546 = vunpack.c.h.b16 %v4197
    %v4547 = vunpack.c.l.b16 %v4198
    %v4548 = vunpack.c.h.b16 %v4198
    %v4549 = vunpack.c.l.b16 %v4199
    %v4550 = vunpack.c.h.b16 %v4199
    %v4551 = vunpack.c.l.b16 %v4200
    %v4552 = vunpack.c.h.b16 %v4200
    %v4553 = vunpack.c.l.b16 %v4201
    %v4554 = vunpack.c.h.b16 %v4201
    %v4555 = vunpack.c.l.b16 %v4202
    %v4556 = vunpack.c.h.b16 %v4202
    %v4557 = vunpack.c.l.b16 %v4203
    %v4558 = vunpack.c.h.b16 %v4203
    %v4559 = vunpack.c.l.b16 %v4204
    %v4560 = vunpack.c.h.b16 %v4204
    %v4561 = vunpack.c.l.b16 %v4205
    %v4562 = vunpack.c.h.b16 %v4205
    %v4563 = vunpack.c.l.b16 %v4206
    %v4564 = vunpack.c.h.b16 %v4206
    %v4565 = vunpack.c.l.b16 %v4207
    %v4566 = vunpack.c.h.b16 %v4207
    %v4567 = vunpack.c.l.b16 %v4208
    %v4568 = vunpack.c.h.b16 %v4208
    %v4569 = vunpack.c.l.b16 %v4209
    %v4570 = vunpack.c.h.b16 %v4209
    %v4571 = vunpack.c.l.b16 %v4210
    %v4572 = vunpack.c.h.b16 %v4210
    %v4573 = vunpack.c.l.b16 %v4211
    %v4574 = vunpack.c.h.b16 %v4211
    %v4575 = vunpack.c.l.b16 %v4212
    %v4576 = vunpack.c.h.b16 %v4212
    %v4577 = vunpack.c.l.b16 %v4213
    %v4578 = vunpack.c.h.b16 %v4213
    %v4579 = vunpack.c.l.b16 %v4214
    %v4580 = vunpack.c.h.b16 %v4214
    %v4581 = vunpack.c.l.b16 %v4215
    %v4582 = vunpack.c.h.b16 %v4215
    %v4583 = vunpack.c.l.b16 %v4216
    %v4584 = vunpack.c.h.b16 %v4216
    %v4585 = vunpack.c.l.b16 %v4217
    %v4586 = vunpack.c.h.b16 %v4217
    %v4587 = vunpack.c.l.b16 %v4218
    %v4588 = vunpack.c.h.b16 %v4218
    %v4589 = vunpack.c.l.b16 %v4219
    %v4590 = vunpack.c.h.b16 %v4219
    %v4591 = vunpack.c.l.b16 %v4220
    %v4592 = vunpack.c.h.b16 %v4220
    %v4593 = vunpack.c.l.b16 %v4221
    %v4594 = vunpack.c.h.b16 %v4221
    %v4595 = vunpack.c.l.b16 %v4222
    %v4596 = vunpack.c.h.b16 %v4222
    %v4597 = vunpack.c.l.b16 %v4223
    %v4598 = vunpack.c.h.b16 %v4223
    %v4599 = vunpack.c.l.b16 %v4224
    %v4600 = vunpack.c.h.b16 %v4224
    %v4601 = vunpack.c.l.b16 %v4225
    %v4602 = vunpack.c.h.b16 %v4225
    %v4603 = vunpack.c.l.b16 %v4226
    %v4604 = vunpack.c.h.b16 %v4226
    %v4605 = vunpack.c.l.b16 %v4227
    %v4606 = vunpack.c.h.b16 %v4227
    %v4607 = vunpack.c.l.b16 %v4228
    %v4608 = vunpack.c.h.b16 %v4228
    %v4609 = vunpack.c.l.b16 %v4229
    %v4610 = vunpack.c.h.b16 %v4229
    %v4611 = vunpack.c.l.b16 %v4230
    %v4612 = vunpack.c.h.b16 %v4230
    %v4613 = vunpack.c.l.b16 %v4231
    %v4614 = vunpack.c.h.b16 %v4231
    %v4615 = vunpack.c.l.b16 %v4232
    %v4616 = vunpack.c.h.b16 %v4232
    %v4617 = vunpack.c.l.b16 %v4233
    %v4618 = vunpack.c.h.b16 %v4233
    %v4619 = vunpack.c.l.b16 %v4234
    %v4620 = vunpack.c.h.b16 %v4234
    %v4621 = vunpack.c.l.b16 %v4235
    %v4622 = vunpack.c.h.b16 %v4235
    %v4623 = vunpack.c.l.b16 %v4236
    %v4624 = vunpack.c.h.b16 %v4236
    %v4625 = vunpack.c.l.b16 %v4237
    %v4626 = vunpack.c.h.b16 %v4237
    %v4627 = vunpack.c.l.b16 %v4238
    %v4628 = vunpack.c.h.b16 %v4238
    %v4629 = vunpack.c.l.b16 %v4239
    %v4630 = vunpack.c.h.b16 %v4239
    %v4631 = vunpack.c.l.b16 %v4240
    %v4632 = vunpack.c.h.b16 %v4240
    %v4633 = vunpack.c.l.b16 %v4241
    %v4634 = vunpack.c.h.b16 %v4241
    %v4635 = vunpack.c.l.b16 %v4242
    %v4636 = vunpack.c.h.b16 %v4242
    %v4637 = vunpack.c.l.b16 %v4243
    %v4638 = vunpack.c.h.b16 %v4243
    %v4639 = vunpack.c.l.b16 %v4244
    %v4640 = vunpack.c.h.b16 %v4244
    %v4641 = vunpack.c.l.b16 %v4245
    %v4642 = vunpack.c.h.b16 %v4245
    %v4643 = vunpack.c.l.b16 %v4246
    %v4644 = vunpack.c.h.b16 %v4246
    %v4645 = vunpack.c.l.b16 %v4247
    %v4646 = vunpack.c.h.b16 %v4247
    %v4647 = vunpack.c.l.b16 %v4248
    %v4648 = vunpack.c.h.b16 %v4248
    %v4649 = vunpack.c.l.b16 %v4249
    %v4650 = vunpack.c.h.b16 %v4249
    %v4651 = vunpack.c.l.b16 %v4250
    %v4652 = vunpack.c.h.b16 %v4250
    %v4653 = vunpack.c.l.b16 %v4251
    %v4654 = vunpack.c.h.b16 %v4251
    %v4655 = vunpack.c.l.b16 %v4252
    %v4656 = vunpack.c.h.b16 %v4252
    %v4657 = vunpack.c.l.b16 %v4253
    %v4658 = vunpack.c.h.b16 %v4253
    %v4659 = vunpack.c.l.b16 %v4254
    %v4660 = vunpack.c.h.b16 %v4254
    %v4661 = vpack.c.b16 %v4409, %v4405
    %v4662 = vpack.c.b16 %v4410, %v4406
    %v4663 = vpack.c.b16 %v4411, %v4407
    %v4664 = vpack.c.b16 %v4412, %v4408
    %v4665 = vpack.c.b16 %v4417, %v4413
    %v4666 = vpack.c.b16 %v4418, %v4414
    %v4667 = vpack.c.b16 %v4419, %v4415
    %v4668 = vpack.c.b16 %v4420, %v4416
    %v4669 = vpack.c.b16 %v4425, %v4421
    %v4670 = vpack.c.b16 %v4426, %v4422
    %v4671 = vpack.c.b16 %v4427, %v4423
    %v4672 = vpack.c.b16 %v4428, %v4424
    %v4673 = vpack.c.b16 %v4433, %v4429
    %v4674 = vpack.c.b16 %v4434, %v4430
    %v4675 = vpack.c.b16 %v4435, %v4431
    %v4676 = vpack.c.b16 %v4436, %v4432
    %v4677 = vpack.c.b16 %v4441, %v4437
    %v4678 = vpack.c.b16 %v4442, %v4438
    %v4679 = vpack.c.b16 %v4443, %v4439
    %v4680 = vpack.c.b16 %v4444, %v4440
    %v4681 = vpack.c.b16 %v4449, %v4445
    %v4682 = vpack.c.b16 %v4450, %v4446
    %v4683 = vpack.c.b16 %v4451, %v4447
    %v4684 = vpack.c.b16 %v4452, %v4448
    %v4685 = vpack.c.b16 %v4457, %v4453
    %v4686 = vpack.c.b16 %v4458, %v4454
    %v4687 = vpack.c.b16 %v4459, %v4455
    %v4688 = vpack.c.b16 %v4460, %v4456
    %v4689 = vpack.c.b16 %v4465, %v4461
    %v4690 = vpack.c.b16 %v4466, %v4462
    %v4691 = vpack.c.b16 %v4467, %v4463
    %v4692 = vpack.c.b16 %v4468, %v4464
    %v4693 = vpack.c.b16 %v4473, %v4469
    %v4694 = vpack.c.b16 %v4474, %v4470
    %v4695 = vpack.c.b16 %v4475, %v4471
    %v4696 = vpack.c.b16 %v4476, %v4472
    %v4697 = vpack.c.b16 %v4481, %v4477
    %v4698 = vpack.c.b16 %v4482, %v4478
    %v4699 = vpack.c.b16 %v4483, %v4479
    %v4700 = vpack.c.b16 %v4484, %v4480
    %v4701 = vpack.c.b16 %v4489, %v4485
    %v4702 = vpack.c.b16 %v4490, %v4486
    %v4703 = vpack.c.b16 %v4491, %v4487
    %v4704 = vpack.c.b16 %v4492, %v4488
    %v4705 = vpack.c.b16 %v4497, %v4493
    %v4706 = vpack.c.b16 %v4498, %v4494
    %v4707 = vpack.c.b16 %v4499, %v4495
    %v4708 = vpack.c.b16 %v4500, %v4496
    %v4709 = vpack.c.b16 %v4505, %v4501
    %v4710 = vpack.c.b16 %v4506, %v4502
    %v4711 = vpack.c.b16 %v4507, %v4503
    %v4712 = vpack.c.b16 %v4508, %v4504
    %v4713 = vpack.c.b16 %v4513, %v4509
    %v4714 = vpack.c.b16 %v4514, %v4510
    %v4715 = vpack.c.b16 %v4515, %v4511
    %v4716 = vpack.c.b16 %v4516, %v4512
    %v4717 = vpack.c.b16 %v4521, %v4517
    %v4718 = vpack.c.b16 %v4522, %v4518
    %v4719 = vpack.c.b16 %v4523, %v4519
    %v4720 = vpack.c.b16 %v4524, %v4520
    %v4721 = vpack.c.b16 %v4529, %v4525
    %v4722 = vpack.c.b16 %v4530, %v4526
    %v4723 = vpack.c.b16 %v4531, %v4527
    %v4724 = vpack.c.b16 %v4532, %v4528
    %v4725 = vpack.c.b16 %v4537, %v4533
    %v4726 = vpack.c.b16 %v4538, %v4534
    %v4727 = vpack.c.b16 %v4539, %v4535
    %v4728 = vpack.c.b16 %v4540, %v4536
    %v4729 = vpack.c.b16 %v4545, %v4541
    %v4730 = vpack.c.b16 %v4546, %v4542
    %v4731 = vpack.c.b16 %v4547, %v4543
    %v4732 = vpack.c.b16 %v4548, %v4544
    %v4733 = vpack.c.b16 %v4553, %v4549
    %v4734 = vpack.c.b16 %v4554, %v4550
    %v4735 = vpack.c.b16 %v4555, %v4551
    %v4736 = vpack.c.b16 %v4556, %v4552
    %v4737 = vpack.c.b16 %v4561, %v4557
    %v4738 = vpack.c.b16 %v4562, %v4558
    %v4739 = vpack.c.b16 %v4563, %v4559
    %v4740 = vpack.c.b16 %v4564, %v4560
    %v4741 = vpack.c.b16 %v4569, %v4565
    %v4742 = vpack.c.b16 %v4570, %v4566
    %v4743 = vpack.c.b16 %v4571, %v4567
    %v4744 = vpack.c.b16 %v4572, %v4568
    %v4745 = vpack.c.b16 %v4577, %v4573
    %v4746 = vpack.c.b16 %v4578, %v4574
    %v4747 = vpack.c.b16 %v4579, %v4575
    %v4748 = vpack.c.b16 %v4580, %v4576
    %v4749 = vpack.c.b16 %v4585, %v4581
    %v4750 = vpack.c.b16 %v4586, %v4582
    %v4751 = vpack.c.b16 %v4587, %v4583
    %v4752 = vpack.c.b16 %v4588, %v4584
    %v4753 = vpack.c.b16 %v4593, %v4589
    %v4754 = vpack.c.b16 %v4594, %v4590
    %v4755 = vpack.c.b16 %v4595, %v4591
    %v4756 = vpack.c.b16 %v4596, %v4592
    %v4757 = vpack.c.b16 %v4601, %v4597
    %v4758 = vpack.c.b16 %v4602, %v4598
    %v4759 = vpack.c.b16 %v4603, %v4599
    %v4760 = vpack.c.b16 %v4604, %v4600
    %v4761 = vpack.c.b16 %v4609, %v4605
    %v4762 = vpack.c.b16 %v4610, %v4606
    %v4763 = vpack.c.b16 %v4611, %v4607
    %v4764 = vpack.c.b16 %v4612, %v4608
    %v4765 = vpack.c.b16 %v4617, %v4613
    %v4766 = vpack.c.b16 %v4618, %v4614
    %v4767 = vpack.c.b16 %v4619, %v4615
    %v4768 = vpack.c.b16 %v4620, %v4616
    %v4769 = vpack.c.b16 %v4625, %v4621
    %v4770 = vpack.c.b16 %v4626, %v4622
    %v4771 = vpack.c.b16 %v4627, %v4623
    %v4772 = vpack.c.b16 %v4628, %v4624
    %v4773 = vpack.c.b16 %v4633, %v4629
    %v4774 = vpack.c.b16 %v4634, %v4630
    %v4775 = vpack.c.b16 %v4635, %v4631
    %v4776 = vpack.c.b16 %v4636, %v4632
    %v4777 = vpack.c.b16 %v4641, %v4637
    %v4778 = vpack.c.b16 %v4642, %v4638
    %v4779 = vpack.c.b16 %v4643, %v4639
    %v4780 = vpack.c.b16 %v4644, %v4640
    %v4781 = vpack.c.b16 %v4649, %v4645
    %v4782 = vpack.c.b16 %v4650, %v4646
    %v4783 = vpack.c.b16 %v4651, %v4647
    %v4784 = vpack.c.b16 %v4652, %v4648
    %v4785 = vpack.c.b16 %v4657, %v4653
    %v4786 = vpack.c.b16 %v4658, %v4654
    %v4787 = vpack.c.b16 %v4659, %v4655
    %v4788 = vpack.c.b16 %v4660, %v4656
    %4917 = vmatprep.subr.bf16.mxu0 %v4662
    %4918 = vmatpush1.bf16.msra.mxu0 %v4661
    %4919 = vmatprep.subr.bf16.mxu0 %v4666
    %4920 = vmatpush1.bf16.msra.mxu0 %v4665
    %4921 = vmatprep.subr.bf16.mxu0 %v4670
    %4922 = vmatpush1.bf16.msra.mxu0 %v4669
    %4923 = vmatprep.subr.bf16.mxu0 %v4674
    %4924 = vmatpush1.bf16.msra.mxu0 %v4673
    %4925 = vmatprep.subr.bf16.mxu0 %v4678
    %4926 = vmatpush1.bf16.msra.mxu0 %v4677
    %4927 = vmatprep.subr.bf16.mxu0 %v4682
    %4928 = vmatpush1.bf16.msra.mxu0 %v4681
    %4929 = vmatprep.subr.bf16.mxu0 %v4686
    %4930 = vmatpush1.bf16.msra.mxu0 %v4685
    %4931 = vmatprep.subr.bf16.mxu0 %v4690
    %4932 = vmatpush1.bf16.msra.mxu0 %v4689
    %4933 = vmatprep.subr.bf16.mxu0 %v4694
    %4934 = vmatpush1.bf16.msra.mxu0 %v4693
    %4935 = vmatprep.subr.bf16.mxu0 %v4698
    %4936 = vmatpush1.bf16.msra.mxu0 %v4697
    %4937 = vmatprep.subr.bf16.mxu0 %v4702
    %4938 = vmatpush1.bf16.msra.mxu0 %v4701
    %4939 = vmatprep.subr.bf16.mxu0 %v4706
    %4940 = vmatpush1.bf16.msra.mxu0 %v4705
    %4941 = vmatprep.subr.bf16.mxu0 %v4710
    %4942 = vmatpush1.bf16.msra.mxu0 %v4709
    %4943 = vmatprep.subr.bf16.mxu0 %v4714
    %4944 = vmatpush1.bf16.msra.mxu0 %v4713
    %4945 = vmatprep.subr.bf16.mxu0 %v4718
    %4946 = vmatpush1.bf16.msra.mxu0 %v4717
    %4947 = vmatprep.subr.bf16.mxu0 %v4722
    %4948 = vmatpush1.bf16.msra.mxu0 %v4721
    %4949 = vmatprep.mubr.bf16.mxu0 %v4124
    %4950 = vmatmul.mubr.bf16.gmra.mrb[0].mxu0 %v4123
    %v4951 = vpop.f32.mrb[0].mxu0
    %v4952 = vadd.f32 %v4260, %v4951
    %v4953 = vpop.f32.mrb[0].mxu0
    %v4954 = vadd.f32 %v4264, %v4953
    %v4955 = vpop.f32.mrb[0].mxu0
    %v4956 = vadd.f32 %v4260, %v4955
    %v4957 = vpop.f32.mrb[0].mxu0
    %v4958 = vadd.f32 %v4264, %v4957
    %4959 = vdwg.mxu0
    %4960 = vmatprep.subr.bf16.mxu0 %v4726
    %4961 = vmatpush1.bf16.msra.mxu0 %v4725
    %4962 = vmatprep.subr.bf16.mxu0 %v4730
    %4963 = vmatpush1.bf16.msra.mxu0 %v4729
    %4964 = vmatprep.subr.bf16.mxu0 %v4734
    %4965 = vmatpush1.bf16.msra.mxu0 %v4733
    %4966 = vmatprep.subr.bf16.mxu0 %v4738
    %4967 = vmatpush1.bf16.msra.mxu0 %v4737
    %4968 = vmatprep.subr.bf16.mxu0 %v4742
    %4969 = vmatpush1.bf16.msra.mxu0 %v4741
    %4970 = vmatprep.subr.bf16.mxu0 %v4746
    %4971 = vmatpush1.bf16.msra.mxu0 %v4745
    %4972 = vmatprep.subr.bf16.mxu0 %v4750
    %4973 = vmatpush1.bf16.msra.mxu0 %v4749
    %4974 = vmatprep.subr.bf16.mxu0 %v4754
    %4975 = vmatpush1.bf16.msra.mxu0 %v4753
    %4976 = vmatprep.subr.bf16.mxu0 %v4758
    %4977 = vmatpush1.bf16.msra.mxu0 %v4757
    %4978 = vmatprep.subr.bf16.mxu0 %v4762
    %4979 = vmatpush1.bf16.msra.mxu0 %v4761
    %4980 = vmatprep.subr.bf16.mxu0 %v4766
    %4981 = vmatpush1.bf16.msra.mxu0 %v4765
    %4982 = vmatprep.subr.bf16.mxu0 %v4770
    %4983 = vmatpush1.bf16.msra.mxu0 %v4769
    %4984 = vmatprep.subr.bf16.mxu0 %v4774
    %4985 = vmatpush1.bf16.msra.mxu0 %v4773
    %4986 = vmatprep.subr.bf16.mxu0 %v4778
    %4987 = vmatpush1.bf16.msra.mxu0 %v4777
    %4988 = vmatprep.subr.bf16.mxu0 %v4782
    %4989 = vmatpush1.bf16.msra.mxu0 %v4781
    %4990 = vmatprep.subr.bf16.mxu0 %v4786
    %4991 = vmatpush1.bf16.msra.mxu0 %v4785
    %4992 = vmatprep.mubr.bf16.mxu0 %v4126
    %4993 = vmatmul.mubr.bf16.gmra.mrb[0].mxu0 %v4125
    %v4994 = vpop.f32.mrb[0].mxu0
    %v4995 = vadd.f32 %v4952, %v4994
    %v4996 = vpop.f32.mrb[0].mxu0
    %v4997 = vadd.f32 %v4954, %v4996
    %v4998 = vpop.f32.mrb[0].mxu0
    %v4999 = vadd.f32 %v4956, %v4998
    %v5000 = vpop.f32.mrb[0].mxu0
    %v5001 = vadd.f32 %v4958, %v5000
    %5002 = vdwg.mxu0
    %5003 = vmatprep.subr.bf16.mxu0 %v4664
    %5004 = vmatpush1.bf16.msra.mxu0 %v4663
    %5005 = vmatprep.subr.bf16.mxu0 %v4668
    %5006 = vmatpush1.bf16.msra.mxu0 %v4667
    %5007 = vmatprep.subr.bf16.mxu0 %v4672
    %5008 = vmatpush1.bf16.msra.mxu0 %v4671
    %5009 = vmatprep.subr.bf16.mxu0 %v4676
    %5010 = vmatpush1.bf16.msra.mxu0 %v4675
    %5011 = vmatprep.subr.bf16.mxu0 %v4680
    %5012 = vmatpush1.bf16.msra.mxu0 %v4679
    %5013 = vmatprep.subr.bf16.mxu0 %v4684
    %5014 = vmatpush1.bf16.msra.mxu0 %v4683
    %5015 = vmatprep.subr.bf16.mxu0 %v4688
    %5016 = vmatpush1.bf16.msra.mxu0 %v4687
    %5017 = vmatprep.subr.bf16.mxu0 %v4692
    %5018 = vmatpush1.bf16.msra.mxu0 %v4691
    %5019 = vmatprep.subr.bf16.mxu0 %v4696
    %5020 = vmatpush1.bf16.msra.mxu0 %v4695
    %5021 = vmatprep.subr.bf16.mxu0 %v4700
    %5022 = vmatpush1.bf16.msra.mxu0 %v4699
    %5023 = vmatprep.subr.bf16.mxu0 %v4704
    %5024 = vmatpush1.bf16.msra.mxu0 %v4703
    %5025 = vmatprep.subr.bf16.mxu0 %v4708
    %5026 = vmatpush1.bf16.msra.mxu0 %v4707
    %5027 = vmatprep.subr.bf16.mxu0 %v4712
    %5028 = vmatpush1.bf16.msra.mxu0 %v4711
    %5029 = vmatprep.subr.bf16.mxu0 %v4716
    %5030 = vmatpush1.bf16.msra.mxu0 %v4715
    %5031 = vmatprep.subr.bf16.mxu0 %v4720
    %5032 = vmatpush1.bf16.msra.mxu0 %v4719
    %5033 = vmatprep.subr.bf16.mxu0 %v4724
    %5034 = vmatpush1.bf16.msra.mxu0 %v4723
    %5035 = vmatprep.mubr.bf16.mxu0 %v4124
    %5036 = vmatmul.mubr.bf16.gmra.mrb[0].mxu0 %v4123
    %v5037 = vpop.f32.mrb[0].mxu0
    %v5038 = vadd.f32 %v4268, %v5037
    %v5039 = vpop.f32.mrb[0].mxu0
    %v5040 = vadd.f32 %v4272, %v5039
    %v5041 = vpop.f32.mrb[0].mxu0
    %v5042 = vadd.f32 %v4268, %v5041
    %v5043 = vpop.f32.mrb[0].mxu0
    %v5044 = vadd.f32 %v4272, %v5043
    %5045 = vdwg.mxu0
    %5046 = vmatprep.subr.bf16.mxu0 %v4728
    %5047 = vmatpush1.bf16.msra.mxu0 %v4727
    %5048 = vmatprep.subr.bf16.mxu0 %v4732
    %5049 = vmatpush1.bf16.msra.mxu0 %v4731
    %5050 = vmatprep.subr.bf16.mxu0 %v4736
    %5051 = vmatpush1.bf16.msra.mxu0 %v4735
    %5052 = vmatprep.subr.bf16.mxu0 %v4740
    %5053 = vmatpush1.bf16.msra.mxu0 %v4739
    %5054 = vmatprep.subr.bf16.mxu0 %v4744
    %5055 = vmatpush1.bf16.msra.mxu0 %v4743
    %5056 = vmatprep.subr.bf16.mxu0 %v4748
    %5057 = vmatpush1.bf16.msra.mxu0 %v4747
    %5058 = vmatprep.subr.bf16.mxu0 %v4752
    %5059 = vmatpush1.bf16.msra.mxu0 %v4751
    %5060 = vmatprep.subr.bf16.mxu0 %v4756
    %5061 = vmatpush1.bf16.msra.mxu0 %v4755
    %5062 = vmatprep.subr.bf16.mxu0 %v4760
    %5063 = vmatpush1.bf16.msra.mxu0 %v4759
    %5064 = vmatprep.subr.bf16.mxu0 %v4764
    %5065 = vmatpush1.bf16.msra.mxu0 %v4763
    %5066 = vmatprep.subr.bf16.mxu0 %v4768
    %5067 = vmatpush1.bf16.msra.mxu0 %v4767
    %5068 = vmatprep.subr.bf16.mxu0 %v4772
    %5069 = vmatpush1.bf16.msra.mxu0 %v4771
    %5070 = vmatprep.subr.bf16.mxu0 %v4776
    %5071 = vmatpush1.bf16.msra.mxu0 %v4775
    %5072 = vmatprep.subr.bf16.mxu0 %v4780
    %5073 = vmatpush1.bf16.msra.mxu0 %v4779
    %5074 = vmatprep.subr.bf16.mxu0 %v4784
    %5075 = vmatpush1.bf16.msra.mxu0 %v4783
    %5076 = vmatprep.subr.bf16.mxu0 %v4788
    %5077 = vmatpush1.bf16.msra.mxu0 %v4787
    %5078 = vmatprep.mubr.bf16.mxu0 %v4126
    %5079 = vmatmul.mubr.bf16.gmra.mrb[0].mxu0 %v4125
    %v5080 = vpop.f32.mrb[0].mxu0
    %v5081 = vadd.f32 %v5038, %v5080
    %v5082 = vpop.f32.mrb[0].mxu0
    %v5083 = vadd.f32 %v5040, %v5082
    %v5084 = vpop.f32.mrb[0].mxu0
    %v5085 = vadd.f32 %v5042, %v5084
    %v5086 = vpop.f32.mrb[0].mxu0
    %v5087 = vadd.f32 %v5044, %v5086
    %5088 = vdwg.mxu0
    %v5089 = vadd.f32 %v757, %v4995
    %v5090 = vadd.f32 %v758, %v4997
    %v5091 = vadd.f32 %v759, %v5081
    %v5092 = vadd.f32 %v760, %v5083
    %v5093 = vadd.f32 %v761, %v4999
    %v5094 = vadd.f32 %v762, %v5001
    %v5095 = vadd.f32 %v763, %v5085
    %v5096 = vadd.f32 %v764, %v5087
    %v5097 = vld [vmem:[%s13] sm:$0xf]
    %v5099 = vlaneseq
    %v5100 = vshrl.u32 %v5099, 7
    %v5101 = vsub.s32 0, %v5100
    %v5102 = vrot.slane %v5097, %v5101
    %v5103 = vlaneseq
    %v5104 = vshrl.u32 %v5103, 7
    %v5105 = vsub.s32 1, %v5104
    %v5106 = vrot.slane %v5097, %v5105
    %v5107 = vlaneseq
    %v5108 = vshrl.u32 %v5107, 7
    %v5109 = vsub.s32 2, %v5108
    %v5110 = vrot.slane %v5097, %v5109
    %v5111 = vlaneseq
    %v5112 = vshrl.u32 %v5111, 7
    %v5113 = vsub.s32 3, %v5112
    %v5114 = vrot.slane %v5097, %v5113
    %v5119 = vmul.f32 %v5089, %v5102
    %v5120 = vmul.f32 %v5090, %v5106
    %v5121 = vmul.f32 %v5091, %v5110
    %v5122 = vmul.f32 %v5092, %v5114
    %v5123 = vmul.f32 %v5093, %v5102
    %v5124 = vmul.f32 %v5094, %v5106
    %v5125 = vmul.f32 %v5095, %v5110
    %v5126 = vmul.f32 %v5096, %v5114
    %v5127 = vadd.f32 %v5119, %v5120
    %v5128 = vadd.f32 %v5127, %v5121
    %v5129 = vadd.f32 %v5128, %v5122
    %5130 = vadd.xlane.f32.xlu0 %v5129
    %v5131 = vpop.xlane.xlu0 %5130
    %v5132 = vadd.f32 %v5123, %v5124
    %v5133 = vadd.f32 %v5132, %v5125
    %v5134 = vadd.f32 %v5133, %v5126
    %5135 = vadd.xlane.f32.xlu0 %v5134
    %v5136 = vpop.xlane.xlu0 %5135
    %v5137 = vld [vmem:[#allocation2] sm:$0x1]
    %v5139 = vlaneseq
    %v5140 = vshrl.u32 %v5139, 7
    %v5141 = vsub.s32 0, %v5140
    %v5142 = vrot.slane %v5137, %v5141
    %5143 = vset.pattern.permute.xlu0 0
    %5144 = vperm.xlu0 %5143, %v5142
    %v5145 = vpop.permute.xlu0 %5144
    %v5147 = vadd.f32 %v5131, %v5145
    %v5148 = vadd.f32 %v5136, %v5145
    %v5151 = vlaneseq
    %v5152 = vand.u32 %v5151, 127
    %v5153 = vlaneseq
    %v5154 = vshrl.u32 %v5153, 7
    %v5155 = vsub.s32 %v5152, %v5154
    %v5156 = vrot.slane %v5147, %v5155
    %v5157 = vlaneseq
    %v5158 = vshrl.u32 %v5157, 7
    %v5159 = vsub.s32 %v5152, %v5158
    %v5160 = vrot.slane %v5148, %v5159
    %vm5161 = vcmask 1041409
    %v5162 = vsel %vm5161, %v5160, %v5156
    %vm5164 = vcmask 58368
    %5165 = vst.msk [vmem:[#allocation15] sm:$0x3] %vm5164, %v5162
    // Predicated region
    $region90: #{tpu_custom_call.1} parent=1 // pred_check
      _
    $region91: #{tpu_custom_call.1} parent=1 // pred_check_branch
      %5167 = sbr.rel (0) target = $region93
    $region92: #{tpu_custom_call.1} parent=1 // pred_region
      %s5169 = ssub.s32 32, 32
      %5170 = vsyncadd [#allocation5], %s5169
      %s5172 = sshll.u32 [#allocation15], 4
      %s5173 = int_to_ptr.vmem [resolvable:$true] %s5172
      %5175 = dma.vmem_to_hbm [thread:$0]  %s5173, 32, %s15, [#allocation5]
    $region93: #{tpu_custom_call.1} parent=1 // pred_fallthru
      _
    // Predicated region
    $region94: #{tpu_custom_call.1} parent=1 // pred_check
      _
    $region95: #{tpu_custom_call.1} parent=1 // pred_check_branch
      %5177 = sbr.rel (0) target = $region97
    $region96: #{tpu_custom_call.1} parent=1 // pred_region
      %5178 = dma.done [#allocation5], 32
    $region97: #{tpu_custom_call.1} parent=1 // pred_fallthru
      _
    %5179 = vsyncpa [#allocation4], 1
    %5180 = vsyncpa [#allocation7], 1
    %5181 = vsyncpa [#allocation10], 1
    %5182 = vsyncpa [#allocation13], 1
    %5183 = vsyncpa [#allocation5], 1

</llo_original>
